<compile_context>
chip_gen: v5e
topology: v5e:2x2
jax: 0.10.0
libtpu: 0.0.40
codegen_flags: <defaults>
</compile_context>

<pallas_src>
import functools

import jax
import jax.numpy as jnp
from jax.experimental import pallas as pl
from jax.experimental.pallas import tpu as pltpu

EMBED_DIM = 15
STATE = 28
N_BOARD = 11          # first 11 positions -> embed_board, remaining 17 -> embed_hand
VOCAB = 14
ACTION = 200
LIN = [800, 1000, 800]

# Lane-dense padded dims (multiples of 128).
K_OH = STATE * VOCAB          # 392 meaningful one-hot columns
K_PAD = 512                   # padded one-hot width (contraction dim of layer 1)
E_DIM = STATE * EMBED_DIM     # 420
E_PAD = 512
H1_PAD = 896                  # 800  -> 896
H2_PAD = 1024                 # 1000 -> 1024
H3_PAD = 896                  # 800  -> 896
OUT_PAD = 256                 # 200  -> 256
IDX_PAD = 128                 # lane-padded width of the raw index input

TILE_B_MAX = 512


def _round_up(n, m):
    return ((n + m - 1) // m) * m


def dqn_kernel(idx_ref, ex_ref, vcol_ref,
               w1_ref, b1_ref, w2_ref, b2_ref,
               w3_ref, b3_ref, w4_ref, b4_ref,
               o_ref):
    f32 = jnp.float32
    bf16 = jnp.bfloat16
    # In-kernel one-hot: replicate each token index (values 0..13, exact in bf16) to
    # its 14 one-hot columns via a tiny MXU matmul, then compare against the
    # per-column target value.  Padded columns have target -1 -> stay exactly zero.
    rep = jnp.dot(idx_ref[...], ex_ref[...], preferred_element_type=f32)   # (tb, 512)
    oh = (rep == vcol_ref[...]).astype(bf16)                               # (tb, 512)
    # Layer 1 has the embedding folded in: W1' = blockdiag(emb) @ W1 (precomputed).
    h = jnp.maximum(
        jnp.dot(oh, w1_ref[...], preferred_element_type=f32) + b1_ref[...], 0.0)
    h = jnp.maximum(
        jnp.dot(h.astype(bf16), w2_ref[...], preferred_element_type=f32)
        + b2_ref[...], 0.0)
    h = jnp.maximum(
        jnp.dot(h.astype(bf16), w3_ref[...], preferred_element_type=f32)
        + b3_ref[...], 0.0)
    o_ref[...] = (
        jnp.dot(h.astype(bf16), w4_ref[...], preferred_element_type=f32)
        + b4_ref[...])


def init_params(key):
    """Deterministic synthetic parameters with the same shapes as the PyTorch module."""
    ks = jax.random.split(key, 10)

    def lin(kw, kb, fan_in, fan_out):
        bound = 1.0 / (fan_in ** 0.5)
        w = jax.random.uniform(kw, (fan_in, fan_out), jnp.float32, -bound, bound)
        b = jax.random.uniform(kb, (1, fan_out), jnp.float32, -bound, bound)
        return w, b

    emb_board = jax.random.normal(ks[0], (VOCAB, EMBED_DIM), jnp.float32)
    emb_hand = jax.random.normal(ks[1], (VOCAB, EMBED_DIM), jnp.float32)
    w1, b1 = lin(ks[2], ks[3], STATE * EMBED_DIM, LIN[0])
    w2, b2 = lin(ks[4], ks[5], LIN[0], LIN[1])
    w3, b3 = lin(ks[6], ks[7], LIN[1], LIN[2])
    w4, b4 = lin(ks[8], ks[9], LIN[2], ACTION)
    return dict(emb_board=emb_board, emb_hand=emb_hand,
                w1=w1, b1=b1, w2=w2, b2=b2, w3=w3, b3=b3, w4=w4, b4=b4)


def prepare_kernel_params(params):
    """Fold the block-diagonal embedding into W1, zero-pad all dims to 128 multiples,
    cast matmul weights to bf16 (biases stay f32; added after the f32 accumulate),
    and build the in-kernel one-hot constants."""
    bf16 = jnp.bfloat16

    # Block-diagonal (one-hot -> concatenated embeddings) matrix, f32.
    we = jnp.zeros((K_PAD, E_PAD), jnp.float32)
    for p in range(STATE):
        tab = params["emb_board"] if p < N_BOARD else params["emb_hand"]
        we = we.at[p * VOCAB:(p + 1) * VOCAB,
                   p * EMBED_DIM:(p + 1) * EMBED_DIM].set(tab)

    def pad2(a, rows, cols):
        return jnp.pad(a, ((0, rows - a.shape[0]), (0, cols - a.shape[1])))

    # Embedding fold: W1' = We @ W1 (f32 compute, then one bf16 cast).
    w1_pad = pad2(params["w1"], E_PAD, H1_PAD)
    w1p = jnp.dot(we, w1_pad, precision=jax.lax.Precision.HIGHEST)   # (512, 896) f32

    # In-kernel one-hot constants: expansion matrix Ex[p, c] = 1 iff column c belongs
    # to position p, and per-column target value (c % 14, or -1 for padded columns).
    col = jnp.arange(K_PAD)
    valid = col < K_OH
    pcol = col // VOCAB
    vcol = col % VOCAB
    ex = ((jnp.arange(IDX_PAD)[:, None] == pcol[None, :])
          & valid[None, :]).astype(bf16)                              # (128, 512)
    vrow = jnp.where(valid, vcol, -1).astype(jnp.float32).reshape(1, K_PAD)

    return dict(
        ex=ex, vcol=vrow,
        w1p=w1p.astype(bf16),
        b1=pad2(params["b1"], 1, H1_PAD),
        w2=pad2(params["w2"], H1_PAD, H2_PAD).astype(bf16),
        b2=pad2(params["b2"], 1, H2_PAD),
        w3=pad2(params["w3"], H2_PAD, H3_PAD).astype(bf16),
        b3=pad2(params["b3"], 1, H3_PAD),
        w4=pad2(params["w4"], H3_PAD, OUT_PAD).astype(bf16),
        b4=pad2(params["b4"], 1, OUT_PAD),
    )


@jax.jit
def dqn_forward(x, kp):
    x = x.reshape(-1, STATE).astype(jnp.int32)
    b = x.shape[0]

    # Batch tiling: at most TILE_B_MAX rows per grid step, rounded to 16 sublanes
    # (bf16-native 16x128 packing, unmasked tiles).  Force grid_n >= 2 whenever the
    # batch is big enough for two tiles so the "parallel" axis shards across both
    # v7x TensorCores.
    grid_n = max(1, -(-b // TILE_B_MAX))
    if b >= 32:
        grid_n = max(grid_n, 2)
    tile_b = _round_up(max(1, -(-b // grid_n)), 16)
    b_pad = tile_b * grid_n

    # Only the raw indices travel to the kernel (lane-padded, bf16 — values 0..13
    # are exact); the one-hot is built in-kernel.
    idx = jnp.pad(x.astype(jnp.bfloat16),
                  ((0, b_pad - b), (0, IDX_PAD - STATE)))

    def wspec(shape):
        # Constant index map -> block stays VMEM-resident across the batch grid.
        # TODO(synk): single-buffer these (pl.Buffered(1)) if VMEM headroom ever gets
        # tight; at ~10 MiB double-buffered they fit comfortably under the 48 MiB cap.
        return pl.BlockSpec(shape, lambda i: (0, 0))

    out = pl.pallas_call(
        dqn_kernel,
        out_shape=jax.ShapeDtypeStruct((b_pad, OUT_PAD), jnp.float32),
        grid=(grid_n,),
        in_specs=[
            pl.BlockSpec((tile_b, IDX_PAD), lambda i: (i, 0)),
            wspec((IDX_PAD, K_PAD)), wspec((1, K_PAD)),
            wspec((K_PAD, H1_PAD)), wspec((1, H1_PAD)),
            wspec((H1_PAD, H2_PAD)), wspec((1, H2_PAD)),
            wspec((H2_PAD, H3_PAD)), wspec((1, H3_PAD)),
            wspec((H3_PAD, OUT_PAD)), wspec((1, OUT_PAD)),
        ],
        out_specs=pl.BlockSpec((tile_b, OUT_PAD), lambda i: (i, 0)),
        compiler_params=pltpu.CompilerParams(
            dimension_semantics=("parallel",),
            vmem_limit_bytes=48 * 1024 * 1024),
    )(idx, kp["ex"], kp["vcol"], kp["w1p"], kp["b1"], kp["w2"], kp["b2"],
      kp["w3"], kp["b3"], kp["w4"], kp["b4"])

    return out[:b, :ACTION]


def dqn_reference_f32(x, params):
    """Pure-JAX f32 reference matching the PyTorch forward."""
    x = x.reshape(-1, STATE)
    board = params["emb_board"][x[:, :N_BOARD]]   # (B, 11, 15)
    hand = params["emb_hand"][x[:, N_BOARD:]]     # (B, 17, 15)
    e = jnp.concatenate([board, hand], axis=1).reshape(x.shape[0], E_DIM)
    mm = functools.partial(jnp.dot, precision=jax.lax.Precision.HIGHEST)
    h = jnp.maximum(mm(e, params["w1"]) + params["b1"], 0.0)
    h = jnp.maximum(mm(h, params["w2"]) + params["b2"], 0.0)
    h = jnp.maximum(mm(h, params["w3"]) + params["b3"], 0.0)
    return mm(h, params["w4"]) + params["b4"]


def dqn_reference_bf16(x, kp):
    """Numerics-matched reference: same bf16 weights / f32 accumulation as the kernel,
    with the folded layer-1 computed as an explicit row gather-sum (independent check
    of the in-kernel one-hot construction)."""
    f32 = jnp.float32
    bf16 = jnp.bfloat16
    x = x.reshape(-1, STATE)
    w1p = kp["w1p"].astype(f32)                            # (512, 896)
    row_ids = jnp.arange(STATE)[None, :] * VOCAB + x       # (B, 28)
    h = jnp.maximum(w1p[row_ids].sum(axis=1) + kp["b1"], 0.0)

    def layer(h, w, b, relu):
        y = jnp.dot(h.astype(bf16), w, preferred_element_type=f32) + b
        return jnp.maximum(y, 0.0) if relu else y

    h = layer(h, kp["w2"], kp["b2"], True)
    h = layer(h, kp["w3"], kp["b3"], True)
    y = layer(h, kp["w4"], kp["b4"], False)
    return y[:, :ACTION]


if __name__ == "__main__":
    key = jax.random.PRNGKey(0)
    k_param, k_x1, k_x2 = jax.random.split(key, 3)

    params = init_params(k_param)
    kp = prepare_kernel_params(params)

    # Small-batch check (B=2), as in the module spec.
    x_small = jax.random.randint(k_x1, (2, STATE), 0, VOCAB, dtype=jnp.int32)
    out_small = jax.block_until_ready(dqn_forward(x_small, kp))
    assert out_small.shape == (2, ACTION), out_small.shape

    ref_bf16 = dqn_reference_bf16(x_small, kp)
    ref_f32 = dqn_reference_f32(x_small, params)
    assert jnp.allclose(out_small, ref_bf16, rtol=2e-3, atol=2e-3), (
        float(jnp.max(jnp.abs(out_small - ref_bf16))))
    assert jnp.allclose(out_small, ref_f32, rtol=5e-2, atol=5e-2), (
        float(jnp.max(jnp.abs(out_small - ref_f32))))

    # Multi-tile grid check (B=300 -> grid of 2 tiles of 160 rows; exercises the
    # forced two-tile split, padding, and output slicing).
    x_big = jax.random.randint(k_x2, (300, STATE), 0, VOCAB, dtype=jnp.int32)
    out_big = jax.block_until_ready(dqn_forward(x_big, kp))
    assert out_big.shape == (300, ACTION), out_big.shape
    ref_big = dqn_reference_bf16(x_big, kp)
    assert jnp.allclose(out_big, ref_big, rtol=2e-3, atol=2e-3), (
        float(jnp.max(jnp.abs(out_big - ref_big))))

    print("KERNEL_OK")
</pallas_src>

<mosaic_0001>
module attributes {stable_mosaic.version = 11 : i64} {
  func.func @dqn_kernel(%arg0: i32, %arg1: memref<16x128xbf16, #tpu.memory_space<vmem>>, %arg2: memref<128x512xbf16, #tpu.memory_space<vmem>>, %arg3: memref<1x512xf32, #tpu.memory_space<vmem>>, %arg4: memref<512x896xbf16, #tpu.memory_space<vmem>>, %arg5: memref<1x896xf32, #tpu.memory_space<vmem>>, %arg6: memref<896x1024xbf16, #tpu.memory_space<vmem>>, %arg7: memref<1x1024xf32, #tpu.memory_space<vmem>>, %arg8: memref<1024x896xbf16, #tpu.memory_space<vmem>>, %arg9: memref<1x896xf32, #tpu.memory_space<vmem>>, %arg10: memref<896x256xbf16, #tpu.memory_space<vmem>>, %arg11: memref<1x256xf32, #tpu.memory_space<vmem>>, %arg12: memref<16x256xf32, #tpu.memory_space<vmem>>) attributes {dimension_semantics = [#tpu.dimension_semantics<parallel>], iteration_bounds = array<i64: 1>, scalar_prefetch = 0 : i64, scratch_operands = 0 : i64, tpu.core_type = #tpu.core_type<tc>, window_params = [{transform_indices = @transform_0, window_bounds = array<i64: 16, 128>}, {pipeline_mode = #tpu.pipeline_mode<synchronous>, transform_indices = @transform_1, window_bounds = array<i64: 128, 512>}, {pipeline_mode = #tpu.pipeline_mode<synchronous>, transform_indices = @transform_2, window_bounds = array<i64: 1, 512>}, {pipeline_mode = #tpu.pipeline_mode<synchronous>, transform_indices = @transform_3, window_bounds = array<i64: 512, 896>}, {pipeline_mode = #tpu.pipeline_mode<synchronous>, transform_indices = @transform_4, window_bounds = array<i64: 1, 896>}, {pipeline_mode = #tpu.pipeline_mode<synchronous>, transform_indices = @transform_5, window_bounds = array<i64: 896, 1024>}, {pipeline_mode = #tpu.pipeline_mode<synchronous>, transform_indices = @transform_6, window_bounds = array<i64: 1, 1024>}, {pipeline_mode = #tpu.pipeline_mode<synchronous>, transform_indices = @transform_7, window_bounds = array<i64: 1024, 896>}, {pipeline_mode = #tpu.pipeline_mode<synchronous>, transform_indices = @transform_8, window_bounds = array<i64: 1, 896>}, {pipeline_mode = #tpu.pipeline_mode<synchronous>, transform_indices = @transform_9, window_bounds = array<i64: 896, 256>}, {pipeline_mode = #tpu.pipeline_mode<synchronous>, transform_indices = @transform_10, window_bounds = array<i64: 1, 256>}, {transform_indices = @transform_11, window_bounds = array<i64: 16, 256>}]} {
    %c0 = arith.constant 0 : index
    %c0_0 = arith.constant 0 : index
    %0 = vector.load %arg1[%c0, %c0_0] : memref<16x128xbf16, #tpu.memory_space<vmem>>, vector<16x128xbf16>
    %c0_1 = arith.constant 0 : index
    %c0_2 = arith.constant 0 : index
    %1 = vector.load %arg2[%c0_1, %c0_2] : memref<128x512xbf16, #tpu.memory_space<vmem>>, vector<128x512xbf16>
    %cst = arith.constant dense<0.000000e+00> : vector<16x512xf32>
    %2 = tpu.matmul %0, %1, %cst {dimension_numbers = #tpu.dot_dimension_numbers<[1], [0], [0], [1], [0, 0, 1, 1], [], []>} : vector<16x128xbf16>, vector<128x512xbf16>, vector<16x512xf32> -> vector<16x512xf32>
    %c0_3 = arith.constant 0 : index
    %c0_4 = arith.constant 0 : index
    %3 = vector.load %arg3[%c0_3, %c0_4] : memref<1x512xf32, #tpu.memory_space<vmem>>, vector<1x512xf32>
    %4 = vector.broadcast %3 : vector<1x512xf32> to vector<16x512xf32>
    %5 = arith.cmpf oeq, %2, %4 : vector<16x512xf32>
    %6 = arith.extui %5 : vector<16x512xi1> to vector<16x512xi32>
    %7 = arith.sitofp %6 : vector<16x512xi32> to vector<16x512xf32>
    %8 = arith.truncf %7 : vector<16x512xf32> to vector<16x512xbf16>
    %c0_5 = arith.constant 0 : index
    %c0_6 = arith.constant 0 : index
    %9 = vector.load %arg4[%c0_5, %c0_6] : memref<512x896xbf16, #tpu.memory_space<vmem>>, vector<512x896xbf16>
    %cst_7 = arith.constant dense<0.000000e+00> : vector<16x896xf32>
    %10 = tpu.matmul %8, %9, %cst_7 {dimension_numbers = #tpu.dot_dimension_numbers<[1], [0], [0], [1], [0, 0, 1, 1], [], []>} : vector<16x512xbf16>, vector<512x896xbf16>, vector<16x896xf32> -> vector<16x896xf32>
    %c0_8 = arith.constant 0 : index
    %c0_9 = arith.constant 0 : index
    %11 = vector.load %arg5[%c0_8, %c0_9] : memref<1x896xf32, #tpu.memory_space<vmem>>, vector<1x896xf32>
    %12 = vector.broadcast %11 : vector<1x896xf32> to vector<16x896xf32>
    %13 = arith.addf %10, %12 : vector<16x896xf32>
    %cst_10 = arith.constant 0.000000e+00 : f32
    %14 = vector.broadcast %cst_10 : f32 to vector<16x896xf32>
    %15 = arith.maximumf %13, %14 : vector<16x896xf32>
    %16 = arith.truncf %15 : vector<16x896xf32> to vector<16x896xbf16>
    %c0_11 = arith.constant 0 : index
    %c0_12 = arith.constant 0 : index
    %17 = vector.load %arg6[%c0_11, %c0_12] : memref<896x1024xbf16, #tpu.memory_space<vmem>>, vector<896x1024xbf16>
    %cst_13 = arith.constant dense<0.000000e+00> : vector<16x1024xf32>
    %18 = tpu.matmul %16, %17, %cst_13 {dimension_numbers = #tpu.dot_dimension_numbers<[1], [0], [0], [1], [0, 0, 1, 1], [], []>} : vector<16x896xbf16>, vector<896x1024xbf16>, vector<16x1024xf32> -> vector<16x1024xf32>
    %c0_14 = arith.constant 0 : index
    %c0_15 = arith.constant 0 : index
    %19 = vector.load %arg7[%c0_14, %c0_15] : memref<1x1024xf32, #tpu.memory_space<vmem>>, vector<1x1024xf32>
    %20 = vector.broadcast %19 : vector<1x1024xf32> to vector<16x1024xf32>
    %21 = arith.addf %18, %20 : vector<16x1024xf32>
    %cst_16 = arith.constant 0.000000e+00 : f32
    %22 = vector.broadcast %cst_16 : f32 to vector<16x1024xf32>
    %23 = arith.maximumf %21, %22 : vector<16x1024xf32>
    %24 = arith.truncf %23 : vector<16x1024xf32> to vector<16x1024xbf16>
    %c0_17 = arith.constant 0 : index
    %c0_18 = arith.constant 0 : index
    %25 = vector.load %arg8[%c0_17, %c0_18] : memref<1024x896xbf16, #tpu.memory_space<vmem>>, vector<1024x896xbf16>
    %cst_19 = arith.constant dense<0.000000e+00> : vector<16x896xf32>
    %26 = tpu.matmul %24, %25, %cst_19 {dimension_numbers = #tpu.dot_dimension_numbers<[1], [0], [0], [1], [0, 0, 1, 1], [], []>} : vector<16x1024xbf16>, vector<1024x896xbf16>, vector<16x896xf32> -> vector<16x896xf32>
    %c0_20 = arith.constant 0 : index
    %c0_21 = arith.constant 0 : index
    %27 = vector.load %arg9[%c0_20, %c0_21] : memref<1x896xf32, #tpu.memory_space<vmem>>, vector<1x896xf32>
    %28 = vector.broadcast %27 : vector<1x896xf32> to vector<16x896xf32>
    %29 = arith.addf %26, %28 : vector<16x896xf32>
    %cst_22 = arith.constant 0.000000e+00 : f32
    %30 = vector.broadcast %cst_22 : f32 to vector<16x896xf32>
    %31 = arith.maximumf %29, %30 : vector<16x896xf32>
    %32 = arith.truncf %31 : vector<16x896xf32> to vector<16x896xbf16>
    %c0_23 = arith.constant 0 : index
    %c0_24 = arith.constant 0 : index
    %33 = vector.load %arg10[%c0_23, %c0_24] : memref<896x256xbf16, #tpu.memory_space<vmem>>, vector<896x256xbf16>
    %cst_25 = arith.constant dense<0.000000e+00> : vector<16x256xf32>
    %34 = tpu.matmul %32, %33, %cst_25 {dimension_numbers = #tpu.dot_dimension_numbers<[1], [0], [0], [1], [0, 0, 1, 1], [], []>} : vector<16x896xbf16>, vector<896x256xbf16>, vector<16x256xf32> -> vector<16x256xf32>
    %c0_26 = arith.constant 0 : index
    %c0_27 = arith.constant 0 : index
    %35 = vector.load %arg11[%c0_26, %c0_27] : memref<1x256xf32, #tpu.memory_space<vmem>>, vector<1x256xf32>
    %36 = vector.broadcast %35 : vector<1x256xf32> to vector<16x256xf32>
    %37 = arith.addf %34, %36 : vector<16x256xf32>
    %c0_28 = arith.constant 0 : index
    %c0_29 = arith.constant 0 : index
    %38 = vector.load %arg12[%c0_28, %c0_29] : memref<16x256xf32, #tpu.memory_space<vmem>>, vector<16x256xf32>
    tpu.vector_store %arg12[%c0_28, %c0_29], %37 {strides = array<i32>} : memref<16x256xf32, #tpu.memory_space<vmem>>, vector<16x256xf32>,
    return
  }
  func.func @transform_0(%arg0: i32) -> (i32, i32) {
    %c0_i32 = arith.constant 0 : i32
    %c0_i32_0 = arith.constant 0 : i32
    return %arg0, %c0_i32 : i32, i32
  }
  func.func @transform_1(%arg0: i32) -> (i32, i32) {
    %c0_i32 = arith.constant 0 : i32
    %c0_i32_0 = arith.constant 0 : i32
    %c0_i32_1 = arith.constant 0 : i32
    return %c0_i32, %c0_i32_0 : i32, i32
  }
  func.func @transform_2(%arg0: i32) -> (i32, i32) {
    %c0_i32 = arith.constant 0 : i32
    %c0_i32_0 = arith.constant 0 : i32
    %c0_i32_1 = arith.constant 0 : i32
    return %c0_i32, %c0_i32_0 : i32, i32
  }
  func.func @transform_3(%arg0: i32) -> (i32, i32) {
    %c0_i32 = arith.constant 0 : i32
    %c0_i32_0 = arith.constant 0 : i32
    %c0_i32_1 = arith.constant 0 : i32
    return %c0_i32, %c0_i32_0 : i32, i32
  }
  func.func @transform_4(%arg0: i32) -> (i32, i32) {
    %c0_i32 = arith.constant 0 : i32
    %c0_i32_0 = arith.constant 0 : i32
    %c0_i32_1 = arith.constant 0 : i32
    return %c0_i32, %c0_i32_0 : i32, i32
  }
  func.func @transform_5(%arg0: i32) -> (i32, i32) {
    %c0_i32 = arith.constant 0 : i32
    %c0_i32_0 = arith.constant 0 : i32
    %c0_i32_1 = arith.constant 0 : i32
    return %c0_i32, %c0_i32_0 : i32, i32
  }
  func.func @transform_6(%arg0: i32) -> (i32, i32) {
    %c0_i32 = arith.constant 0 : i32
    %c0_i32_0 = arith.constant 0 : i32
    %c0_i32_1 = arith.constant 0 : i32
    return %c0_i32, %c0_i32_0 : i32, i32
  }
  func.func @transform_7(%arg0: i32) -> (i32, i32) {
    %c0_i32 = arith.constant 0 : i32
    %c0_i32_0 = arith.constant 0 : i32
    %c0_i32_1 = arith.constant 0 : i32
    return %c0_i32, %c0_i32_0 : i32, i32
  }
  func.func @transform_8(%arg0: i32) -> (i32, i32) {
    %c0_i32 = arith.constant 0 : i32
    %c0_i32_0 = arith.constant 0 : i32
    %c0_i32_1 = arith.constant 0 : i32
    return %c0_i32, %c0_i32_0 : i32, i32
  }
  func.func @transform_9(%arg0: i32) -> (i32, i32) {
    %c0_i32 = arith.constant 0 : i32
    %c0_i32_0 = arith.constant 0 : i32
    %c0_i32_1 = arith.constant 0 : i32
    return %c0_i32, %c0_i32_0 : i32, i32
  }
  func.func @transform_10(%arg0: i32) -> (i32, i32) {
    %c0_i32 = arith.constant 0 : i32
    %c0_i32_0 = arith.constant 0 : i32
    %c0_i32_1 = arith.constant 0 : i32
    return %c0_i32, %c0_i32_0 : i32, i32
  }
  func.func @transform_11(%arg0: i32) -> (i32, i32) {
    %c0_i32 = arith.constant 0 : i32
    %c0_i32_0 = arith.constant 0 : i32
    return %arg0, %c0_i32 : i32, i32
  }
}

</mosaic_0001>

<llo_original>
// kernel: dqn_forward.1
$region0: #{dqn_forward.1}
  #allocation0 [shape = 'u32[]', space=smem, size = 0x4, offset = 0x4, fixed_abs, tag = 'smem constant byte address 0x4 - core index']
  #allocation1 [shape = 'u32[72,128]{1,0:T(1,128)}', space=vmem, size = 0x9000, scoped, tag = 'internal scratch']
  %s0 = inlined_call_operand.vmem [shape: bf16[16,128], index: 0, kind: input, shape index: {}]
  %s1 = inlined_call_operand.hbm [shape: bf16[128,512], index: 1, kind: input, shape index: {}]
  %s2 = inlined_call_operand.hbm [shape: f32[1,512], index: 2, kind: input, shape index: {}]
  %s3 = inlined_call_operand.hbm [shape: bf16[512,896], index: 3, kind: input, shape index: {}]
  %s4 = inlined_call_operand.hbm [shape: f32[1,896], index: 4, kind: input, shape index: {}]
  %s5 = inlined_call_operand.hbm [shape: bf16[896,1024], index: 5, kind: input, shape index: {}]
  %s6 = inlined_call_operand.hbm [shape: f32[1,1024], index: 6, kind: input, shape index: {}]
  %s7 = inlined_call_operand.hbm [shape: bf16[1024,896], index: 7, kind: input, shape index: {}]
  %s8 = inlined_call_operand.hbm [shape: f32[1,896], index: 8, kind: input, shape index: {}]
  %s9 = inlined_call_operand.hbm [shape: bf16[896,256], index: 9, kind: input, shape index: {}]
  %s10 = inlined_call_operand.hbm [shape: f32[1,256], index: 10, kind: input, shape index: {}]
  %s11 = inlined_call_operand.vmem [shape: f32[16,256], index: 11, kind: output, shape index: {}]
  %s12 = sld [smem:[#allocation0]]
  $region94: #{dqn_forward.1} parent=0
    _
  %s14 = ssub.s32 1, %s12
  %s15 = scalar_select 0, %s14, %s12
  $region1: #{dqn_forward.1} parent=0
    #allocation2 [shape = 'u8[131072]{0}', space=vmem, size = 0x20000, scoped, tag = 'input window, operand 1, single buffered']
    #allocation3 [shape = 's32[1]{0}', space=sflag, size = 0x4, scoped, tag = 'scoped memory for dqn_forward.1']
    #allocation4 [shape = 'u8[2048]{0}', space=vmem, size = 0x800, scoped, tag = 'input window, operand 2, single buffered']
    #allocation5 [shape = 's32[1]{0}', space=sflag, size = 0x4, scoped, tag = 'scoped memory for dqn_forward.1']
    #allocation6 [shape = 'u8[917504]{0}', space=vmem, size = 0xe0000, scoped, tag = 'input window, operand 3, single buffered']
    #allocation7 [shape = 'u8[3584]{0}', space=vmem, size = 0x1000, scoped, tag = 'input window, operand 4, single buffered']
    #allocation8 [shape = 's32[1]{0}', space=sflag, size = 0x4, scoped, tag = 'scoped memory for dqn_forward.1']
    #allocation9 [shape = 'u8[1835008]{0}', space=vmem, size = 0x1c0000, scoped, tag = 'input window, operand 5, single buffered']
    #allocation10 [shape = 'u8[4096]{0}', space=vmem, size = 0x1000, scoped, tag = 'input window, operand 6, single buffered']
    #allocation11 [shape = 's32[1]{0}', space=sflag, size = 0x4, scoped, tag = 'scoped memory for dqn_forward.1']
    #allocation12 [shape = 'u8[1835008]{0}', space=vmem, size = 0x1c0000, scoped, tag = 'input window, operand 7, single buffered']
    #allocation13 [shape = 'u8[3584]{0}', space=vmem, size = 0x1000, scoped, tag = 'input window, operand 8, single buffered']
    #allocation14 [shape = 's32[1]{0}', space=sflag, size = 0x4, scoped, tag = 'scoped memory for dqn_forward.1']
    #allocation15 [shape = 'u8[458752]{0}', space=vmem, size = 0x70000, scoped, tag = 'input window, operand 9, single buffered']
    #allocation16 [shape = 'u8[1024]{0}', space=vmem, size = 0x400, scoped, tag = 'input window, operand 10, single buffered']
    #allocation17 [shape = 's32[1]{0}', space=sflag, size = 0x4, scoped, tag = 'scoped memory for dqn_forward.1']
    %16 = vsyncpa [#allocation3], 0
    %17 = vsyncpa [#allocation5], 0
    %18 = vsyncpa [#allocation8], 0
    %19 = vsyncpa [#allocation11], 0
    %20 = vsyncpa [#allocation14], 0
    %21 = vsyncpa [#allocation17], 0
    // Predicated region
    $region2: #{dqn_forward.1} parent=1 // pred_check
      _
    $region3: #{dqn_forward.1} parent=1 // pred_check_branch
      %23 = sbr.rel (0) target = $region5
    $region4: #{dqn_forward.1} parent=1 // pred_region
      _
    $region5: #{dqn_forward.1} parent=1 // pred_fallthru
      _
    // Predicated region
    $region6: #{dqn_forward.1} parent=1 // pred_check
      _
    $region7: #{dqn_forward.1} parent=1 // pred_check_branch
      %25 = sbr.rel (0) target = $region9
    $region8: #{dqn_forward.1} parent=1 // pred_region
      %27 = vsyncadd [#allocation3], 0
      %s28 = sshll.u32 %s1, 4
      %s29 = int_to_ptr.hbm [resolvable:$true] %s28
      %s30 = sshll.u32 [#allocation2], 4
      %s31 = int_to_ptr.vmem [resolvable:$true] %s30
      %36 = dma.hbm_to_vmem [thread:$0]  %s29, 4096, %s31, [#allocation3], 256, 256, 16
    $region9: #{dqn_forward.1} parent=1 // pred_fallthru
      _
    // Predicated region
    $region10: #{dqn_forward.1} parent=1 // pred_check
      _
    $region11: #{dqn_forward.1} parent=1 // pred_check_branch
      %38 = sbr.rel (0) target = $region13
    $region12: #{dqn_forward.1} parent=1 // pred_region
      %40 = vsyncadd [#allocation5], 0
      %s42 = sshll.u32 %s2, 4
      %s43 = int_to_ptr.hbm [resolvable:$true] %s42
      %s44 = sshll.u32 [#allocation4], 4
      %s45 = int_to_ptr.vmem [resolvable:$true] %s44
      %47 = dma.hbm_to_vmem [thread:$0]  %s43, 64, %s45, [#allocation5]
    $region13: #{dqn_forward.1} parent=1 // pred_fallthru
      _
    // Predicated region
    $region14: #{dqn_forward.1} parent=1 // pred_check
      _
    $region15: #{dqn_forward.1} parent=1 // pred_check_branch
      %49 = sbr.rel (0) target = $region17
    $region16: #{dqn_forward.1} parent=1 // pred_region
      %51 = vsyncadd [#allocation5], 0
      %s52 = sshll.u32 %s3, 4
      %s53 = int_to_ptr.hbm [resolvable:$true] %s52
      %s54 = sshll.u32 [#allocation6], 4
      %s55 = int_to_ptr.vmem [resolvable:$true] %s54
      %60 = dma.hbm_to_vmem [thread:$0]  %s53, 28672, %s55, [#allocation5], 448, 448, 28
    $region17: #{dqn_forward.1} parent=1 // pred_fallthru
      _
    // Predicated region
    $region18: #{dqn_forward.1} parent=1 // pred_check
      _
    $region19: #{dqn_forward.1} parent=1 // pred_check_branch
      %62 = sbr.rel (0) target = $region21
    $region20: #{dqn_forward.1} parent=1 // pred_region
      %64 = vsyncadd [#allocation8], 0
      %s66 = sshll.u32 %s4, 4
      %s67 = int_to_ptr.hbm [resolvable:$true] %s66
      %s68 = sshll.u32 [#allocation7], 4
      %s69 = int_to_ptr.vmem [resolvable:$true] %s68
      %71 = dma.hbm_to_vmem [thread:$0]  %s67, 112, %s69, [#allocation8]
    $region21: #{dqn_forward.1} parent=1 // pred_fallthru
      _
    // Predicated region
    $region22: #{dqn_forward.1} parent=1 // pred_check
      _
    $region23: #{dqn_forward.1} parent=1 // pred_check_branch
      %73 = sbr.rel (0) target = $region25
    $region24: #{dqn_forward.1} parent=1 // pred_region
      %75 = vsyncadd [#allocation8], 0
      %s76 = sshll.u32 %s5, 4
      %s77 = int_to_ptr.hbm [resolvable:$true] %s76
      %s78 = sshll.u32 [#allocation9], 4
      %s79 = int_to_ptr.vmem [resolvable:$true] %s78
      %84 = dma.hbm_to_vmem [thread:$0]  %s77, 57344, %s79, [#allocation8], 512, 512, 32
    $region25: #{dqn_forward.1} parent=1 // pred_fallthru
      _
    // Predicated region
    $region26: #{dqn_forward.1} parent=1 // pred_check
      _
    $region27: #{dqn_forward.1} parent=1 // pred_check_branch
      %86 = sbr.rel (0) target = $region29
    $region28: #{dqn_forward.1} parent=1 // pred_region
      %88 = vsyncadd [#allocation11], 0
      %s90 = sshll.u32 %s6, 4
      %s91 = int_to_ptr.hbm [resolvable:$true] %s90
      %s92 = sshll.u32 [#allocation10], 4
      %s93 = int_to_ptr.vmem [resolvable:$true] %s92
      %95 = dma.hbm_to_vmem [thread:$0]  %s91, 128, %s93, [#allocation11]
    $region29: #{dqn_forward.1} parent=1 // pred_fallthru
      _
    // Predicated region
    $region30: #{dqn_forward.1} parent=1 // pred_check
      _
    $region31: #{dqn_forward.1} parent=1 // pred_check_branch
      %97 = sbr.rel (0) target = $region33
    $region32: #{dqn_forward.1} parent=1 // pred_region
      %99 = vsyncadd [#allocation11], 0
      %s100 = sshll.u32 %s7, 4
      %s101 = int_to_ptr.hbm [resolvable:$true] %s100
      %s102 = sshll.u32 [#allocation12], 4
      %s103 = int_to_ptr.vmem [resolvable:$true] %s102
      %108 = dma.hbm_to_vmem [thread:$0]  %s101, 57344, %s103, [#allocation11], 448, 448, 28
    $region33: #{dqn_forward.1} parent=1 // pred_fallthru
      _
    // Predicated region
    $region34: #{dqn_forward.1} parent=1 // pred_check
      _
    $region35: #{dqn_forward.1} parent=1 // pred_check_branch
      %110 = sbr.rel (0) target = $region37
    $region36: #{dqn_forward.1} parent=1 // pred_region
      %112 = vsyncadd [#allocation14], 0
      %s114 = sshll.u32 %s8, 4
      %s115 = int_to_ptr.hbm [resolvable:$true] %s114
      %s116 = sshll.u32 [#allocation13], 4
      %s117 = int_to_ptr.vmem [resolvable:$true] %s116
      %119 = dma.hbm_to_vmem [thread:$0]  %s115, 112, %s117, [#allocation14]
    $region37: #{dqn_forward.1} parent=1 // pred_fallthru
      _
    // Predicated region
    $region38: #{dqn_forward.1} parent=1 // pred_check
      _
    $region39: #{dqn_forward.1} parent=1 // pred_check_branch
      %121 = sbr.rel (0) target = $region41
    $region40: #{dqn_forward.1} parent=1 // pred_region
      %123 = vsyncadd [#allocation14], 0
      %s124 = sshll.u32 %s9, 4
      %s125 = int_to_ptr.hbm [resolvable:$true] %s124
      %s126 = sshll.u32 [#allocation15], 4
      %s127 = int_to_ptr.vmem [resolvable:$true] %s126
      %132 = dma.hbm_to_vmem [thread:$0]  %s125, 14336, %s127, [#allocation14], 128, 128, 8
    $region41: #{dqn_forward.1} parent=1 // pred_fallthru
      _
    // Predicated region
    $region42: #{dqn_forward.1} parent=1 // pred_check
      _
    $region43: #{dqn_forward.1} parent=1 // pred_check_branch
      %134 = sbr.rel (0) target = $region45
    $region44: #{dqn_forward.1} parent=1 // pred_region
      %136 = vsyncadd [#allocation17], 0
      %s138 = sshll.u32 %s10, 4
      %s139 = int_to_ptr.hbm [resolvable:$true] %s138
      %s140 = sshll.u32 [#allocation16], 4
      %s141 = int_to_ptr.vmem [resolvable:$true] %s140
      %143 = dma.hbm_to_vmem [thread:$0]  %s139, 32, %s141, [#allocation17]
    $region45: #{dqn_forward.1} parent=1 // pred_fallthru
      _
    // Predicated region
    $region46: #{dqn_forward.1} parent=1 // pred_check
      _
    $region47: #{dqn_forward.1} parent=1 // pred_check_branch
      %145 = sbr.rel (0) target = $region49
    $region48: #{dqn_forward.1} parent=1 // pred_region
      %147 = dma.done [#allocation3], 4096
    $region49: #{dqn_forward.1} parent=1 // pred_fallthru
      _
    // Predicated region
    $region50: #{dqn_forward.1} parent=1 // pred_check
      _
    $region51: #{dqn_forward.1} parent=1 // pred_check_branch
      %149 = sbr.rel (0) target = $region53
    $region52: #{dqn_forward.1} parent=1 // pred_region
      %151 = dma.done [#allocation5], 64
    $region53: #{dqn_forward.1} parent=1 // pred_fallthru
      _
    // Predicated region
    $region54: #{dqn_forward.1} parent=1 // pred_check
      _
    $region55: #{dqn_forward.1} parent=1 // pred_check_branch
      %153 = sbr.rel (0) target = $region57
    $region56: #{dqn_forward.1} parent=1 // pred_region
      %155 = dma.done [#allocation5], 28672
    $region57: #{dqn_forward.1} parent=1 // pred_fallthru
      _
    // Predicated region
    $region58: #{dqn_forward.1} parent=1 // pred_check
      _
    $region59: #{dqn_forward.1} parent=1 // pred_check_branch
      %157 = sbr.rel (0) target = $region61
    $region60: #{dqn_forward.1} parent=1 // pred_region
      %159 = dma.done [#allocation8], 112
    $region61: #{dqn_forward.1} parent=1 // pred_fallthru
      _
    // Predicated region
    $region62: #{dqn_forward.1} parent=1 // pred_check
      _
    $region63: #{dqn_forward.1} parent=1 // pred_check_branch
      %161 = sbr.rel (0) target = $region65
    $region64: #{dqn_forward.1} parent=1 // pred_region
      %163 = dma.done [#allocation8], 57344
    $region65: #{dqn_forward.1} parent=1 // pred_fallthru
      _
    // Predicated region
    $region66: #{dqn_forward.1} parent=1 // pred_check
      _
    $region67: #{dqn_forward.1} parent=1 // pred_check_branch
      %165 = sbr.rel (0) target = $region69
    $region68: #{dqn_forward.1} parent=1 // pred_region
      %167 = dma.done [#allocation11], 128
    $region69: #{dqn_forward.1} parent=1 // pred_fallthru
      _
    // Predicated region
    $region70: #{dqn_forward.1} parent=1 // pred_check
      _
    $region71: #{dqn_forward.1} parent=1 // pred_check_branch
      %169 = sbr.rel (0) target = $region73
    $region72: #{dqn_forward.1} parent=1 // pred_region
      %171 = dma.done [#allocation11], 57344
    $region73: #{dqn_forward.1} parent=1 // pred_fallthru
      _
    // Predicated region
    $region74: #{dqn_forward.1} parent=1 // pred_check
      _
    $region75: #{dqn_forward.1} parent=1 // pred_check_branch
      %173 = sbr.rel (0) target = $region77
    $region76: #{dqn_forward.1} parent=1 // pred_region
      %175 = dma.done [#allocation14], 112
    $region77: #{dqn_forward.1} parent=1 // pred_fallthru
      _
    // Predicated region
    $region78: #{dqn_forward.1} parent=1 // pred_check
      _
    $region79: #{dqn_forward.1} parent=1 // pred_check_branch
      %177 = sbr.rel (0) target = $region81
    $region80: #{dqn_forward.1} parent=1 // pred_region
      %179 = dma.done [#allocation14], 14336
    $region81: #{dqn_forward.1} parent=1 // pred_fallthru
      _
    // Predicated region
    $region82: #{dqn_forward.1} parent=1 // pred_check
      _
    $region83: #{dqn_forward.1} parent=1 // pred_check_branch
      %181 = sbr.rel (0) target = $region85
    $region84: #{dqn_forward.1} parent=1 // pred_region
      %183 = dma.done [#allocation17], 32
    $region85: #{dqn_forward.1} parent=1 // pred_fallthru
      _
    %v184 = vld [vmem:[%s0] sm:$0xf]
    %v185 = vld [vmem:[%s0 + $0x4] sm:$0xf]
    %v186 = vld [vmem:[#allocation2] sm:$0xff]
    %v187 = vld [vmem:[#allocation2 + $0x8] sm:$0xff]
    %v188 = vld [vmem:[#allocation2 + $0x10] sm:$0xff]
    %v189 = vld [vmem:[#allocation2 + $0x18] sm:$0xff]
    %v190 = vld [vmem:[#allocation2 + $0x20] sm:$0xff]
    %v191 = vld [vmem:[#allocation2 + $0x28] sm:$0xff]
    %v192 = vld [vmem:[#allocation2 + $0x30] sm:$0xff]
    %v193 = vld [vmem:[#allocation2 + $0x38] sm:$0xff]
    %v194 = vld [vmem:[#allocation2 + $0x40] sm:$0xff]
    %v195 = vld [vmem:[#allocation2 + $0x48] sm:$0xff]
    %v196 = vld [vmem:[#allocation2 + $0x50] sm:$0xff]
    %v197 = vld [vmem:[#allocation2 + $0x58] sm:$0xff]
    %v198 = vld [vmem:[#allocation2 + $0x60] sm:$0xff]
    %v199 = vld [vmem:[#allocation2 + $0x68] sm:$0xff]
    %v200 = vld [vmem:[#allocation2 + $0x70] sm:$0xff]
    %v201 = vld [vmem:[#allocation2 + $0x78] sm:$0xff]
    %v202 = vld [vmem:[#allocation2 + $0x80] sm:$0xff]
    %v203 = vld [vmem:[#allocation2 + $0x88] sm:$0xff]
    %v204 = vld [vmem:[#allocation2 + $0x90] sm:$0xff]
    %v205 = vld [vmem:[#allocation2 + $0x98] sm:$0xff]
    %v206 = vld [vmem:[#allocation2 + $0xa0] sm:$0xff]
    %v207 = vld [vmem:[#allocation2 + $0xa8] sm:$0xff]
    %v208 = vld [vmem:[#allocation2 + $0xb0] sm:$0xff]
    %v209 = vld [vmem:[#allocation2 + $0xb8] sm:$0xff]
    %v210 = vld [vmem:[#allocation2 + $0xc0] sm:$0xff]
    %v211 = vld [vmem:[#allocation2 + $0xc8] sm:$0xff]
    %v212 = vld [vmem:[#allocation2 + $0xd0] sm:$0xff]
    %v213 = vld [vmem:[#allocation2 + $0xd8] sm:$0xff]
    %v214 = vld [vmem:[#allocation2 + $0xe0] sm:$0xff]
    %v215 = vld [vmem:[#allocation2 + $0xe8] sm:$0xff]
    %v216 = vld [vmem:[#allocation2 + $0xf0] sm:$0xff]
    %v217 = vld [vmem:[#allocation2 + $0xf8] sm:$0xff]
    %v220 = vunpack.c.l.b16 %v184
    %v221 = vunpack.c.l.b16 %v185
    %v222 = vpack.c.b16 %v221, %v220
    %v256 = vunpack.c.l.b16 %v186
    %v257 = vunpack.c.h.b16 %v186
    %v258 = vunpack.c.l.b16 %v187
    %v259 = vunpack.c.h.b16 %v187
    %v260 = vunpack.c.l.b16 %v188
    %v261 = vunpack.c.h.b16 %v188
    %v262 = vunpack.c.l.b16 %v189
    %v263 = vunpack.c.h.b16 %v189
    %v264 = vunpack.c.l.b16 %v190
    %v265 = vunpack.c.h.b16 %v190
    %v266 = vunpack.c.l.b16 %v191
    %v267 = vunpack.c.h.b16 %v191
    %v268 = vunpack.c.l.b16 %v192
    %v269 = vunpack.c.h.b16 %v192
    %v270 = vunpack.c.l.b16 %v193
    %v271 = vunpack.c.h.b16 %v193
    %v272 = vunpack.c.l.b16 %v194
    %v273 = vunpack.c.h.b16 %v194
    %v274 = vunpack.c.l.b16 %v195
    %v275 = vunpack.c.h.b16 %v195
    %v276 = vunpack.c.l.b16 %v196
    %v277 = vunpack.c.h.b16 %v196
    %v278 = vunpack.c.l.b16 %v197
    %v279 = vunpack.c.h.b16 %v197
    %v280 = vunpack.c.l.b16 %v198
    %v281 = vunpack.c.h.b16 %v198
    %v282 = vunpack.c.l.b16 %v199
    %v283 = vunpack.c.h.b16 %v199
    %v284 = vunpack.c.l.b16 %v200
    %v285 = vunpack.c.h.b16 %v200
    %v286 = vunpack.c.l.b16 %v201
    %v287 = vunpack.c.h.b16 %v201
    %v288 = vunpack.c.l.b16 %v202
    %v289 = vunpack.c.h.b16 %v202
    %v290 = vunpack.c.l.b16 %v203
    %v291 = vunpack.c.h.b16 %v203
    %v292 = vunpack.c.l.b16 %v204
    %v293 = vunpack.c.h.b16 %v204
    %v294 = vunpack.c.l.b16 %v205
    %v295 = vunpack.c.h.b16 %v205
    %v296 = vunpack.c.l.b16 %v206
    %v297 = vunpack.c.h.b16 %v206
    %v298 = vunpack.c.l.b16 %v207
    %v299 = vunpack.c.h.b16 %v207
    %v300 = vunpack.c.l.b16 %v208
    %v301 = vunpack.c.h.b16 %v208
    %v302 = vunpack.c.l.b16 %v209
    %v303 = vunpack.c.h.b16 %v209
    %v304 = vunpack.c.l.b16 %v210
    %v305 = vunpack.c.h.b16 %v210
    %v306 = vunpack.c.l.b16 %v211
    %v307 = vunpack.c.h.b16 %v211
    %v308 = vunpack.c.l.b16 %v212
    %v309 = vunpack.c.h.b16 %v212
    %v310 = vunpack.c.l.b16 %v213
    %v311 = vunpack.c.h.b16 %v213
    %v312 = vunpack.c.l.b16 %v214
    %v313 = vunpack.c.h.b16 %v214
    %v314 = vunpack.c.l.b16 %v215
    %v315 = vunpack.c.h.b16 %v215
    %v316 = vunpack.c.l.b16 %v216
    %v317 = vunpack.c.h.b16 %v216
    %v318 = vunpack.c.l.b16 %v217
    %v319 = vunpack.c.h.b16 %v217
    %v320 = vpack.c.b16 %v260, %v256
    %v321 = vpack.c.b16 %v261, %v257
    %v322 = vpack.c.b16 %v262, %v258
    %v323 = vpack.c.b16 %v263, %v259
    %v324 = vpack.c.b16 %v268, %v264
    %v325 = vpack.c.b16 %v269, %v265
    %v326 = vpack.c.b16 %v270, %v266
    %v327 = vpack.c.b16 %v271, %v267
    %v328 = vpack.c.b16 %v276, %v272
    %v329 = vpack.c.b16 %v277, %v273
    %v330 = vpack.c.b16 %v278, %v274
    %v331 = vpack.c.b16 %v279, %v275
    %v332 = vpack.c.b16 %v284, %v280
    %v333 = vpack.c.b16 %v285, %v281
    %v334 = vpack.c.b16 %v286, %v282
    %v335 = vpack.c.b16 %v287, %v283
    %v336 = vpack.c.b16 %v292, %v288
    %v337 = vpack.c.b16 %v293, %v289
    %v338 = vpack.c.b16 %v294, %v290
    %v339 = vpack.c.b16 %v295, %v291
    %v340 = vpack.c.b16 %v300, %v296
    %v341 = vpack.c.b16 %v301, %v297
    %v342 = vpack.c.b16 %v302, %v298
    %v343 = vpack.c.b16 %v303, %v299
    %v344 = vpack.c.b16 %v308, %v304
    %v345 = vpack.c.b16 %v309, %v305
    %v346 = vpack.c.b16 %v310, %v306
    %v347 = vpack.c.b16 %v311, %v307
    %v348 = vpack.c.b16 %v316, %v312
    %v349 = vpack.c.b16 %v317, %v313
    %v350 = vpack.c.b16 %v318, %v314
    %v351 = vpack.c.b16 %v319, %v315
    %384 = vmatpush.bf16.msra.mxu0 %v348
    %385 = vmatpush.bf16.msra.mxu0 %v344
    %386 = vmatpush.bf16.msra.mxu0 %v340
    %387 = vmatpush.bf16.msra.mxu0 %v336
    %388 = vmatpush.bf16.msra.mxu0 %v332
    %389 = vmatpush.bf16.msra.mxu0 %v328
    %390 = vmatpush.bf16.msra.mxu0 %v324
    %391 = vmatpush.bf16.msra.mxu0 %v320
    %392 = vmatmul.bf16.gmra.mxu0 %v222
    %v393 = vpop.f32.mrf.mxu0
    %v394 = vadd.f32 0.0, %v393
    %v395 = vpop.f32.mrf.mxu0
    %v396 = vadd.f32 0.0, %v395
    %397 = vdwg.mxu0
    %398 = vmatpush.bf16.msra.mxu0 %v349
    %399 = vmatpush.bf16.msra.mxu0 %v345
    %400 = vmatpush.bf16.msra.mxu0 %v341
    %401 = vmatpush.bf16.msra.mxu0 %v337
    %402 = vmatpush.bf16.msra.mxu0 %v333
    %403 = vmatpush.bf16.msra.mxu0 %v329
    %404 = vmatpush.bf16.msra.mxu0 %v325
    %405 = vmatpush.bf16.msra.mxu0 %v321
    %406 = vmatmul.bf16.gmra.mxu0 %v222
    %v407 = vpop.f32.mrf.mxu0
    %v408 = vadd.f32 0.0, %v407
    %v409 = vpop.f32.mrf.mxu0
    %v410 = vadd.f32 0.0, %v409
    %411 = vdwg.mxu0
    %412 = vmatpush.bf16.msra.mxu0 %v350
    %413 = vmatpush.bf16.msra.mxu0 %v346
    %414 = vmatpush.bf16.msra.mxu0 %v342
    %415 = vmatpush.bf16.msra.mxu0 %v338
    %416 = vmatpush.bf16.msra.mxu0 %v334
    %417 = vmatpush.bf16.msra.mxu0 %v330
    %418 = vmatpush.bf16.msra.mxu0 %v326
    %419 = vmatpush.bf16.msra.mxu0 %v322
    %420 = vmatmul.bf16.gmra.mxu0 %v222
    %v421 = vpop.f32.mrf.mxu0
    %v422 = vadd.f32 0.0, %v421
    %v423 = vpop.f32.mrf.mxu0
    %v424 = vadd.f32 0.0, %v423
    %425 = vdwg.mxu0
    %426 = vmatpush.bf16.msra.mxu0 %v351
    %427 = vmatpush.bf16.msra.mxu0 %v347
    %428 = vmatpush.bf16.msra.mxu0 %v343
    %429 = vmatpush.bf16.msra.mxu0 %v339
    %430 = vmatpush.bf16.msra.mxu0 %v335
    %431 = vmatpush.bf16.msra.mxu0 %v331
    %432 = vmatpush.bf16.msra.mxu0 %v327
    %433 = vmatpush.bf16.msra.mxu0 %v323
    %434 = vmatmul.bf16.gmra.mxu0 %v222
    %v435 = vpop.f32.mrf.mxu0
    %v436 = vadd.f32 0.0, %v435
    %v437 = vpop.f32.mrf.mxu0
    %v438 = vadd.f32 0.0, %v437
    %439 = vdwg.mxu0
    %v440 = vld [vmem:[#allocation4] sm:$0xf]
    %v442 = vperm.slane %v440, 0
    %v443 = vperm.slane %v440, 1
    %v444 = vperm.slane %v440, 2
    %v445 = vperm.slane %v440, 3
    %vm450 = vcmp.eq.f32.partialorder %v394, %v442
    %vm451 = vcmp.eq.f32.partialorder %v408, %v443
    %vm452 = vcmp.eq.f32.partialorder %v422, %v444
    %vm453 = vcmp.eq.f32.partialorder %v436, %v445
    %vm454 = vcmp.eq.f32.partialorder %v396, %v442
    %vm455 = vcmp.eq.f32.partialorder %v410, %v443
    %vm456 = vcmp.eq.f32.partialorder %v424, %v444
    %vm457 = vcmp.eq.f32.partialorder %v438, %v445
    %v458 = vsel %vm450, 1, 0
    %v459 = vsel %vm451, 1, 0
    %v460 = vsel %vm452, 1, 0
    %v461 = vsel %vm453, 1, 0
    %v462 = vsel %vm454, 1, 0
    %v463 = vsel %vm455, 1, 0
    %v464 = vsel %vm456, 1, 0
    %v465 = vsel %vm457, 1, 0
    %v466 = vcvt.s32.f32 %v458
    %v467 = vcvt.s32.f32 %v459
    %v468 = vcvt.s32.f32 %v460
    %v469 = vcvt.s32.f32 %v461
    %v470 = vcvt.s32.f32 %v462
    %v471 = vcvt.s32.f32 %v463
    %v472 = vcvt.s32.f32 %v464
    %v473 = vcvt.s32.f32 %v465
    %v474 = vpack.c.bf16 %v470, %v466
    %v475 = vpack.c.bf16 %v471, %v467
    %v476 = vpack.c.bf16 %v472, %v468
    %v477 = vpack.c.bf16 %v473, %v469
    %v478 = vld [vmem:[#allocation6] sm:$0xff]
    %v479 = vld [vmem:[#allocation6 + $0x8] sm:$0xff]
    %v480 = vld [vmem:[#allocation6 + $0x10] sm:$0xff]
    %v481 = vld [vmem:[#allocation6 + $0x18] sm:$0xf]
    %v482 = vld [vmem:[#allocation6 + $0x1c] sm:$0xff]
    %v483 = vld [vmem:[#allocation6 + $0x24] sm:$0xff]
    %v484 = vld [vmem:[#allocation6 + $0x2c] sm:$0xff]
    %v485 = vld [vmem:[#allocation6 + $0x34] sm:$0xf]
    %v486 = vld [vmem:[#allocation6 + $0x38] sm:$0xff]
    %v487 = vld [vmem:[#allocation6 + $0x40] sm:$0xff]
    %v488 = vld [vmem:[#allocation6 + $0x48] sm:$0xff]
    %v489 = vld [vmem:[#allocation6 + $0x50] sm:$0xf]
    %v490 = vld [vmem:[#allocation6 + $0x54] sm:$0xff]
    %v491 = vld [vmem:[#allocation6 + $0x5c] sm:$0xff]
    %v492 = vld [vmem:[#allocation6 + $0x64] sm:$0xff]
    %v493 = vld [vmem:[#allocation6 + $0x6c] sm:$0xf]
    %v494 = vld [vmem:[#allocation6 + $0x70] sm:$0xff]
    %v495 = vld [vmem:[#allocation6 + $0x78] sm:$0xff]
    %v496 = vld [vmem:[#allocation6 + $0x80] sm:$0xff]
    %v497 = vld [vmem:[#allocation6 + $0x88] sm:$0xf]
    %v498 = vld [vmem:[#allocation6 + $0x8c] sm:$0xff]
    %v499 = vld [vmem:[#allocation6 + $0x94] sm:$0xff]
    %v500 = vld [vmem:[#allocation6 + $0x9c] sm:$0xff]
    %v501 = vld [vmem:[#allocation6 + $0xa4] sm:$0xf]
    %v502 = vld [vmem:[#allocation6 + $0xa8] sm:$0xff]
    %v503 = vld [vmem:[#allocation6 + $0xb0] sm:$0xff]
    %v504 = vld [vmem:[#allocation6 + $0xb8] sm:$0xff]
    %v505 = vld [vmem:[#allocation6 + $0xc0] sm:$0xf]
    %v506 = vld [vmem:[#allocation6 + $0xc4] sm:$0xff]
    %v507 = vld [vmem:[#allocation6 + $0xcc] sm:$0xff]
    %v508 = vld [vmem:[#allocation6 + $0xd4] sm:$0xff]
    %v509 = vld [vmem:[#allocation6 + $0xdc] sm:$0xf]
    %v510 = vld [vmem:[#allocation6 + $0xe0] sm:$0xff]
    %v511 = vld [vmem:[#allocation6 + $0xe8] sm:$0xff]
    %v512 = vld [vmem:[#allocation6 + $0xf0] sm:$0xff]
    %v513 = vld [vmem:[#allocation6 + $0xf8] sm:$0xf]
    %v514 = vld [vmem:[#allocation6 + $0xfc] sm:$0xff]
    %v515 = vld [vmem:[#allocation6 + $0x104] sm:$0xff]
    %v516 = vld [vmem:[#allocation6 + $0x10c] sm:$0xff]
    %v517 = vld [vmem:[#allocation6 + $0x114] sm:$0xf]
    %v518 = vld [vmem:[#allocation6 + $0x118] sm:$0xff]
    %v519 = vld [vmem:[#allocation6 + $0x120] sm:$0xff]
    %v520 = vld [vmem:[#allocation6 + $0x128] sm:$0xff]
    %v521 = vld [vmem:[#allocation6 + $0x130] sm:$0xf]
    %v522 = vld [vmem:[#allocation6 + $0x134] sm:$0xff]
    %v523 = vld [vmem:[#allocation6 + $0x13c] sm:$0xff]
    %v524 = vld [vmem:[#allocation6 + $0x144] sm:$0xff]
    %v525 = vld [vmem:[#allocation6 + $0x14c] sm:$0xf]
    %v526 = vld [vmem:[#allocation6 + $0x150] sm:$0xff]
    %v527 = vld [vmem:[#allocation6 + $0x158] sm:$0xff]
    %v528 = vld [vmem:[#allocation6 + $0x160] sm:$0xff]
    %v529 = vld [vmem:[#allocation6 + $0x168] sm:$0xf]
    %v530 = vld [vmem:[#allocation6 + $0x16c] sm:$0xff]
    %v531 = vld [vmem:[#allocation6 + $0x174] sm:$0xff]
    %v532 = vld [vmem:[#allocation6 + $0x17c] sm:$0xff]
    %v533 = vld [vmem:[#allocation6 + $0x184] sm:$0xf]
    %v534 = vld [vmem:[#allocation6 + $0x188] sm:$0xff]
    %v535 = vld [vmem:[#allocation6 + $0x190] sm:$0xff]
    %v536 = vld [vmem:[#allocation6 + $0x198] sm:$0xff]
    %v537 = vld [vmem:[#allocation6 + $0x1a0] sm:$0xf]
    %v538 = vld [vmem:[#allocation6 + $0x1a4] sm:$0xff]
    %v539 = vld [vmem:[#allocation6 + $0x1ac] sm:$0xff]
    %v540 = vld [vmem:[#allocation6 + $0x1b4] sm:$0xff]
    %v541 = vld [vmem:[#allocation6 + $0x1bc] sm:$0xf]
    %v542 = vld [vmem:[#allocation6 + $0x1c0] sm:$0xff]
    %v543 = vld [vmem:[#allocation6 + $0x1c8] sm:$0xff]
    %v544 = vld [vmem:[#allocation6 + $0x1d0] sm:$0xff]
    %v545 = vld [vmem:[#allocation6 + $0x1d8] sm:$0xf]
    %v546 = vld [vmem:[#allocation6 + $0x1dc] sm:$0xff]
    %v547 = vld [vmem:[#allocation6 + $0x1e4] sm:$0xff]
    %v548 = vld [vmem:[#allocation6 + $0x1ec] sm:$0xff]
    %v549 = vld [vmem:[#allocation6 + $0x1f4] sm:$0xf]
    %v550 = vld [vmem:[#allocation6 + $0x1f8] sm:$0xff]
    %v551 = vld [vmem:[#allocation6 + $0x200] sm:$0xff]
    %v552 = vld [vmem:[#allocation6 + $0x208] sm:$0xff]
    %v553 = vld [vmem:[#allocation6 + $0x210] sm:$0xf]
    %v554 = vld [vmem:[#allocation6 + $0x214] sm:$0xff]
    %v555 = vld [vmem:[#allocation6 + $0x21c] sm:$0xff]
    %v556 = vld [vmem:[#allocation6 + $0x224] sm:$0xff]
    %v557 = vld [vmem:[#allocation6 + $0x22c] sm:$0xf]
    %v558 = vld [vmem:[#allocation6 + $0x230] sm:$0xff]
    %v559 = vld [vmem:[#allocation6 + $0x238] sm:$0xff]
    %v560 = vld [vmem:[#allocation6 + $0x240] sm:$0xff]
    %v561 = vld [vmem:[#allocation6 + $0x248] sm:$0xf]
    %v562 = vld [vmem:[#allocation6 + $0x24c] sm:$0xff]
    %v563 = vld [vmem:[#allocation6 + $0x254] sm:$0xff]
    %v564 = vld [vmem:[#allocation6 + $0x25c] sm:$0xff]
    %v565 = vld [vmem:[#allocation6 + $0x264] sm:$0xf]
    %v566 = vld [vmem:[#allocation6 + $0x268] sm:$0xff]
    %v567 = vld [vmem:[#allocation6 + $0x270] sm:$0xff]
    %v568 = vld [vmem:[#allocation6 + $0x278] sm:$0xff]
    %v569 = vld [vmem:[#allocation6 + $0x280] sm:$0xf]
    %v570 = vld [vmem:[#allocation6 + $0x284] sm:$0xff]
    %v571 = vld [vmem:[#allocation6 + $0x28c] sm:$0xff]
    %v572 = vld [vmem:[#allocation6 + $0x294] sm:$0xff]
    %v573 = vld [vmem:[#allocation6 + $0x29c] sm:$0xf]
    %v574 = vld [vmem:[#allocation6 + $0x2a0] sm:$0xff]
    %v575 = vld [vmem:[#allocation6 + $0x2a8] sm:$0xff]
    %v576 = vld [vmem:[#allocation6 + $0x2b0] sm:$0xff]
    %v577 = vld [vmem:[#allocation6 + $0x2b8] sm:$0xf]
    %v578 = vld [vmem:[#allocation6 + $0x2bc] sm:$0xff]
    %v579 = vld [vmem:[#allocation6 + $0x2c4] sm:$0xff]
    %v580 = vld [vmem:[#allocation6 + $0x2cc] sm:$0xff]
    %v581 = vld [vmem:[#allocation6 + $0x2d4] sm:$0xf]
    %v582 = vld [vmem:[#allocation6 + $0x2d8] sm:$0xff]
    %v583 = vld [vmem:[#allocation6 + $0x2e0] sm:$0xff]
    %v584 = vld [vmem:[#allocation6 + $0x2e8] sm:$0xff]
    %v585 = vld [vmem:[#allocation6 + $0x2f0] sm:$0xf]
    %v586 = vld [vmem:[#allocation6 + $0x2f4] sm:$0xff]
    %v587 = vld [vmem:[#allocation6 + $0x2fc] sm:$0xff]
    %v588 = vld [vmem:[#allocation6 + $0x304] sm:$0xff]
    %v589 = vld [vmem:[#allocation6 + $0x30c] sm:$0xf]
    %v590 = vld [vmem:[#allocation6 + $0x310] sm:$0xff]
    %v591 = vld [vmem:[#allocation6 + $0x318] sm:$0xff]
    %v592 = vld [vmem:[#allocation6 + $0x320] sm:$0xff]
    %v593 = vld [vmem:[#allocation6 + $0x328] sm:$0xf]
    %v594 = vld [vmem:[#allocation6 + $0x32c] sm:$0xff]
    %v595 = vld [vmem:[#allocation6 + $0x334] sm:$0xff]
    %v596 = vld [vmem:[#allocation6 + $0x33c] sm:$0xff]
    %v597 = vld [vmem:[#allocation6 + $0x344] sm:$0xf]
    %v598 = vld [vmem:[#allocation6 + $0x348] sm:$0xff]
    %v599 = vld [vmem:[#allocation6 + $0x350] sm:$0xff]
    %v600 = vld [vmem:[#allocation6 + $0x358] sm:$0xff]
    %v601 = vld [vmem:[#allocation6 + $0x360] sm:$0xf]
    %v602 = vld [vmem:[#allocation6 + $0x364] sm:$0xff]
    %v603 = vld [vmem:[#allocation6 + $0x36c] sm:$0xff]
    %v604 = vld [vmem:[#allocation6 + $0x374] sm:$0xff]
    %v605 = vld [vmem:[#allocation6 + $0x37c] sm:$0xf]
    %v606 = vld [vmem:[#allocation6 + $0x380] sm:$0xff]
    %v607 = vld [vmem:[#allocation6 + $0x388] sm:$0xff]
    %v608 = vld [vmem:[#allocation6 + $0x390] sm:$0xff]
    %v609 = vld [vmem:[#allocation6 + $0x398] sm:$0xf]
    %v610 = vld [vmem:[#allocation6 + $0x39c] sm:$0xff]
    %v611 = vld [vmem:[#allocation6 + $0x3a4] sm:$0xff]
    %v612 = vld [vmem:[#allocation6 + $0x3ac] sm:$0xff]
    %v613 = vld [vmem:[#allocation6 + $0x3b4] sm:$0xf]
    %v614 = vld [vmem:[#allocation6 + $0x3b8] sm:$0xff]
    %v615 = vld [vmem:[#allocation6 + $0x3c0] sm:$0xff]
    %v616 = vld [vmem:[#allocation6 + $0x3c8] sm:$0xff]
    %v617 = vld [vmem:[#allocation6 + $0x3d0] sm:$0xf]
    %v618 = vld [vmem:[#allocation6 + $0x3d4] sm:$0xff]
    %v619 = vld [vmem:[#allocation6 + $0x3dc] sm:$0xff]
    %v620 = vld [vmem:[#allocation6 + $0x3e4] sm:$0xff]
    %v621 = vld [vmem:[#allocation6 + $0x3ec] sm:$0xf]
    %v622 = vld [vmem:[#allocation6 + $0x3f0] sm:$0xff]
    %v623 = vld [vmem:[#allocation6 + $0x3f8] sm:$0xff]
    %v624 = vld [vmem:[#allocation6 + $0x400] sm:$0xff]
    %v625 = vld [vmem:[#allocation6 + $0x408] sm:$0xf]
    %v626 = vld [vmem:[#allocation6 + $0x40c] sm:$0xff]
    %v627 = vld [vmem:[#allocation6 + $0x414] sm:$0xff]
    %v628 = vld [vmem:[#allocation6 + $0x41c] sm:$0xff]
    %v629 = vld [vmem:[#allocation6 + $0x424] sm:$0xf]
    %v630 = vld [vmem:[#allocation6 + $0x428] sm:$0xff]
    %v631 = vld [vmem:[#allocation6 + $0x430] sm:$0xff]
    %v632 = vld [vmem:[#allocation6 + $0x438] sm:$0xff]
    %v633 = vld [vmem:[#allocation6 + $0x440] sm:$0xf]
    %v634 = vld [vmem:[#allocation6 + $0x444] sm:$0xff]
    %v635 = vld [vmem:[#allocation6 + $0x44c] sm:$0xff]
    %v636 = vld [vmem:[#allocation6 + $0x454] sm:$0xff]
    %v637 = vld [vmem:[#allocation6 + $0x45c] sm:$0xf]
    %v638 = vld [vmem:[#allocation6 + $0x460] sm:$0xff]
    %v639 = vld [vmem:[#allocation6 + $0x468] sm:$0xff]
    %v640 = vld [vmem:[#allocation6 + $0x470] sm:$0xff]
    %v641 = vld [vmem:[#allocation6 + $0x478] sm:$0xf]
    %v642 = vld [vmem:[#allocation6 + $0x47c] sm:$0xff]
    %v643 = vld [vmem:[#allocation6 + $0x484] sm:$0xff]
    %v644 = vld [vmem:[#allocation6 + $0x48c] sm:$0xff]
    %v645 = vld [vmem:[#allocation6 + $0x494] sm:$0xf]
    %v646 = vld [vmem:[#allocation6 + $0x498] sm:$0xff]
    %v647 = vld [vmem:[#allocation6 + $0x4a0] sm:$0xff]
    %v648 = vld [vmem:[#allocation6 + $0x4a8] sm:$0xff]
    %v649 = vld [vmem:[#allocation6 + $0x4b0] sm:$0xf]
    %v650 = vld [vmem:[#allocation6 + $0x4b4] sm:$0xff]
    %v651 = vld [vmem:[#allocation6 + $0x4bc] sm:$0xff]
    %v652 = vld [vmem:[#allocation6 + $0x4c4] sm:$0xff]
    %v653 = vld [vmem:[#allocation6 + $0x4cc] sm:$0xf]
    %v654 = vld [vmem:[#allocation6 + $0x4d0] sm:$0xff]
    %v655 = vld [vmem:[#allocation6 + $0x4d8] sm:$0xff]
    %v656 = vld [vmem:[#allocation6 + $0x4e0] sm:$0xff]
    %v657 = vld [vmem:[#allocation6 + $0x4e8] sm:$0xf]
    %v658 = vld [vmem:[#allocation6 + $0x4ec] sm:$0xff]
    %v659 = vld [vmem:[#allocation6 + $0x4f4] sm:$0xff]
    %v660 = vld [vmem:[#allocation6 + $0x4fc] sm:$0xff]
    %v661 = vld [vmem:[#allocation6 + $0x504] sm:$0xf]
    %v662 = vld [vmem:[#allocation6 + $0x508] sm:$0xff]
    %v663 = vld [vmem:[#allocation6 + $0x510] sm:$0xff]
    %v664 = vld [vmem:[#allocation6 + $0x518] sm:$0xff]
    %v665 = vld [vmem:[#allocation6 + $0x520] sm:$0xf]
    %v666 = vld [vmem:[#allocation6 + $0x524] sm:$0xff]
    %v667 = vld [vmem:[#allocation6 + $0x52c] sm:$0xff]
    %v668 = vld [vmem:[#allocation6 + $0x534] sm:$0xff]
    %v669 = vld [vmem:[#allocation6 + $0x53c] sm:$0xf]
    %v670 = vld [vmem:[#allocation6 + $0x540] sm:$0xff]
    %v671 = vld [vmem:[#allocation6 + $0x548] sm:$0xff]
    %v672 = vld [vmem:[#allocation6 + $0x550] sm:$0xff]
    %v673 = vld [vmem:[#allocation6 + $0x558] sm:$0xf]
    %v674 = vld [vmem:[#allocation6 + $0x55c] sm:$0xff]
    %v675 = vld [vmem:[#allocation6 + $0x564] sm:$0xff]
    %v676 = vld [vmem:[#allocation6 + $0x56c] sm:$0xff]
    %v677 = vld [vmem:[#allocation6 + $0x574] sm:$0xf]
    %v678 = vld [vmem:[#allocation6 + $0x578] sm:$0xff]
    %v679 = vld [vmem:[#allocation6 + $0x580] sm:$0xff]
    %v680 = vld [vmem:[#allocation6 + $0x588] sm:$0xff]
    %v681 = vld [vmem:[#allocation6 + $0x590] sm:$0xf]
    %v682 = vld [vmem:[#allocation6 + $0x594] sm:$0xff]
    %v683 = vld [vmem:[#allocation6 + $0x59c] sm:$0xff]
    %v684 = vld [vmem:[#allocation6 + $0x5a4] sm:$0xff]
    %v685 = vld [vmem:[#allocation6 + $0x5ac] sm:$0xf]
    %v686 = vld [vmem:[#allocation6 + $0x5b0] sm:$0xff]
    %v687 = vld [vmem:[#allocation6 + $0x5b8] sm:$0xff]
    %v688 = vld [vmem:[#allocation6 + $0x5c0] sm:$0xff]
    %v689 = vld [vmem:[#allocation6 + $0x5c8] sm:$0xf]
    %v690 = vld [vmem:[#allocation6 + $0x5cc] sm:$0xff]
    %v691 = vld [vmem:[#allocation6 + $0x5d4] sm:$0xff]
    %v692 = vld [vmem:[#allocation6 + $0x5dc] sm:$0xff]
    %v693 = vld [vmem:[#allocation6 + $0x5e4] sm:$0xf]
    %v694 = vld [vmem:[#allocation6 + $0x5e8] sm:$0xff]
    %v695 = vld [vmem:[#allocation6 + $0x5f0] sm:$0xff]
    %v696 = vld [vmem:[#allocation6 + $0x5f8] sm:$0xff]
    %v697 = vld [vmem:[#allocation6 + $0x600] sm:$0xf]
    %v698 = vld [vmem:[#allocation6 + $0x604] sm:$0xff]
    %v699 = vld [vmem:[#allocation6 + $0x60c] sm:$0xff]
    %v700 = vld [vmem:[#allocation6 + $0x614] sm:$0xff]
    %v701 = vld [vmem:[#allocation6 + $0x61c] sm:$0xf]
    %v702 = vld [vmem:[#allocation6 + $0x620] sm:$0xff]
    %v703 = vld [vmem:[#allocation6 + $0x628] sm:$0xff]
    %v704 = vld [vmem:[#allocation6 + $0x630] sm:$0xff]
    %v705 = vld [vmem:[#allocation6 + $0x638] sm:$0xf]
    %v706 = vld [vmem:[#allocation6 + $0x63c] sm:$0xff]
    %v707 = vld [vmem:[#allocation6 + $0x644] sm:$0xff]
    %v708 = vld [vmem:[#allocation6 + $0x64c] sm:$0xff]
    %v709 = vld [vmem:[#allocation6 + $0x654] sm:$0xf]
    %v710 = vld [vmem:[#allocation6 + $0x658] sm:$0xff]
    %v711 = vld [vmem:[#allocation6 + $0x660] sm:$0xff]
    %v712 = vld [vmem:[#allocation6 + $0x668] sm:$0xff]
    %v713 = vld [vmem:[#allocation6 + $0x670] sm:$0xf]
    %v714 = vld [vmem:[#allocation6 + $0x674] sm:$0xff]
    %v715 = vld [vmem:[#allocation6 + $0x67c] sm:$0xff]
    %v716 = vld [vmem:[#allocation6 + $0x684] sm:$0xff]
    %v717 = vld [vmem:[#allocation6 + $0x68c] sm:$0xf]
    %v718 = vld [vmem:[#allocation6 + $0x690] sm:$0xff]
    %v719 = vld [vmem:[#allocation6 + $0x698] sm:$0xff]
    %v720 = vld [vmem:[#allocation6 + $0x6a0] sm:$0xff]
    %v721 = vld [vmem:[#allocation6 + $0x6a8] sm:$0xf]
    %v722 = vld [vmem:[#allocation6 + $0x6ac] sm:$0xff]
    %v723 = vld [vmem:[#allocation6 + $0x6b4] sm:$0xff]
    %v724 = vld [vmem:[#allocation6 + $0x6bc] sm:$0xff]
    %v725 = vld [vmem:[#allocation6 + $0x6c4] sm:$0xf]
    %v726 = vld [vmem:[#allocation6 + $0x6c8] sm:$0xff]
    %v727 = vld [vmem:[#allocation6 + $0x6d0] sm:$0xff]
    %v728 = vld [vmem:[#allocation6 + $0x6d8] sm:$0xff]
    %v729 = vld [vmem:[#allocation6 + $0x6e0] sm:$0xf]
    %v730 = vld [vmem:[#allocation6 + $0x6e4] sm:$0xff]
    %v731 = vld [vmem:[#allocation6 + $0x6ec] sm:$0xff]
    %v732 = vld [vmem:[#allocation6 + $0x6f4] sm:$0xff]
    %v733 = vld [vmem:[#allocation6 + $0x6fc] sm:$0xf]
    %v734 = vld [vmem:[#allocation7] sm:$0xff]
    %v736 = vperm.slane %v734, 0
    %v737 = vperm.slane %v734, 1
    %v738 = vperm.slane %v734, 2
    %v739 = vperm.slane %v734, 3
    %v740 = vperm.slane %v734, 4
    %v741 = vperm.slane %v734, 5
    %v742 = vperm.slane %v734, 6
    %v1006 = vunpack.c.l.b16 %v478
    %v1007 = vunpack.c.h.b16 %v478
    %v1008 = vunpack.c.l.b16 %v479
    %v1009 = vunpack.c.h.b16 %v479
    %v1010 = vunpack.c.l.b16 %v480
    %v1011 = vunpack.c.h.b16 %v480
    %v1012 = vunpack.c.l.b16 %v481
    %v1013 = vunpack.c.l.b16 %v482
    %v1014 = vunpack.c.h.b16 %v482
    %v1015 = vunpack.c.l.b16 %v483
    %v1016 = vunpack.c.h.b16 %v483
    %v1017 = vunpack.c.l.b16 %v484
    %v1018 = vunpack.c.h.b16 %v484
    %v1019 = vunpack.c.l.b16 %v485
    %v1020 = vunpack.c.l.b16 %v486
    %v1021 = vunpack.c.h.b16 %v486
    %v1022 = vunpack.c.l.b16 %v487
    %v1023 = vunpack.c.h.b16 %v487
    %v1024 = vunpack.c.l.b16 %v488
    %v1025 = vunpack.c.h.b16 %v488
    %v1026 = vunpack.c.l.b16 %v489
    %v1027 = vunpack.c.l.b16 %v490
    %v1028 = vunpack.c.h.b16 %v490
    %v1029 = vunpack.c.l.b16 %v491
    %v1030 = vunpack.c.h.b16 %v491
    %v1031 = vunpack.c.l.b16 %v492
    %v1032 = vunpack.c.h.b16 %v492
    %v1033 = vunpack.c.l.b16 %v493
    %v1034 = vunpack.c.l.b16 %v494
    %v1035 = vunpack.c.h.b16 %v494
    %v1036 = vunpack.c.l.b16 %v495
    %v1037 = vunpack.c.h.b16 %v495
    %v1038 = vunpack.c.l.b16 %v496
    %v1039 = vunpack.c.h.b16 %v496
    %v1040 = vunpack.c.l.b16 %v497
    %v1041 = vunpack.c.l.b16 %v498
    %v1042 = vunpack.c.h.b16 %v498
    %v1043 = vunpack.c.l.b16 %v499
    %v1044 = vunpack.c.h.b16 %v499
    %v1045 = vunpack.c.l.b16 %v500
    %v1046 = vunpack.c.h.b16 %v500
    %v1047 = vunpack.c.l.b16 %v501
    %v1048 = vunpack.c.l.b16 %v502
    %v1049 = vunpack.c.h.b16 %v502
    %v1050 = vunpack.c.l.b16 %v503
    %v1051 = vunpack.c.h.b16 %v503
    %v1052 = vunpack.c.l.b16 %v504
    %v1053 = vunpack.c.h.b16 %v504
    %v1054 = vunpack.c.l.b16 %v505
    %v1055 = vunpack.c.l.b16 %v506
    %v1056 = vunpack.c.h.b16 %v506
    %v1057 = vunpack.c.l.b16 %v507
    %v1058 = vunpack.c.h.b16 %v507
    %v1059 = vunpack.c.l.b16 %v508
    %v1060 = vunpack.c.h.b16 %v508
    %v1061 = vunpack.c.l.b16 %v509
    %v1062 = vunpack.c.l.b16 %v510
    %v1063 = vunpack.c.h.b16 %v510
    %v1064 = vunpack.c.l.b16 %v511
    %v1065 = vunpack.c.h.b16 %v511
    %v1066 = vunpack.c.l.b16 %v512
    %v1067 = vunpack.c.h.b16 %v512
    %v1068 = vunpack.c.l.b16 %v513
    %v1069 = vunpack.c.l.b16 %v514
    %v1070 = vunpack.c.h.b16 %v514
    %v1071 = vunpack.c.l.b16 %v515
    %v1072 = vunpack.c.h.b16 %v515
    %v1073 = vunpack.c.l.b16 %v516
    %v1074 = vunpack.c.h.b16 %v516
    %v1075 = vunpack.c.l.b16 %v517
    %v1076 = vunpack.c.l.b16 %v518
    %v1077 = vunpack.c.h.b16 %v518
    %v1078 = vunpack.c.l.b16 %v519
    %v1079 = vunpack.c.h.b16 %v519
    %v1080 = vunpack.c.l.b16 %v520
    %v1081 = vunpack.c.h.b16 %v520
    %v1082 = vunpack.c.l.b16 %v521
    %v1083 = vunpack.c.l.b16 %v522
    %v1084 = vunpack.c.h.b16 %v522
    %v1085 = vunpack.c.l.b16 %v523
    %v1086 = vunpack.c.h.b16 %v523
    %v1087 = vunpack.c.l.b16 %v524
    %v1088 = vunpack.c.h.b16 %v524
    %v1089 = vunpack.c.l.b16 %v525
    %v1090 = vunpack.c.l.b16 %v526
    %v1091 = vunpack.c.h.b16 %v526
    %v1092 = vunpack.c.l.b16 %v527
    %v1093 = vunpack.c.h.b16 %v527
    %v1094 = vunpack.c.l.b16 %v528
    %v1095 = vunpack.c.h.b16 %v528
    %v1096 = vunpack.c.l.b16 %v529
    %v1097 = vunpack.c.l.b16 %v530
    %v1098 = vunpack.c.h.b16 %v530
    %v1099 = vunpack.c.l.b16 %v531
    %v1100 = vunpack.c.h.b16 %v531
    %v1101 = vunpack.c.l.b16 %v532
    %v1102 = vunpack.c.h.b16 %v532
    %v1103 = vunpack.c.l.b16 %v533
    %v1104 = vunpack.c.l.b16 %v534
    %v1105 = vunpack.c.h.b16 %v534
    %v1106 = vunpack.c.l.b16 %v535
    %v1107 = vunpack.c.h.b16 %v535
    %v1108 = vunpack.c.l.b16 %v536
    %v1109 = vunpack.c.h.b16 %v536
    %v1110 = vunpack.c.l.b16 %v537
    %v1111 = vunpack.c.l.b16 %v538
    %v1112 = vunpack.c.h.b16 %v538
    %v1113 = vunpack.c.l.b16 %v539
    %v1114 = vunpack.c.h.b16 %v539
    %v1115 = vunpack.c.l.b16 %v540
    %v1116 = vunpack.c.h.b16 %v540
    %v1117 = vunpack.c.l.b16 %v541
    %v1118 = vunpack.c.l.b16 %v542
    %v1119 = vunpack.c.h.b16 %v542
    %v1120 = vunpack.c.l.b16 %v543
    %v1121 = vunpack.c.h.b16 %v543
    %v1122 = vunpack.c.l.b16 %v544
    %v1123 = vunpack.c.h.b16 %v544
    %v1124 = vunpack.c.l.b16 %v545
    %v1125 = vunpack.c.l.b16 %v546
    %v1126 = vunpack.c.h.b16 %v546
    %v1127 = vunpack.c.l.b16 %v547
    %v1128 = vunpack.c.h.b16 %v547
    %v1129 = vunpack.c.l.b16 %v548
    %v1130 = vunpack.c.h.b16 %v548
    %v1131 = vunpack.c.l.b16 %v549
    %v1132 = vunpack.c.l.b16 %v550
    %v1133 = vunpack.c.h.b16 %v550
    %v1134 = vunpack.c.l.b16 %v551
    %v1135 = vunpack.c.h.b16 %v551
    %v1136 = vunpack.c.l.b16 %v552
    %v1137 = vunpack.c.h.b16 %v552
    %v1138 = vunpack.c.l.b16 %v553
    %v1139 = vunpack.c.l.b16 %v554
    %v1140 = vunpack.c.h.b16 %v554
    %v1141 = vunpack.c.l.b16 %v555
    %v1142 = vunpack.c.h.b16 %v555
    %v1143 = vunpack.c.l.b16 %v556
    %v1144 = vunpack.c.h.b16 %v556
    %v1145 = vunpack.c.l.b16 %v557
    %v1146 = vunpack.c.l.b16 %v558
    %v1147 = vunpack.c.h.b16 %v558
    %v1148 = vunpack.c.l.b16 %v559
    %v1149 = vunpack.c.h.b16 %v559
    %v1150 = vunpack.c.l.b16 %v560
    %v1151 = vunpack.c.h.b16 %v560
    %v1152 = vunpack.c.l.b16 %v561
    %v1153 = vunpack.c.l.b16 %v562
    %v1154 = vunpack.c.h.b16 %v562
    %v1155 = vunpack.c.l.b16 %v563
    %v1156 = vunpack.c.h.b16 %v563
    %v1157 = vunpack.c.l.b16 %v564
    %v1158 = vunpack.c.h.b16 %v564
    %v1159 = vunpack.c.l.b16 %v565
    %v1160 = vunpack.c.l.b16 %v566
    %v1161 = vunpack.c.h.b16 %v566
    %v1162 = vunpack.c.l.b16 %v567
    %v1163 = vunpack.c.h.b16 %v567
    %v1164 = vunpack.c.l.b16 %v568
    %v1165 = vunpack.c.h.b16 %v568
    %v1166 = vunpack.c.l.b16 %v569
    %v1167 = vunpack.c.l.b16 %v570
    %v1168 = vunpack.c.h.b16 %v570
    %v1169 = vunpack.c.l.b16 %v571
    %v1170 = vunpack.c.h.b16 %v571
    %v1171 = vunpack.c.l.b16 %v572
    %v1172 = vunpack.c.h.b16 %v572
    %v1173 = vunpack.c.l.b16 %v573
    %v1174 = vunpack.c.l.b16 %v574
    %v1175 = vunpack.c.h.b16 %v574
    %v1176 = vunpack.c.l.b16 %v575
    %v1177 = vunpack.c.h.b16 %v575
    %v1178 = vunpack.c.l.b16 %v576
    %v1179 = vunpack.c.h.b16 %v576
    %v1180 = vunpack.c.l.b16 %v577
    %v1181 = vunpack.c.l.b16 %v578
    %v1182 = vunpack.c.h.b16 %v578
    %v1183 = vunpack.c.l.b16 %v579
    %v1184 = vunpack.c.h.b16 %v579
    %v1185 = vunpack.c.l.b16 %v580
    %v1186 = vunpack.c.h.b16 %v580
    %v1187 = vunpack.c.l.b16 %v581
    %v1188 = vunpack.c.l.b16 %v582
    %v1189 = vunpack.c.h.b16 %v582
    %v1190 = vunpack.c.l.b16 %v583
    %v1191 = vunpack.c.h.b16 %v583
    %v1192 = vunpack.c.l.b16 %v584
    %v1193 = vunpack.c.h.b16 %v584
    %v1194 = vunpack.c.l.b16 %v585
    %v1195 = vunpack.c.l.b16 %v586
    %v1196 = vunpack.c.h.b16 %v586
    %v1197 = vunpack.c.l.b16 %v587
    %v1198 = vunpack.c.h.b16 %v587
    %v1199 = vunpack.c.l.b16 %v588
    %v1200 = vunpack.c.h.b16 %v588
    %v1201 = vunpack.c.l.b16 %v589
    %v1202 = vunpack.c.l.b16 %v590
    %v1203 = vunpack.c.h.b16 %v590
    %v1204 = vunpack.c.l.b16 %v591
    %v1205 = vunpack.c.h.b16 %v591
    %v1206 = vunpack.c.l.b16 %v592
    %v1207 = vunpack.c.h.b16 %v592
    %v1208 = vunpack.c.l.b16 %v593
    %v1209 = vunpack.c.l.b16 %v594
    %v1210 = vunpack.c.h.b16 %v594
    %v1211 = vunpack.c.l.b16 %v595
    %v1212 = vunpack.c.h.b16 %v595
    %v1213 = vunpack.c.l.b16 %v596
    %v1214 = vunpack.c.h.b16 %v596
    %v1215 = vunpack.c.l.b16 %v597
    %v1216 = vunpack.c.l.b16 %v598
    %v1217 = vunpack.c.h.b16 %v598
    %v1218 = vunpack.c.l.b16 %v599
    %v1219 = vunpack.c.h.b16 %v599
    %v1220 = vunpack.c.l.b16 %v600
    %v1221 = vunpack.c.h.b16 %v600
    %v1222 = vunpack.c.l.b16 %v601
    %v1223 = vunpack.c.l.b16 %v602
    %v1224 = vunpack.c.h.b16 %v602
    %v1225 = vunpack.c.l.b16 %v603
    %v1226 = vunpack.c.h.b16 %v603
    %v1227 = vunpack.c.l.b16 %v604
    %v1228 = vunpack.c.h.b16 %v604
    %v1229 = vunpack.c.l.b16 %v605
    %v1230 = vunpack.c.l.b16 %v606
    %v1231 = vunpack.c.h.b16 %v606
    %v1232 = vunpack.c.l.b16 %v607
    %v1233 = vunpack.c.h.b16 %v607
    %v1234 = vunpack.c.l.b16 %v608
    %v1235 = vunpack.c.h.b16 %v608
    %v1236 = vunpack.c.l.b16 %v609
    %v1237 = vunpack.c.l.b16 %v610
    %v1238 = vunpack.c.h.b16 %v610
    %v1239 = vunpack.c.l.b16 %v611
    %v1240 = vunpack.c.h.b16 %v611
    %v1241 = vunpack.c.l.b16 %v612
    %v1242 = vunpack.c.h.b16 %v612
    %v1243 = vunpack.c.l.b16 %v613
    %v1244 = vunpack.c.l.b16 %v614
    %v1245 = vunpack.c.h.b16 %v614
    %v1246 = vunpack.c.l.b16 %v615
    %v1247 = vunpack.c.h.b16 %v615
    %v1248 = vunpack.c.l.b16 %v616
    %v1249 = vunpack.c.h.b16 %v616
    %v1250 = vunpack.c.l.b16 %v617
    %v1251 = vunpack.c.l.b16 %v618
    %v1252 = vunpack.c.h.b16 %v618
    %v1253 = vunpack.c.l.b16 %v619
    %v1254 = vunpack.c.h.b16 %v619
    %v1255 = vunpack.c.l.b16 %v620
    %v1256 = vunpack.c.h.b16 %v620
    %v1257 = vunpack.c.l.b16 %v621
    %v1258 = vunpack.c.l.b16 %v622
    %v1259 = vunpack.c.h.b16 %v622
    %v1260 = vunpack.c.l.b16 %v623
    %v1261 = vunpack.c.h.b16 %v623
    %v1262 = vunpack.c.l.b16 %v624
    %v1263 = vunpack.c.h.b16 %v624
    %v1264 = vunpack.c.l.b16 %v625
    %v1265 = vunpack.c.l.b16 %v626
    %v1266 = vunpack.c.h.b16 %v626
    %v1267 = vunpack.c.l.b16 %v627
    %v1268 = vunpack.c.h.b16 %v627
    %v1269 = vunpack.c.l.b16 %v628
    %v1270 = vunpack.c.h.b16 %v628
    %v1271 = vunpack.c.l.b16 %v629
    %v1272 = vunpack.c.l.b16 %v630
    %v1273 = vunpack.c.h.b16 %v630
    %v1274 = vunpack.c.l.b16 %v631
    %v1275 = vunpack.c.h.b16 %v631
    %v1276 = vunpack.c.l.b16 %v632
    %v1277 = vunpack.c.h.b16 %v632
    %v1278 = vunpack.c.l.b16 %v633
    %v1279 = vunpack.c.l.b16 %v634
    %v1280 = vunpack.c.h.b16 %v634
    %v1281 = vunpack.c.l.b16 %v635
    %v1282 = vunpack.c.h.b16 %v635
    %v1283 = vunpack.c.l.b16 %v636
    %v1284 = vunpack.c.h.b16 %v636
    %v1285 = vunpack.c.l.b16 %v637
    %v1286 = vunpack.c.l.b16 %v638
    %v1287 = vunpack.c.h.b16 %v638
    %v1288 = vunpack.c.l.b16 %v639
    %v1289 = vunpack.c.h.b16 %v639
    %v1290 = vunpack.c.l.b16 %v640
    %v1291 = vunpack.c.h.b16 %v640
    %v1292 = vunpack.c.l.b16 %v641
    %v1293 = vunpack.c.l.b16 %v642
    %v1294 = vunpack.c.h.b16 %v642
    %v1295 = vunpack.c.l.b16 %v643
    %v1296 = vunpack.c.h.b16 %v643
    %v1297 = vunpack.c.l.b16 %v644
    %v1298 = vunpack.c.h.b16 %v644
    %v1299 = vunpack.c.l.b16 %v645
    %v1300 = vunpack.c.l.b16 %v646
    %v1301 = vunpack.c.h.b16 %v646
    %v1302 = vunpack.c.l.b16 %v647
    %v1303 = vunpack.c.h.b16 %v647
    %v1304 = vunpack.c.l.b16 %v648
    %v1305 = vunpack.c.h.b16 %v648
    %v1306 = vunpack.c.l.b16 %v649
    %v1307 = vunpack.c.l.b16 %v650
    %v1308 = vunpack.c.h.b16 %v650
    %v1309 = vunpack.c.l.b16 %v651
    %v1310 = vunpack.c.h.b16 %v651
    %v1311 = vunpack.c.l.b16 %v652
    %v1312 = vunpack.c.h.b16 %v652
    %v1313 = vunpack.c.l.b16 %v653
    %v1314 = vunpack.c.l.b16 %v654
    %v1315 = vunpack.c.h.b16 %v654
    %v1316 = vunpack.c.l.b16 %v655
    %v1317 = vunpack.c.h.b16 %v655
    %v1318 = vunpack.c.l.b16 %v656
    %v1319 = vunpack.c.h.b16 %v656
    %v1320 = vunpack.c.l.b16 %v657
    %v1321 = vunpack.c.l.b16 %v658
    %v1322 = vunpack.c.h.b16 %v658
    %v1323 = vunpack.c.l.b16 %v659
    %v1324 = vunpack.c.h.b16 %v659
    %v1325 = vunpack.c.l.b16 %v660
    %v1326 = vunpack.c.h.b16 %v660
    %v1327 = vunpack.c.l.b16 %v661
    %v1328 = vunpack.c.l.b16 %v662
    %v1329 = vunpack.c.h.b16 %v662
    %v1330 = vunpack.c.l.b16 %v663
    %v1331 = vunpack.c.h.b16 %v663
    %v1332 = vunpack.c.l.b16 %v664
    %v1333 = vunpack.c.h.b16 %v664
    %v1334 = vunpack.c.l.b16 %v665
    %v1335 = vunpack.c.l.b16 %v666
    %v1336 = vunpack.c.h.b16 %v666
    %v1337 = vunpack.c.l.b16 %v667
    %v1338 = vunpack.c.h.b16 %v667
    %v1339 = vunpack.c.l.b16 %v668
    %v1340 = vunpack.c.h.b16 %v668
    %v1341 = vunpack.c.l.b16 %v669
    %v1342 = vunpack.c.l.b16 %v670
    %v1343 = vunpack.c.h.b16 %v670
    %v1344 = vunpack.c.l.b16 %v671
    %v1345 = vunpack.c.h.b16 %v671
    %v1346 = vunpack.c.l.b16 %v672
    %v1347 = vunpack.c.h.b16 %v672
    %v1348 = vunpack.c.l.b16 %v673
    %v1349 = vunpack.c.l.b16 %v674
    %v1350 = vunpack.c.h.b16 %v674
    %v1351 = vunpack.c.l.b16 %v675
    %v1352 = vunpack.c.h.b16 %v675
    %v1353 = vunpack.c.l.b16 %v676
    %v1354 = vunpack.c.h.b16 %v676
    %v1355 = vunpack.c.l.b16 %v677
    %v1356 = vunpack.c.l.b16 %v678
    %v1357 = vunpack.c.h.b16 %v678
    %v1358 = vunpack.c.l.b16 %v679
    %v1359 = vunpack.c.h.b16 %v679
    %v1360 = vunpack.c.l.b16 %v680
    %v1361 = vunpack.c.h.b16 %v680
    %v1362 = vunpack.c.l.b16 %v681
    %v1363 = vunpack.c.l.b16 %v682
    %v1364 = vunpack.c.h.b16 %v682
    %v1365 = vunpack.c.l.b16 %v683
    %v1366 = vunpack.c.h.b16 %v683
    %v1367 = vunpack.c.l.b16 %v684
    %v1368 = vunpack.c.h.b16 %v684
    %v1369 = vunpack.c.l.b16 %v685
    %v1370 = vunpack.c.l.b16 %v686
    %v1371 = vunpack.c.h.b16 %v686
    %v1372 = vunpack.c.l.b16 %v687
    %v1373 = vunpack.c.h.b16 %v687
    %v1374 = vunpack.c.l.b16 %v688
    %v1375 = vunpack.c.h.b16 %v688
    %v1376 = vunpack.c.l.b16 %v689
    %v1377 = vunpack.c.l.b16 %v690
    %v1378 = vunpack.c.h.b16 %v690
    %v1379 = vunpack.c.l.b16 %v691
    %v1380 = vunpack.c.h.b16 %v691
    %v1381 = vunpack.c.l.b16 %v692
    %v1382 = vunpack.c.h.b16 %v692
    %v1383 = vunpack.c.l.b16 %v693
    %v1384 = vunpack.c.l.b16 %v694
    %v1385 = vunpack.c.h.b16 %v694
    %v1386 = vunpack.c.l.b16 %v695
    %v1387 = vunpack.c.h.b16 %v695
    %v1388 = vunpack.c.l.b16 %v696
    %v1389 = vunpack.c.h.b16 %v696
    %v1390 = vunpack.c.l.b16 %v697
    %v1391 = vunpack.c.l.b16 %v698
    %v1392 = vunpack.c.h.b16 %v698
    %v1393 = vunpack.c.l.b16 %v699
    %v1394 = vunpack.c.h.b16 %v699
    %v1395 = vunpack.c.l.b16 %v700
    %v1396 = vunpack.c.h.b16 %v700
    %v1397 = vunpack.c.l.b16 %v701
    %v1398 = vunpack.c.l.b16 %v702
    %v1399 = vunpack.c.h.b16 %v702
    %v1400 = vunpack.c.l.b16 %v703
    %v1401 = vunpack.c.h.b16 %v703
    %v1402 = vunpack.c.l.b16 %v704
    %v1403 = vunpack.c.h.b16 %v704
    %v1404 = vunpack.c.l.b16 %v705
    %v1405 = vunpack.c.l.b16 %v706
    %v1406 = vunpack.c.h.b16 %v706
    %v1407 = vunpack.c.l.b16 %v707
    %v1408 = vunpack.c.h.b16 %v707
    %v1409 = vunpack.c.l.b16 %v708
    %v1410 = vunpack.c.h.b16 %v708
    %v1411 = vunpack.c.l.b16 %v709
    %v1412 = vunpack.c.l.b16 %v710
    %v1413 = vunpack.c.h.b16 %v710
    %v1414 = vunpack.c.l.b16 %v711
    %v1415 = vunpack.c.h.b16 %v711
    %v1416 = vunpack.c.l.b16 %v712
    %v1417 = vunpack.c.h.b16 %v712
    %v1418 = vunpack.c.l.b16 %v713
    %v1419 = vunpack.c.l.b16 %v714
    %v1420 = vunpack.c.h.b16 %v714
    %v1421 = vunpack.c.l.b16 %v715
    %v1422 = vunpack.c.h.b16 %v715
    %v1423 = vunpack.c.l.b16 %v716
    %v1424 = vunpack.c.h.b16 %v716
    %v1425 = vunpack.c.l.b16 %v717
    %v1426 = vunpack.c.l.b16 %v718
    %v1427 = vunpack.c.h.b16 %v718
    %v1428 = vunpack.c.l.b16 %v719
    %v1429 = vunpack.c.h.b16 %v719
    %v1430 = vunpack.c.l.b16 %v720
    %v1431 = vunpack.c.h.b16 %v720
    %v1432 = vunpack.c.l.b16 %v721
    %v1433 = vunpack.c.l.b16 %v722
    %v1434 = vunpack.c.h.b16 %v722
    %v1435 = vunpack.c.l.b16 %v723
    %v1436 = vunpack.c.h.b16 %v723
    %v1437 = vunpack.c.l.b16 %v724
    %v1438 = vunpack.c.h.b16 %v724
    %v1439 = vunpack.c.l.b16 %v725
    %v1440 = vunpack.c.l.b16 %v726
    %v1441 = vunpack.c.h.b16 %v726
    %v1442 = vunpack.c.l.b16 %v727
    %v1443 = vunpack.c.h.b16 %v727
    %v1444 = vunpack.c.l.b16 %v728
    %v1445 = vunpack.c.h.b16 %v728
    %v1446 = vunpack.c.l.b16 %v729
    %v1447 = vunpack.c.l.b16 %v730
    %v1448 = vunpack.c.h.b16 %v730
    %v1449 = vunpack.c.l.b16 %v731
    %v1450 = vunpack.c.h.b16 %v731
    %v1451 = vunpack.c.l.b16 %v732
    %v1452 = vunpack.c.h.b16 %v732
    %v1453 = vunpack.c.l.b16 %v733
    %v1454 = vpack.c.b16 %v1013, %v1006
    %v1455 = vpack.c.b16 %v1014, %v1007
    %v1456 = vpack.c.b16 %v1015, %v1008
    %v1457 = vpack.c.b16 %v1016, %v1009
    %v1458 = vpack.c.b16 %v1017, %v1010
    %v1459 = vpack.c.b16 %v1018, %v1011
    %v1460 = vpack.c.b16 %v1019, %v1012
    %v1461 = vpack.c.b16 %v1027, %v1020
    %v1462 = vpack.c.b16 %v1028, %v1021
    %v1463 = vpack.c.b16 %v1029, %v1022
    %v1464 = vpack.c.b16 %v1030, %v1023
    %v1465 = vpack.c.b16 %v1031, %v1024
    %v1466 = vpack.c.b16 %v1032, %v1025
    %v1467 = vpack.c.b16 %v1033, %v1026
    %v1468 = vpack.c.b16 %v1041, %v1034
    %v1469 = vpack.c.b16 %v1042, %v1035
    %v1470 = vpack.c.b16 %v1043, %v1036
    %v1471 = vpack.c.b16 %v1044, %v1037
    %v1472 = vpack.c.b16 %v1045, %v1038
    %v1473 = vpack.c.b16 %v1046, %v1039
    %v1474 = vpack.c.b16 %v1047, %v1040
    %v1475 = vpack.c.b16 %v1055, %v1048
    %v1476 = vpack.c.b16 %v1056, %v1049
    %v1477 = vpack.c.b16 %v1057, %v1050
    %v1478 = vpack.c.b16 %v1058, %v1051
    %v1479 = vpack.c.b16 %v1059, %v1052
    %v1480 = vpack.c.b16 %v1060, %v1053
    %v1481 = vpack.c.b16 %v1061, %v1054
    %v1482 = vpack.c.b16 %v1069, %v1062
    %v1483 = vpack.c.b16 %v1070, %v1063
    %v1484 = vpack.c.b16 %v1071, %v1064
    %v1485 = vpack.c.b16 %v1072, %v1065
    %v1486 = vpack.c.b16 %v1073, %v1066
    %v1487 = vpack.c.b16 %v1074, %v1067
    %v1488 = vpack.c.b16 %v1075, %v1068
    %v1489 = vpack.c.b16 %v1083, %v1076
    %v1490 = vpack.c.b16 %v1084, %v1077
    %v1491 = vpack.c.b16 %v1085, %v1078
    %v1492 = vpack.c.b16 %v1086, %v1079
    %v1493 = vpack.c.b16 %v1087, %v1080
    %v1494 = vpack.c.b16 %v1088, %v1081
    %v1495 = vpack.c.b16 %v1089, %v1082
    %v1496 = vpack.c.b16 %v1097, %v1090
    %v1497 = vpack.c.b16 %v1098, %v1091
    %v1498 = vpack.c.b16 %v1099, %v1092
    %v1499 = vpack.c.b16 %v1100, %v1093
    %v1500 = vpack.c.b16 %v1101, %v1094
    %v1501 = vpack.c.b16 %v1102, %v1095
    %v1502 = vpack.c.b16 %v1103, %v1096
    %v1503 = vpack.c.b16 %v1111, %v1104
    %v1504 = vpack.c.b16 %v1112, %v1105
    %v1505 = vpack.c.b16 %v1113, %v1106
    %v1506 = vpack.c.b16 %v1114, %v1107
    %v1507 = vpack.c.b16 %v1115, %v1108
    %v1508 = vpack.c.b16 %v1116, %v1109
    %v1509 = vpack.c.b16 %v1117, %v1110
    %v1510 = vpack.c.b16 %v1125, %v1118
    %v1511 = vpack.c.b16 %v1126, %v1119
    %v1512 = vpack.c.b16 %v1127, %v1120
    %v1513 = vpack.c.b16 %v1128, %v1121
    %v1514 = vpack.c.b16 %v1129, %v1122
    %v1515 = vpack.c.b16 %v1130, %v1123
    %v1516 = vpack.c.b16 %v1131, %v1124
    %v1517 = vpack.c.b16 %v1139, %v1132
    %v1518 = vpack.c.b16 %v1140, %v1133
    %v1519 = vpack.c.b16 %v1141, %v1134
    %v1520 = vpack.c.b16 %v1142, %v1135
    %v1521 = vpack.c.b16 %v1143, %v1136
    %v1522 = vpack.c.b16 %v1144, %v1137
    %v1523 = vpack.c.b16 %v1145, %v1138
    %v1524 = vpack.c.b16 %v1153, %v1146
    %v1525 = vpack.c.b16 %v1154, %v1147
    %v1526 = vpack.c.b16 %v1155, %v1148
    %v1527 = vpack.c.b16 %v1156, %v1149
    %v1528 = vpack.c.b16 %v1157, %v1150
    %v1529 = vpack.c.b16 %v1158, %v1151
    %v1530 = vpack.c.b16 %v1159, %v1152
    %v1531 = vpack.c.b16 %v1167, %v1160
    %v1532 = vpack.c.b16 %v1168, %v1161
    %v1533 = vpack.c.b16 %v1169, %v1162
    %v1534 = vpack.c.b16 %v1170, %v1163
    %v1535 = vpack.c.b16 %v1171, %v1164
    %v1536 = vpack.c.b16 %v1172, %v1165
    %v1537 = vpack.c.b16 %v1173, %v1166
    %v1538 = vpack.c.b16 %v1181, %v1174
    %v1539 = vpack.c.b16 %v1182, %v1175
    %v1540 = vpack.c.b16 %v1183, %v1176
    %v1541 = vpack.c.b16 %v1184, %v1177
    %v1542 = vpack.c.b16 %v1185, %v1178
    %v1543 = vpack.c.b16 %v1186, %v1179
    %v1544 = vpack.c.b16 %v1187, %v1180
    %v1545 = vpack.c.b16 %v1195, %v1188
    %v1546 = vpack.c.b16 %v1196, %v1189
    %v1547 = vpack.c.b16 %v1197, %v1190
    %v1548 = vpack.c.b16 %v1198, %v1191
    %v1549 = vpack.c.b16 %v1199, %v1192
    %v1550 = vpack.c.b16 %v1200, %v1193
    %v1551 = vpack.c.b16 %v1201, %v1194
    %v1552 = vpack.c.b16 %v1209, %v1202
    %v1553 = vpack.c.b16 %v1210, %v1203
    %v1554 = vpack.c.b16 %v1211, %v1204
    %v1555 = vpack.c.b16 %v1212, %v1205
    %v1556 = vpack.c.b16 %v1213, %v1206
    %v1557 = vpack.c.b16 %v1214, %v1207
    %v1558 = vpack.c.b16 %v1215, %v1208
    %v1559 = vpack.c.b16 %v1223, %v1216
    %v1560 = vpack.c.b16 %v1224, %v1217
    %v1561 = vpack.c.b16 %v1225, %v1218
    %v1562 = vpack.c.b16 %v1226, %v1219
    %v1563 = vpack.c.b16 %v1227, %v1220
    %v1564 = vpack.c.b16 %v1228, %v1221
    %v1565 = vpack.c.b16 %v1229, %v1222
    %v1566 = vpack.c.b16 %v1237, %v1230
    %v1567 = vpack.c.b16 %v1238, %v1231
    %v1568 = vpack.c.b16 %v1239, %v1232
    %v1569 = vpack.c.b16 %v1240, %v1233
    %v1570 = vpack.c.b16 %v1241, %v1234
    %v1571 = vpack.c.b16 %v1242, %v1235
    %v1572 = vpack.c.b16 %v1243, %v1236
    %v1573 = vpack.c.b16 %v1251, %v1244
    %v1574 = vpack.c.b16 %v1252, %v1245
    %v1575 = vpack.c.b16 %v1253, %v1246
    %v1576 = vpack.c.b16 %v1254, %v1247
    %v1577 = vpack.c.b16 %v1255, %v1248
    %v1578 = vpack.c.b16 %v1256, %v1249
    %v1579 = vpack.c.b16 %v1257, %v1250
    %v1580 = vpack.c.b16 %v1265, %v1258
    %v1581 = vpack.c.b16 %v1266, %v1259
    %v1582 = vpack.c.b16 %v1267, %v1260
    %v1583 = vpack.c.b16 %v1268, %v1261
    %v1584 = vpack.c.b16 %v1269, %v1262
    %v1585 = vpack.c.b16 %v1270, %v1263
    %v1586 = vpack.c.b16 %v1271, %v1264
    %v1587 = vpack.c.b16 %v1279, %v1272
    %v1588 = vpack.c.b16 %v1280, %v1273
    %v1589 = vpack.c.b16 %v1281, %v1274
    %v1590 = vpack.c.b16 %v1282, %v1275
    %v1591 = vpack.c.b16 %v1283, %v1276
    %v1592 = vpack.c.b16 %v1284, %v1277
    %v1593 = vpack.c.b16 %v1285, %v1278
    %v1594 = vpack.c.b16 %v1293, %v1286
    %v1595 = vpack.c.b16 %v1294, %v1287
    %v1596 = vpack.c.b16 %v1295, %v1288
    %v1597 = vpack.c.b16 %v1296, %v1289
    %v1598 = vpack.c.b16 %v1297, %v1290
    %v1599 = vpack.c.b16 %v1298, %v1291
    %v1600 = vpack.c.b16 %v1299, %v1292
    %v1601 = vpack.c.b16 %v1307, %v1300
    %v1602 = vpack.c.b16 %v1308, %v1301
    %v1603 = vpack.c.b16 %v1309, %v1302
    %v1604 = vpack.c.b16 %v1310, %v1303
    %v1605 = vpack.c.b16 %v1311, %v1304
    %v1606 = vpack.c.b16 %v1312, %v1305
    %v1607 = vpack.c.b16 %v1313, %v1306
    %v1608 = vpack.c.b16 %v1321, %v1314
    %v1609 = vpack.c.b16 %v1322, %v1315
    %v1610 = vpack.c.b16 %v1323, %v1316
    %v1611 = vpack.c.b16 %v1324, %v1317
    %v1612 = vpack.c.b16 %v1325, %v1318
    %v1613 = vpack.c.b16 %v1326, %v1319
    %v1614 = vpack.c.b16 %v1327, %v1320
    %v1615 = vpack.c.b16 %v1335, %v1328
    %v1616 = vpack.c.b16 %v1336, %v1329
    %v1617 = vpack.c.b16 %v1337, %v1330
    %v1618 = vpack.c.b16 %v1338, %v1331
    %v1619 = vpack.c.b16 %v1339, %v1332
    %v1620 = vpack.c.b16 %v1340, %v1333
    %v1621 = vpack.c.b16 %v1341, %v1334
    %v1622 = vpack.c.b16 %v1349, %v1342
    %v1623 = vpack.c.b16 %v1350, %v1343
    %v1624 = vpack.c.b16 %v1351, %v1344
    %v1625 = vpack.c.b16 %v1352, %v1345
    %v1626 = vpack.c.b16 %v1353, %v1346
    %v1627 = vpack.c.b16 %v1354, %v1347
    %v1628 = vpack.c.b16 %v1355, %v1348
    %v1629 = vpack.c.b16 %v1363, %v1356
    %v1630 = vpack.c.b16 %v1364, %v1357
    %v1631 = vpack.c.b16 %v1365, %v1358
    %v1632 = vpack.c.b16 %v1366, %v1359
    %v1633 = vpack.c.b16 %v1367, %v1360
    %v1634 = vpack.c.b16 %v1368, %v1361
    %v1635 = vpack.c.b16 %v1369, %v1362
    %v1636 = vpack.c.b16 %v1377, %v1370
    %v1637 = vpack.c.b16 %v1378, %v1371
    %v1638 = vpack.c.b16 %v1379, %v1372
    %v1639 = vpack.c.b16 %v1380, %v1373
    %v1640 = vpack.c.b16 %v1381, %v1374
    %v1641 = vpack.c.b16 %v1382, %v1375
    %v1642 = vpack.c.b16 %v1383, %v1376
    %v1643 = vpack.c.b16 %v1391, %v1384
    %v1644 = vpack.c.b16 %v1392, %v1385
    %v1645 = vpack.c.b16 %v1393, %v1386
    %v1646 = vpack.c.b16 %v1394, %v1387
    %v1647 = vpack.c.b16 %v1395, %v1388
    %v1648 = vpack.c.b16 %v1396, %v1389
    %v1649 = vpack.c.b16 %v1397, %v1390
    %v1650 = vpack.c.b16 %v1405, %v1398
    %v1651 = vpack.c.b16 %v1406, %v1399
    %v1652 = vpack.c.b16 %v1407, %v1400
    %v1653 = vpack.c.b16 %v1408, %v1401
    %v1654 = vpack.c.b16 %v1409, %v1402
    %v1655 = vpack.c.b16 %v1410, %v1403
    %v1656 = vpack.c.b16 %v1411, %v1404
    %v1657 = vpack.c.b16 %v1419, %v1412
    %v1658 = vpack.c.b16 %v1420, %v1413
    %v1659 = vpack.c.b16 %v1421, %v1414
    %v1660 = vpack.c.b16 %v1422, %v1415
    %v1661 = vpack.c.b16 %v1423, %v1416
    %v1662 = vpack.c.b16 %v1424, %v1417
    %v1663 = vpack.c.b16 %v1425, %v1418
    %v1664 = vpack.c.b16 %v1433, %v1426
    %v1665 = vpack.c.b16 %v1434, %v1427
    %v1666 = vpack.c.b16 %v1435, %v1428
    %v1667 = vpack.c.b16 %v1436, %v1429
    %v1668 = vpack.c.b16 %v1437, %v1430
    %v1669 = vpack.c.b16 %v1438, %v1431
    %v1670 = vpack.c.b16 %v1439, %v1432
    %v1671 = vpack.c.b16 %v1447, %v1440
    %v1672 = vpack.c.b16 %v1448, %v1441
    %v1673 = vpack.c.b16 %v1449, %v1442
    %v1674 = vpack.c.b16 %v1450, %v1443
    %v1675 = vpack.c.b16 %v1451, %v1444
    %v1676 = vpack.c.b16 %v1452, %v1445
    %v1677 = vpack.c.b16 %v1453, %v1446
    %1902 = vmatpush.bf16.msra.mxu0 %v1503
    %1903 = vmatpush.bf16.msra.mxu0 %v1496
    %1904 = vmatpush.bf16.msra.mxu0 %v1489
    %1905 = vmatpush.bf16.msra.mxu0 %v1482
    %1906 = vmatpush.bf16.msra.mxu0 %v1475
    %1907 = vmatpush.bf16.msra.mxu0 %v1468
    %1908 = vmatpush.bf16.msra.mxu0 %v1461
    %1909 = vmatpush.bf16.msra.mxu0 %v1454
    %1910 = vmatmul.bf16.gmra.mxu0 %v474
    %v1911 = vpop.f32.mrf.mxu0
    %v1912 = vadd.f32 %v736, %v1911
    %v1913 = vpop.f32.mrf.mxu0
    %v1914 = vadd.f32 %v736, %v1913
    %1915 = vdwg.mxu0
    %1916 = vmatpush.bf16.msra.mxu0 %v1559
    %1917 = vmatpush.bf16.msra.mxu0 %v1552
    %1918 = vmatpush.bf16.msra.mxu0 %v1545
    %1919 = vmatpush.bf16.msra.mxu0 %v1538
    %1920 = vmatpush.bf16.msra.mxu0 %v1531
    %1921 = vmatpush.bf16.msra.mxu0 %v1524
    %1922 = vmatpush.bf16.msra.mxu0 %v1517
    %1923 = vmatpush.bf16.msra.mxu0 %v1510
    %1924 = vmatmul.bf16.gmra.mxu0 %v475
    %v1925 = vpop.f32.mrf.mxu0
    %v1926 = vadd.f32 %v1912, %v1925
    %v1927 = vpop.f32.mrf.mxu0
    %v1928 = vadd.f32 %v1914, %v1927
    %1929 = vdwg.mxu0
    %1930 = vmatpush.bf16.msra.mxu0 %v1615
    %1931 = vmatpush.bf16.msra.mxu0 %v1608
    %1932 = vmatpush.bf16.msra.mxu0 %v1601
    %1933 = vmatpush.bf16.msra.mxu0 %v1594
    %1934 = vmatpush.bf16.msra.mxu0 %v1587
    %1935 = vmatpush.bf16.msra.mxu0 %v1580
    %1936 = vmatpush.bf16.msra.mxu0 %v1573
    %1937 = vmatpush.bf16.msra.mxu0 %v1566
    %1938 = vmatmul.bf16.gmra.mxu0 %v476
    %v1939 = vpop.f32.mrf.mxu0
    %v1940 = vadd.f32 %v1926, %v1939
    %v1941 = vpop.f32.mrf.mxu0
    %v1942 = vadd.f32 %v1928, %v1941
    %1943 = vdwg.mxu0
    %1944 = vmatpush.bf16.msra.mxu0 %v1671
    %1945 = vmatpush.bf16.msra.mxu0 %v1664
    %1946 = vmatpush.bf16.msra.mxu0 %v1657
    %1947 = vmatpush.bf16.msra.mxu0 %v1650
    %1948 = vmatpush.bf16.msra.mxu0 %v1643
    %1949 = vmatpush.bf16.msra.mxu0 %v1636
    %1950 = vmatpush.bf16.msra.mxu0 %v1629
    %1951 = vmatpush.bf16.msra.mxu0 %v1622
    %1952 = vmatmul.bf16.gmra.mxu0 %v477
    %v1953 = vpop.f32.mrf.mxu0
    %v1954 = vadd.f32 %v1940, %v1953
    %v1955 = vpop.f32.mrf.mxu0
    %v1956 = vadd.f32 %v1942, %v1955
    %1957 = vdwg.mxu0
    %1958 = vmatpush.bf16.msra.mxu0 %v1504
    %1959 = vmatpush.bf16.msra.mxu0 %v1497
    %1960 = vmatpush.bf16.msra.mxu0 %v1490
    %1961 = vmatpush.bf16.msra.mxu0 %v1483
    %1962 = vmatpush.bf16.msra.mxu0 %v1476
    %1963 = vmatpush.bf16.msra.mxu0 %v1469
    %1964 = vmatpush.bf16.msra.mxu0 %v1462
    %1965 = vmatpush.bf16.msra.mxu0 %v1455
    %1966 = vmatmul.bf16.gmra.mxu0 %v474
    %v1967 = vpop.f32.mrf.mxu0
    %v1968 = vadd.f32 %v737, %v1967
    %v1969 = vpop.f32.mrf.mxu0
    %v1970 = vadd.f32 %v737, %v1969
    %1971 = vdwg.mxu0
    %1972 = vmatpush.bf16.msra.mxu0 %v1560
    %1973 = vmatpush.bf16.msra.mxu0 %v1553
    %1974 = vmatpush.bf16.msra.mxu0 %v1546
    %1975 = vmatpush.bf16.msra.mxu0 %v1539
    %1976 = vmatpush.bf16.msra.mxu0 %v1532
    %1977 = vmatpush.bf16.msra.mxu0 %v1525
    %1978 = vmatpush.bf16.msra.mxu0 %v1518
    %1979 = vmatpush.bf16.msra.mxu0 %v1511
    %1980 = vmatmul.bf16.gmra.mxu0 %v475
    %v1981 = vpop.f32.mrf.mxu0
    %v1982 = vadd.f32 %v1968, %v1981
    %v1983 = vpop.f32.mrf.mxu0
    %v1984 = vadd.f32 %v1970, %v1983
    %1985 = vdwg.mxu0
    %1986 = vmatpush.bf16.msra.mxu0 %v1616
    %1987 = vmatpush.bf16.msra.mxu0 %v1609
    %1988 = vmatpush.bf16.msra.mxu0 %v1602
    %1989 = vmatpush.bf16.msra.mxu0 %v1595
    %1990 = vmatpush.bf16.msra.mxu0 %v1588
    %1991 = vmatpush.bf16.msra.mxu0 %v1581
    %1992 = vmatpush.bf16.msra.mxu0 %v1574
    %1993 = vmatpush.bf16.msra.mxu0 %v1567
    %1994 = vmatmul.bf16.gmra.mxu0 %v476
    %v1995 = vpop.f32.mrf.mxu0
    %v1996 = vadd.f32 %v1982, %v1995
    %v1997 = vpop.f32.mrf.mxu0
    %v1998 = vadd.f32 %v1984, %v1997
    %1999 = vdwg.mxu0
    %2000 = vmatpush.bf16.msra.mxu0 %v1672
    %2001 = vmatpush.bf16.msra.mxu0 %v1665
    %2002 = vmatpush.bf16.msra.mxu0 %v1658
    %2003 = vmatpush.bf16.msra.mxu0 %v1651
    %2004 = vmatpush.bf16.msra.mxu0 %v1644
    %2005 = vmatpush.bf16.msra.mxu0 %v1637
    %2006 = vmatpush.bf16.msra.mxu0 %v1630
    %2007 = vmatpush.bf16.msra.mxu0 %v1623
    %2008 = vmatmul.bf16.gmra.mxu0 %v477
    %v2009 = vpop.f32.mrf.mxu0
    %v2010 = vadd.f32 %v1996, %v2009
    %v2011 = vpop.f32.mrf.mxu0
    %v2012 = vadd.f32 %v1998, %v2011
    %2013 = vdwg.mxu0
    %2014 = vmatpush.bf16.msra.mxu0 %v1505
    %2015 = vmatpush.bf16.msra.mxu0 %v1498
    %2016 = vmatpush.bf16.msra.mxu0 %v1491
    %2017 = vmatpush.bf16.msra.mxu0 %v1484
    %2018 = vmatpush.bf16.msra.mxu0 %v1477
    %2019 = vmatpush.bf16.msra.mxu0 %v1470
    %2020 = vmatpush.bf16.msra.mxu0 %v1463
    %2021 = vmatpush.bf16.msra.mxu0 %v1456
    %2022 = vmatmul.bf16.gmra.mxu0 %v474
    %v2023 = vpop.f32.mrf.mxu0
    %v2024 = vadd.f32 %v738, %v2023
    %v2025 = vpop.f32.mrf.mxu0
    %v2026 = vadd.f32 %v738, %v2025
    %2027 = vdwg.mxu0
    %2028 = vmatpush.bf16.msra.mxu0 %v1561
    %2029 = vmatpush.bf16.msra.mxu0 %v1554
    %2030 = vmatpush.bf16.msra.mxu0 %v1547
    %2031 = vmatpush.bf16.msra.mxu0 %v1540
    %2032 = vmatpush.bf16.msra.mxu0 %v1533
    %2033 = vmatpush.bf16.msra.mxu0 %v1526
    %2034 = vmatpush.bf16.msra.mxu0 %v1519
    %2035 = vmatpush.bf16.msra.mxu0 %v1512
    %2036 = vmatmul.bf16.gmra.mxu0 %v475
    %v2037 = vpop.f32.mrf.mxu0
    %v2038 = vadd.f32 %v2024, %v2037
    %v2039 = vpop.f32.mrf.mxu0
    %v2040 = vadd.f32 %v2026, %v2039
    %2041 = vdwg.mxu0
    %2042 = vmatpush.bf16.msra.mxu0 %v1617
    %2043 = vmatpush.bf16.msra.mxu0 %v1610
    %2044 = vmatpush.bf16.msra.mxu0 %v1603
    %2045 = vmatpush.bf16.msra.mxu0 %v1596
    %2046 = vmatpush.bf16.msra.mxu0 %v1589
    %2047 = vmatpush.bf16.msra.mxu0 %v1582
    %2048 = vmatpush.bf16.msra.mxu0 %v1575
    %2049 = vmatpush.bf16.msra.mxu0 %v1568
    %2050 = vmatmul.bf16.gmra.mxu0 %v476
    %v2051 = vpop.f32.mrf.mxu0
    %v2052 = vadd.f32 %v2038, %v2051
    %v2053 = vpop.f32.mrf.mxu0
    %v2054 = vadd.f32 %v2040, %v2053
    %2055 = vdwg.mxu0
    %2056 = vmatpush.bf16.msra.mxu0 %v1673
    %2057 = vmatpush.bf16.msra.mxu0 %v1666
    %2058 = vmatpush.bf16.msra.mxu0 %v1659
    %2059 = vmatpush.bf16.msra.mxu0 %v1652
    %2060 = vmatpush.bf16.msra.mxu0 %v1645
    %2061 = vmatpush.bf16.msra.mxu0 %v1638
    %2062 = vmatpush.bf16.msra.mxu0 %v1631
    %2063 = vmatpush.bf16.msra.mxu0 %v1624
    %2064 = vmatmul.bf16.gmra.mxu0 %v477
    %v2065 = vpop.f32.mrf.mxu0
    %v2066 = vadd.f32 %v2052, %v2065
    %v2067 = vpop.f32.mrf.mxu0
    %v2068 = vadd.f32 %v2054, %v2067
    %2069 = vdwg.mxu0
    %2070 = vmatpush.bf16.msra.mxu0 %v1506
    %2071 = vmatpush.bf16.msra.mxu0 %v1499
    %2072 = vmatpush.bf16.msra.mxu0 %v1492
    %2073 = vmatpush.bf16.msra.mxu0 %v1485
    %2074 = vmatpush.bf16.msra.mxu0 %v1478
    %2075 = vmatpush.bf16.msra.mxu0 %v1471
    %2076 = vmatpush.bf16.msra.mxu0 %v1464
    %2077 = vmatpush.bf16.msra.mxu0 %v1457
    %2078 = vmatmul.bf16.gmra.mxu0 %v474
    %v2079 = vpop.f32.mrf.mxu0
    %v2080 = vadd.f32 %v739, %v2079
    %v2081 = vpop.f32.mrf.mxu0
    %v2082 = vadd.f32 %v739, %v2081
    %2083 = vdwg.mxu0
    %2084 = vmatpush.bf16.msra.mxu0 %v1562
    %2085 = vmatpush.bf16.msra.mxu0 %v1555
    %2086 = vmatpush.bf16.msra.mxu0 %v1548
    %2087 = vmatpush.bf16.msra.mxu0 %v1541
    %2088 = vmatpush.bf16.msra.mxu0 %v1534
    %2089 = vmatpush.bf16.msra.mxu0 %v1527
    %2090 = vmatpush.bf16.msra.mxu0 %v1520
    %2091 = vmatpush.bf16.msra.mxu0 %v1513
    %2092 = vmatmul.bf16.gmra.mxu0 %v475
    %v2093 = vpop.f32.mrf.mxu0
    %v2094 = vadd.f32 %v2080, %v2093
    %v2095 = vpop.f32.mrf.mxu0
    %v2096 = vadd.f32 %v2082, %v2095
    %2097 = vdwg.mxu0
    %2098 = vmatpush.bf16.msra.mxu0 %v1618
    %2099 = vmatpush.bf16.msra.mxu0 %v1611
    %2100 = vmatpush.bf16.msra.mxu0 %v1604
    %2101 = vmatpush.bf16.msra.mxu0 %v1597
    %2102 = vmatpush.bf16.msra.mxu0 %v1590
    %2103 = vmatpush.bf16.msra.mxu0 %v1583
    %2104 = vmatpush.bf16.msra.mxu0 %v1576
    %2105 = vmatpush.bf16.msra.mxu0 %v1569
    %2106 = vmatmul.bf16.gmra.mxu0 %v476
    %v2107 = vpop.f32.mrf.mxu0
    %v2108 = vadd.f32 %v2094, %v2107
    %v2109 = vpop.f32.mrf.mxu0
    %v2110 = vadd.f32 %v2096, %v2109
    %2111 = vdwg.mxu0
    %2112 = vmatpush.bf16.msra.mxu0 %v1674
    %2113 = vmatpush.bf16.msra.mxu0 %v1667
    %2114 = vmatpush.bf16.msra.mxu0 %v1660
    %2115 = vmatpush.bf16.msra.mxu0 %v1653
    %2116 = vmatpush.bf16.msra.mxu0 %v1646
    %2117 = vmatpush.bf16.msra.mxu0 %v1639
    %2118 = vmatpush.bf16.msra.mxu0 %v1632
    %2119 = vmatpush.bf16.msra.mxu0 %v1625
    %2120 = vmatmul.bf16.gmra.mxu0 %v477
    %v2121 = vpop.f32.mrf.mxu0
    %v2122 = vadd.f32 %v2108, %v2121
    %v2123 = vpop.f32.mrf.mxu0
    %v2124 = vadd.f32 %v2110, %v2123
    %2125 = vdwg.mxu0
    %2126 = vmatpush.bf16.msra.mxu0 %v1507
    %2127 = vmatpush.bf16.msra.mxu0 %v1500
    %2128 = vmatpush.bf16.msra.mxu0 %v1493
    %2129 = vmatpush.bf16.msra.mxu0 %v1486
    %2130 = vmatpush.bf16.msra.mxu0 %v1479
    %2131 = vmatpush.bf16.msra.mxu0 %v1472
    %2132 = vmatpush.bf16.msra.mxu0 %v1465
    %2133 = vmatpush.bf16.msra.mxu0 %v1458
    %2134 = vmatmul.bf16.gmra.mxu0 %v474
    %v2135 = vpop.f32.mrf.mxu0
    %v2136 = vadd.f32 %v740, %v2135
    %v2137 = vpop.f32.mrf.mxu0
    %v2138 = vadd.f32 %v740, %v2137
    %2139 = vdwg.mxu0
    %2140 = vmatpush.bf16.msra.mxu0 %v1563
    %2141 = vmatpush.bf16.msra.mxu0 %v1556
    %2142 = vmatpush.bf16.msra.mxu0 %v1549
    %2143 = vmatpush.bf16.msra.mxu0 %v1542
    %2144 = vmatpush.bf16.msra.mxu0 %v1535
    %2145 = vmatpush.bf16.msra.mxu0 %v1528
    %2146 = vmatpush.bf16.msra.mxu0 %v1521
    %2147 = vmatpush.bf16.msra.mxu0 %v1514
    %2148 = vmatmul.bf16.gmra.mxu0 %v475
    %v2149 = vpop.f32.mrf.mxu0
    %v2150 = vadd.f32 %v2136, %v2149
    %v2151 = vpop.f32.mrf.mxu0
    %v2152 = vadd.f32 %v2138, %v2151
    %2153 = vdwg.mxu0
    %2154 = vmatpush.bf16.msra.mxu0 %v1619
    %2155 = vmatpush.bf16.msra.mxu0 %v1612
    %2156 = vmatpush.bf16.msra.mxu0 %v1605
    %2157 = vmatpush.bf16.msra.mxu0 %v1598
    %2158 = vmatpush.bf16.msra.mxu0 %v1591
    %2159 = vmatpush.bf16.msra.mxu0 %v1584
    %2160 = vmatpush.bf16.msra.mxu0 %v1577
    %2161 = vmatpush.bf16.msra.mxu0 %v1570
    %2162 = vmatmul.bf16.gmra.mxu0 %v476
    %v2163 = vpop.f32.mrf.mxu0
    %v2164 = vadd.f32 %v2150, %v2163
    %v2165 = vpop.f32.mrf.mxu0
    %v2166 = vadd.f32 %v2152, %v2165
    %2167 = vdwg.mxu0
    %2168 = vmatpush.bf16.msra.mxu0 %v1675
    %2169 = vmatpush.bf16.msra.mxu0 %v1668
    %2170 = vmatpush.bf16.msra.mxu0 %v1661
    %2171 = vmatpush.bf16.msra.mxu0 %v1654
    %2172 = vmatpush.bf16.msra.mxu0 %v1647
    %2173 = vmatpush.bf16.msra.mxu0 %v1640
    %2174 = vmatpush.bf16.msra.mxu0 %v1633
    %2175 = vmatpush.bf16.msra.mxu0 %v1626
    %2176 = vmatmul.bf16.gmra.mxu0 %v477
    %v2177 = vpop.f32.mrf.mxu0
    %v2178 = vadd.f32 %v2164, %v2177
    %v2179 = vpop.f32.mrf.mxu0
    %v2180 = vadd.f32 %v2166, %v2179
    %2181 = vdwg.mxu0
    %2182 = vmatpush.bf16.msra.mxu0 %v1508
    %2183 = vmatpush.bf16.msra.mxu0 %v1501
    %2184 = vmatpush.bf16.msra.mxu0 %v1494
    %2185 = vmatpush.bf16.msra.mxu0 %v1487
    %2186 = vmatpush.bf16.msra.mxu0 %v1480
    %2187 = vmatpush.bf16.msra.mxu0 %v1473
    %2188 = vmatpush.bf16.msra.mxu0 %v1466
    %2189 = vmatpush.bf16.msra.mxu0 %v1459
    %2190 = vmatmul.bf16.gmra.mxu0 %v474
    %v2191 = vpop.f32.mrf.mxu0
    %v2192 = vadd.f32 %v741, %v2191
    %v2193 = vpop.f32.mrf.mxu0
    %v2194 = vadd.f32 %v741, %v2193
    %2195 = vdwg.mxu0
    %2196 = vmatpush.bf16.msra.mxu0 %v1564
    %2197 = vmatpush.bf16.msra.mxu0 %v1557
    %2198 = vmatpush.bf16.msra.mxu0 %v1550
    %2199 = vmatpush.bf16.msra.mxu0 %v1543
    %2200 = vmatpush.bf16.msra.mxu0 %v1536
    %2201 = vmatpush.bf16.msra.mxu0 %v1529
    %2202 = vmatpush.bf16.msra.mxu0 %v1522
    %2203 = vmatpush.bf16.msra.mxu0 %v1515
    %2204 = vmatmul.bf16.gmra.mxu0 %v475
    %v2205 = vpop.f32.mrf.mxu0
    %v2206 = vadd.f32 %v2192, %v2205
    %v2207 = vpop.f32.mrf.mxu0
    %v2208 = vadd.f32 %v2194, %v2207
    %2209 = vdwg.mxu0
    %2210 = vmatpush.bf16.msra.mxu0 %v1620
    %2211 = vmatpush.bf16.msra.mxu0 %v1613
    %2212 = vmatpush.bf16.msra.mxu0 %v1606
    %2213 = vmatpush.bf16.msra.mxu0 %v1599
    %2214 = vmatpush.bf16.msra.mxu0 %v1592
    %2215 = vmatpush.bf16.msra.mxu0 %v1585
    %2216 = vmatpush.bf16.msra.mxu0 %v1578
    %2217 = vmatpush.bf16.msra.mxu0 %v1571
    %2218 = vmatmul.bf16.gmra.mxu0 %v476
    %v2219 = vpop.f32.mrf.mxu0
    %v2220 = vadd.f32 %v2206, %v2219
    %v2221 = vpop.f32.mrf.mxu0
    %v2222 = vadd.f32 %v2208, %v2221
    %2223 = vdwg.mxu0
    %2224 = vmatpush.bf16.msra.mxu0 %v1676
    %2225 = vmatpush.bf16.msra.mxu0 %v1669
    %2226 = vmatpush.bf16.msra.mxu0 %v1662
    %2227 = vmatpush.bf16.msra.mxu0 %v1655
    %2228 = vmatpush.bf16.msra.mxu0 %v1648
    %2229 = vmatpush.bf16.msra.mxu0 %v1641
    %2230 = vmatpush.bf16.msra.mxu0 %v1634
    %2231 = vmatpush.bf16.msra.mxu0 %v1627
    %2232 = vmatmul.bf16.gmra.mxu0 %v477
    %v2233 = vpop.f32.mrf.mxu0
    %v2234 = vadd.f32 %v2220, %v2233
    %v2235 = vpop.f32.mrf.mxu0
    %v2236 = vadd.f32 %v2222, %v2235
    %2237 = vdwg.mxu0
    %2238 = vmatpush.bf16.msra.mxu0 %v1509
    %2239 = vmatpush.bf16.msra.mxu0 %v1502
    %2240 = vmatpush.bf16.msra.mxu0 %v1495
    %2241 = vmatpush.bf16.msra.mxu0 %v1488
    %2242 = vmatpush.bf16.msra.mxu0 %v1481
    %2243 = vmatpush.bf16.msra.mxu0 %v1474
    %2244 = vmatpush.bf16.msra.mxu0 %v1467
    %2245 = vmatpush.bf16.msra.mxu0 %v1460
    %2246 = vmatmul.bf16.gmra.mxu0 %v474
    %v2247 = vpop.f32.mrf.mxu0
    %v2248 = vadd.f32 %v742, %v2247
    %v2249 = vpop.f32.mrf.mxu0
    %v2250 = vadd.f32 %v742, %v2249
    %2251 = vdwg.mxu0
    %2252 = vmatpush.bf16.msra.mxu0 %v1565
    %2253 = vmatpush.bf16.msra.mxu0 %v1558
    %2254 = vmatpush.bf16.msra.mxu0 %v1551
    %2255 = vmatpush.bf16.msra.mxu0 %v1544
    %2256 = vmatpush.bf16.msra.mxu0 %v1537
    %2257 = vmatpush.bf16.msra.mxu0 %v1530
    %2258 = vmatpush.bf16.msra.mxu0 %v1523
    %2259 = vmatpush.bf16.msra.mxu0 %v1516
    %2260 = vmatmul.bf16.gmra.mxu0 %v475
    %v2261 = vpop.f32.mrf.mxu0
    %v2262 = vadd.f32 %v2248, %v2261
    %v2263 = vpop.f32.mrf.mxu0
    %v2264 = vadd.f32 %v2250, %v2263
    %2265 = vdwg.mxu0
    %2266 = vmatpush.bf16.msra.mxu0 %v1621
    %2267 = vmatpush.bf16.msra.mxu0 %v1614
    %2268 = vmatpush.bf16.msra.mxu0 %v1607
    %2269 = vmatpush.bf16.msra.mxu0 %v1600
    %2270 = vmatpush.bf16.msra.mxu0 %v1593
    %2271 = vmatpush.bf16.msra.mxu0 %v1586
    %2272 = vmatpush.bf16.msra.mxu0 %v1579
    %2273 = vmatpush.bf16.msra.mxu0 %v1572
    %2274 = vmatmul.bf16.gmra.mxu0 %v476
    %v2275 = vpop.f32.mrf.mxu0
    %v2276 = vadd.f32 %v2262, %v2275
    %v2277 = vpop.f32.mrf.mxu0
    %v2278 = vadd.f32 %v2264, %v2277
    %2279 = vdwg.mxu0
    %2280 = vmatpush.bf16.msra.mxu0 %v1677
    %2281 = vmatpush.bf16.msra.mxu0 %v1670
    %2282 = vmatpush.bf16.msra.mxu0 %v1663
    %2283 = vmatpush.bf16.msra.mxu0 %v1656
    %2284 = vmatpush.bf16.msra.mxu0 %v1649
    %2285 = vmatpush.bf16.msra.mxu0 %v1642
    %2286 = vmatpush.bf16.msra.mxu0 %v1635
    %2287 = vmatpush.bf16.msra.mxu0 %v1628
    %2288 = vmatmul.bf16.gmra.mxu0 %v477
    %v2289 = vpop.f32.mrf.mxu0
    %v2290 = vadd.f32 %v2276, %v2289
    %v2291 = vpop.f32.mrf.mxu0
    %v2292 = vadd.f32 %v2278, %v2291
    %2293 = vdwg.mxu0
    %v2294 = vmax.f32 %v1954, 0.0
    %v2295 = vmax.f32 %v2010, 0.0
    %v2296 = vmax.f32 %v2066, 0.0
    %v2297 = vmax.f32 %v2122, 0.0
    %v2298 = vmax.f32 %v2178, 0.0
    %v2299 = vmax.f32 %v2234, 0.0
    %v2300 = vmax.f32 %v2290, 0.0
    %v2301 = vmax.f32 %v1956, 0.0
    %v2302 = vmax.f32 %v2012, 0.0
    %v2303 = vmax.f32 %v2068, 0.0
    %v2304 = vmax.f32 %v2124, 0.0
    %v2305 = vmax.f32 %v2180, 0.0
    %v2306 = vmax.f32 %v2236, 0.0
    %v2307 = vmax.f32 %v2292, 0.0
    %v2308 = vpack.c.bf16 %v2301, %v2294
    %v2309 = vpack.c.bf16 %v2302, %v2295
    %v2310 = vpack.c.bf16 %v2303, %v2296
    %v2311 = vpack.c.bf16 %v2304, %v2297
    %v2312 = vpack.c.bf16 %v2305, %v2298
    %v2313 = vpack.c.bf16 %v2306, %v2299
    %v2314 = vpack.c.bf16 %v2307, %v2300
    %v2315 = vld [vmem:[#allocation9] sm:$0xff]
    %v2316 = vld [vmem:[#allocation9 + $0x8] sm:$0xff]
    %v2317 = vld [vmem:[#allocation9 + $0x10] sm:$0xff]
    %v2318 = vld [vmem:[#allocation9 + $0x18] sm:$0xff]
    %v2319 = vld [vmem:[#allocation9 + $0x20] sm:$0xff]
    %v2320 = vld [vmem:[#allocation9 + $0x28] sm:$0xff]
    %v2321 = vld [vmem:[#allocation9 + $0x30] sm:$0xff]
    %v2322 = vld [vmem:[#allocation9 + $0x38] sm:$0xff]
    %v2323 = vld [vmem:[#allocation9 + $0x40] sm:$0xff]
    %v2324 = vld [vmem:[#allocation9 + $0x48] sm:$0xff]
    %v2325 = vld [vmem:[#allocation9 + $0x50] sm:$0xff]
    %v2326 = vld [vmem:[#allocation9 + $0x58] sm:$0xff]
    %v2327 = vld [vmem:[#allocation9 + $0x60] sm:$0xff]
    %v2328 = vld [vmem:[#allocation9 + $0x68] sm:$0xff]
    %v2329 = vld [vmem:[#allocation9 + $0x70] sm:$0xff]
    %v2330 = vld [vmem:[#allocation9 + $0x78] sm:$0xff]
    %v2331 = vld [vmem:[#allocation9 + $0x80] sm:$0xff]
    %v2332 = vld [vmem:[#allocation9 + $0x88] sm:$0xff]
    %v2333 = vld [vmem:[#allocation9 + $0x90] sm:$0xff]
    %v2334 = vld [vmem:[#allocation9 + $0x98] sm:$0xff]
    %v2335 = vld [vmem:[#allocation9 + $0xa0] sm:$0xff]
    %v2336 = vld [vmem:[#allocation9 + $0xa8] sm:$0xff]
    %v2337 = vld [vmem:[#allocation9 + $0xb0] sm:$0xff]
    %v2338 = vld [vmem:[#allocation9 + $0xb8] sm:$0xff]
    %v2339 = vld [vmem:[#allocation9 + $0xc0] sm:$0xff]
    %v2340 = vld [vmem:[#allocation9 + $0xc8] sm:$0xff]
    %v2341 = vld [vmem:[#allocation9 + $0xd0] sm:$0xff]
    %v2342 = vld [vmem:[#allocation9 + $0xd8] sm:$0xff]
    %v2343 = vld [vmem:[#allocation9 + $0xe0] sm:$0xff]
    %v2344 = vld [vmem:[#allocation9 + $0xe8] sm:$0xff]
    %v2345 = vld [vmem:[#allocation9 + $0xf0] sm:$0xff]
    %v2346 = vld [vmem:[#allocation9 + $0xf8] sm:$0xff]
    %v2347 = vld [vmem:[#allocation9 + $0x100] sm:$0xff]
    %v2348 = vld [vmem:[#allocation9 + $0x108] sm:$0xff]
    %v2349 = vld [vmem:[#allocation9 + $0x110] sm:$0xff]
    %v2350 = vld [vmem:[#allocation9 + $0x118] sm:$0xff]
    %v2351 = vld [vmem:[#allocation9 + $0x120] sm:$0xff]
    %v2352 = vld [vmem:[#allocation9 + $0x128] sm:$0xff]
    %v2353 = vld [vmem:[#allocation9 + $0x130] sm:$0xff]
    %v2354 = vld [vmem:[#allocation9 + $0x138] sm:$0xff]
    %v2355 = vld [vmem:[#allocation9 + $0x140] sm:$0xff]
    %v2356 = vld [vmem:[#allocation9 + $0x148] sm:$0xff]
    %v2357 = vld [vmem:[#allocation9 + $0x150] sm:$0xff]
    %v2358 = vld [vmem:[#allocation9 + $0x158] sm:$0xff]
    %v2359 = vld [vmem:[#allocation9 + $0x160] sm:$0xff]
    %v2360 = vld [vmem:[#allocation9 + $0x168] sm:$0xff]
    %v2361 = vld [vmem:[#allocation9 + $0x170] sm:$0xff]
    %v2362 = vld [vmem:[#allocation9 + $0x178] sm:$0xff]
    %v2363 = vld [vmem:[#allocation9 + $0x180] sm:$0xff]
    %v2364 = vld [vmem:[#allocation9 + $0x188] sm:$0xff]
    %v2365 = vld [vmem:[#allocation9 + $0x190] sm:$0xff]
    %v2366 = vld [vmem:[#allocation9 + $0x198] sm:$0xff]
    %v2367 = vld [vmem:[#allocation9 + $0x1a0] sm:$0xff]
    %v2368 = vld [vmem:[#allocation9 + $0x1a8] sm:$0xff]
    %v2369 = vld [vmem:[#allocation9 + $0x1b0] sm:$0xff]
    %v2370 = vld [vmem:[#allocation9 + $0x1b8] sm:$0xff]
    %v2371 = vld [vmem:[#allocation9 + $0x1c0] sm:$0xff]
    %v2372 = vld [vmem:[#allocation9 + $0x1c8] sm:$0xff]
    %v2373 = vld [vmem:[#allocation9 + $0x1d0] sm:$0xff]
    %v2374 = vld [vmem:[#allocation9 + $0x1d8] sm:$0xff]
    %v2375 = vld [vmem:[#allocation9 + $0x1e0] sm:$0xff]
    %v2376 = vld [vmem:[#allocation9 + $0x1e8] sm:$0xff]
    %v2377 = vld [vmem:[#allocation9 + $0x1f0] sm:$0xff]
    %v2378 = vld [vmem:[#allocation9 + $0x1f8] sm:$0xff]
    %v2379 = vld [vmem:[#allocation9 + $0x200] sm:$0xff]
    %v2380 = vld [vmem:[#allocation9 + $0x208] sm:$0xff]
    %v2381 = vld [vmem:[#allocation9 + $0x210] sm:$0xff]
    %v2382 = vld [vmem:[#allocation9 + $0x218] sm:$0xff]
    %v2383 = vld [vmem:[#allocation9 + $0x220] sm:$0xff]
    %v2384 = vld [vmem:[#allocation9 + $0x228] sm:$0xff]
    %v2385 = vld [vmem:[#allocation9 + $0x230] sm:$0xff]
    %v2386 = vld [vmem:[#allocation9 + $0x238] sm:$0xff]
    %v2387 = vld [vmem:[#allocation9 + $0x240] sm:$0xff]
    %v2388 = vld [vmem:[#allocation9 + $0x248] sm:$0xff]
    %v2389 = vld [vmem:[#allocation9 + $0x250] sm:$0xff]
    %v2390 = vld [vmem:[#allocation9 + $0x258] sm:$0xff]
    %v2391 = vld [vmem:[#allocation9 + $0x260] sm:$0xff]
    %v2392 = vld [vmem:[#allocation9 + $0x268] sm:$0xff]
    %v2393 = vld [vmem:[#allocation9 + $0x270] sm:$0xff]
    %v2394 = vld [vmem:[#allocation9 + $0x278] sm:$0xff]
    %v2395 = vld [vmem:[#allocation9 + $0x280] sm:$0xff]
    %v2396 = vld [vmem:[#allocation9 + $0x288] sm:$0xff]
    %v2397 = vld [vmem:[#allocation9 + $0x290] sm:$0xff]
    %v2398 = vld [vmem:[#allocation9 + $0x298] sm:$0xff]
    %v2399 = vld [vmem:[#allocation9 + $0x2a0] sm:$0xff]
    %v2400 = vld [vmem:[#allocation9 + $0x2a8] sm:$0xff]
    %v2401 = vld [vmem:[#allocation9 + $0x2b0] sm:$0xff]
    %v2402 = vld [vmem:[#allocation9 + $0x2b8] sm:$0xff]
    %v2403 = vld [vmem:[#allocation9 + $0x2c0] sm:$0xff]
    %v2404 = vld [vmem:[#allocation9 + $0x2c8] sm:$0xff]
    %v2405 = vld [vmem:[#allocation9 + $0x2d0] sm:$0xff]
    %v2406 = vld [vmem:[#allocation9 + $0x2d8] sm:$0xff]
    %v2407 = vld [vmem:[#allocation9 + $0x2e0] sm:$0xff]
    %v2408 = vld [vmem:[#allocation9 + $0x2e8] sm:$0xff]
    %v2409 = vld [vmem:[#allocation9 + $0x2f0] sm:$0xff]
    %v2410 = vld [vmem:[#allocation9 + $0x2f8] sm:$0xff]
    %v2411 = vld [vmem:[#allocation9 + $0x300] sm:$0xff]
    %v2412 = vld [vmem:[#allocation9 + $0x308] sm:$0xff]
    %v2413 = vld [vmem:[#allocation9 + $0x310] sm:$0xff]
    %v2414 = vld [vmem:[#allocation9 + $0x318] sm:$0xff]
    %v2415 = vld [vmem:[#allocation9 + $0x320] sm:$0xff]
    %v2416 = vld [vmem:[#allocation9 + $0x328] sm:$0xff]
    %v2417 = vld [vmem:[#allocation9 + $0x330] sm:$0xff]
    %v2418 = vld [vmem:[#allocation9 + $0x338] sm:$0xff]
    %v2419 = vld [vmem:[#allocation9 + $0x340] sm:$0xff]
    %v2420 = vld [vmem:[#allocation9 + $0x348] sm:$0xff]
    %v2421 = vld [vmem:[#allocation9 + $0x350] sm:$0xff]
    %v2422 = vld [vmem:[#allocation9 + $0x358] sm:$0xff]
    %v2423 = vld [vmem:[#allocation9 + $0x360] sm:$0xff]
    %v2424 = vld [vmem:[#allocation9 + $0x368] sm:$0xff]
    %v2425 = vld [vmem:[#allocation9 + $0x370] sm:$0xff]
    %v2426 = vld [vmem:[#allocation9 + $0x378] sm:$0xff]
    %v2427 = vld [vmem:[#allocation9 + $0x380] sm:$0xff]
    %v2428 = vld [vmem:[#allocation9 + $0x388] sm:$0xff]
    %v2429 = vld [vmem:[#allocation9 + $0x390] sm:$0xff]
    %v2430 = vld [vmem:[#allocation9 + $0x398] sm:$0xff]
    %v2431 = vld [vmem:[#allocation9 + $0x3a0] sm:$0xff]
    %v2432 = vld [vmem:[#allocation9 + $0x3a8] sm:$0xff]
    %v2433 = vld [vmem:[#allocation9 + $0x3b0] sm:$0xff]
    %v2434 = vld [vmem:[#allocation9 + $0x3b8] sm:$0xff]
    %v2435 = vld [vmem:[#allocation9 + $0x3c0] sm:$0xff]
    %v2436 = vld [vmem:[#allocation9 + $0x3c8] sm:$0xff]
    %v2437 = vld [vmem:[#allocation9 + $0x3d0] sm:$0xff]
    %v2438 = vld [vmem:[#allocation9 + $0x3d8] sm:$0xff]
    %v2439 = vld [vmem:[#allocation9 + $0x3e0] sm:$0xff]
    %v2440 = vld [vmem:[#allocation9 + $0x3e8] sm:$0xff]
    %v2441 = vld [vmem:[#allocation9 + $0x3f0] sm:$0xff]
    %v2442 = vld [vmem:[#allocation9 + $0x3f8] sm:$0xff]
    %v2443 = vld [vmem:[#allocation9 + $0x400] sm:$0xff]
    %v2444 = vld [vmem:[#allocation9 + $0x408] sm:$0xff]
    %v2445 = vld [vmem:[#allocation9 + $0x410] sm:$0xff]
    %v2446 = vld [vmem:[#allocation9 + $0x418] sm:$0xff]
    %v2447 = vld [vmem:[#allocation9 + $0x420] sm:$0xff]
    %v2448 = vld [vmem:[#allocation9 + $0x428] sm:$0xff]
    %v2449 = vld [vmem:[#allocation9 + $0x430] sm:$0xff]
    %v2450 = vld [vmem:[#allocation9 + $0x438] sm:$0xff]
    %v2451 = vld [vmem:[#allocation9 + $0x440] sm:$0xff]
    %v2452 = vld [vmem:[#allocation9 + $0x448] sm:$0xff]
    %v2453 = vld [vmem:[#allocation9 + $0x450] sm:$0xff]
    %v2454 = vld [vmem:[#allocation9 + $0x458] sm:$0xff]
    %v2455 = vld [vmem:[#allocation9 + $0x460] sm:$0xff]
    %v2456 = vld [vmem:[#allocation9 + $0x468] sm:$0xff]
    %v2457 = vld [vmem:[#allocation9 + $0x470] sm:$0xff]
    %v2458 = vld [vmem:[#allocation9 + $0x478] sm:$0xff]
    %v2459 = vld [vmem:[#allocation9 + $0x480] sm:$0xff]
    %v2460 = vld [vmem:[#allocation9 + $0x488] sm:$0xff]
    %v2461 = vld [vmem:[#allocation9 + $0x490] sm:$0xff]
    %v2462 = vld [vmem:[#allocation9 + $0x498] sm:$0xff]
    %v2463 = vld [vmem:[#allocation9 + $0x4a0] sm:$0xff]
    %v2464 = vld [vmem:[#allocation9 + $0x4a8] sm:$0xff]
    %v2465 = vld [vmem:[#allocation9 + $0x4b0] sm:$0xff]
    %v2466 = vld [vmem:[#allocation9 + $0x4b8] sm:$0xff]
    %v2467 = vld [vmem:[#allocation9 + $0x4c0] sm:$0xff]
    %v2468 = vld [vmem:[#allocation9 + $0x4c8] sm:$0xff]
    %v2469 = vld [vmem:[#allocation9 + $0x4d0] sm:$0xff]
    %v2470 = vld [vmem:[#allocation9 + $0x4d8] sm:$0xff]
    %v2471 = vld [vmem:[#allocation9 + $0x4e0] sm:$0xff]
    %v2472 = vld [vmem:[#allocation9 + $0x4e8] sm:$0xff]
    %v2473 = vld [vmem:[#allocation9 + $0x4f0] sm:$0xff]
    %v2474 = vld [vmem:[#allocation9 + $0x4f8] sm:$0xff]
    %v2475 = vld [vmem:[#allocation9 + $0x500] sm:$0xff]
    %v2476 = vld [vmem:[#allocation9 + $0x508] sm:$0xff]
    %v2477 = vld [vmem:[#allocation9 + $0x510] sm:$0xff]
    %v2478 = vld [vmem:[#allocation9 + $0x518] sm:$0xff]
    %v2479 = vld [vmem:[#allocation9 + $0x520] sm:$0xff]
    %v2480 = vld [vmem:[#allocation9 + $0x528] sm:$0xff]
    %v2481 = vld [vmem:[#allocation9 + $0x530] sm:$0xff]
    %v2482 = vld [vmem:[#allocation9 + $0x538] sm:$0xff]
    %v2483 = vld [vmem:[#allocation9 + $0x540] sm:$0xff]
    %v2484 = vld [vmem:[#allocation9 + $0x548] sm:$0xff]
    %v2485 = vld [vmem:[#allocation9 + $0x550] sm:$0xff]
    %v2486 = vld [vmem:[#allocation9 + $0x558] sm:$0xff]
    %v2487 = vld [vmem:[#allocation9 + $0x560] sm:$0xff]
    %v2488 = vld [vmem:[#allocation9 + $0x568] sm:$0xff]
    %v2489 = vld [vmem:[#allocation9 + $0x570] sm:$0xff]
    %v2490 = vld [vmem:[#allocation9 + $0x578] sm:$0xff]
    %v2491 = vld [vmem:[#allocation9 + $0x580] sm:$0xff]
    %v2492 = vld [vmem:[#allocation9 + $0x588] sm:$0xff]
    %v2493 = vld [vmem:[#allocation9 + $0x590] sm:$0xff]
    %v2494 = vld [vmem:[#allocation9 + $0x598] sm:$0xff]
    %v2495 = vld [vmem:[#allocation9 + $0x5a0] sm:$0xff]
    %v2496 = vld [vmem:[#allocation9 + $0x5a8] sm:$0xff]
    %v2497 = vld [vmem:[#allocation9 + $0x5b0] sm:$0xff]
    %v2498 = vld [vmem:[#allocation9 + $0x5b8] sm:$0xff]
    %v2499 = vld [vmem:[#allocation9 + $0x5c0] sm:$0xff]
    %v2500 = vld [vmem:[#allocation9 + $0x5c8] sm:$0xff]
    %v2501 = vld [vmem:[#allocation9 + $0x5d0] sm:$0xff]
    %v2502 = vld [vmem:[#allocation9 + $0x5d8] sm:$0xff]
    %v2503 = vld [vmem:[#allocation9 + $0x5e0] sm:$0xff]
    %v2504 = vld [vmem:[#allocation9 + $0x5e8] sm:$0xff]
    %v2505 = vld [vmem:[#allocation9 + $0x5f0] sm:$0xff]
    %v2506 = vld [vmem:[#allocation9 + $0x5f8] sm:$0xff]
    %v2507 = vld [vmem:[#allocation9 + $0x600] sm:$0xff]
    %v2508 = vld [vmem:[#allocation9 + $0x608] sm:$0xff]
    %v2509 = vld [vmem:[#allocation9 + $0x610] sm:$0xff]
    %v2510 = vld [vmem:[#allocation9 + $0x618] sm:$0xff]
    %v2511 = vld [vmem:[#allocation9 + $0x620] sm:$0xff]
    %v2512 = vld [vmem:[#allocation9 + $0x628] sm:$0xff]
    %v2513 = vld [vmem:[#allocation9 + $0x630] sm:$0xff]
    %v2514 = vld [vmem:[#allocation9 + $0x638] sm:$0xff]
    %v2515 = vld [vmem:[#allocation9 + $0x640] sm:$0xff]
    %v2516 = vld [vmem:[#allocation9 + $0x648] sm:$0xff]
    %v2517 = vld [vmem:[#allocation9 + $0x650] sm:$0xff]
    %v2518 = vld [vmem:[#allocation9 + $0x658] sm:$0xff]
    %v2519 = vld [vmem:[#allocation9 + $0x660] sm:$0xff]
    %v2520 = vld [vmem:[#allocation9 + $0x668] sm:$0xff]
    %v2521 = vld [vmem:[#allocation9 + $0x670] sm:$0xff]
    %v2522 = vld [vmem:[#allocation9 + $0x678] sm:$0xff]
    %v2523 = vld [vmem:[#allocation9 + $0x680] sm:$0xff]
    %v2524 = vld [vmem:[#allocation9 + $0x688] sm:$0xff]
    %v2525 = vld [vmem:[#allocation9 + $0x690] sm:$0xff]
    %v2526 = vld [vmem:[#allocation9 + $0x698] sm:$0xff]
    %v2527 = vld [vmem:[#allocation9 + $0x6a0] sm:$0xff]
    %v2528 = vld [vmem:[#allocation9 + $0x6a8] sm:$0xff]
    %v2529 = vld [vmem:[#allocation9 + $0x6b0] sm:$0xff]
    %v2530 = vld [vmem:[#allocation9 + $0x6b8] sm:$0xff]
    %v2531 = vld [vmem:[#allocation9 + $0x6c0] sm:$0xff]
    %v2532 = vld [vmem:[#allocation9 + $0x6c8] sm:$0xff]
    %v2533 = vld [vmem:[#allocation9 + $0x6d0] sm:$0xff]
    %v2534 = vld [vmem:[#allocation9 + $0x6d8] sm:$0xff]
    %v2535 = vld [vmem:[#allocation9 + $0x6e0] sm:$0xff]
    %v2536 = vld [vmem:[#allocation9 + $0x6e8] sm:$0xff]
    %v2537 = vld [vmem:[#allocation9 + $0x6f0] sm:$0xff]
    %v2538 = vld [vmem:[#allocation9 + $0x6f8] sm:$0xff]
    %v2539 = vld [vmem:[#allocation9 + $0x700] sm:$0xff]
    %v2540 = vld [vmem:[#allocation9 + $0x708] sm:$0xff]
    %v2541 = vld [vmem:[#allocation9 + $0x710] sm:$0xff]
    %v2542 = vld [vmem:[#allocation9 + $0x718] sm:$0xff]
    %v2543 = vld [vmem:[#allocation9 + $0x720] sm:$0xff]
    %v2544 = vld [vmem:[#allocation9 + $0x728] sm:$0xff]
    %v2545 = vld [vmem:[#allocation9 + $0x730] sm:$0xff]
    %v2546 = vld [vmem:[#allocation9 + $0x738] sm:$0xff]
    %v2547 = vld [vmem:[#allocation9 + $0x740] sm:$0xff]
    %v2548 = vld [vmem:[#allocation9 + $0x748] sm:$0xff]
    %v2549 = vld [vmem:[#allocation9 + $0x750] sm:$0xff]
    %v2550 = vld [vmem:[#allocation9 + $0x758] sm:$0xff]
    %v2551 = vld [vmem:[#allocation9 + $0x760] sm:$0xff]
    %v2552 = vld [vmem:[#allocation9 + $0x768] sm:$0xff]
    %v2553 = vld [vmem:[#allocation9 + $0x770] sm:$0xff]
    %v2554 = vld [vmem:[#allocation9 + $0x778] sm:$0xff]
    %v2555 = vld [vmem:[#allocation9 + $0x780] sm:$0xff]
    %v2556 = vld [vmem:[#allocation9 + $0x788] sm:$0xff]
    %v2557 = vld [vmem:[#allocation9 + $0x790] sm:$0xff]
    %v2558 = vld [vmem:[#allocation9 + $0x798] sm:$0xff]
    %v2559 = vld [vmem:[#allocation9 + $0x7a0] sm:$0xff]
    %v2560 = vld [vmem:[#allocation9 + $0x7a8] sm:$0xff]
    %v2561 = vld [vmem:[#allocation9 + $0x7b0] sm:$0xff]
    %v2562 = vld [vmem:[#allocation9 + $0x7b8] sm:$0xff]
    %v2563 = vld [vmem:[#allocation9 + $0x7c0] sm:$0xff]
    %v2564 = vld [vmem:[#allocation9 + $0x7c8] sm:$0xff]
    %v2565 = vld [vmem:[#allocation9 + $0x7d0] sm:$0xff]
    %v2566 = vld [vmem:[#allocation9 + $0x7d8] sm:$0xff]
    %v2567 = vld [vmem:[#allocation9 + $0x7e0] sm:$0xff]
    %v2568 = vld [vmem:[#allocation9 + $0x7e8] sm:$0xff]
    %v2569 = vld [vmem:[#allocation9 + $0x7f0] sm:$0xff]
    %v2570 = vld [vmem:[#allocation9 + $0x7f8] sm:$0xff]
    %v2571 = vld [vmem:[#allocation9 + $0x800] sm:$0xff]
    %v2572 = vld [vmem:[#allocation9 + $0x808] sm:$0xff]
    %v2573 = vld [vmem:[#allocation9 + $0x810] sm:$0xff]
    %v2574 = vld [vmem:[#allocation9 + $0x818] sm:$0xff]
    %v2575 = vld [vmem:[#allocation9 + $0x820] sm:$0xff]
    %v2576 = vld [vmem:[#allocation9 + $0x828] sm:$0xff]
    %v2577 = vld [vmem:[#allocation9 + $0x830] sm:$0xff]
    %v2578 = vld [vmem:[#allocation9 + $0x838] sm:$0xff]
    %v2579 = vld [vmem:[#allocation9 + $0x840] sm:$0xff]
    %v2580 = vld [vmem:[#allocation9 + $0x848] sm:$0xff]
    %v2581 = vld [vmem:[#allocation9 + $0x850] sm:$0xff]
    %v2582 = vld [vmem:[#allocation9 + $0x858] sm:$0xff]
    %v2583 = vld [vmem:[#allocation9 + $0x860] sm:$0xff]
    %v2584 = vld [vmem:[#allocation9 + $0x868] sm:$0xff]
    %v2585 = vld [vmem:[#allocation9 + $0x870] sm:$0xff]
    %v2586 = vld [vmem:[#allocation9 + $0x878] sm:$0xff]
    %v2587 = vld [vmem:[#allocation9 + $0x880] sm:$0xff]
    %v2588 = vld [vmem:[#allocation9 + $0x888] sm:$0xff]
    %v2589 = vld [vmem:[#allocation9 + $0x890] sm:$0xff]
    %v2590 = vld [vmem:[#allocation9 + $0x898] sm:$0xff]
    %v2591 = vld [vmem:[#allocation9 + $0x8a0] sm:$0xff]
    %v2592 = vld [vmem:[#allocation9 + $0x8a8] sm:$0xff]
    %v2593 = vld [vmem:[#allocation9 + $0x8b0] sm:$0xff]
    %v2594 = vld [vmem:[#allocation9 + $0x8b8] sm:$0xff]
    %v2595 = vld [vmem:[#allocation9 + $0x8c0] sm:$0xff]
    %v2596 = vld [vmem:[#allocation9 + $0x8c8] sm:$0xff]
    %v2597 = vld [vmem:[#allocation9 + $0x8d0] sm:$0xff]
    %v2598 = vld [vmem:[#allocation9 + $0x8d8] sm:$0xff]
    %v2599 = vld [vmem:[#allocation9 + $0x8e0] sm:$0xff]
    %v2600 = vld [vmem:[#allocation9 + $0x8e8] sm:$0xff]
    %v2601 = vld [vmem:[#allocation9 + $0x8f0] sm:$0xff]
    %v2602 = vld [vmem:[#allocation9 + $0x8f8] sm:$0xff]
    %v2603 = vld [vmem:[#allocation9 + $0x900] sm:$0xff]
    %v2604 = vld [vmem:[#allocation9 + $0x908] sm:$0xff]
    %v2605 = vld [vmem:[#allocation9 + $0x910] sm:$0xff]
    %v2606 = vld [vmem:[#allocation9 + $0x918] sm:$0xff]
    %v2607 = vld [vmem:[#allocation9 + $0x920] sm:$0xff]
    %v2608 = vld [vmem:[#allocation9 + $0x928] sm:$0xff]
    %v2609 = vld [vmem:[#allocation9 + $0x930] sm:$0xff]
    %v2610 = vld [vmem:[#allocation9 + $0x938] sm:$0xff]
    %v2611 = vld [vmem:[#allocation9 + $0x940] sm:$0xff]
    %v2612 = vld [vmem:[#allocation9 + $0x948] sm:$0xff]
    %v2613 = vld [vmem:[#allocation9 + $0x950] sm:$0xff]
    %v2614 = vld [vmem:[#allocation9 + $0x958] sm:$0xff]
    %v2615 = vld [vmem:[#allocation9 + $0x960] sm:$0xff]
    %v2616 = vld [vmem:[#allocation9 + $0x968] sm:$0xff]
    %v2617 = vld [vmem:[#allocation9 + $0x970] sm:$0xff]
    %v2618 = vld [vmem:[#allocation9 + $0x978] sm:$0xff]
    %v2619 = vld [vmem:[#allocation9 + $0x980] sm:$0xff]
    %v2620 = vld [vmem:[#allocation9 + $0x988] sm:$0xff]
    %v2621 = vld [vmem:[#allocation9 + $0x990] sm:$0xff]
    %v2622 = vld [vmem:[#allocation9 + $0x998] sm:$0xff]
    %v2623 = vld [vmem:[#allocation9 + $0x9a0] sm:$0xff]
    %v2624 = vld [vmem:[#allocation9 + $0x9a8] sm:$0xff]
    %v2625 = vld [vmem:[#allocation9 + $0x9b0] sm:$0xff]
    %v2626 = vld [vmem:[#allocation9 + $0x9b8] sm:$0xff]
    %v2627 = vld [vmem:[#allocation9 + $0x9c0] sm:$0xff]
    %v2628 = vld [vmem:[#allocation9 + $0x9c8] sm:$0xff]
    %v2629 = vld [vmem:[#allocation9 + $0x9d0] sm:$0xff]
    %v2630 = vld [vmem:[#allocation9 + $0x9d8] sm:$0xff]
    %v2631 = vld [vmem:[#allocation9 + $0x9e0] sm:$0xff]
    %v2632 = vld [vmem:[#allocation9 + $0x9e8] sm:$0xff]
    %v2633 = vld [vmem:[#allocation9 + $0x9f0] sm:$0xff]
    %v2634 = vld [vmem:[#allocation9 + $0x9f8] sm:$0xff]
    %v2635 = vld [vmem:[#allocation9 + $0xa00] sm:$0xff]
    %v2636 = vld [vmem:[#allocation9 + $0xa08] sm:$0xff]
    %v2637 = vld [vmem:[#allocation9 + $0xa10] sm:$0xff]
    %v2638 = vld [vmem:[#allocation9 + $0xa18] sm:$0xff]
    %v2639 = vld [vmem:[#allocation9 + $0xa20] sm:$0xff]
    %v2640 = vld [vmem:[#allocation9 + $0xa28] sm:$0xff]
    %v2641 = vld [vmem:[#allocation9 + $0xa30] sm:$0xff]
    %v2642 = vld [vmem:[#allocation9 + $0xa38] sm:$0xff]
    %v2643 = vld [vmem:[#allocation9 + $0xa40] sm:$0xff]
    %v2644 = vld [vmem:[#allocation9 + $0xa48] sm:$0xff]
    %v2645 = vld [vmem:[#allocation9 + $0xa50] sm:$0xff]
    %v2646 = vld [vmem:[#allocation9 + $0xa58] sm:$0xff]
    %v2647 = vld [vmem:[#allocation9 + $0xa60] sm:$0xff]
    %v2648 = vld [vmem:[#allocation9 + $0xa68] sm:$0xff]
    %v2649 = vld [vmem:[#allocation9 + $0xa70] sm:$0xff]
    %v2650 = vld [vmem:[#allocation9 + $0xa78] sm:$0xff]
    %v2651 = vld [vmem:[#allocation9 + $0xa80] sm:$0xff]
    %v2652 = vld [vmem:[#allocation9 + $0xa88] sm:$0xff]
    %v2653 = vld [vmem:[#allocation9 + $0xa90] sm:$0xff]
    %v2654 = vld [vmem:[#allocation9 + $0xa98] sm:$0xff]
    %v2655 = vld [vmem:[#allocation9 + $0xaa0] sm:$0xff]
    %v2656 = vld [vmem:[#allocation9 + $0xaa8] sm:$0xff]
    %v2657 = vld [vmem:[#allocation9 + $0xab0] sm:$0xff]
    %v2658 = vld [vmem:[#allocation9 + $0xab8] sm:$0xff]
    %v2659 = vld [vmem:[#allocation9 + $0xac0] sm:$0xff]
    %v2660 = vld [vmem:[#allocation9 + $0xac8] sm:$0xff]
    %v2661 = vld [vmem:[#allocation9 + $0xad0] sm:$0xff]
    %v2662 = vld [vmem:[#allocation9 + $0xad8] sm:$0xff]
    %v2663 = vld [vmem:[#allocation9 + $0xae0] sm:$0xff]
    %v2664 = vld [vmem:[#allocation9 + $0xae8] sm:$0xff]
    %v2665 = vld [vmem:[#allocation9 + $0xaf0] sm:$0xff]
    %v2666 = vld [vmem:[#allocation9 + $0xaf8] sm:$0xff]
    %v2667 = vld [vmem:[#allocation9 + $0xb00] sm:$0xff]
    %v2668 = vld [vmem:[#allocation9 + $0xb08] sm:$0xff]
    %v2669 = vld [vmem:[#allocation9 + $0xb10] sm:$0xff]
    %v2670 = vld [vmem:[#allocation9 + $0xb18] sm:$0xff]
    %v2671 = vld [vmem:[#allocation9 + $0xb20] sm:$0xff]
    %v2672 = vld [vmem:[#allocation9 + $0xb28] sm:$0xff]
    %v2673 = vld [vmem:[#allocation9 + $0xb30] sm:$0xff]
    %v2674 = vld [vmem:[#allocation9 + $0xb38] sm:$0xff]
    %v2675 = vld [vmem:[#allocation9 + $0xb40] sm:$0xff]
    %v2676 = vld [vmem:[#allocation9 + $0xb48] sm:$0xff]
    %v2677 = vld [vmem:[#allocation9 + $0xb50] sm:$0xff]
    %v2678 = vld [vmem:[#allocation9 + $0xb58] sm:$0xff]
    %v2679 = vld [vmem:[#allocation9 + $0xb60] sm:$0xff]
    %v2680 = vld [vmem:[#allocation9 + $0xb68] sm:$0xff]
    %v2681 = vld [vmem:[#allocation9 + $0xb70] sm:$0xff]
    %v2682 = vld [vmem:[#allocation9 + $0xb78] sm:$0xff]
    %v2683 = vld [vmem:[#allocation9 + $0xb80] sm:$0xff]
    %v2684 = vld [vmem:[#allocation9 + $0xb88] sm:$0xff]
    %v2685 = vld [vmem:[#allocation9 + $0xb90] sm:$0xff]
    %v2686 = vld [vmem:[#allocation9 + $0xb98] sm:$0xff]
    %v2687 = vld [vmem:[#allocation9 + $0xba0] sm:$0xff]
    %v2688 = vld [vmem:[#allocation9 + $0xba8] sm:$0xff]
    %v2689 = vld [vmem:[#allocation9 + $0xbb0] sm:$0xff]
    %v2690 = vld [vmem:[#allocation9 + $0xbb8] sm:$0xff]
    %v2691 = vld [vmem:[#allocation9 + $0xbc0] sm:$0xff]
    %v2692 = vld [vmem:[#allocation9 + $0xbc8] sm:$0xff]
    %v2693 = vld [vmem:[#allocation9 + $0xbd0] sm:$0xff]
    %v2694 = vld [vmem:[#allocation9 + $0xbd8] sm:$0xff]
    %v2695 = vld [vmem:[#allocation9 + $0xbe0] sm:$0xff]
    %v2696 = vld [vmem:[#allocation9 + $0xbe8] sm:$0xff]
    %v2697 = vld [vmem:[#allocation9 + $0xbf0] sm:$0xff]
    %v2698 = vld [vmem:[#allocation9 + $0xbf8] sm:$0xff]
    %v2699 = vld [vmem:[#allocation9 + $0xc00] sm:$0xff]
    %v2700 = vld [vmem:[#allocation9 + $0xc08] sm:$0xff]
    %v2701 = vld [vmem:[#allocation9 + $0xc10] sm:$0xff]
    %v2702 = vld [vmem:[#allocation9 + $0xc18] sm:$0xff]
    %v2703 = vld [vmem:[#allocation9 + $0xc20] sm:$0xff]
    %v2704 = vld [vmem:[#allocation9 + $0xc28] sm:$0xff]
    %v2705 = vld [vmem:[#allocation9 + $0xc30] sm:$0xff]
    %v2706 = vld [vmem:[#allocation9 + $0xc38] sm:$0xff]
    %v2707 = vld [vmem:[#allocation9 + $0xc40] sm:$0xff]
    %v2708 = vld [vmem:[#allocation9 + $0xc48] sm:$0xff]
    %v2709 = vld [vmem:[#allocation9 + $0xc50] sm:$0xff]
    %v2710 = vld [vmem:[#allocation9 + $0xc58] sm:$0xff]
    %v2711 = vld [vmem:[#allocation9 + $0xc60] sm:$0xff]
    %v2712 = vld [vmem:[#allocation9 + $0xc68] sm:$0xff]
    %v2713 = vld [vmem:[#allocation9 + $0xc70] sm:$0xff]
    %v2714 = vld [vmem:[#allocation9 + $0xc78] sm:$0xff]
    %v2715 = vld [vmem:[#allocation9 + $0xc80] sm:$0xff]
    %v2716 = vld [vmem:[#allocation9 + $0xc88] sm:$0xff]
    %v2717 = vld [vmem:[#allocation9 + $0xc90] sm:$0xff]
    %v2718 = vld [vmem:[#allocation9 + $0xc98] sm:$0xff]
    %v2719 = vld [vmem:[#allocation9 + $0xca0] sm:$0xff]
    %v2720 = vld [vmem:[#allocation9 + $0xca8] sm:$0xff]
    %v2721 = vld [vmem:[#allocation9 + $0xcb0] sm:$0xff]
    %v2722 = vld [vmem:[#allocation9 + $0xcb8] sm:$0xff]
    %v2723 = vld [vmem:[#allocation9 + $0xcc0] sm:$0xff]
    %v2724 = vld [vmem:[#allocation9 + $0xcc8] sm:$0xff]
    %v2725 = vld [vmem:[#allocation9 + $0xcd0] sm:$0xff]
    %v2726 = vld [vmem:[#allocation9 + $0xcd8] sm:$0xff]
    %v2727 = vld [vmem:[#allocation9 + $0xce0] sm:$0xff]
    %v2728 = vld [vmem:[#allocation9 + $0xce8] sm:$0xff]
    %v2729 = vld [vmem:[#allocation9 + $0xcf0] sm:$0xff]
    %v2730 = vld [vmem:[#allocation9 + $0xcf8] sm:$0xff]
    %v2731 = vld [vmem:[#allocation9 + $0xd00] sm:$0xff]
    %v2732 = vld [vmem:[#allocation9 + $0xd08] sm:$0xff]
    %v2733 = vld [vmem:[#allocation9 + $0xd10] sm:$0xff]
    %v2734 = vld [vmem:[#allocation9 + $0xd18] sm:$0xff]
    %v2735 = vld [vmem:[#allocation9 + $0xd20] sm:$0xff]
    %v2736 = vld [vmem:[#allocation9 + $0xd28] sm:$0xff]
    %v2737 = vld [vmem:[#allocation9 + $0xd30] sm:$0xff]
    %v2738 = vld [vmem:[#allocation9 + $0xd38] sm:$0xff]
    %v2739 = vld [vmem:[#allocation9 + $0xd40] sm:$0xff]
    %v2740 = vld [vmem:[#allocation9 + $0xd48] sm:$0xff]
    %v2741 = vld [vmem:[#allocation9 + $0xd50] sm:$0xff]
    %v2742 = vld [vmem:[#allocation9 + $0xd58] sm:$0xff]
    %v2743 = vld [vmem:[#allocation9 + $0xd60] sm:$0xff]
    %v2744 = vld [vmem:[#allocation9 + $0xd68] sm:$0xff]
    %v2745 = vld [vmem:[#allocation9 + $0xd70] sm:$0xff]
    %v2746 = vld [vmem:[#allocation9 + $0xd78] sm:$0xff]
    %v2747 = vld [vmem:[#allocation9 + $0xd80] sm:$0xff]
    %v2748 = vld [vmem:[#allocation9 + $0xd88] sm:$0xff]
    %v2749 = vld [vmem:[#allocation9 + $0xd90] sm:$0xff]
    %v2750 = vld [vmem:[#allocation9 + $0xd98] sm:$0xff]
    %v2751 = vld [vmem:[#allocation9 + $0xda0] sm:$0xff]
    %v2752 = vld [vmem:[#allocation9 + $0xda8] sm:$0xff]
    %v2753 = vld [vmem:[#allocation9 + $0xdb0] sm:$0xff]
    %v2754 = vld [vmem:[#allocation9 + $0xdb8] sm:$0xff]
    %v2755 = vld [vmem:[#allocation9 + $0xdc0] sm:$0xff]
    %v2756 = vld [vmem:[#allocation9 + $0xdc8] sm:$0xff]
    %v2757 = vld [vmem:[#allocation9 + $0xdd0] sm:$0xff]
    %v2758 = vld [vmem:[#allocation9 + $0xdd8] sm:$0xff]
    %v2759 = vld [vmem:[#allocation9 + $0xde0] sm:$0xff]
    %v2760 = vld [vmem:[#allocation9 + $0xde8] sm:$0xff]
    %v2761 = vld [vmem:[#allocation9 + $0xdf0] sm:$0xff]
    %v2762 = vld [vmem:[#allocation9 + $0xdf8] sm:$0xff]
    %v2763 = vld [vmem:[#allocation10] sm:$0xff]
    %v2765 = vperm.slane %v2763, 0
    %v2766 = vperm.slane %v2763, 1
    %v2767 = vperm.slane %v2763, 2
    %v2768 = vperm.slane %v2763, 3
    %v2769 = vperm.slane %v2763, 4
    %v2770 = vperm.slane %v2763, 5
    %v2771 = vperm.slane %v2763, 6
    %v2772 = vperm.slane %v2763, 7
    %v3229 = vunpack.c.l.b16 %v2315
    %v3230 = vunpack.c.h.b16 %v2315
    %v3231 = vunpack.c.l.b16 %v2316
    %v3232 = vunpack.c.h.b16 %v2316
    %v3233 = vunpack.c.l.b16 %v2317
    %v3234 = vunpack.c.h.b16 %v2317
    %v3235 = vunpack.c.l.b16 %v2318
    %v3236 = vunpack.c.h.b16 %v2318
    %v3237 = vunpack.c.l.b16 %v2319
    %v3238 = vunpack.c.h.b16 %v2319
    %v3239 = vunpack.c.l.b16 %v2320
    %v3240 = vunpack.c.h.b16 %v2320
    %v3241 = vunpack.c.l.b16 %v2321
    %v3242 = vunpack.c.h.b16 %v2321
    %v3243 = vunpack.c.l.b16 %v2322
    %v3244 = vunpack.c.h.b16 %v2322
    %v3245 = vunpack.c.l.b16 %v2323
    %v3246 = vunpack.c.h.b16 %v2323
    %v3247 = vunpack.c.l.b16 %v2324
    %v3248 = vunpack.c.h.b16 %v2324
    %v3249 = vunpack.c.l.b16 %v2325
    %v3250 = vunpack.c.h.b16 %v2325
    %v3251 = vunpack.c.l.b16 %v2326
    %v3252 = vunpack.c.h.b16 %v2326
    %v3253 = vunpack.c.l.b16 %v2327
    %v3254 = vunpack.c.h.b16 %v2327
    %v3255 = vunpack.c.l.b16 %v2328
    %v3256 = vunpack.c.h.b16 %v2328
    %v3257 = vunpack.c.l.b16 %v2329
    %v3258 = vunpack.c.h.b16 %v2329
    %v3259 = vunpack.c.l.b16 %v2330
    %v3260 = vunpack.c.h.b16 %v2330
    %v3261 = vunpack.c.l.b16 %v2331
    %v3262 = vunpack.c.h.b16 %v2331
    %v3263 = vunpack.c.l.b16 %v2332
    %v3264 = vunpack.c.h.b16 %v2332
    %v3265 = vunpack.c.l.b16 %v2333
    %v3266 = vunpack.c.h.b16 %v2333
    %v3267 = vunpack.c.l.b16 %v2334
    %v3268 = vunpack.c.h.b16 %v2334
    %v3269 = vunpack.c.l.b16 %v2335
    %v3270 = vunpack.c.h.b16 %v2335
    %v3271 = vunpack.c.l.b16 %v2336
    %v3272 = vunpack.c.h.b16 %v2336
    %v3273 = vunpack.c.l.b16 %v2337
    %v3274 = vunpack.c.h.b16 %v2337
    %v3275 = vunpack.c.l.b16 %v2338
    %v3276 = vunpack.c.h.b16 %v2338
    %v3277 = vunpack.c.l.b16 %v2339
    %v3278 = vunpack.c.h.b16 %v2339
    %v3279 = vunpack.c.l.b16 %v2340
    %v3280 = vunpack.c.h.b16 %v2340
    %v3281 = vunpack.c.l.b16 %v2341
    %v3282 = vunpack.c.h.b16 %v2341
    %v3283 = vunpack.c.l.b16 %v2342
    %v3284 = vunpack.c.h.b16 %v2342
    %v3285 = vunpack.c.l.b16 %v2343
    %v3286 = vunpack.c.h.b16 %v2343
    %v3287 = vunpack.c.l.b16 %v2344
    %v3288 = vunpack.c.h.b16 %v2344
    %v3289 = vunpack.c.l.b16 %v2345
    %v3290 = vunpack.c.h.b16 %v2345
    %v3291 = vunpack.c.l.b16 %v2346
    %v3292 = vunpack.c.h.b16 %v2346
    %v3293 = vunpack.c.l.b16 %v2347
    %v3294 = vunpack.c.h.b16 %v2347
    %v3295 = vunpack.c.l.b16 %v2348
    %v3296 = vunpack.c.h.b16 %v2348
    %v3297 = vunpack.c.l.b16 %v2349
    %v3298 = vunpack.c.h.b16 %v2349
    %v3299 = vunpack.c.l.b16 %v2350
    %v3300 = vunpack.c.h.b16 %v2350
    %v3301 = vunpack.c.l.b16 %v2351
    %v3302 = vunpack.c.h.b16 %v2351
    %v3303 = vunpack.c.l.b16 %v2352
    %v3304 = vunpack.c.h.b16 %v2352
    %v3305 = vunpack.c.l.b16 %v2353
    %v3306 = vunpack.c.h.b16 %v2353
    %v3307 = vunpack.c.l.b16 %v2354
    %v3308 = vunpack.c.h.b16 %v2354
    %v3309 = vunpack.c.l.b16 %v2355
    %v3310 = vunpack.c.h.b16 %v2355
    %v3311 = vunpack.c.l.b16 %v2356
    %v3312 = vunpack.c.h.b16 %v2356
    %v3313 = vunpack.c.l.b16 %v2357
    %v3314 = vunpack.c.h.b16 %v2357
    %v3315 = vunpack.c.l.b16 %v2358
    %v3316 = vunpack.c.h.b16 %v2358
    %v3317 = vunpack.c.l.b16 %v2359
    %v3318 = vunpack.c.h.b16 %v2359
    %v3319 = vunpack.c.l.b16 %v2360
    %v3320 = vunpack.c.h.b16 %v2360
    %v3321 = vunpack.c.l.b16 %v2361
    %v3322 = vunpack.c.h.b16 %v2361
    %v3323 = vunpack.c.l.b16 %v2362
    %v3324 = vunpack.c.h.b16 %v2362
    %v3325 = vunpack.c.l.b16 %v2363
    %v3326 = vunpack.c.h.b16 %v2363
    %v3327 = vunpack.c.l.b16 %v2364
    %v3328 = vunpack.c.h.b16 %v2364
    %v3329 = vunpack.c.l.b16 %v2365
    %v3330 = vunpack.c.h.b16 %v2365
    %v3331 = vunpack.c.l.b16 %v2366
    %v3332 = vunpack.c.h.b16 %v2366
    %v3333 = vunpack.c.l.b16 %v2367
    %v3334 = vunpack.c.h.b16 %v2367
    %v3335 = vunpack.c.l.b16 %v2368
    %v3336 = vunpack.c.h.b16 %v2368
    %v3337 = vunpack.c.l.b16 %v2369
    %v3338 = vunpack.c.h.b16 %v2369
    %v3339 = vunpack.c.l.b16 %v2370
    %v3340 = vunpack.c.h.b16 %v2370
    %v3341 = vunpack.c.l.b16 %v2371
    %v3342 = vunpack.c.h.b16 %v2371
    %v3343 = vunpack.c.l.b16 %v2372
    %v3344 = vunpack.c.h.b16 %v2372
    %v3345 = vunpack.c.l.b16 %v2373
    %v3346 = vunpack.c.h.b16 %v2373
    %v3347 = vunpack.c.l.b16 %v2374
    %v3348 = vunpack.c.h.b16 %v2374
    %v3349 = vunpack.c.l.b16 %v2375
    %v3350 = vunpack.c.h.b16 %v2375
    %v3351 = vunpack.c.l.b16 %v2376
    %v3352 = vunpack.c.h.b16 %v2376
    %v3353 = vunpack.c.l.b16 %v2377
    %v3354 = vunpack.c.h.b16 %v2377
    %v3355 = vunpack.c.l.b16 %v2378
    %v3356 = vunpack.c.h.b16 %v2378
    %v3357 = vunpack.c.l.b16 %v2379
    %v3358 = vunpack.c.h.b16 %v2379
    %v3359 = vunpack.c.l.b16 %v2380
    %v3360 = vunpack.c.h.b16 %v2380
    %v3361 = vunpack.c.l.b16 %v2381
    %v3362 = vunpack.c.h.b16 %v2381
    %v3363 = vunpack.c.l.b16 %v2382
    %v3364 = vunpack.c.h.b16 %v2382
    %v3365 = vunpack.c.l.b16 %v2383
    %v3366 = vunpack.c.h.b16 %v2383
    %v3367 = vunpack.c.l.b16 %v2384
    %v3368 = vunpack.c.h.b16 %v2384
    %v3369 = vunpack.c.l.b16 %v2385
    %v3370 = vunpack.c.h.b16 %v2385
    %v3371 = vunpack.c.l.b16 %v2386
    %v3372 = vunpack.c.h.b16 %v2386
    %v3373 = vunpack.c.l.b16 %v2387
    %v3374 = vunpack.c.h.b16 %v2387
    %v3375 = vunpack.c.l.b16 %v2388
    %v3376 = vunpack.c.h.b16 %v2388
    %v3377 = vunpack.c.l.b16 %v2389
    %v3378 = vunpack.c.h.b16 %v2389
    %v3379 = vunpack.c.l.b16 %v2390
    %v3380 = vunpack.c.h.b16 %v2390
    %v3381 = vunpack.c.l.b16 %v2391
    %v3382 = vunpack.c.h.b16 %v2391
    %v3383 = vunpack.c.l.b16 %v2392
    %v3384 = vunpack.c.h.b16 %v2392
    %v3385 = vunpack.c.l.b16 %v2393
    %v3386 = vunpack.c.h.b16 %v2393
    %v3387 = vunpack.c.l.b16 %v2394
    %v3388 = vunpack.c.h.b16 %v2394
    %v3389 = vunpack.c.l.b16 %v2395
    %v3390 = vunpack.c.h.b16 %v2395
    %v3391 = vunpack.c.l.b16 %v2396
    %v3392 = vunpack.c.h.b16 %v2396
    %v3393 = vunpack.c.l.b16 %v2397
    %v3394 = vunpack.c.h.b16 %v2397
    %v3395 = vunpack.c.l.b16 %v2398
    %v3396 = vunpack.c.h.b16 %v2398
    %v3397 = vunpack.c.l.b16 %v2399
    %v3398 = vunpack.c.h.b16 %v2399
    %v3399 = vunpack.c.l.b16 %v2400
    %v3400 = vunpack.c.h.b16 %v2400
    %v3401 = vunpack.c.l.b16 %v2401
    %v3402 = vunpack.c.h.b16 %v2401
    %v3403 = vunpack.c.l.b16 %v2402
    %v3404 = vunpack.c.h.b16 %v2402
    %v3405 = vunpack.c.l.b16 %v2403
    %v3406 = vunpack.c.h.b16 %v2403
    %v3407 = vunpack.c.l.b16 %v2404
    %v3408 = vunpack.c.h.b16 %v2404
    %v3409 = vunpack.c.l.b16 %v2405
    %v3410 = vunpack.c.h.b16 %v2405
    %v3411 = vunpack.c.l.b16 %v2406
    %v3412 = vunpack.c.h.b16 %v2406
    %v3413 = vunpack.c.l.b16 %v2407
    %v3414 = vunpack.c.h.b16 %v2407
    %v3415 = vunpack.c.l.b16 %v2408
    %v3416 = vunpack.c.h.b16 %v2408
    %v3417 = vunpack.c.l.b16 %v2409
    %v3418 = vunpack.c.h.b16 %v2409
    %v3419 = vunpack.c.l.b16 %v2410
    %v3420 = vunpack.c.h.b16 %v2410
    %v3421 = vunpack.c.l.b16 %v2411
    %v3422 = vunpack.c.h.b16 %v2411
    %v3423 = vunpack.c.l.b16 %v2412
    %v3424 = vunpack.c.h.b16 %v2412
    %v3425 = vunpack.c.l.b16 %v2413
    %v3426 = vunpack.c.h.b16 %v2413
    %v3427 = vunpack.c.l.b16 %v2414
    %v3428 = vunpack.c.h.b16 %v2414
    %v3429 = vunpack.c.l.b16 %v2415
    %v3430 = vunpack.c.h.b16 %v2415
    %v3431 = vunpack.c.l.b16 %v2416
    %v3432 = vunpack.c.h.b16 %v2416
    %v3433 = vunpack.c.l.b16 %v2417
    %v3434 = vunpack.c.h.b16 %v2417
    %v3435 = vunpack.c.l.b16 %v2418
    %v3436 = vunpack.c.h.b16 %v2418
    %v3437 = vunpack.c.l.b16 %v2419
    %v3438 = vunpack.c.h.b16 %v2419
    %v3439 = vunpack.c.l.b16 %v2420
    %v3440 = vunpack.c.h.b16 %v2420
    %v3441 = vunpack.c.l.b16 %v2421
    %v3442 = vunpack.c.h.b16 %v2421
    %v3443 = vunpack.c.l.b16 %v2422
    %v3444 = vunpack.c.h.b16 %v2422
    %v3445 = vunpack.c.l.b16 %v2423
    %v3446 = vunpack.c.h.b16 %v2423
    %v3447 = vunpack.c.l.b16 %v2424
    %v3448 = vunpack.c.h.b16 %v2424
    %v3449 = vunpack.c.l.b16 %v2425
    %v3450 = vunpack.c.h.b16 %v2425
    %v3451 = vunpack.c.l.b16 %v2426
    %v3452 = vunpack.c.h.b16 %v2426
    %v3453 = vunpack.c.l.b16 %v2427
    %v3454 = vunpack.c.h.b16 %v2427
    %v3455 = vunpack.c.l.b16 %v2428
    %v3456 = vunpack.c.h.b16 %v2428
    %v3457 = vunpack.c.l.b16 %v2429
    %v3458 = vunpack.c.h.b16 %v2429
    %v3459 = vunpack.c.l.b16 %v2430
    %v3460 = vunpack.c.h.b16 %v2430
    %v3461 = vunpack.c.l.b16 %v2431
    %v3462 = vunpack.c.h.b16 %v2431
    %v3463 = vunpack.c.l.b16 %v2432
    %v3464 = vunpack.c.h.b16 %v2432
    %v3465 = vunpack.c.l.b16 %v2433
    %v3466 = vunpack.c.h.b16 %v2433
    %v3467 = vunpack.c.l.b16 %v2434
    %v3468 = vunpack.c.h.b16 %v2434
    %v3469 = vunpack.c.l.b16 %v2435
    %v3470 = vunpack.c.h.b16 %v2435
    %v3471 = vunpack.c.l.b16 %v2436
    %v3472 = vunpack.c.h.b16 %v2436
    %v3473 = vunpack.c.l.b16 %v2437
    %v3474 = vunpack.c.h.b16 %v2437
    %v3475 = vunpack.c.l.b16 %v2438
    %v3476 = vunpack.c.h.b16 %v2438
    %v3477 = vunpack.c.l.b16 %v2439
    %v3478 = vunpack.c.h.b16 %v2439
    %v3479 = vunpack.c.l.b16 %v2440
    %v3480 = vunpack.c.h.b16 %v2440
    %v3481 = vunpack.c.l.b16 %v2441
    %v3482 = vunpack.c.h.b16 %v2441
    %v3483 = vunpack.c.l.b16 %v2442
    %v3484 = vunpack.c.h.b16 %v2442
    %v3485 = vunpack.c.l.b16 %v2443
    %v3486 = vunpack.c.h.b16 %v2443
    %v3487 = vunpack.c.l.b16 %v2444
    %v3488 = vunpack.c.h.b16 %v2444
    %v3489 = vunpack.c.l.b16 %v2445
    %v3490 = vunpack.c.h.b16 %v2445
    %v3491 = vunpack.c.l.b16 %v2446
    %v3492 = vunpack.c.h.b16 %v2446
    %v3493 = vunpack.c.l.b16 %v2447
    %v3494 = vunpack.c.h.b16 %v2447
    %v3495 = vunpack.c.l.b16 %v2448
    %v3496 = vunpack.c.h.b16 %v2448
    %v3497 = vunpack.c.l.b16 %v2449
    %v3498 = vunpack.c.h.b16 %v2449
    %v3499 = vunpack.c.l.b16 %v2450
    %v3500 = vunpack.c.h.b16 %v2450
    %v3501 = vunpack.c.l.b16 %v2451
    %v3502 = vunpack.c.h.b16 %v2451
    %v3503 = vunpack.c.l.b16 %v2452
    %v3504 = vunpack.c.h.b16 %v2452
    %v3505 = vunpack.c.l.b16 %v2453
    %v3506 = vunpack.c.h.b16 %v2453
    %v3507 = vunpack.c.l.b16 %v2454
    %v3508 = vunpack.c.h.b16 %v2454
    %v3509 = vunpack.c.l.b16 %v2455
    %v3510 = vunpack.c.h.b16 %v2455
    %v3511 = vunpack.c.l.b16 %v2456
    %v3512 = vunpack.c.h.b16 %v2456
    %v3513 = vunpack.c.l.b16 %v2457
    %v3514 = vunpack.c.h.b16 %v2457
    %v3515 = vunpack.c.l.b16 %v2458
    %v3516 = vunpack.c.h.b16 %v2458
    %v3517 = vunpack.c.l.b16 %v2459
    %v3518 = vunpack.c.h.b16 %v2459
    %v3519 = vunpack.c.l.b16 %v2460
    %v3520 = vunpack.c.h.b16 %v2460
    %v3521 = vunpack.c.l.b16 %v2461
    %v3522 = vunpack.c.h.b16 %v2461
    %v3523 = vunpack.c.l.b16 %v2462
    %v3524 = vunpack.c.h.b16 %v2462
    %v3525 = vunpack.c.l.b16 %v2463
    %v3526 = vunpack.c.h.b16 %v2463
    %v3527 = vunpack.c.l.b16 %v2464
    %v3528 = vunpack.c.h.b16 %v2464
    %v3529 = vunpack.c.l.b16 %v2465
    %v3530 = vunpack.c.h.b16 %v2465
    %v3531 = vunpack.c.l.b16 %v2466
    %v3532 = vunpack.c.h.b16 %v2466
    %v3533 = vunpack.c.l.b16 %v2467
    %v3534 = vunpack.c.h.b16 %v2467
    %v3535 = vunpack.c.l.b16 %v2468
    %v3536 = vunpack.c.h.b16 %v2468
    %v3537 = vunpack.c.l.b16 %v2469
    %v3538 = vunpack.c.h.b16 %v2469
    %v3539 = vunpack.c.l.b16 %v2470
    %v3540 = vunpack.c.h.b16 %v2470
    %v3541 = vunpack.c.l.b16 %v2471
    %v3542 = vunpack.c.h.b16 %v2471
    %v3543 = vunpack.c.l.b16 %v2472
    %v3544 = vunpack.c.h.b16 %v2472
    %v3545 = vunpack.c.l.b16 %v2473
    %v3546 = vunpack.c.h.b16 %v2473
    %v3547 = vunpack.c.l.b16 %v2474
    %v3548 = vunpack.c.h.b16 %v2474
    %v3549 = vunpack.c.l.b16 %v2475
    %v3550 = vunpack.c.h.b16 %v2475
    %v3551 = vunpack.c.l.b16 %v2476
    %v3552 = vunpack.c.h.b16 %v2476
    %v3553 = vunpack.c.l.b16 %v2477
    %v3554 = vunpack.c.h.b16 %v2477
    %v3555 = vunpack.c.l.b16 %v2478
    %v3556 = vunpack.c.h.b16 %v2478
    %v3557 = vunpack.c.l.b16 %v2479
    %v3558 = vunpack.c.h.b16 %v2479
    %v3559 = vunpack.c.l.b16 %v2480
    %v3560 = vunpack.c.h.b16 %v2480
    %v3561 = vunpack.c.l.b16 %v2481
    %v3562 = vunpack.c.h.b16 %v2481
    %v3563 = vunpack.c.l.b16 %v2482
    %v3564 = vunpack.c.h.b16 %v2482
    %v3565 = vunpack.c.l.b16 %v2483
    %v3566 = vunpack.c.h.b16 %v2483
    %v3567 = vunpack.c.l.b16 %v2484
    %v3568 = vunpack.c.h.b16 %v2484
    %v3569 = vunpack.c.l.b16 %v2485
    %v3570 = vunpack.c.h.b16 %v2485
    %v3571 = vunpack.c.l.b16 %v2486
    %v3572 = vunpack.c.h.b16 %v2486
    %v3573 = vunpack.c.l.b16 %v2487
    %v3574 = vunpack.c.h.b16 %v2487
    %v3575 = vunpack.c.l.b16 %v2488
    %v3576 = vunpack.c.h.b16 %v2488
    %v3577 = vunpack.c.l.b16 %v2489
    %v3578 = vunpack.c.h.b16 %v2489
    %v3579 = vunpack.c.l.b16 %v2490
    %v3580 = vunpack.c.h.b16 %v2490
    %v3581 = vunpack.c.l.b16 %v2491
    %v3582 = vunpack.c.h.b16 %v2491
    %v3583 = vunpack.c.l.b16 %v2492
    %v3584 = vunpack.c.h.b16 %v2492
    %v3585 = vunpack.c.l.b16 %v2493
    %v3586 = vunpack.c.h.b16 %v2493
    %v3587 = vunpack.c.l.b16 %v2494
    %v3588 = vunpack.c.h.b16 %v2494
    %v3589 = vunpack.c.l.b16 %v2495
    %v3590 = vunpack.c.h.b16 %v2495
    %v3591 = vunpack.c.l.b16 %v2496
    %v3592 = vunpack.c.h.b16 %v2496
    %v3593 = vunpack.c.l.b16 %v2497
    %v3594 = vunpack.c.h.b16 %v2497
    %v3595 = vunpack.c.l.b16 %v2498
    %v3596 = vunpack.c.h.b16 %v2498
    %v3597 = vunpack.c.l.b16 %v2499
    %v3598 = vunpack.c.h.b16 %v2499
    %v3599 = vunpack.c.l.b16 %v2500
    %v3600 = vunpack.c.h.b16 %v2500
    %v3601 = vunpack.c.l.b16 %v2501
    %v3602 = vunpack.c.h.b16 %v2501
    %v3603 = vunpack.c.l.b16 %v2502
    %v3604 = vunpack.c.h.b16 %v2502
    %v3605 = vunpack.c.l.b16 %v2503
    %v3606 = vunpack.c.h.b16 %v2503
    %v3607 = vunpack.c.l.b16 %v2504
    %v3608 = vunpack.c.h.b16 %v2504
    %v3609 = vunpack.c.l.b16 %v2505
    %v3610 = vunpack.c.h.b16 %v2505
    %v3611 = vunpack.c.l.b16 %v2506
    %v3612 = vunpack.c.h.b16 %v2506
    %v3613 = vunpack.c.l.b16 %v2507
    %v3614 = vunpack.c.h.b16 %v2507
    %v3615 = vunpack.c.l.b16 %v2508
    %v3616 = vunpack.c.h.b16 %v2508
    %v3617 = vunpack.c.l.b16 %v2509
    %v3618 = vunpack.c.h.b16 %v2509
    %v3619 = vunpack.c.l.b16 %v2510
    %v3620 = vunpack.c.h.b16 %v2510
    %v3621 = vunpack.c.l.b16 %v2511
    %v3622 = vunpack.c.h.b16 %v2511
    %v3623 = vunpack.c.l.b16 %v2512
    %v3624 = vunpack.c.h.b16 %v2512
    %v3625 = vunpack.c.l.b16 %v2513
    %v3626 = vunpack.c.h.b16 %v2513
    %v3627 = vunpack.c.l.b16 %v2514
    %v3628 = vunpack.c.h.b16 %v2514
    %v3629 = vunpack.c.l.b16 %v2515
    %v3630 = vunpack.c.h.b16 %v2515
    %v3631 = vunpack.c.l.b16 %v2516
    %v3632 = vunpack.c.h.b16 %v2516
    %v3633 = vunpack.c.l.b16 %v2517
    %v3634 = vunpack.c.h.b16 %v2517
    %v3635 = vunpack.c.l.b16 %v2518
    %v3636 = vunpack.c.h.b16 %v2518
    %v3637 = vunpack.c.l.b16 %v2519
    %v3638 = vunpack.c.h.b16 %v2519
    %v3639 = vunpack.c.l.b16 %v2520
    %v3640 = vunpack.c.h.b16 %v2520
    %v3641 = vunpack.c.l.b16 %v2521
    %v3642 = vunpack.c.h.b16 %v2521
    %v3643 = vunpack.c.l.b16 %v2522
    %v3644 = vunpack.c.h.b16 %v2522
    %v3645 = vunpack.c.l.b16 %v2523
    %v3646 = vunpack.c.h.b16 %v2523
    %v3647 = vunpack.c.l.b16 %v2524
    %v3648 = vunpack.c.h.b16 %v2524
    %v3649 = vunpack.c.l.b16 %v2525
    %v3650 = vunpack.c.h.b16 %v2525
    %v3651 = vunpack.c.l.b16 %v2526
    %v3652 = vunpack.c.h.b16 %v2526
    %v3653 = vunpack.c.l.b16 %v2527
    %v3654 = vunpack.c.h.b16 %v2527
    %v3655 = vunpack.c.l.b16 %v2528
    %v3656 = vunpack.c.h.b16 %v2528
    %v3657 = vunpack.c.l.b16 %v2529
    %v3658 = vunpack.c.h.b16 %v2529
    %v3659 = vunpack.c.l.b16 %v2530
    %v3660 = vunpack.c.h.b16 %v2530
    %v3661 = vunpack.c.l.b16 %v2531
    %v3662 = vunpack.c.h.b16 %v2531
    %v3663 = vunpack.c.l.b16 %v2532
    %v3664 = vunpack.c.h.b16 %v2532
    %v3665 = vunpack.c.l.b16 %v2533
    %v3666 = vunpack.c.h.b16 %v2533
    %v3667 = vunpack.c.l.b16 %v2534
    %v3668 = vunpack.c.h.b16 %v2534
    %v3669 = vunpack.c.l.b16 %v2535
    %v3670 = vunpack.c.h.b16 %v2535
    %v3671 = vunpack.c.l.b16 %v2536
    %v3672 = vunpack.c.h.b16 %v2536
    %v3673 = vunpack.c.l.b16 %v2537
    %v3674 = vunpack.c.h.b16 %v2537
    %v3675 = vunpack.c.l.b16 %v2538
    %v3676 = vunpack.c.h.b16 %v2538
    %v3677 = vunpack.c.l.b16 %v2539
    %v3678 = vunpack.c.h.b16 %v2539
    %v3679 = vunpack.c.l.b16 %v2540
    %v3680 = vunpack.c.h.b16 %v2540
    %v3681 = vunpack.c.l.b16 %v2541
    %v3682 = vunpack.c.h.b16 %v2541
    %v3683 = vunpack.c.l.b16 %v2542
    %v3684 = vunpack.c.h.b16 %v2542
    %v3685 = vunpack.c.l.b16 %v2543
    %v3686 = vunpack.c.h.b16 %v2543
    %v3687 = vunpack.c.l.b16 %v2544
    %v3688 = vunpack.c.h.b16 %v2544
    %v3689 = vunpack.c.l.b16 %v2545
    %v3690 = vunpack.c.h.b16 %v2545
    %v3691 = vunpack.c.l.b16 %v2546
    %v3692 = vunpack.c.h.b16 %v2546
    %v3693 = vunpack.c.l.b16 %v2547
    %v3694 = vunpack.c.h.b16 %v2547
    %v3695 = vunpack.c.l.b16 %v2548
    %v3696 = vunpack.c.h.b16 %v2548
    %v3697 = vunpack.c.l.b16 %v2549
    %v3698 = vunpack.c.h.b16 %v2549
    %v3699 = vunpack.c.l.b16 %v2550
    %v3700 = vunpack.c.h.b16 %v2550
    %v3701 = vunpack.c.l.b16 %v2551
    %v3702 = vunpack.c.h.b16 %v2551
    %v3703 = vunpack.c.l.b16 %v2552
    %v3704 = vunpack.c.h.b16 %v2552
    %v3705 = vunpack.c.l.b16 %v2553
    %v3706 = vunpack.c.h.b16 %v2553
    %v3707 = vunpack.c.l.b16 %v2554
    %v3708 = vunpack.c.h.b16 %v2554
    %v3709 = vunpack.c.l.b16 %v2555
    %v3710 = vunpack.c.h.b16 %v2555
    %v3711 = vunpack.c.l.b16 %v2556
    %v3712 = vunpack.c.h.b16 %v2556
    %v3713 = vunpack.c.l.b16 %v2557
    %v3714 = vunpack.c.h.b16 %v2557
    %v3715 = vunpack.c.l.b16 %v2558
    %v3716 = vunpack.c.h.b16 %v2558
    %v3717 = vunpack.c.l.b16 %v2559
    %v3718 = vunpack.c.h.b16 %v2559
    %v3719 = vunpack.c.l.b16 %v2560
    %v3720 = vunpack.c.h.b16 %v2560
    %v3721 = vunpack.c.l.b16 %v2561
    %v3722 = vunpack.c.h.b16 %v2561
    %v3723 = vunpack.c.l.b16 %v2562
    %v3724 = vunpack.c.h.b16 %v2562
    %v3725 = vunpack.c.l.b16 %v2563
    %v3726 = vunpack.c.h.b16 %v2563
    %v3727 = vunpack.c.l.b16 %v2564
    %v3728 = vunpack.c.h.b16 %v2564
    %v3729 = vunpack.c.l.b16 %v2565
    %v3730 = vunpack.c.h.b16 %v2565
    %v3731 = vunpack.c.l.b16 %v2566
    %v3732 = vunpack.c.h.b16 %v2566
    %v3733 = vunpack.c.l.b16 %v2567
    %v3734 = vunpack.c.h.b16 %v2567
    %v3735 = vunpack.c.l.b16 %v2568
    %v3736 = vunpack.c.h.b16 %v2568
    %v3737 = vunpack.c.l.b16 %v2569
    %v3738 = vunpack.c.h.b16 %v2569
    %v3739 = vunpack.c.l.b16 %v2570
    %v3740 = vunpack.c.h.b16 %v2570
    %v3741 = vunpack.c.l.b16 %v2571
    %v3742 = vunpack.c.h.b16 %v2571
    %v3743 = vunpack.c.l.b16 %v2572
    %v3744 = vunpack.c.h.b16 %v2572
    %v3745 = vunpack.c.l.b16 %v2573
    %v3746 = vunpack.c.h.b16 %v2573
    %v3747 = vunpack.c.l.b16 %v2574
    %v3748 = vunpack.c.h.b16 %v2574
    %v3749 = vunpack.c.l.b16 %v2575
    %v3750 = vunpack.c.h.b16 %v2575
    %v3751 = vunpack.c.l.b16 %v2576
    %v3752 = vunpack.c.h.b16 %v2576
    %v3753 = vunpack.c.l.b16 %v2577
    %v3754 = vunpack.c.h.b16 %v2577
    %v3755 = vunpack.c.l.b16 %v2578
    %v3756 = vunpack.c.h.b16 %v2578
    %v3757 = vunpack.c.l.b16 %v2579
    %v3758 = vunpack.c.h.b16 %v2579
    %v3759 = vunpack.c.l.b16 %v2580
    %v3760 = vunpack.c.h.b16 %v2580
    %v3761 = vunpack.c.l.b16 %v2581
    %v3762 = vunpack.c.h.b16 %v2581
    %v3763 = vunpack.c.l.b16 %v2582
    %v3764 = vunpack.c.h.b16 %v2582
    %v3765 = vunpack.c.l.b16 %v2583
    %v3766 = vunpack.c.h.b16 %v2583
    %v3767 = vunpack.c.l.b16 %v2584
    %v3768 = vunpack.c.h.b16 %v2584
    %v3769 = vunpack.c.l.b16 %v2585
    %v3770 = vunpack.c.h.b16 %v2585
    %v3771 = vunpack.c.l.b16 %v2586
    %v3772 = vunpack.c.h.b16 %v2586
    %v3773 = vunpack.c.l.b16 %v2587
    %v3774 = vunpack.c.h.b16 %v2587
    %v3775 = vunpack.c.l.b16 %v2588
    %v3776 = vunpack.c.h.b16 %v2588
    %v3777 = vunpack.c.l.b16 %v2589
    %v3778 = vunpack.c.h.b16 %v2589
    %v3779 = vunpack.c.l.b16 %v2590
    %v3780 = vunpack.c.h.b16 %v2590
    %v3781 = vunpack.c.l.b16 %v2591
    %v3782 = vunpack.c.h.b16 %v2591
    %v3783 = vunpack.c.l.b16 %v2592
    %v3784 = vunpack.c.h.b16 %v2592
    %v3785 = vunpack.c.l.b16 %v2593
    %v3786 = vunpack.c.h.b16 %v2593
    %v3787 = vunpack.c.l.b16 %v2594
    %v3788 = vunpack.c.h.b16 %v2594
    %v3789 = vunpack.c.l.b16 %v2595
    %v3790 = vunpack.c.h.b16 %v2595
    %v3791 = vunpack.c.l.b16 %v2596
    %v3792 = vunpack.c.h.b16 %v2596
    %v3793 = vunpack.c.l.b16 %v2597
    %v3794 = vunpack.c.h.b16 %v2597
    %v3795 = vunpack.c.l.b16 %v2598
    %v3796 = vunpack.c.h.b16 %v2598
    %v3797 = vunpack.c.l.b16 %v2599
    %v3798 = vunpack.c.h.b16 %v2599
    %v3799 = vunpack.c.l.b16 %v2600
    %v3800 = vunpack.c.h.b16 %v2600
    %v3801 = vunpack.c.l.b16 %v2601
    %v3802 = vunpack.c.h.b16 %v2601
    %v3803 = vunpack.c.l.b16 %v2602
    %v3804 = vunpack.c.h.b16 %v2602
    %v3805 = vunpack.c.l.b16 %v2603
    %v3806 = vunpack.c.h.b16 %v2603
    %v3807 = vunpack.c.l.b16 %v2604
    %v3808 = vunpack.c.h.b16 %v2604
    %v3809 = vunpack.c.l.b16 %v2605
    %v3810 = vunpack.c.h.b16 %v2605
    %v3811 = vunpack.c.l.b16 %v2606
    %v3812 = vunpack.c.h.b16 %v2606
    %v3813 = vunpack.c.l.b16 %v2607
    %v3814 = vunpack.c.h.b16 %v2607
    %v3815 = vunpack.c.l.b16 %v2608
    %v3816 = vunpack.c.h.b16 %v2608
    %v3817 = vunpack.c.l.b16 %v2609
    %v3818 = vunpack.c.h.b16 %v2609
    %v3819 = vunpack.c.l.b16 %v2610
    %v3820 = vunpack.c.h.b16 %v2610
    %v3821 = vunpack.c.l.b16 %v2611
    %v3822 = vunpack.c.h.b16 %v2611
    %v3823 = vunpack.c.l.b16 %v2612
    %v3824 = vunpack.c.h.b16 %v2612
    %v3825 = vunpack.c.l.b16 %v2613
    %v3826 = vunpack.c.h.b16 %v2613
    %v3827 = vunpack.c.l.b16 %v2614
    %v3828 = vunpack.c.h.b16 %v2614
    %v3829 = vunpack.c.l.b16 %v2615
    %v3830 = vunpack.c.h.b16 %v2615
    %v3831 = vunpack.c.l.b16 %v2616
    %v3832 = vunpack.c.h.b16 %v2616
    %v3833 = vunpack.c.l.b16 %v2617
    %v3834 = vunpack.c.h.b16 %v2617
    %v3835 = vunpack.c.l.b16 %v2618
    %v3836 = vunpack.c.h.b16 %v2618
    %v3837 = vunpack.c.l.b16 %v2619
    %v3838 = vunpack.c.h.b16 %v2619
    %v3839 = vunpack.c.l.b16 %v2620
    %v3840 = vunpack.c.h.b16 %v2620
    %v3841 = vunpack.c.l.b16 %v2621
    %v3842 = vunpack.c.h.b16 %v2621
    %v3843 = vunpack.c.l.b16 %v2622
    %v3844 = vunpack.c.h.b16 %v2622
    %v3845 = vunpack.c.l.b16 %v2623
    %v3846 = vunpack.c.h.b16 %v2623
    %v3847 = vunpack.c.l.b16 %v2624
    %v3848 = vunpack.c.h.b16 %v2624
    %v3849 = vunpack.c.l.b16 %v2625
    %v3850 = vunpack.c.h.b16 %v2625
    %v3851 = vunpack.c.l.b16 %v2626
    %v3852 = vunpack.c.h.b16 %v2626
    %v3853 = vunpack.c.l.b16 %v2627
    %v3854 = vunpack.c.h.b16 %v2627
    %v3855 = vunpack.c.l.b16 %v2628
    %v3856 = vunpack.c.h.b16 %v2628
    %v3857 = vunpack.c.l.b16 %v2629
    %v3858 = vunpack.c.h.b16 %v2629
    %v3859 = vunpack.c.l.b16 %v2630
    %v3860 = vunpack.c.h.b16 %v2630
    %v3861 = vunpack.c.l.b16 %v2631
    %v3862 = vunpack.c.h.b16 %v2631
    %v3863 = vunpack.c.l.b16 %v2632
    %v3864 = vunpack.c.h.b16 %v2632
    %v3865 = vunpack.c.l.b16 %v2633
    %v3866 = vunpack.c.h.b16 %v2633
    %v3867 = vunpack.c.l.b16 %v2634
    %v3868 = vunpack.c.h.b16 %v2634
    %v3869 = vunpack.c.l.b16 %v2635
    %v3870 = vunpack.c.h.b16 %v2635
    %v3871 = vunpack.c.l.b16 %v2636
    %v3872 = vunpack.c.h.b16 %v2636
    %v3873 = vunpack.c.l.b16 %v2637
    %v3874 = vunpack.c.h.b16 %v2637
    %v3875 = vunpack.c.l.b16 %v2638
    %v3876 = vunpack.c.h.b16 %v2638
    %v3877 = vunpack.c.l.b16 %v2639
    %v3878 = vunpack.c.h.b16 %v2639
    %v3879 = vunpack.c.l.b16 %v2640
    %v3880 = vunpack.c.h.b16 %v2640
    %v3881 = vunpack.c.l.b16 %v2641
    %v3882 = vunpack.c.h.b16 %v2641
    %v3883 = vunpack.c.l.b16 %v2642
    %v3884 = vunpack.c.h.b16 %v2642
    %v3885 = vunpack.c.l.b16 %v2643
    %v3886 = vunpack.c.h.b16 %v2643
    %v3887 = vunpack.c.l.b16 %v2644
    %v3888 = vunpack.c.h.b16 %v2644
    %v3889 = vunpack.c.l.b16 %v2645
    %v3890 = vunpack.c.h.b16 %v2645
    %v3891 = vunpack.c.l.b16 %v2646
    %v3892 = vunpack.c.h.b16 %v2646
    %v3893 = vunpack.c.l.b16 %v2647
    %v3894 = vunpack.c.h.b16 %v2647
    %v3895 = vunpack.c.l.b16 %v2648
    %v3896 = vunpack.c.h.b16 %v2648
    %v3897 = vunpack.c.l.b16 %v2649
    %v3898 = vunpack.c.h.b16 %v2649
    %v3899 = vunpack.c.l.b16 %v2650
    %v3900 = vunpack.c.h.b16 %v2650
    %v3901 = vunpack.c.l.b16 %v2651
    %v3902 = vunpack.c.h.b16 %v2651
    %v3903 = vunpack.c.l.b16 %v2652
    %v3904 = vunpack.c.h.b16 %v2652
    %v3905 = vunpack.c.l.b16 %v2653
    %v3906 = vunpack.c.h.b16 %v2653
    %v3907 = vunpack.c.l.b16 %v2654
    %v3908 = vunpack.c.h.b16 %v2654
    %v3909 = vunpack.c.l.b16 %v2655
    %v3910 = vunpack.c.h.b16 %v2655
    %v3911 = vunpack.c.l.b16 %v2656
    %v3912 = vunpack.c.h.b16 %v2656
    %v3913 = vunpack.c.l.b16 %v2657
    %v3914 = vunpack.c.h.b16 %v2657
    %v3915 = vunpack.c.l.b16 %v2658
    %v3916 = vunpack.c.h.b16 %v2658
    %v3917 = vunpack.c.l.b16 %v2659
    %v3918 = vunpack.c.h.b16 %v2659
    %v3919 = vunpack.c.l.b16 %v2660
    %v3920 = vunpack.c.h.b16 %v2660
    %v3921 = vunpack.c.l.b16 %v2661
    %v3922 = vunpack.c.h.b16 %v2661
    %v3923 = vunpack.c.l.b16 %v2662
    %v3924 = vunpack.c.h.b16 %v2662
    %v3925 = vunpack.c.l.b16 %v2663
    %v3926 = vunpack.c.h.b16 %v2663
    %v3927 = vunpack.c.l.b16 %v2664
    %v3928 = vunpack.c.h.b16 %v2664
    %v3929 = vunpack.c.l.b16 %v2665
    %v3930 = vunpack.c.h.b16 %v2665
    %v3931 = vunpack.c.l.b16 %v2666
    %v3932 = vunpack.c.h.b16 %v2666
    %v3933 = vunpack.c.l.b16 %v2667
    %v3934 = vunpack.c.h.b16 %v2667
    %v3935 = vunpack.c.l.b16 %v2668
    %v3936 = vunpack.c.h.b16 %v2668
    %v3937 = vunpack.c.l.b16 %v2669
    %v3938 = vunpack.c.h.b16 %v2669
    %v3939 = vunpack.c.l.b16 %v2670
    %v3940 = vunpack.c.h.b16 %v2670
    %v3941 = vunpack.c.l.b16 %v2671
    %v3942 = vunpack.c.h.b16 %v2671
    %v3943 = vunpack.c.l.b16 %v2672
    %v3944 = vunpack.c.h.b16 %v2672
    %v3945 = vunpack.c.l.b16 %v2673
    %v3946 = vunpack.c.h.b16 %v2673
    %v3947 = vunpack.c.l.b16 %v2674
    %v3948 = vunpack.c.h.b16 %v2674
    %v3949 = vunpack.c.l.b16 %v2675
    %v3950 = vunpack.c.h.b16 %v2675
    %v3951 = vunpack.c.l.b16 %v2676
    %v3952 = vunpack.c.h.b16 %v2676
    %v3953 = vunpack.c.l.b16 %v2677
    %v3954 = vunpack.c.h.b16 %v2677
    %v3955 = vunpack.c.l.b16 %v2678
    %v3956 = vunpack.c.h.b16 %v2678
    %v3957 = vunpack.c.l.b16 %v2679
    %v3958 = vunpack.c.h.b16 %v2679
    %v3959 = vunpack.c.l.b16 %v2680
    %v3960 = vunpack.c.h.b16 %v2680
    %v3961 = vunpack.c.l.b16 %v2681
    %v3962 = vunpack.c.h.b16 %v2681
    %v3963 = vunpack.c.l.b16 %v2682
    %v3964 = vunpack.c.h.b16 %v2682
    %v3965 = vunpack.c.l.b16 %v2683
    %v3966 = vunpack.c.h.b16 %v2683
    %v3967 = vunpack.c.l.b16 %v2684
    %v3968 = vunpack.c.h.b16 %v2684
    %v3969 = vunpack.c.l.b16 %v2685
    %v3970 = vunpack.c.h.b16 %v2685
    %v3971 = vunpack.c.l.b16 %v2686
    %v3972 = vunpack.c.h.b16 %v2686
    %v3973 = vunpack.c.l.b16 %v2687
    %v3974 = vunpack.c.h.b16 %v2687
    %v3975 = vunpack.c.l.b16 %v2688
    %v3976 = vunpack.c.h.b16 %v2688
    %v3977 = vunpack.c.l.b16 %v2689
    %v3978 = vunpack.c.h.b16 %v2689
    %v3979 = vunpack.c.l.b16 %v2690
    %v3980 = vunpack.c.h.b16 %v2690
    %v3981 = vunpack.c.l.b16 %v2691
    %v3982 = vunpack.c.h.b16 %v2691
    %v3983 = vunpack.c.l.b16 %v2692
    %v3984 = vunpack.c.h.b16 %v2692
    %v3985 = vunpack.c.l.b16 %v2693
    %v3986 = vunpack.c.h.b16 %v2693
    %v3987 = vunpack.c.l.b16 %v2694
    %v3988 = vunpack.c.h.b16 %v2694
    %v3989 = vunpack.c.l.b16 %v2695
    %v3990 = vunpack.c.h.b16 %v2695
    %v3991 = vunpack.c.l.b16 %v2696
    %v3992 = vunpack.c.h.b16 %v2696
    %v3993 = vunpack.c.l.b16 %v2697
    %v3994 = vunpack.c.h.b16 %v2697
    %v3995 = vunpack.c.l.b16 %v2698
    %v3996 = vunpack.c.h.b16 %v2698
    %v3997 = vunpack.c.l.b16 %v2699
    %v3998 = vunpack.c.h.b16 %v2699
    %v3999 = vunpack.c.l.b16 %v2700
    %v4000 = vunpack.c.h.b16 %v2700
    %v4001 = vunpack.c.l.b16 %v2701
    %v4002 = vunpack.c.h.b16 %v2701
    %v4003 = vunpack.c.l.b16 %v2702
    %v4004 = vunpack.c.h.b16 %v2702
    %v4005 = vunpack.c.l.b16 %v2703
    %v4006 = vunpack.c.h.b16 %v2703
    %v4007 = vunpack.c.l.b16 %v2704
    %v4008 = vunpack.c.h.b16 %v2704
    %v4009 = vunpack.c.l.b16 %v2705
    %v4010 = vunpack.c.h.b16 %v2705
    %v4011 = vunpack.c.l.b16 %v2706
    %v4012 = vunpack.c.h.b16 %v2706
    %v4013 = vunpack.c.l.b16 %v2707
    %v4014 = vunpack.c.h.b16 %v2707
    %v4015 = vunpack.c.l.b16 %v2708
    %v4016 = vunpack.c.h.b16 %v2708
    %v4017 = vunpack.c.l.b16 %v2709
    %v4018 = vunpack.c.h.b16 %v2709
    %v4019 = vunpack.c.l.b16 %v2710
    %v4020 = vunpack.c.h.b16 %v2710
    %v4021 = vunpack.c.l.b16 %v2711
    %v4022 = vunpack.c.h.b16 %v2711
    %v4023 = vunpack.c.l.b16 %v2712
    %v4024 = vunpack.c.h.b16 %v2712
    %v4025 = vunpack.c.l.b16 %v2713
    %v4026 = vunpack.c.h.b16 %v2713
    %v4027 = vunpack.c.l.b16 %v2714
    %v4028 = vunpack.c.h.b16 %v2714
    %v4029 = vunpack.c.l.b16 %v2715
    %v4030 = vunpack.c.h.b16 %v2715
    %v4031 = vunpack.c.l.b16 %v2716
    %v4032 = vunpack.c.h.b16 %v2716
    %v4033 = vunpack.c.l.b16 %v2717
    %v4034 = vunpack.c.h.b16 %v2717
    %v4035 = vunpack.c.l.b16 %v2718
    %v4036 = vunpack.c.h.b16 %v2718
    %v4037 = vunpack.c.l.b16 %v2719
    %v4038 = vunpack.c.h.b16 %v2719
    %v4039 = vunpack.c.l.b16 %v2720
    %v4040 = vunpack.c.h.b16 %v2720
    %v4041 = vunpack.c.l.b16 %v2721
    %v4042 = vunpack.c.h.b16 %v2721
    %v4043 = vunpack.c.l.b16 %v2722
    %v4044 = vunpack.c.h.b16 %v2722
    %v4045 = vunpack.c.l.b16 %v2723
    %v4046 = vunpack.c.h.b16 %v2723
    %v4047 = vunpack.c.l.b16 %v2724
    %v4048 = vunpack.c.h.b16 %v2724
    %v4049 = vunpack.c.l.b16 %v2725
    %v4050 = vunpack.c.h.b16 %v2725
    %v4051 = vunpack.c.l.b16 %v2726
    %v4052 = vunpack.c.h.b16 %v2726
    %v4053 = vunpack.c.l.b16 %v2727
    %v4054 = vunpack.c.h.b16 %v2727
    %v4055 = vunpack.c.l.b16 %v2728
    %v4056 = vunpack.c.h.b16 %v2728
    %v4057 = vunpack.c.l.b16 %v2729
    %v4058 = vunpack.c.h.b16 %v2729
    %v4059 = vunpack.c.l.b16 %v2730
    %v4060 = vunpack.c.h.b16 %v2730
    %v4061 = vunpack.c.l.b16 %v2731
    %v4062 = vunpack.c.h.b16 %v2731
    %v4063 = vunpack.c.l.b16 %v2732
    %v4064 = vunpack.c.h.b16 %v2732
    %v4065 = vunpack.c.l.b16 %v2733
    %v4066 = vunpack.c.h.b16 %v2733
    %v4067 = vunpack.c.l.b16 %v2734
    %v4068 = vunpack.c.h.b16 %v2734
    %v4069 = vunpack.c.l.b16 %v2735
    %v4070 = vunpack.c.h.b16 %v2735
    %v4071 = vunpack.c.l.b16 %v2736
    %v4072 = vunpack.c.h.b16 %v2736
    %v4073 = vunpack.c.l.b16 %v2737
    %v4074 = vunpack.c.h.b16 %v2737
    %v4075 = vunpack.c.l.b16 %v2738
    %v4076 = vunpack.c.h.b16 %v2738
    %v4077 = vunpack.c.l.b16 %v2739
    %v4078 = vunpack.c.h.b16 %v2739
    %v4079 = vunpack.c.l.b16 %v2740
    %v4080 = vunpack.c.h.b16 %v2740
    %v4081 = vunpack.c.l.b16 %v2741
    %v4082 = vunpack.c.h.b16 %v2741
    %v4083 = vunpack.c.l.b16 %v2742
    %v4084 = vunpack.c.h.b16 %v2742
    %v4085 = vunpack.c.l.b16 %v2743
    %v4086 = vunpack.c.h.b16 %v2743
    %v4087 = vunpack.c.l.b16 %v2744
    %v4088 = vunpack.c.h.b16 %v2744
    %v4089 = vunpack.c.l.b16 %v2745
    %v4090 = vunpack.c.h.b16 %v2745
    %v4091 = vunpack.c.l.b16 %v2746
    %v4092 = vunpack.c.h.b16 %v2746
    %v4093 = vunpack.c.l.b16 %v2747
    %v4094 = vunpack.c.h.b16 %v2747
    %v4095 = vunpack.c.l.b16 %v2748
    %v4096 = vunpack.c.h.b16 %v2748
    %v4097 = vunpack.c.l.b16 %v2749
    %v4098 = vunpack.c.h.b16 %v2749
    %v4099 = vunpack.c.l.b16 %v2750
    %v4100 = vunpack.c.h.b16 %v2750
    %v4101 = vunpack.c.l.b16 %v2751
    %v4102 = vunpack.c.h.b16 %v2751
    %v4103 = vunpack.c.l.b16 %v2752
    %v4104 = vunpack.c.h.b16 %v2752
    %v4105 = vunpack.c.l.b16 %v2753
    %v4106 = vunpack.c.h.b16 %v2753
    %v4107 = vunpack.c.l.b16 %v2754
    %v4108 = vunpack.c.h.b16 %v2754
    %v4109 = vunpack.c.l.b16 %v2755
    %v4110 = vunpack.c.h.b16 %v2755
    %v4111 = vunpack.c.l.b16 %v2756
    %v4112 = vunpack.c.h.b16 %v2756
    %v4113 = vunpack.c.l.b16 %v2757
    %v4114 = vunpack.c.h.b16 %v2757
    %v4115 = vunpack.c.l.b16 %v2758
    %v4116 = vunpack.c.h.b16 %v2758
    %v4117 = vunpack.c.l.b16 %v2759
    %v4118 = vunpack.c.h.b16 %v2759
    %v4119 = vunpack.c.l.b16 %v2760
    %v4120 = vunpack.c.h.b16 %v2760
    %v4121 = vunpack.c.l.b16 %v2761
    %v4122 = vunpack.c.h.b16 %v2761
    %v4123 = vunpack.c.l.b16 %v2762
    %v4124 = vunpack.c.h.b16 %v2762
    %v4125 = vpack.c.b16 %v3237, %v3229
    %v4126 = vpack.c.b16 %v3238, %v3230
    %v4127 = vpack.c.b16 %v3239, %v3231
    %v4128 = vpack.c.b16 %v3240, %v3232
    %v4129 = vpack.c.b16 %v3241, %v3233
    %v4130 = vpack.c.b16 %v3242, %v3234
    %v4131 = vpack.c.b16 %v3243, %v3235
    %v4132 = vpack.c.b16 %v3244, %v3236
    %v4133 = vpack.c.b16 %v3253, %v3245
    %v4134 = vpack.c.b16 %v3254, %v3246
    %v4135 = vpack.c.b16 %v3255, %v3247
    %v4136 = vpack.c.b16 %v3256, %v3248
    %v4137 = vpack.c.b16 %v3257, %v3249
    %v4138 = vpack.c.b16 %v3258, %v3250
    %v4139 = vpack.c.b16 %v3259, %v3251
    %v4140 = vpack.c.b16 %v3260, %v3252
    %v4141 = vpack.c.b16 %v3269, %v3261
    %v4142 = vpack.c.b16 %v3270, %v3262
    %v4143 = vpack.c.b16 %v3271, %v3263
    %v4144 = vpack.c.b16 %v3272, %v3264
    %v4145 = vpack.c.b16 %v3273, %v3265
    %v4146 = vpack.c.b16 %v3274, %v3266
    %v4147 = vpack.c.b16 %v3275, %v3267
    %v4148 = vpack.c.b16 %v3276, %v3268
    %v4149 = vpack.c.b16 %v3285, %v3277
    %v4150 = vpack.c.b16 %v3286, %v3278
    %v4151 = vpack.c.b16 %v3287, %v3279
    %v4152 = vpack.c.b16 %v3288, %v3280
    %v4153 = vpack.c.b16 %v3289, %v3281
    %v4154 = vpack.c.b16 %v3290, %v3282
    %v4155 = vpack.c.b16 %v3291, %v3283
    %v4156 = vpack.c.b16 %v3292, %v3284
    %v4157 = vpack.c.b16 %v3301, %v3293
    %v4158 = vpack.c.b16 %v3302, %v3294
    %v4159 = vpack.c.b16 %v3303, %v3295
    %v4160 = vpack.c.b16 %v3304, %v3296
    %v4161 = vpack.c.b16 %v3305, %v3297
    %v4162 = vpack.c.b16 %v3306, %v3298
    %v4163 = vpack.c.b16 %v3307, %v3299
    %v4164 = vpack.c.b16 %v3308, %v3300
    %v4165 = vpack.c.b16 %v3317, %v3309
    %v4166 = vpack.c.b16 %v3318, %v3310
    %v4167 = vpack.c.b16 %v3319, %v3311
    %v4168 = vpack.c.b16 %v3320, %v3312
    %v4169 = vpack.c.b16 %v3321, %v3313
    %v4170 = vpack.c.b16 %v3322, %v3314
    %v4171 = vpack.c.b16 %v3323, %v3315
    %v4172 = vpack.c.b16 %v3324, %v3316
    %v4173 = vpack.c.b16 %v3333, %v3325
    %v4174 = vpack.c.b16 %v3334, %v3326
    %v4175 = vpack.c.b16 %v3335, %v3327
    %v4176 = vpack.c.b16 %v3336, %v3328
    %v4177 = vpack.c.b16 %v3337, %v3329
    %v4178 = vpack.c.b16 %v3338, %v3330
    %v4179 = vpack.c.b16 %v3339, %v3331
    %v4180 = vpack.c.b16 %v3340, %v3332
    %v4181 = vpack.c.b16 %v3349, %v3341
    %v4182 = vpack.c.b16 %v3350, %v3342
    %v4183 = vpack.c.b16 %v3351, %v3343
    %v4184 = vpack.c.b16 %v3352, %v3344
    %v4185 = vpack.c.b16 %v3353, %v3345
    %v4186 = vpack.c.b16 %v3354, %v3346
    %v4187 = vpack.c.b16 %v3355, %v3347
    %v4188 = vpack.c.b16 %v3356, %v3348
    %v4189 = vpack.c.b16 %v3365, %v3357
    %v4190 = vpack.c.b16 %v3366, %v3358
    %v4191 = vpack.c.b16 %v3367, %v3359
    %v4192 = vpack.c.b16 %v3368, %v3360
    %v4193 = vpack.c.b16 %v3369, %v3361
    %v4194 = vpack.c.b16 %v3370, %v3362
    %v4195 = vpack.c.b16 %v3371, %v3363
    %v4196 = vpack.c.b16 %v3372, %v3364
    %v4197 = vpack.c.b16 %v3381, %v3373
    %v4198 = vpack.c.b16 %v3382, %v3374
    %v4199 = vpack.c.b16 %v3383, %v3375
    %v4200 = vpack.c.b16 %v3384, %v3376
    %v4201 = vpack.c.b16 %v3385, %v3377
    %v4202 = vpack.c.b16 %v3386, %v3378
    %v4203 = vpack.c.b16 %v3387, %v3379
    %v4204 = vpack.c.b16 %v3388, %v3380
    %v4205 = vpack.c.b16 %v3397, %v3389
    %v4206 = vpack.c.b16 %v3398, %v3390
    %v4207 = vpack.c.b16 %v3399, %v3391
    %v4208 = vpack.c.b16 %v3400, %v3392
    %v4209 = vpack.c.b16 %v3401, %v3393
    %v4210 = vpack.c.b16 %v3402, %v3394
    %v4211 = vpack.c.b16 %v3403, %v3395
    %v4212 = vpack.c.b16 %v3404, %v3396
    %v4213 = vpack.c.b16 %v3413, %v3405
    %v4214 = vpack.c.b16 %v3414, %v3406
    %v4215 = vpack.c.b16 %v3415, %v3407
    %v4216 = vpack.c.b16 %v3416, %v3408
    %v4217 = vpack.c.b16 %v3417, %v3409
    %v4218 = vpack.c.b16 %v3418, %v3410
    %v4219 = vpack.c.b16 %v3419, %v3411
    %v4220 = vpack.c.b16 %v3420, %v3412
    %v4221 = vpack.c.b16 %v3429, %v3421
    %v4222 = vpack.c.b16 %v3430, %v3422
    %v4223 = vpack.c.b16 %v3431, %v3423
    %v4224 = vpack.c.b16 %v3432, %v3424
    %v4225 = vpack.c.b16 %v3433, %v3425
    %v4226 = vpack.c.b16 %v3434, %v3426
    %v4227 = vpack.c.b16 %v3435, %v3427
    %v4228 = vpack.c.b16 %v3436, %v3428
    %v4229 = vpack.c.b16 %v3445, %v3437
    %v4230 = vpack.c.b16 %v3446, %v3438
    %v4231 = vpack.c.b16 %v3447, %v3439
    %v4232 = vpack.c.b16 %v3448, %v3440
    %v4233 = vpack.c.b16 %v3449, %v3441
    %v4234 = vpack.c.b16 %v3450, %v3442
    %v4235 = vpack.c.b16 %v3451, %v3443
    %v4236 = vpack.c.b16 %v3452, %v3444
    %v4237 = vpack.c.b16 %v3461, %v3453
    %v4238 = vpack.c.b16 %v3462, %v3454
    %v4239 = vpack.c.b16 %v3463, %v3455
    %v4240 = vpack.c.b16 %v3464, %v3456
    %v4241 = vpack.c.b16 %v3465, %v3457
    %v4242 = vpack.c.b16 %v3466, %v3458
    %v4243 = vpack.c.b16 %v3467, %v3459
    %v4244 = vpack.c.b16 %v3468, %v3460
    %v4245 = vpack.c.b16 %v3477, %v3469
    %v4246 = vpack.c.b16 %v3478, %v3470
    %v4247 = vpack.c.b16 %v3479, %v3471
    %v4248 = vpack.c.b16 %v3480, %v3472
    %v4249 = vpack.c.b16 %v3481, %v3473
    %v4250 = vpack.c.b16 %v3482, %v3474
    %v4251 = vpack.c.b16 %v3483, %v3475
    %v4252 = vpack.c.b16 %v3484, %v3476
    %v4253 = vpack.c.b16 %v3493, %v3485
    %v4254 = vpack.c.b16 %v3494, %v3486
    %v4255 = vpack.c.b16 %v3495, %v3487
    %v4256 = vpack.c.b16 %v3496, %v3488
    %v4257 = vpack.c.b16 %v3497, %v3489
    %v4258 = vpack.c.b16 %v3498, %v3490
    %v4259 = vpack.c.b16 %v3499, %v3491
    %v4260 = vpack.c.b16 %v3500, %v3492
    %v4261 = vpack.c.b16 %v3509, %v3501
    %v4262 = vpack.c.b16 %v3510, %v3502
    %v4263 = vpack.c.b16 %v3511, %v3503
    %v4264 = vpack.c.b16 %v3512, %v3504
    %v4265 = vpack.c.b16 %v3513, %v3505
    %v4266 = vpack.c.b16 %v3514, %v3506
    %v4267 = vpack.c.b16 %v3515, %v3507
    %v4268 = vpack.c.b16 %v3516, %v3508
    %v4269 = vpack.c.b16 %v3525, %v3517
    %v4270 = vpack.c.b16 %v3526, %v3518
    %v4271 = vpack.c.b16 %v3527, %v3519
    %v4272 = vpack.c.b16 %v3528, %v3520
    %v4273 = vpack.c.b16 %v3529, %v3521
    %v4274 = vpack.c.b16 %v3530, %v3522
    %v4275 = vpack.c.b16 %v3531, %v3523
    %v4276 = vpack.c.b16 %v3532, %v3524
    %v4277 = vpack.c.b16 %v3541, %v3533
    %v4278 = vpack.c.b16 %v3542, %v3534
    %v4279 = vpack.c.b16 %v3543, %v3535
    %v4280 = vpack.c.b16 %v3544, %v3536
    %v4281 = vpack.c.b16 %v3545, %v3537
    %v4282 = vpack.c.b16 %v3546, %v3538
    %v4283 = vpack.c.b16 %v3547, %v3539
    %v4284 = vpack.c.b16 %v3548, %v3540
    %v4285 = vpack.c.b16 %v3557, %v3549
    %v4286 = vpack.c.b16 %v3558, %v3550
    %v4287 = vpack.c.b16 %v3559, %v3551
    %v4288 = vpack.c.b16 %v3560, %v3552
    %v4289 = vpack.c.b16 %v3561, %v3553
    %v4290 = vpack.c.b16 %v3562, %v3554
    %v4291 = vpack.c.b16 %v3563, %v3555
    %v4292 = vpack.c.b16 %v3564, %v3556
    %v4293 = vpack.c.b16 %v3573, %v3565
    %v4294 = vpack.c.b16 %v3574, %v3566
    %v4295 = vpack.c.b16 %v3575, %v3567
    %v4296 = vpack.c.b16 %v3576, %v3568
    %v4297 = vpack.c.b16 %v3577, %v3569
    %v4298 = vpack.c.b16 %v3578, %v3570
    %v4299 = vpack.c.b16 %v3579, %v3571
    %v4300 = vpack.c.b16 %v3580, %v3572
    %v4301 = vpack.c.b16 %v3589, %v3581
    %v4302 = vpack.c.b16 %v3590, %v3582
    %v4303 = vpack.c.b16 %v3591, %v3583
    %v4304 = vpack.c.b16 %v3592, %v3584
    %v4305 = vpack.c.b16 %v3593, %v3585
    %v4306 = vpack.c.b16 %v3594, %v3586
    %v4307 = vpack.c.b16 %v3595, %v3587
    %v4308 = vpack.c.b16 %v3596, %v3588
    %v4309 = vpack.c.b16 %v3605, %v3597
    %v4310 = vpack.c.b16 %v3606, %v3598
    %v4311 = vpack.c.b16 %v3607, %v3599
    %v4312 = vpack.c.b16 %v3608, %v3600
    %v4313 = vpack.c.b16 %v3609, %v3601
    %v4314 = vpack.c.b16 %v3610, %v3602
    %v4315 = vpack.c.b16 %v3611, %v3603
    %v4316 = vpack.c.b16 %v3612, %v3604
    %v4317 = vpack.c.b16 %v3621, %v3613
    %v4318 = vpack.c.b16 %v3622, %v3614
    %v4319 = vpack.c.b16 %v3623, %v3615
    %v4320 = vpack.c.b16 %v3624, %v3616
    %v4321 = vpack.c.b16 %v3625, %v3617
    %v4322 = vpack.c.b16 %v3626, %v3618
    %v4323 = vpack.c.b16 %v3627, %v3619
    %v4324 = vpack.c.b16 %v3628, %v3620
    %v4325 = vpack.c.b16 %v3637, %v3629
    %v4326 = vpack.c.b16 %v3638, %v3630
    %v4327 = vpack.c.b16 %v3639, %v3631
    %v4328 = vpack.c.b16 %v3640, %v3632
    %v4329 = vpack.c.b16 %v3641, %v3633
    %v4330 = vpack.c.b16 %v3642, %v3634
    %v4331 = vpack.c.b16 %v3643, %v3635
    %v4332 = vpack.c.b16 %v3644, %v3636
    %v4333 = vpack.c.b16 %v3653, %v3645
    %v4334 = vpack.c.b16 %v3654, %v3646
    %v4335 = vpack.c.b16 %v3655, %v3647
    %v4336 = vpack.c.b16 %v3656, %v3648
    %v4337 = vpack.c.b16 %v3657, %v3649
    %v4338 = vpack.c.b16 %v3658, %v3650
    %v4339 = vpack.c.b16 %v3659, %v3651
    %v4340 = vpack.c.b16 %v3660, %v3652
    %v4341 = vpack.c.b16 %v3669, %v3661
    %v4342 = vpack.c.b16 %v3670, %v3662
    %v4343 = vpack.c.b16 %v3671, %v3663
    %v4344 = vpack.c.b16 %v3672, %v3664
    %v4345 = vpack.c.b16 %v3673, %v3665
    %v4346 = vpack.c.b16 %v3674, %v3666
    %v4347 = vpack.c.b16 %v3675, %v3667
    %v4348 = vpack.c.b16 %v3676, %v3668
    %v4349 = vpack.c.b16 %v3685, %v3677
    %v4350 = vpack.c.b16 %v3686, %v3678
    %v4351 = vpack.c.b16 %v3687, %v3679
    %v4352 = vpack.c.b16 %v3688, %v3680
    %v4353 = vpack.c.b16 %v3689, %v3681
    %v4354 = vpack.c.b16 %v3690, %v3682
    %v4355 = vpack.c.b16 %v3691, %v3683
    %v4356 = vpack.c.b16 %v3692, %v3684
    %v4357 = vpack.c.b16 %v3701, %v3693
    %v4358 = vpack.c.b16 %v3702, %v3694
    %v4359 = vpack.c.b16 %v3703, %v3695
    %v4360 = vpack.c.b16 %v3704, %v3696
    %v4361 = vpack.c.b16 %v3705, %v3697
    %v4362 = vpack.c.b16 %v3706, %v3698
    %v4363 = vpack.c.b16 %v3707, %v3699
    %v4364 = vpack.c.b16 %v3708, %v3700
    %v4365 = vpack.c.b16 %v3717, %v3709
    %v4366 = vpack.c.b16 %v3718, %v3710
    %v4367 = vpack.c.b16 %v3719, %v3711
    %v4368 = vpack.c.b16 %v3720, %v3712
    %v4369 = vpack.c.b16 %v3721, %v3713
    %v4370 = vpack.c.b16 %v3722, %v3714
    %v4371 = vpack.c.b16 %v3723, %v3715
    %v4372 = vpack.c.b16 %v3724, %v3716
    %v4373 = vpack.c.b16 %v3733, %v3725
    %v4374 = vpack.c.b16 %v3734, %v3726
    %v4375 = vpack.c.b16 %v3735, %v3727
    %v4376 = vpack.c.b16 %v3736, %v3728
    %v4377 = vpack.c.b16 %v3737, %v3729
    %v4378 = vpack.c.b16 %v3738, %v3730
    %v4379 = vpack.c.b16 %v3739, %v3731
    %v4380 = vpack.c.b16 %v3740, %v3732
    %v4381 = vpack.c.b16 %v3749, %v3741
    %v4382 = vpack.c.b16 %v3750, %v3742
    %v4383 = vpack.c.b16 %v3751, %v3743
    %v4384 = vpack.c.b16 %v3752, %v3744
    %v4385 = vpack.c.b16 %v3753, %v3745
    %v4386 = vpack.c.b16 %v3754, %v3746
    %v4387 = vpack.c.b16 %v3755, %v3747
    %v4388 = vpack.c.b16 %v3756, %v3748
    %v4389 = vpack.c.b16 %v3765, %v3757
    %v4390 = vpack.c.b16 %v3766, %v3758
    %v4391 = vpack.c.b16 %v3767, %v3759
    %v4392 = vpack.c.b16 %v3768, %v3760
    %v4393 = vpack.c.b16 %v3769, %v3761
    %v4394 = vpack.c.b16 %v3770, %v3762
    %v4395 = vpack.c.b16 %v3771, %v3763
    %v4396 = vpack.c.b16 %v3772, %v3764
    %v4397 = vpack.c.b16 %v3781, %v3773
    %v4398 = vpack.c.b16 %v3782, %v3774
    %v4399 = vpack.c.b16 %v3783, %v3775
    %v4400 = vpack.c.b16 %v3784, %v3776
    %v4401 = vpack.c.b16 %v3785, %v3777
    %v4402 = vpack.c.b16 %v3786, %v3778
    %v4403 = vpack.c.b16 %v3787, %v3779
    %v4404 = vpack.c.b16 %v3788, %v3780
    %v4405 = vpack.c.b16 %v3797, %v3789
    %v4406 = vpack.c.b16 %v3798, %v3790
    %v4407 = vpack.c.b16 %v3799, %v3791
    %v4408 = vpack.c.b16 %v3800, %v3792
    %v4409 = vpack.c.b16 %v3801, %v3793
    %v4410 = vpack.c.b16 %v3802, %v3794
    %v4411 = vpack.c.b16 %v3803, %v3795
    %v4412 = vpack.c.b16 %v3804, %v3796
    %v4413 = vpack.c.b16 %v3813, %v3805
    %v4414 = vpack.c.b16 %v3814, %v3806
    %v4415 = vpack.c.b16 %v3815, %v3807
    %v4416 = vpack.c.b16 %v3816, %v3808
    %v4417 = vpack.c.b16 %v3817, %v3809
    %v4418 = vpack.c.b16 %v3818, %v3810
    %v4419 = vpack.c.b16 %v3819, %v3811
    %v4420 = vpack.c.b16 %v3820, %v3812
    %v4421 = vpack.c.b16 %v3829, %v3821
    %v4422 = vpack.c.b16 %v3830, %v3822
    %v4423 = vpack.c.b16 %v3831, %v3823
    %v4424 = vpack.c.b16 %v3832, %v3824
    %v4425 = vpack.c.b16 %v3833, %v3825
    %v4426 = vpack.c.b16 %v3834, %v3826
    %v4427 = vpack.c.b16 %v3835, %v3827
    %v4428 = vpack.c.b16 %v3836, %v3828
    %v4429 = vpack.c.b16 %v3845, %v3837
    %v4430 = vpack.c.b16 %v3846, %v3838
    %v4431 = vpack.c.b16 %v3847, %v3839
    %v4432 = vpack.c.b16 %v3848, %v3840
    %v4433 = vpack.c.b16 %v3849, %v3841
    %v4434 = vpack.c.b16 %v3850, %v3842
    %v4435 = vpack.c.b16 %v3851, %v3843
    %v4436 = vpack.c.b16 %v3852, %v3844
    %v4437 = vpack.c.b16 %v3861, %v3853
    %v4438 = vpack.c.b16 %v3862, %v3854
    %v4439 = vpack.c.b16 %v3863, %v3855
    %v4440 = vpack.c.b16 %v3864, %v3856
    %v4441 = vpack.c.b16 %v3865, %v3857
    %v4442 = vpack.c.b16 %v3866, %v3858
    %v4443 = vpack.c.b16 %v3867, %v3859
    %v4444 = vpack.c.b16 %v3868, %v3860
    %v4445 = vpack.c.b16 %v3877, %v3869
    %v4446 = vpack.c.b16 %v3878, %v3870
    %v4447 = vpack.c.b16 %v3879, %v3871
    %v4448 = vpack.c.b16 %v3880, %v3872
    %v4449 = vpack.c.b16 %v3881, %v3873
    %v4450 = vpack.c.b16 %v3882, %v3874
    %v4451 = vpack.c.b16 %v3883, %v3875
    %v4452 = vpack.c.b16 %v3884, %v3876
    %v4453 = vpack.c.b16 %v3893, %v3885
    %v4454 = vpack.c.b16 %v3894, %v3886
    %v4455 = vpack.c.b16 %v3895, %v3887
    %v4456 = vpack.c.b16 %v3896, %v3888
    %v4457 = vpack.c.b16 %v3897, %v3889
    %v4458 = vpack.c.b16 %v3898, %v3890
    %v4459 = vpack.c.b16 %v3899, %v3891
    %v4460 = vpack.c.b16 %v3900, %v3892
    %v4461 = vpack.c.b16 %v3909, %v3901
    %v4462 = vpack.c.b16 %v3910, %v3902
    %v4463 = vpack.c.b16 %v3911, %v3903
    %v4464 = vpack.c.b16 %v3912, %v3904
    %v4465 = vpack.c.b16 %v3913, %v3905
    %v4466 = vpack.c.b16 %v3914, %v3906
    %v4467 = vpack.c.b16 %v3915, %v3907
    %v4468 = vpack.c.b16 %v3916, %v3908
    %v4469 = vpack.c.b16 %v3925, %v3917
    %v4470 = vpack.c.b16 %v3926, %v3918
    %v4471 = vpack.c.b16 %v3927, %v3919
    %v4472 = vpack.c.b16 %v3928, %v3920
    %v4473 = vpack.c.b16 %v3929, %v3921
    %v4474 = vpack.c.b16 %v3930, %v3922
    %v4475 = vpack.c.b16 %v3931, %v3923
    %v4476 = vpack.c.b16 %v3932, %v3924
    %v4477 = vpack.c.b16 %v3941, %v3933
    %v4478 = vpack.c.b16 %v3942, %v3934
    %v4479 = vpack.c.b16 %v3943, %v3935
    %v4480 = vpack.c.b16 %v3944, %v3936
    %v4481 = vpack.c.b16 %v3945, %v3937
    %v4482 = vpack.c.b16 %v3946, %v3938
    %v4483 = vpack.c.b16 %v3947, %v3939
    %v4484 = vpack.c.b16 %v3948, %v3940
    %v4485 = vpack.c.b16 %v3957, %v3949
    %v4486 = vpack.c.b16 %v3958, %v3950
    %v4487 = vpack.c.b16 %v3959, %v3951
    %v4488 = vpack.c.b16 %v3960, %v3952
    %v4489 = vpack.c.b16 %v3961, %v3953
    %v4490 = vpack.c.b16 %v3962, %v3954
    %v4491 = vpack.c.b16 %v3963, %v3955
    %v4492 = vpack.c.b16 %v3964, %v3956
    %v4493 = vpack.c.b16 %v3973, %v3965
    %v4494 = vpack.c.b16 %v3974, %v3966
    %v4495 = vpack.c.b16 %v3975, %v3967
    %v4496 = vpack.c.b16 %v3976, %v3968
    %v4497 = vpack.c.b16 %v3977, %v3969
    %v4498 = vpack.c.b16 %v3978, %v3970
    %v4499 = vpack.c.b16 %v3979, %v3971
    %v4500 = vpack.c.b16 %v3980, %v3972
    %v4501 = vpack.c.b16 %v3989, %v3981
    %v4502 = vpack.c.b16 %v3990, %v3982
    %v4503 = vpack.c.b16 %v3991, %v3983
    %v4504 = vpack.c.b16 %v3992, %v3984
    %v4505 = vpack.c.b16 %v3993, %v3985
    %v4506 = vpack.c.b16 %v3994, %v3986
    %v4507 = vpack.c.b16 %v3995, %v3987
    %v4508 = vpack.c.b16 %v3996, %v3988
    %v4509 = vpack.c.b16 %v4005, %v3997
    %v4510 = vpack.c.b16 %v4006, %v3998
    %v4511 = vpack.c.b16 %v4007, %v3999
    %v4512 = vpack.c.b16 %v4008, %v4000
    %v4513 = vpack.c.b16 %v4009, %v4001
    %v4514 = vpack.c.b16 %v4010, %v4002
    %v4515 = vpack.c.b16 %v4011, %v4003
    %v4516 = vpack.c.b16 %v4012, %v4004
    %v4517 = vpack.c.b16 %v4021, %v4013
    %v4518 = vpack.c.b16 %v4022, %v4014
    %v4519 = vpack.c.b16 %v4023, %v4015
    %v4520 = vpack.c.b16 %v4024, %v4016
    %v4521 = vpack.c.b16 %v4025, %v4017
    %v4522 = vpack.c.b16 %v4026, %v4018
    %v4523 = vpack.c.b16 %v4027, %v4019
    %v4524 = vpack.c.b16 %v4028, %v4020
    %v4525 = vpack.c.b16 %v4037, %v4029
    %v4526 = vpack.c.b16 %v4038, %v4030
    %v4527 = vpack.c.b16 %v4039, %v4031
    %v4528 = vpack.c.b16 %v4040, %v4032
    %v4529 = vpack.c.b16 %v4041, %v4033
    %v4530 = vpack.c.b16 %v4042, %v4034
    %v4531 = vpack.c.b16 %v4043, %v4035
    %v4532 = vpack.c.b16 %v4044, %v4036
    %v4533 = vpack.c.b16 %v4053, %v4045
    %v4534 = vpack.c.b16 %v4054, %v4046
    %v4535 = vpack.c.b16 %v4055, %v4047
    %v4536 = vpack.c.b16 %v4056, %v4048
    %v4537 = vpack.c.b16 %v4057, %v4049
    %v4538 = vpack.c.b16 %v4058, %v4050
    %v4539 = vpack.c.b16 %v4059, %v4051
    %v4540 = vpack.c.b16 %v4060, %v4052
    %v4541 = vpack.c.b16 %v4069, %v4061
    %v4542 = vpack.c.b16 %v4070, %v4062
    %v4543 = vpack.c.b16 %v4071, %v4063
    %v4544 = vpack.c.b16 %v4072, %v4064
    %v4545 = vpack.c.b16 %v4073, %v4065
    %v4546 = vpack.c.b16 %v4074, %v4066
    %v4547 = vpack.c.b16 %v4075, %v4067
    %v4548 = vpack.c.b16 %v4076, %v4068
    %v4549 = vpack.c.b16 %v4085, %v4077
    %v4550 = vpack.c.b16 %v4086, %v4078
    %v4551 = vpack.c.b16 %v4087, %v4079
    %v4552 = vpack.c.b16 %v4088, %v4080
    %v4553 = vpack.c.b16 %v4089, %v4081
    %v4554 = vpack.c.b16 %v4090, %v4082
    %v4555 = vpack.c.b16 %v4091, %v4083
    %v4556 = vpack.c.b16 %v4092, %v4084
    %v4557 = vpack.c.b16 %v4101, %v4093
    %v4558 = vpack.c.b16 %v4102, %v4094
    %v4559 = vpack.c.b16 %v4103, %v4095
    %v4560 = vpack.c.b16 %v4104, %v4096
    %v4561 = vpack.c.b16 %v4105, %v4097
    %v4562 = vpack.c.b16 %v4106, %v4098
    %v4563 = vpack.c.b16 %v4107, %v4099
    %v4564 = vpack.c.b16 %v4108, %v4100
    %v4565 = vpack.c.b16 %v4117, %v4109
    %v4566 = vpack.c.b16 %v4118, %v4110
    %v4567 = vpack.c.b16 %v4119, %v4111
    %v4568 = vpack.c.b16 %v4120, %v4112
    %v4569 = vpack.c.b16 %v4121, %v4113
    %v4570 = vpack.c.b16 %v4122, %v4114
    %v4571 = vpack.c.b16 %v4123, %v4115
    %v4572 = vpack.c.b16 %v4124, %v4116
    %5021 = vmatpush.bf16.msra.mxu0 %v4181
    %5022 = vmatpush.bf16.msra.mxu0 %v4173
    %5023 = vmatpush.bf16.msra.mxu0 %v4165
    %5024 = vmatpush.bf16.msra.mxu0 %v4157
    %5025 = vmatpush.bf16.msra.mxu0 %v4149
    %5026 = vmatpush.bf16.msra.mxu0 %v4141
    %5027 = vmatpush.bf16.msra.mxu0 %v4133
    %5028 = vmatpush.bf16.msra.mxu0 %v4125
    %5029 = vmatmul.bf16.gmra.mxu0 %v2308
    %v5030 = vpop.f32.mrf.mxu0
    %v5031 = vadd.f32 %v2765, %v5030
    %v5032 = vpop.f32.mrf.mxu0
    %v5033 = vadd.f32 %v2765, %v5032
    %5034 = vdwg.mxu0
    %5035 = vmatpush.bf16.msra.mxu0 %v4245
    %5036 = vmatpush.bf16.msra.mxu0 %v4237
    %5037 = vmatpush.bf16.msra.mxu0 %v4229
    %5038 = vmatpush.bf16.msra.mxu0 %v4221
    %5039 = vmatpush.bf16.msra.mxu0 %v4213
    %5040 = vmatpush.bf16.msra.mxu0 %v4205
    %5041 = vmatpush.bf16.msra.mxu0 %v4197
    %5042 = vmatpush.bf16.msra.mxu0 %v4189
    %5043 = vmatmul.bf16.gmra.mxu0 %v2309
    %v5044 = vpop.f32.mrf.mxu0
    %v5045 = vadd.f32 %v5031, %v5044
    %v5046 = vpop.f32.mrf.mxu0
    %v5047 = vadd.f32 %v5033, %v5046
    %5048 = vdwg.mxu0
    %5049 = vmatpush.bf16.msra.mxu0 %v4309
    %5050 = vmatpush.bf16.msra.mxu0 %v4301
    %5051 = vmatpush.bf16.msra.mxu0 %v4293
    %5052 = vmatpush.bf16.msra.mxu0 %v4285
    %5053 = vmatpush.bf16.msra.mxu0 %v4277
    %5054 = vmatpush.bf16.msra.mxu0 %v4269
    %5055 = vmatpush.bf16.msra.mxu0 %v4261
    %5056 = vmatpush.bf16.msra.mxu0 %v4253
    %5057 = vmatmul.bf16.gmra.mxu0 %v2310
    %v5058 = vpop.f32.mrf.mxu0
    %v5059 = vadd.f32 %v5045, %v5058
    %v5060 = vpop.f32.mrf.mxu0
    %v5061 = vadd.f32 %v5047, %v5060
    %5062 = vdwg.mxu0
    %5063 = vmatpush.bf16.msra.mxu0 %v4373
    %5064 = vmatpush.bf16.msra.mxu0 %v4365
    %5065 = vmatpush.bf16.msra.mxu0 %v4357
    %5066 = vmatpush.bf16.msra.mxu0 %v4349
    %5067 = vmatpush.bf16.msra.mxu0 %v4341
    %5068 = vmatpush.bf16.msra.mxu0 %v4333
    %5069 = vmatpush.bf16.msra.mxu0 %v4325
    %5070 = vmatpush.bf16.msra.mxu0 %v4317
    %5071 = vmatmul.bf16.gmra.mxu0 %v2311
    %v5072 = vpop.f32.mrf.mxu0
    %v5073 = vadd.f32 %v5059, %v5072
    %v5074 = vpop.f32.mrf.mxu0
    %v5075 = vadd.f32 %v5061, %v5074
    %5076 = vdwg.mxu0
    %5077 = vmatpush.bf16.msra.mxu0 %v4437
    %5078 = vmatpush.bf16.msra.mxu0 %v4429
    %5079 = vmatpush.bf16.msra.mxu0 %v4421
    %5080 = vmatpush.bf16.msra.mxu0 %v4413
    %5081 = vmatpush.bf16.msra.mxu0 %v4405
    %5082 = vmatpush.bf16.msra.mxu0 %v4397
    %5083 = vmatpush.bf16.msra.mxu0 %v4389
    %5084 = vmatpush.bf16.msra.mxu0 %v4381
    %5085 = vmatmul.bf16.gmra.mxu0 %v2312
    %v5086 = vpop.f32.mrf.mxu0
    %v5087 = vadd.f32 %v5073, %v5086
    %v5088 = vpop.f32.mrf.mxu0
    %v5089 = vadd.f32 %v5075, %v5088
    %5090 = vdwg.mxu0
    %5091 = vmatpush.bf16.msra.mxu0 %v4501
    %5092 = vmatpush.bf16.msra.mxu0 %v4493
    %5093 = vmatpush.bf16.msra.mxu0 %v4485
    %5094 = vmatpush.bf16.msra.mxu0 %v4477
    %5095 = vmatpush.bf16.msra.mxu0 %v4469
    %5096 = vmatpush.bf16.msra.mxu0 %v4461
    %5097 = vmatpush.bf16.msra.mxu0 %v4453
    %5098 = vmatpush.bf16.msra.mxu0 %v4445
    %5099 = vmatmul.bf16.gmra.mxu0 %v2313
    %v5100 = vpop.f32.mrf.mxu0
    %v5101 = vadd.f32 %v5087, %v5100
    %v5102 = vpop.f32.mrf.mxu0
    %v5103 = vadd.f32 %v5089, %v5102
    %5104 = vdwg.mxu0
    %5105 = vmatpush.bf16.msra.mxu0 %v4565
    %5106 = vmatpush.bf16.msra.mxu0 %v4557
    %5107 = vmatpush.bf16.msra.mxu0 %v4549
    %5108 = vmatpush.bf16.msra.mxu0 %v4541
    %5109 = vmatpush.bf16.msra.mxu0 %v4533
    %5110 = vmatpush.bf16.msra.mxu0 %v4525
    %5111 = vmatpush.bf16.msra.mxu0 %v4517
    %5112 = vmatpush.bf16.msra.mxu0 %v4509
    %5113 = vmatmul.bf16.gmra.mxu0 %v2314
    %v5114 = vpop.f32.mrf.mxu0
    %v5115 = vadd.f32 %v5101, %v5114
    %v5116 = vpop.f32.mrf.mxu0
    %v5117 = vadd.f32 %v5103, %v5116
    %5118 = vdwg.mxu0
    %5119 = vmatpush.bf16.msra.mxu0 %v4182
    %5120 = vmatpush.bf16.msra.mxu0 %v4174
    %5121 = vmatpush.bf16.msra.mxu0 %v4166
    %5122 = vmatpush.bf16.msra.mxu0 %v4158
    %5123 = vmatpush.bf16.msra.mxu0 %v4150
    %5124 = vmatpush.bf16.msra.mxu0 %v4142
    %5125 = vmatpush.bf16.msra.mxu0 %v4134
    %5126 = vmatpush.bf16.msra.mxu0 %v4126
    %5127 = vmatmul.bf16.gmra.mxu0 %v2308
    %v5128 = vpop.f32.mrf.mxu0
    %v5129 = vadd.f32 %v2766, %v5128
    %v5130 = vpop.f32.mrf.mxu0
    %v5131 = vadd.f32 %v2766, %v5130
    %5132 = vdwg.mxu0
    %5133 = vmatpush.bf16.msra.mxu0 %v4246
    %5134 = vmatpush.bf16.msra.mxu0 %v4238
    %5135 = vmatpush.bf16.msra.mxu0 %v4230
    %5136 = vmatpush.bf16.msra.mxu0 %v4222
    %5137 = vmatpush.bf16.msra.mxu0 %v4214
    %5138 = vmatpush.bf16.msra.mxu0 %v4206
    %5139 = vmatpush.bf16.msra.mxu0 %v4198
    %5140 = vmatpush.bf16.msra.mxu0 %v4190
    %5141 = vmatmul.bf16.gmra.mxu0 %v2309
    %v5142 = vpop.f32.mrf.mxu0
    %v5143 = vadd.f32 %v5129, %v5142
    %v5144 = vpop.f32.mrf.mxu0
    %v5145 = vadd.f32 %v5131, %v5144
    %5146 = vdwg.mxu0
    %5147 = vmatpush.bf16.msra.mxu0 %v4310
    %5148 = vmatpush.bf16.msra.mxu0 %v4302
    %5149 = vmatpush.bf16.msra.mxu0 %v4294
    %5150 = vmatpush.bf16.msra.mxu0 %v4286
    %5151 = vmatpush.bf16.msra.mxu0 %v4278
    %5152 = vmatpush.bf16.msra.mxu0 %v4270
    %5153 = vmatpush.bf16.msra.mxu0 %v4262
    %5154 = vmatpush.bf16.msra.mxu0 %v4254
    %5155 = vmatmul.bf16.gmra.mxu0 %v2310
    %v5156 = vpop.f32.mrf.mxu0
    %v5157 = vadd.f32 %v5143, %v5156
    %v5158 = vpop.f32.mrf.mxu0
    %v5159 = vadd.f32 %v5145, %v5158
    %5160 = vdwg.mxu0
    %5161 = vmatpush.bf16.msra.mxu0 %v4374
    %5162 = vmatpush.bf16.msra.mxu0 %v4366
    %5163 = vmatpush.bf16.msra.mxu0 %v4358
    %5164 = vmatpush.bf16.msra.mxu0 %v4350
    %5165 = vmatpush.bf16.msra.mxu0 %v4342
    %5166 = vmatpush.bf16.msra.mxu0 %v4334
    %5167 = vmatpush.bf16.msra.mxu0 %v4326
    %5168 = vmatpush.bf16.msra.mxu0 %v4318
    %5169 = vmatmul.bf16.gmra.mxu0 %v2311
    %v5170 = vpop.f32.mrf.mxu0
    %v5171 = vadd.f32 %v5157, %v5170
    %v5172 = vpop.f32.mrf.mxu0
    %v5173 = vadd.f32 %v5159, %v5172
    %5174 = vdwg.mxu0
    %5175 = vmatpush.bf16.msra.mxu0 %v4438
    %5176 = vmatpush.bf16.msra.mxu0 %v4430
    %5177 = vmatpush.bf16.msra.mxu0 %v4422
    %5178 = vmatpush.bf16.msra.mxu0 %v4414
    %5179 = vmatpush.bf16.msra.mxu0 %v4406
    %5180 = vmatpush.bf16.msra.mxu0 %v4398
    %5181 = vmatpush.bf16.msra.mxu0 %v4390
    %5182 = vmatpush.bf16.msra.mxu0 %v4382
    %5183 = vmatmul.bf16.gmra.mxu0 %v2312
    %v5184 = vpop.f32.mrf.mxu0
    %v5185 = vadd.f32 %v5171, %v5184
    %v5186 = vpop.f32.mrf.mxu0
    %v5187 = vadd.f32 %v5173, %v5186
    %5188 = vdwg.mxu0
    %5189 = vmatpush.bf16.msra.mxu0 %v4502
    %5190 = vmatpush.bf16.msra.mxu0 %v4494
    %5191 = vmatpush.bf16.msra.mxu0 %v4486
    %5192 = vmatpush.bf16.msra.mxu0 %v4478
    %5193 = vmatpush.bf16.msra.mxu0 %v4470
    %5194 = vmatpush.bf16.msra.mxu0 %v4462
    %5195 = vmatpush.bf16.msra.mxu0 %v4454
    %5196 = vmatpush.bf16.msra.mxu0 %v4446
    %5197 = vmatmul.bf16.gmra.mxu0 %v2313
    %v5198 = vpop.f32.mrf.mxu0
    %v5199 = vadd.f32 %v5185, %v5198
    %v5200 = vpop.f32.mrf.mxu0
    %v5201 = vadd.f32 %v5187, %v5200
    %5202 = vdwg.mxu0
    %5203 = vmatpush.bf16.msra.mxu0 %v4566
    %5204 = vmatpush.bf16.msra.mxu0 %v4558
    %5205 = vmatpush.bf16.msra.mxu0 %v4550
    %5206 = vmatpush.bf16.msra.mxu0 %v4542
    %5207 = vmatpush.bf16.msra.mxu0 %v4534
    %5208 = vmatpush.bf16.msra.mxu0 %v4526
    %5209 = vmatpush.bf16.msra.mxu0 %v4518
    %5210 = vmatpush.bf16.msra.mxu0 %v4510
    %5211 = vmatmul.bf16.gmra.mxu0 %v2314
    %v5212 = vpop.f32.mrf.mxu0
    %v5213 = vadd.f32 %v5199, %v5212
    %v5214 = vpop.f32.mrf.mxu0
    %v5215 = vadd.f32 %v5201, %v5214
    %5216 = vdwg.mxu0
    %5217 = vmatpush.bf16.msra.mxu0 %v4183
    %5218 = vmatpush.bf16.msra.mxu0 %v4175
    %5219 = vmatpush.bf16.msra.mxu0 %v4167
    %5220 = vmatpush.bf16.msra.mxu0 %v4159
    %5221 = vmatpush.bf16.msra.mxu0 %v4151
    %5222 = vmatpush.bf16.msra.mxu0 %v4143
    %5223 = vmatpush.bf16.msra.mxu0 %v4135
    %5224 = vmatpush.bf16.msra.mxu0 %v4127
    %5225 = vmatmul.bf16.gmra.mxu0 %v2308
    %v5226 = vpop.f32.mrf.mxu0
    %v5227 = vadd.f32 %v2767, %v5226
    %v5228 = vpop.f32.mrf.mxu0
    %v5229 = vadd.f32 %v2767, %v5228
    %5230 = vdwg.mxu0
    %5231 = vmatpush.bf16.msra.mxu0 %v4247
    %5232 = vmatpush.bf16.msra.mxu0 %v4239
    %5233 = vmatpush.bf16.msra.mxu0 %v4231
    %5234 = vmatpush.bf16.msra.mxu0 %v4223
    %5235 = vmatpush.bf16.msra.mxu0 %v4215
    %5236 = vmatpush.bf16.msra.mxu0 %v4207
    %5237 = vmatpush.bf16.msra.mxu0 %v4199
    %5238 = vmatpush.bf16.msra.mxu0 %v4191
    %5239 = vmatmul.bf16.gmra.mxu0 %v2309
    %v5240 = vpop.f32.mrf.mxu0
    %v5241 = vadd.f32 %v5227, %v5240
    %v5242 = vpop.f32.mrf.mxu0
    %v5243 = vadd.f32 %v5229, %v5242
    %5244 = vdwg.mxu0
    %5245 = vmatpush.bf16.msra.mxu0 %v4311
    %5246 = vmatpush.bf16.msra.mxu0 %v4303
    %5247 = vmatpush.bf16.msra.mxu0 %v4295
    %5248 = vmatpush.bf16.msra.mxu0 %v4287
    %5249 = vmatpush.bf16.msra.mxu0 %v4279
    %5250 = vmatpush.bf16.msra.mxu0 %v4271
    %5251 = vmatpush.bf16.msra.mxu0 %v4263
    %5252 = vmatpush.bf16.msra.mxu0 %v4255
    %5253 = vmatmul.bf16.gmra.mxu0 %v2310
    %v5254 = vpop.f32.mrf.mxu0
    %v5255 = vadd.f32 %v5241, %v5254
    %v5256 = vpop.f32.mrf.mxu0
    %v5257 = vadd.f32 %v5243, %v5256
    %5258 = vdwg.mxu0
    %5259 = vmatpush.bf16.msra.mxu0 %v4375
    %5260 = vmatpush.bf16.msra.mxu0 %v4367
    %5261 = vmatpush.bf16.msra.mxu0 %v4359
    %5262 = vmatpush.bf16.msra.mxu0 %v4351
    %5263 = vmatpush.bf16.msra.mxu0 %v4343
    %5264 = vmatpush.bf16.msra.mxu0 %v4335
    %5265 = vmatpush.bf16.msra.mxu0 %v4327
    %5266 = vmatpush.bf16.msra.mxu0 %v4319
    %5267 = vmatmul.bf16.gmra.mxu0 %v2311
    %v5268 = vpop.f32.mrf.mxu0
    %v5269 = vadd.f32 %v5255, %v5268
    %v5270 = vpop.f32.mrf.mxu0
    %v5271 = vadd.f32 %v5257, %v5270
    %5272 = vdwg.mxu0
    %5273 = vmatpush.bf16.msra.mxu0 %v4439
    %5274 = vmatpush.bf16.msra.mxu0 %v4431
    %5275 = vmatpush.bf16.msra.mxu0 %v4423
    %5276 = vmatpush.bf16.msra.mxu0 %v4415
    %5277 = vmatpush.bf16.msra.mxu0 %v4407
    %5278 = vmatpush.bf16.msra.mxu0 %v4399
    %5279 = vmatpush.bf16.msra.mxu0 %v4391
    %5280 = vmatpush.bf16.msra.mxu0 %v4383
    %5281 = vmatmul.bf16.gmra.mxu0 %v2312
    %v5282 = vpop.f32.mrf.mxu0
    %v5283 = vadd.f32 %v5269, %v5282
    %v5284 = vpop.f32.mrf.mxu0
    %v5285 = vadd.f32 %v5271, %v5284
    %5286 = vdwg.mxu0
    %5287 = vmatpush.bf16.msra.mxu0 %v4503
    %5288 = vmatpush.bf16.msra.mxu0 %v4495
    %5289 = vmatpush.bf16.msra.mxu0 %v4487
    %5290 = vmatpush.bf16.msra.mxu0 %v4479
    %5291 = vmatpush.bf16.msra.mxu0 %v4471
    %5292 = vmatpush.bf16.msra.mxu0 %v4463
    %5293 = vmatpush.bf16.msra.mxu0 %v4455
    %5294 = vmatpush.bf16.msra.mxu0 %v4447
    %5295 = vmatmul.bf16.gmra.mxu0 %v2313
    %v5296 = vpop.f32.mrf.mxu0
    %v5297 = vadd.f32 %v5283, %v5296
    %v5298 = vpop.f32.mrf.mxu0
    %v5299 = vadd.f32 %v5285, %v5298
    %5300 = vdwg.mxu0
    %5301 = vmatpush.bf16.msra.mxu0 %v4567
    %5302 = vmatpush.bf16.msra.mxu0 %v4559
    %5303 = vmatpush.bf16.msra.mxu0 %v4551
    %5304 = vmatpush.bf16.msra.mxu0 %v4543
    %5305 = vmatpush.bf16.msra.mxu0 %v4535
    %5306 = vmatpush.bf16.msra.mxu0 %v4527
    %5307 = vmatpush.bf16.msra.mxu0 %v4519
    %5308 = vmatpush.bf16.msra.mxu0 %v4511
    %5309 = vmatmul.bf16.gmra.mxu0 %v2314
    %v5310 = vpop.f32.mrf.mxu0
    %v5311 = vadd.f32 %v5297, %v5310
    %v5312 = vpop.f32.mrf.mxu0
    %v5313 = vadd.f32 %v5299, %v5312
    %5314 = vdwg.mxu0
    %5315 = vmatpush.bf16.msra.mxu0 %v4184
    %5316 = vmatpush.bf16.msra.mxu0 %v4176
    %5317 = vmatpush.bf16.msra.mxu0 %v4168
    %5318 = vmatpush.bf16.msra.mxu0 %v4160
    %5319 = vmatpush.bf16.msra.mxu0 %v4152
    %5320 = vmatpush.bf16.msra.mxu0 %v4144
    %5321 = vmatpush.bf16.msra.mxu0 %v4136
    %5322 = vmatpush.bf16.msra.mxu0 %v4128
    %5323 = vmatmul.bf16.gmra.mxu0 %v2308
    %v5324 = vpop.f32.mrf.mxu0
    %v5325 = vadd.f32 %v2768, %v5324
    %v5326 = vpop.f32.mrf.mxu0
    %v5327 = vadd.f32 %v2768, %v5326
    %5328 = vdwg.mxu0
    %5329 = vmatpush.bf16.msra.mxu0 %v4248
    %5330 = vmatpush.bf16.msra.mxu0 %v4240
    %5331 = vmatpush.bf16.msra.mxu0 %v4232
    %5332 = vmatpush.bf16.msra.mxu0 %v4224
    %5333 = vmatpush.bf16.msra.mxu0 %v4216
    %5334 = vmatpush.bf16.msra.mxu0 %v4208
    %5335 = vmatpush.bf16.msra.mxu0 %v4200
    %5336 = vmatpush.bf16.msra.mxu0 %v4192
    %5337 = vmatmul.bf16.gmra.mxu0 %v2309
    %v5338 = vpop.f32.mrf.mxu0
    %v5339 = vadd.f32 %v5325, %v5338
    %v5340 = vpop.f32.mrf.mxu0
    %v5341 = vadd.f32 %v5327, %v5340
    %5342 = vdwg.mxu0
    %5343 = vmatpush.bf16.msra.mxu0 %v4312
    %5344 = vmatpush.bf16.msra.mxu0 %v4304
    %5345 = vmatpush.bf16.msra.mxu0 %v4296
    %5346 = vmatpush.bf16.msra.mxu0 %v4288
    %5347 = vmatpush.bf16.msra.mxu0 %v4280
    %5348 = vmatpush.bf16.msra.mxu0 %v4272
    %5349 = vmatpush.bf16.msra.mxu0 %v4264
    %5350 = vmatpush.bf16.msra.mxu0 %v4256
    %5351 = vmatmul.bf16.gmra.mxu0 %v2310
    %v5352 = vpop.f32.mrf.mxu0
    %v5353 = vadd.f32 %v5339, %v5352
    %v5354 = vpop.f32.mrf.mxu0
    %v5355 = vadd.f32 %v5341, %v5354
    %5356 = vdwg.mxu0
    %5357 = vmatpush.bf16.msra.mxu0 %v4376
    %5358 = vmatpush.bf16.msra.mxu0 %v4368
    %5359 = vmatpush.bf16.msra.mxu0 %v4360
    %5360 = vmatpush.bf16.msra.mxu0 %v4352
    %5361 = vmatpush.bf16.msra.mxu0 %v4344
    %5362 = vmatpush.bf16.msra.mxu0 %v4336
    %5363 = vmatpush.bf16.msra.mxu0 %v4328
    %5364 = vmatpush.bf16.msra.mxu0 %v4320
    %5365 = vmatmul.bf16.gmra.mxu0 %v2311
    %v5366 = vpop.f32.mrf.mxu0
    %v5367 = vadd.f32 %v5353, %v5366
    %v5368 = vpop.f32.mrf.mxu0
    %v5369 = vadd.f32 %v5355, %v5368
    %5370 = vdwg.mxu0
    %5371 = vmatpush.bf16.msra.mxu0 %v4440
    %5372 = vmatpush.bf16.msra.mxu0 %v4432
    %5373 = vmatpush.bf16.msra.mxu0 %v4424
    %5374 = vmatpush.bf16.msra.mxu0 %v4416
    %5375 = vmatpush.bf16.msra.mxu0 %v4408
    %5376 = vmatpush.bf16.msra.mxu0 %v4400
    %5377 = vmatpush.bf16.msra.mxu0 %v4392
    %5378 = vmatpush.bf16.msra.mxu0 %v4384
    %5379 = vmatmul.bf16.gmra.mxu0 %v2312
    %v5380 = vpop.f32.mrf.mxu0
    %v5381 = vadd.f32 %v5367, %v5380
    %v5382 = vpop.f32.mrf.mxu0
    %v5383 = vadd.f32 %v5369, %v5382
    %5384 = vdwg.mxu0
    %5385 = vmatpush.bf16.msra.mxu0 %v4504
    %5386 = vmatpush.bf16.msra.mxu0 %v4496
    %5387 = vmatpush.bf16.msra.mxu0 %v4488
    %5388 = vmatpush.bf16.msra.mxu0 %v4480
    %5389 = vmatpush.bf16.msra.mxu0 %v4472
    %5390 = vmatpush.bf16.msra.mxu0 %v4464
    %5391 = vmatpush.bf16.msra.mxu0 %v4456
    %5392 = vmatpush.bf16.msra.mxu0 %v4448
    %5393 = vmatmul.bf16.gmra.mxu0 %v2313
    %v5394 = vpop.f32.mrf.mxu0
    %v5395 = vadd.f32 %v5381, %v5394
    %v5396 = vpop.f32.mrf.mxu0
    %v5397 = vadd.f32 %v5383, %v5396
    %5398 = vdwg.mxu0
    %5399 = vmatpush.bf16.msra.mxu0 %v4568
    %5400 = vmatpush.bf16.msra.mxu0 %v4560
    %5401 = vmatpush.bf16.msra.mxu0 %v4552
    %5402 = vmatpush.bf16.msra.mxu0 %v4544
    %5403 = vmatpush.bf16.msra.mxu0 %v4536
    %5404 = vmatpush.bf16.msra.mxu0 %v4528
    %5405 = vmatpush.bf16.msra.mxu0 %v4520
    %5406 = vmatpush.bf16.msra.mxu0 %v4512
    %5407 = vmatmul.bf16.gmra.mxu0 %v2314
    %v5408 = vpop.f32.mrf.mxu0
    %v5409 = vadd.f32 %v5395, %v5408
    %v5410 = vpop.f32.mrf.mxu0
    %v5411 = vadd.f32 %v5397, %v5410
    %5412 = vdwg.mxu0
    %5413 = vmatpush.bf16.msra.mxu0 %v4185
    %5414 = vmatpush.bf16.msra.mxu0 %v4177
    %5415 = vmatpush.bf16.msra.mxu0 %v4169
    %5416 = vmatpush.bf16.msra.mxu0 %v4161
    %5417 = vmatpush.bf16.msra.mxu0 %v4153
    %5418 = vmatpush.bf16.msra.mxu0 %v4145
    %5419 = vmatpush.bf16.msra.mxu0 %v4137
    %5420 = vmatpush.bf16.msra.mxu0 %v4129
    %5421 = vmatmul.bf16.gmra.mxu0 %v2308
    %v5422 = vpop.f32.mrf.mxu0
    %v5423 = vadd.f32 %v2769, %v5422
    %v5424 = vpop.f32.mrf.mxu0
    %v5425 = vadd.f32 %v2769, %v5424
    %5426 = vdwg.mxu0
    %5427 = vmatpush.bf16.msra.mxu0 %v4249
    %5428 = vmatpush.bf16.msra.mxu0 %v4241
    %5429 = vmatpush.bf16.msra.mxu0 %v4233
    %5430 = vmatpush.bf16.msra.mxu0 %v4225
    %5431 = vmatpush.bf16.msra.mxu0 %v4217
    %5432 = vmatpush.bf16.msra.mxu0 %v4209
    %5433 = vmatpush.bf16.msra.mxu0 %v4201
    %5434 = vmatpush.bf16.msra.mxu0 %v4193
    %5435 = vmatmul.bf16.gmra.mxu0 %v2309
    %v5436 = vpop.f32.mrf.mxu0
    %v5437 = vadd.f32 %v5423, %v5436
    %v5438 = vpop.f32.mrf.mxu0
    %v5439 = vadd.f32 %v5425, %v5438
    %5440 = vdwg.mxu0
    %5441 = vmatpush.bf16.msra.mxu0 %v4313
    %5442 = vmatpush.bf16.msra.mxu0 %v4305
    %5443 = vmatpush.bf16.msra.mxu0 %v4297
    %5444 = vmatpush.bf16.msra.mxu0 %v4289
    %5445 = vmatpush.bf16.msra.mxu0 %v4281
    %5446 = vmatpush.bf16.msra.mxu0 %v4273
    %5447 = vmatpush.bf16.msra.mxu0 %v4265
    %5448 = vmatpush.bf16.msra.mxu0 %v4257
    %5449 = vmatmul.bf16.gmra.mxu0 %v2310
    %v5450 = vpop.f32.mrf.mxu0
    %v5451 = vadd.f32 %v5437, %v5450
    %v5452 = vpop.f32.mrf.mxu0
    %v5453 = vadd.f32 %v5439, %v5452
    %5454 = vdwg.mxu0
    %5455 = vmatpush.bf16.msra.mxu0 %v4377
    %5456 = vmatpush.bf16.msra.mxu0 %v4369
    %5457 = vmatpush.bf16.msra.mxu0 %v4361
    %5458 = vmatpush.bf16.msra.mxu0 %v4353
    %5459 = vmatpush.bf16.msra.mxu0 %v4345
    %5460 = vmatpush.bf16.msra.mxu0 %v4337
    %5461 = vmatpush.bf16.msra.mxu0 %v4329
    %5462 = vmatpush.bf16.msra.mxu0 %v4321
    %5463 = vmatmul.bf16.gmra.mxu0 %v2311
    %v5464 = vpop.f32.mrf.mxu0
    %v5465 = vadd.f32 %v5451, %v5464
    %v5466 = vpop.f32.mrf.mxu0
    %v5467 = vadd.f32 %v5453, %v5466
    %5468 = vdwg.mxu0
    %5469 = vmatpush.bf16.msra.mxu0 %v4441
    %5470 = vmatpush.bf16.msra.mxu0 %v4433
    %5471 = vmatpush.bf16.msra.mxu0 %v4425
    %5472 = vmatpush.bf16.msra.mxu0 %v4417
    %5473 = vmatpush.bf16.msra.mxu0 %v4409
    %5474 = vmatpush.bf16.msra.mxu0 %v4401
    %5475 = vmatpush.bf16.msra.mxu0 %v4393
    %5476 = vmatpush.bf16.msra.mxu0 %v4385
    %5477 = vmatmul.bf16.gmra.mxu0 %v2312
    %v5478 = vpop.f32.mrf.mxu0
    %v5479 = vadd.f32 %v5465, %v5478
    %v5480 = vpop.f32.mrf.mxu0
    %v5481 = vadd.f32 %v5467, %v5480
    %5482 = vdwg.mxu0
    %5483 = vmatpush.bf16.msra.mxu0 %v4505
    %5484 = vmatpush.bf16.msra.mxu0 %v4497
    %5485 = vmatpush.bf16.msra.mxu0 %v4489
    %5486 = vmatpush.bf16.msra.mxu0 %v4481
    %5487 = vmatpush.bf16.msra.mxu0 %v4473
    %5488 = vmatpush.bf16.msra.mxu0 %v4465
    %5489 = vmatpush.bf16.msra.mxu0 %v4457
    %5490 = vmatpush.bf16.msra.mxu0 %v4449
    %5491 = vmatmul.bf16.gmra.mxu0 %v2313
    %v5492 = vpop.f32.mrf.mxu0
    %v5493 = vadd.f32 %v5479, %v5492
    %v5494 = vpop.f32.mrf.mxu0
    %v5495 = vadd.f32 %v5481, %v5494
    %5496 = vdwg.mxu0
    %5497 = vmatpush.bf16.msra.mxu0 %v4569
    %5498 = vmatpush.bf16.msra.mxu0 %v4561
    %5499 = vmatpush.bf16.msra.mxu0 %v4553
    %5500 = vmatpush.bf16.msra.mxu0 %v4545
    %5501 = vmatpush.bf16.msra.mxu0 %v4537
    %5502 = vmatpush.bf16.msra.mxu0 %v4529
    %5503 = vmatpush.bf16.msra.mxu0 %v4521
    %5504 = vmatpush.bf16.msra.mxu0 %v4513
    %5505 = vmatmul.bf16.gmra.mxu0 %v2314
    %v5506 = vpop.f32.mrf.mxu0
    %v5507 = vadd.f32 %v5493, %v5506
    %v5508 = vpop.f32.mrf.mxu0
    %v5509 = vadd.f32 %v5495, %v5508
    %5510 = vdwg.mxu0
    %5511 = vmatpush.bf16.msra.mxu0 %v4186
    %5512 = vmatpush.bf16.msra.mxu0 %v4178
    %5513 = vmatpush.bf16.msra.mxu0 %v4170
    %5514 = vmatpush.bf16.msra.mxu0 %v4162
    %5515 = vmatpush.bf16.msra.mxu0 %v4154
    %5516 = vmatpush.bf16.msra.mxu0 %v4146
    %5517 = vmatpush.bf16.msra.mxu0 %v4138
    %5518 = vmatpush.bf16.msra.mxu0 %v4130
    %5519 = vmatmul.bf16.gmra.mxu0 %v2308
    %v5520 = vpop.f32.mrf.mxu0
    %v5521 = vadd.f32 %v2770, %v5520
    %v5522 = vpop.f32.mrf.mxu0
    %v5523 = vadd.f32 %v2770, %v5522
    %5524 = vdwg.mxu0
    %5525 = vmatpush.bf16.msra.mxu0 %v4250
    %5526 = vmatpush.bf16.msra.mxu0 %v4242
    %5527 = vmatpush.bf16.msra.mxu0 %v4234
    %5528 = vmatpush.bf16.msra.mxu0 %v4226
    %5529 = vmatpush.bf16.msra.mxu0 %v4218
    %5530 = vmatpush.bf16.msra.mxu0 %v4210
    %5531 = vmatpush.bf16.msra.mxu0 %v4202
    %5532 = vmatpush.bf16.msra.mxu0 %v4194
    %5533 = vmatmul.bf16.gmra.mxu0 %v2309
    %v5534 = vpop.f32.mrf.mxu0
    %v5535 = vadd.f32 %v5521, %v5534
    %v5536 = vpop.f32.mrf.mxu0
    %v5537 = vadd.f32 %v5523, %v5536
    %5538 = vdwg.mxu0
    %5539 = vmatpush.bf16.msra.mxu0 %v4314
    %5540 = vmatpush.bf16.msra.mxu0 %v4306
    %5541 = vmatpush.bf16.msra.mxu0 %v4298
    %5542 = vmatpush.bf16.msra.mxu0 %v4290
    %5543 = vmatpush.bf16.msra.mxu0 %v4282
    %5544 = vmatpush.bf16.msra.mxu0 %v4274
    %5545 = vmatpush.bf16.msra.mxu0 %v4266
    %5546 = vmatpush.bf16.msra.mxu0 %v4258
    %5547 = vmatmul.bf16.gmra.mxu0 %v2310
    %v5548 = vpop.f32.mrf.mxu0
    %v5549 = vadd.f32 %v5535, %v5548
    %v5550 = vpop.f32.mrf.mxu0
    %v5551 = vadd.f32 %v5537, %v5550
    %5552 = vdwg.mxu0
    %5553 = vmatpush.bf16.msra.mxu0 %v4378
    %5554 = vmatpush.bf16.msra.mxu0 %v4370
    %5555 = vmatpush.bf16.msra.mxu0 %v4362
    %5556 = vmatpush.bf16.msra.mxu0 %v4354
    %5557 = vmatpush.bf16.msra.mxu0 %v4346
    %5558 = vmatpush.bf16.msra.mxu0 %v4338
    %5559 = vmatpush.bf16.msra.mxu0 %v4330
    %5560 = vmatpush.bf16.msra.mxu0 %v4322
    %5561 = vmatmul.bf16.gmra.mxu0 %v2311
    %v5562 = vpop.f32.mrf.mxu0
    %v5563 = vadd.f32 %v5549, %v5562
    %v5564 = vpop.f32.mrf.mxu0
    %v5565 = vadd.f32 %v5551, %v5564
    %5566 = vdwg.mxu0
    %5567 = vmatpush.bf16.msra.mxu0 %v4442
    %5568 = vmatpush.bf16.msra.mxu0 %v4434
    %5569 = vmatpush.bf16.msra.mxu0 %v4426
    %5570 = vmatpush.bf16.msra.mxu0 %v4418
    %5571 = vmatpush.bf16.msra.mxu0 %v4410
    %5572 = vmatpush.bf16.msra.mxu0 %v4402
    %5573 = vmatpush.bf16.msra.mxu0 %v4394
    %5574 = vmatpush.bf16.msra.mxu0 %v4386
    %5575 = vmatmul.bf16.gmra.mxu0 %v2312
    %v5576 = vpop.f32.mrf.mxu0
    %v5577 = vadd.f32 %v5563, %v5576
    %v5578 = vpop.f32.mrf.mxu0
    %v5579 = vadd.f32 %v5565, %v5578
    %5580 = vdwg.mxu0
    %5581 = vmatpush.bf16.msra.mxu0 %v4506
    %5582 = vmatpush.bf16.msra.mxu0 %v4498
    %5583 = vmatpush.bf16.msra.mxu0 %v4490
    %5584 = vmatpush.bf16.msra.mxu0 %v4482
    %5585 = vmatpush.bf16.msra.mxu0 %v4474
    %5586 = vmatpush.bf16.msra.mxu0 %v4466
    %5587 = vmatpush.bf16.msra.mxu0 %v4458
    %5588 = vmatpush.bf16.msra.mxu0 %v4450
    %5589 = vmatmul.bf16.gmra.mxu0 %v2313
    %v5590 = vpop.f32.mrf.mxu0
    %v5591 = vadd.f32 %v5577, %v5590
    %v5592 = vpop.f32.mrf.mxu0
    %v5593 = vadd.f32 %v5579, %v5592
    %5594 = vdwg.mxu0
    %5595 = vmatpush.bf16.msra.mxu0 %v4570
    %5596 = vmatpush.bf16.msra.mxu0 %v4562
    %5597 = vmatpush.bf16.msra.mxu0 %v4554
    %5598 = vmatpush.bf16.msra.mxu0 %v4546
    %5599 = vmatpush.bf16.msra.mxu0 %v4538
    %5600 = vmatpush.bf16.msra.mxu0 %v4530
    %5601 = vmatpush.bf16.msra.mxu0 %v4522
    %5602 = vmatpush.bf16.msra.mxu0 %v4514
    %5603 = vmatmul.bf16.gmra.mxu0 %v2314
    %v5604 = vpop.f32.mrf.mxu0
    %v5605 = vadd.f32 %v5591, %v5604
    %v5606 = vpop.f32.mrf.mxu0
    %v5607 = vadd.f32 %v5593, %v5606
    %5608 = vdwg.mxu0
    %5609 = vmatpush.bf16.msra.mxu0 %v4187
    %5610 = vmatpush.bf16.msra.mxu0 %v4179
    %5611 = vmatpush.bf16.msra.mxu0 %v4171
    %5612 = vmatpush.bf16.msra.mxu0 %v4163
    %5613 = vmatpush.bf16.msra.mxu0 %v4155
    %5614 = vmatpush.bf16.msra.mxu0 %v4147
    %5615 = vmatpush.bf16.msra.mxu0 %v4139
    %5616 = vmatpush.bf16.msra.mxu0 %v4131
    %5617 = vmatmul.bf16.gmra.mxu0 %v2308
    %v5618 = vpop.f32.mrf.mxu0
    %v5619 = vadd.f32 %v2771, %v5618
    %v5620 = vpop.f32.mrf.mxu0
    %v5621 = vadd.f32 %v2771, %v5620
    %5622 = vdwg.mxu0
    %5623 = vmatpush.bf16.msra.mxu0 %v4251
    %5624 = vmatpush.bf16.msra.mxu0 %v4243
    %5625 = vmatpush.bf16.msra.mxu0 %v4235
    %5626 = vmatpush.bf16.msra.mxu0 %v4227
    %5627 = vmatpush.bf16.msra.mxu0 %v4219
    %5628 = vmatpush.bf16.msra.mxu0 %v4211
    %5629 = vmatpush.bf16.msra.mxu0 %v4203
    %5630 = vmatpush.bf16.msra.mxu0 %v4195
    %5631 = vmatmul.bf16.gmra.mxu0 %v2309
    %v5632 = vpop.f32.mrf.mxu0
    %v5633 = vadd.f32 %v5619, %v5632
    %v5634 = vpop.f32.mrf.mxu0
    %v5635 = vadd.f32 %v5621, %v5634
    %5636 = vdwg.mxu0
    %5637 = vmatpush.bf16.msra.mxu0 %v4315
    %5638 = vmatpush.bf16.msra.mxu0 %v4307
    %5639 = vmatpush.bf16.msra.mxu0 %v4299
    %5640 = vmatpush.bf16.msra.mxu0 %v4291
    %5641 = vmatpush.bf16.msra.mxu0 %v4283
    %5642 = vmatpush.bf16.msra.mxu0 %v4275
    %5643 = vmatpush.bf16.msra.mxu0 %v4267
    %5644 = vmatpush.bf16.msra.mxu0 %v4259
    %5645 = vmatmul.bf16.gmra.mxu0 %v2310
    %v5646 = vpop.f32.mrf.mxu0
    %v5647 = vadd.f32 %v5633, %v5646
    %v5648 = vpop.f32.mrf.mxu0
    %v5649 = vadd.f32 %v5635, %v5648
    %5650 = vdwg.mxu0
    %5651 = vmatpush.bf16.msra.mxu0 %v4379
    %5652 = vmatpush.bf16.msra.mxu0 %v4371
    %5653 = vmatpush.bf16.msra.mxu0 %v4363
    %5654 = vmatpush.bf16.msra.mxu0 %v4355
    %5655 = vmatpush.bf16.msra.mxu0 %v4347
    %5656 = vmatpush.bf16.msra.mxu0 %v4339
    %5657 = vmatpush.bf16.msra.mxu0 %v4331
    %5658 = vmatpush.bf16.msra.mxu0 %v4323
    %5659 = vmatmul.bf16.gmra.mxu0 %v2311
    %v5660 = vpop.f32.mrf.mxu0
    %v5661 = vadd.f32 %v5647, %v5660
    %v5662 = vpop.f32.mrf.mxu0
    %v5663 = vadd.f32 %v5649, %v5662
    %5664 = vdwg.mxu0
    %5665 = vmatpush.bf16.msra.mxu0 %v4443
    %5666 = vmatpush.bf16.msra.mxu0 %v4435
    %5667 = vmatpush.bf16.msra.mxu0 %v4427
    %5668 = vmatpush.bf16.msra.mxu0 %v4419
    %5669 = vmatpush.bf16.msra.mxu0 %v4411
    %5670 = vmatpush.bf16.msra.mxu0 %v4403
    %5671 = vmatpush.bf16.msra.mxu0 %v4395
    %5672 = vmatpush.bf16.msra.mxu0 %v4387
    %5673 = vmatmul.bf16.gmra.mxu0 %v2312
    %v5674 = vpop.f32.mrf.mxu0
    %v5675 = vadd.f32 %v5661, %v5674
    %v5676 = vpop.f32.mrf.mxu0
    %v5677 = vadd.f32 %v5663, %v5676
    %5678 = vdwg.mxu0
    %5679 = vmatpush.bf16.msra.mxu0 %v4507
    %5680 = vmatpush.bf16.msra.mxu0 %v4499
    %5681 = vmatpush.bf16.msra.mxu0 %v4491
    %5682 = vmatpush.bf16.msra.mxu0 %v4483
    %5683 = vmatpush.bf16.msra.mxu0 %v4475
    %5684 = vmatpush.bf16.msra.mxu0 %v4467
    %5685 = vmatpush.bf16.msra.mxu0 %v4459
    %5686 = vmatpush.bf16.msra.mxu0 %v4451
    %5687 = vmatmul.bf16.gmra.mxu0 %v2313
    %v5688 = vpop.f32.mrf.mxu0
    %v5689 = vadd.f32 %v5675, %v5688
    %v5690 = vpop.f32.mrf.mxu0
    %v5691 = vadd.f32 %v5677, %v5690
    %5692 = vdwg.mxu0
    %5693 = vmatpush.bf16.msra.mxu0 %v4571
    %5694 = vmatpush.bf16.msra.mxu0 %v4563
    %5695 = vmatpush.bf16.msra.mxu0 %v4555
    %5696 = vmatpush.bf16.msra.mxu0 %v4547
    %5697 = vmatpush.bf16.msra.mxu0 %v4539
    %5698 = vmatpush.bf16.msra.mxu0 %v4531
    %5699 = vmatpush.bf16.msra.mxu0 %v4523
    %5700 = vmatpush.bf16.msra.mxu0 %v4515
    %5701 = vmatmul.bf16.gmra.mxu0 %v2314
    %v5702 = vpop.f32.mrf.mxu0
    %v5703 = vadd.f32 %v5689, %v5702
    %v5704 = vpop.f32.mrf.mxu0
    %v5705 = vadd.f32 %v5691, %v5704
    %5706 = vdwg.mxu0
    %5707 = vmatpush.bf16.msra.mxu0 %v4188
    %5708 = vmatpush.bf16.msra.mxu0 %v4180
    %5709 = vmatpush.bf16.msra.mxu0 %v4172
    %5710 = vmatpush.bf16.msra.mxu0 %v4164
    %5711 = vmatpush.bf16.msra.mxu0 %v4156
    %5712 = vmatpush.bf16.msra.mxu0 %v4148
    %5713 = vmatpush.bf16.msra.mxu0 %v4140
    %5714 = vmatpush.bf16.msra.mxu0 %v4132
    %5715 = vmatmul.bf16.gmra.mxu0 %v2308
    %v5716 = vpop.f32.mrf.mxu0
    %v5717 = vadd.f32 %v2772, %v5716
    %v5718 = vpop.f32.mrf.mxu0
    %v5719 = vadd.f32 %v2772, %v5718
    %5720 = vdwg.mxu0
    %5721 = vmatpush.bf16.msra.mxu0 %v4252
    %5722 = vmatpush.bf16.msra.mxu0 %v4244
    %5723 = vmatpush.bf16.msra.mxu0 %v4236
    %5724 = vmatpush.bf16.msra.mxu0 %v4228
    %5725 = vmatpush.bf16.msra.mxu0 %v4220
    %5726 = vmatpush.bf16.msra.mxu0 %v4212
    %5727 = vmatpush.bf16.msra.mxu0 %v4204
    %5728 = vmatpush.bf16.msra.mxu0 %v4196
    %5729 = vmatmul.bf16.gmra.mxu0 %v2309
    %v5730 = vpop.f32.mrf.mxu0
    %v5731 = vadd.f32 %v5717, %v5730
    %v5732 = vpop.f32.mrf.mxu0
    %v5733 = vadd.f32 %v5719, %v5732
    %5734 = vdwg.mxu0
    %5735 = vmatpush.bf16.msra.mxu0 %v4316
    %5736 = vmatpush.bf16.msra.mxu0 %v4308
    %5737 = vmatpush.bf16.msra.mxu0 %v4300
    %5738 = vmatpush.bf16.msra.mxu0 %v4292
    %5739 = vmatpush.bf16.msra.mxu0 %v4284
    %5740 = vmatpush.bf16.msra.mxu0 %v4276
    %5741 = vmatpush.bf16.msra.mxu0 %v4268
    %5742 = vmatpush.bf16.msra.mxu0 %v4260
    %5743 = vmatmul.bf16.gmra.mxu0 %v2310
    %v5744 = vpop.f32.mrf.mxu0
    %v5745 = vadd.f32 %v5731, %v5744
    %v5746 = vpop.f32.mrf.mxu0
    %v5747 = vadd.f32 %v5733, %v5746
    %5748 = vdwg.mxu0
    %5749 = vmatpush.bf16.msra.mxu0 %v4380
    %5750 = vmatpush.bf16.msra.mxu0 %v4372
    %5751 = vmatpush.bf16.msra.mxu0 %v4364
    %5752 = vmatpush.bf16.msra.mxu0 %v4356
    %5753 = vmatpush.bf16.msra.mxu0 %v4348
    %5754 = vmatpush.bf16.msra.mxu0 %v4340
    %5755 = vmatpush.bf16.msra.mxu0 %v4332
    %5756 = vmatpush.bf16.msra.mxu0 %v4324
    %5757 = vmatmul.bf16.gmra.mxu0 %v2311
    %v5758 = vpop.f32.mrf.mxu0
    %v5759 = vadd.f32 %v5745, %v5758
    %v5760 = vpop.f32.mrf.mxu0
    %v5761 = vadd.f32 %v5747, %v5760
    %5762 = vdwg.mxu0
    %5763 = vmatpush.bf16.msra.mxu0 %v4444
    %5764 = vmatpush.bf16.msra.mxu0 %v4436
    %5765 = vmatpush.bf16.msra.mxu0 %v4428
    %5766 = vmatpush.bf16.msra.mxu0 %v4420
    %5767 = vmatpush.bf16.msra.mxu0 %v4412
    %5768 = vmatpush.bf16.msra.mxu0 %v4404
    %5769 = vmatpush.bf16.msra.mxu0 %v4396
    %5770 = vmatpush.bf16.msra.mxu0 %v4388
    %5771 = vmatmul.bf16.gmra.mxu0 %v2312
    %v5772 = vpop.f32.mrf.mxu0
    %v5773 = vadd.f32 %v5759, %v5772
    %v5774 = vpop.f32.mrf.mxu0
    %v5775 = vadd.f32 %v5761, %v5774
    %5776 = vdwg.mxu0
    %5777 = vmatpush.bf16.msra.mxu0 %v4508
    %5778 = vmatpush.bf16.msra.mxu0 %v4500
    %5779 = vmatpush.bf16.msra.mxu0 %v4492
    %5780 = vmatpush.bf16.msra.mxu0 %v4484
    %5781 = vmatpush.bf16.msra.mxu0 %v4476
    %5782 = vmatpush.bf16.msra.mxu0 %v4468
    %5783 = vmatpush.bf16.msra.mxu0 %v4460
    %5784 = vmatpush.bf16.msra.mxu0 %v4452
    %5785 = vmatmul.bf16.gmra.mxu0 %v2313
    %v5786 = vpop.f32.mrf.mxu0
    %v5787 = vadd.f32 %v5773, %v5786
    %v5788 = vpop.f32.mrf.mxu0
    %v5789 = vadd.f32 %v5775, %v5788
    %5790 = vdwg.mxu0
    %5791 = vmatpush.bf16.msra.mxu0 %v4572
    %5792 = vmatpush.bf16.msra.mxu0 %v4564
    %5793 = vmatpush.bf16.msra.mxu0 %v4556
    %5794 = vmatpush.bf16.msra.mxu0 %v4548
    %5795 = vmatpush.bf16.msra.mxu0 %v4540
    %5796 = vmatpush.bf16.msra.mxu0 %v4532
    %5797 = vmatpush.bf16.msra.mxu0 %v4524
    %5798 = vmatpush.bf16.msra.mxu0 %v4516
    %5799 = vmatmul.bf16.gmra.mxu0 %v2314
    %v5800 = vpop.f32.mrf.mxu0
    %v5801 = vadd.f32 %v5787, %v5800
    %v5802 = vpop.f32.mrf.mxu0
    %v5803 = vadd.f32 %v5789, %v5802
    %5804 = vdwg.mxu0
    %v5805 = vmax.f32 %v5115, 0.0
    %v5806 = vmax.f32 %v5213, 0.0
    %v5807 = vmax.f32 %v5311, 0.0
    %v5808 = vmax.f32 %v5409, 0.0
    %v5809 = vmax.f32 %v5507, 0.0
    %v5810 = vmax.f32 %v5605, 0.0
    %v5811 = vmax.f32 %v5703, 0.0
    %v5812 = vmax.f32 %v5801, 0.0
    %v5813 = vmax.f32 %v5117, 0.0
    %v5814 = vmax.f32 %v5215, 0.0
    %v5815 = vmax.f32 %v5313, 0.0
    %v5816 = vmax.f32 %v5411, 0.0
    %v5817 = vmax.f32 %v5509, 0.0
    %v5818 = vmax.f32 %v5607, 0.0
    %v5819 = vmax.f32 %v5705, 0.0
    %v5820 = vmax.f32 %v5803, 0.0
    %v5821 = vpack.c.bf16 %v5813, %v5805
    %v5822 = vpack.c.bf16 %v5814, %v5806
    %v5823 = vpack.c.bf16 %v5815, %v5807
    %v5824 = vpack.c.bf16 %v5816, %v5808
    %v5825 = vpack.c.bf16 %v5817, %v5809
    %v5826 = vpack.c.bf16 %v5818, %v5810
    %v5827 = vpack.c.bf16 %v5819, %v5811
    %v5828 = vpack.c.bf16 %v5820, %v5812
    %v5829 = vld [vmem:[#allocation12] sm:$0xff]
    %v5830 = vld [vmem:[#allocation12 + $0x8] sm:$0xff]
    %v5831 = vld [vmem:[#allocation12 + $0x10] sm:$0xff]
    %v5832 = vld [vmem:[#allocation12 + $0x18] sm:$0xf]
    %v5833 = vld [vmem:[#allocation12 + $0x1c] sm:$0xff]
    %v5834 = vld [vmem:[#allocation12 + $0x24] sm:$0xff]
    %v5835 = vld [vmem:[#allocation12 + $0x2c] sm:$0xff]
    %v5836 = vld [vmem:[#allocation12 + $0x34] sm:$0xf]
    %v5837 = vld [vmem:[#allocation12 + $0x38] sm:$0xff]
    %v5838 = vld [vmem:[#allocation12 + $0x40] sm:$0xff]
    %v5839 = vld [vmem:[#allocation12 + $0x48] sm:$0xff]
    %v5840 = vld [vmem:[#allocation12 + $0x50] sm:$0xf]
    %v5841 = vld [vmem:[#allocation12 + $0x54] sm:$0xff]
    %v5842 = vld [vmem:[#allocation12 + $0x5c] sm:$0xff]
    %v5843 = vld [vmem:[#allocation12 + $0x64] sm:$0xff]
    %v5844 = vld [vmem:[#allocation12 + $0x6c] sm:$0xf]
    %v5845 = vld [vmem:[#allocation12 + $0x70] sm:$0xff]
    %v5846 = vld [vmem:[#allocation12 + $0x78] sm:$0xff]
    %v5847 = vld [vmem:[#allocation12 + $0x80] sm:$0xff]
    %v5848 = vld [vmem:[#allocation12 + $0x88] sm:$0xf]
    %v5849 = vld [vmem:[#allocation12 + $0x8c] sm:$0xff]
    %v5850 = vld [vmem:[#allocation12 + $0x94] sm:$0xff]
    %v5851 = vld [vmem:[#allocation12 + $0x9c] sm:$0xff]
    %v5852 = vld [vmem:[#allocation12 + $0xa4] sm:$0xf]
    %v5853 = vld [vmem:[#allocation12 + $0xa8] sm:$0xff]
    %v5854 = vld [vmem:[#allocation12 + $0xb0] sm:$0xff]
    %v5855 = vld [vmem:[#allocation12 + $0xb8] sm:$0xff]
    %v5856 = vld [vmem:[#allocation12 + $0xc0] sm:$0xf]
    %v5857 = vld [vmem:[#allocation12 + $0xc4] sm:$0xff]
    %v5858 = vld [vmem:[#allocation12 + $0xcc] sm:$0xff]
    %v5859 = vld [vmem:[#allocation12 + $0xd4] sm:$0xff]
    %v5860 = vld [vmem:[#allocation12 + $0xdc] sm:$0xf]
    %v5861 = vld [vmem:[#allocation12 + $0xe0] sm:$0xff]
    %v5862 = vld [vmem:[#allocation12 + $0xe8] sm:$0xff]
    %v5863 = vld [vmem:[#allocation12 + $0xf0] sm:$0xff]
    %v5864 = vld [vmem:[#allocation12 + $0xf8] sm:$0xf]
    %v5865 = vld [vmem:[#allocation12 + $0xfc] sm:$0xff]
    %v5866 = vld [vmem:[#allocation12 + $0x104] sm:$0xff]
    %v5867 = vld [vmem:[#allocation12 + $0x10c] sm:$0xff]
    %v5868 = vld [vmem:[#allocation12 + $0x114] sm:$0xf]
    %v5869 = vld [vmem:[#allocation12 + $0x118] sm:$0xff]
    %v5870 = vld [vmem:[#allocation12 + $0x120] sm:$0xff]
    %v5871 = vld [vmem:[#allocation12 + $0x128] sm:$0xff]
    %v5872 = vld [vmem:[#allocation12 + $0x130] sm:$0xf]
    %v5873 = vld [vmem:[#allocation12 + $0x134] sm:$0xff]
    %v5874 = vld [vmem:[#allocation12 + $0x13c] sm:$0xff]
    %v5875 = vld [vmem:[#allocation12 + $0x144] sm:$0xff]
    %v5876 = vld [vmem:[#allocation12 + $0x14c] sm:$0xf]
    %v5877 = vld [vmem:[#allocation12 + $0x150] sm:$0xff]
    %v5878 = vld [vmem:[#allocation12 + $0x158] sm:$0xff]
    %v5879 = vld [vmem:[#allocation12 + $0x160] sm:$0xff]
    %v5880 = vld [vmem:[#allocation12 + $0x168] sm:$0xf]
    %v5881 = vld [vmem:[#allocation12 + $0x16c] sm:$0xff]
    %v5882 = vld [vmem:[#allocation12 + $0x174] sm:$0xff]
    %v5883 = vld [vmem:[#allocation12 + $0x17c] sm:$0xff]
    %v5884 = vld [vmem:[#allocation12 + $0x184] sm:$0xf]
    %v5885 = vld [vmem:[#allocation12 + $0x188] sm:$0xff]
    %v5886 = vld [vmem:[#allocation12 + $0x190] sm:$0xff]
    %v5887 = vld [vmem:[#allocation12 + $0x198] sm:$0xff]
    %v5888 = vld [vmem:[#allocation12 + $0x1a0] sm:$0xf]
    %v5889 = vld [vmem:[#allocation12 + $0x1a4] sm:$0xff]
    %v5890 = vld [vmem:[#allocation12 + $0x1ac] sm:$0xff]
    %v5891 = vld [vmem:[#allocation12 + $0x1b4] sm:$0xff]
    %v5892 = vld [vmem:[#allocation12 + $0x1bc] sm:$0xf]
    %v5893 = vld [vmem:[#allocation12 + $0x1c0] sm:$0xff]
    %v5894 = vld [vmem:[#allocation12 + $0x1c8] sm:$0xff]
    %v5895 = vld [vmem:[#allocation12 + $0x1d0] sm:$0xff]
    %v5896 = vld [vmem:[#allocation12 + $0x1d8] sm:$0xf]
    %v5897 = vld [vmem:[#allocation12 + $0x1dc] sm:$0xff]
    %v5898 = vld [vmem:[#allocation12 + $0x1e4] sm:$0xff]
    %v5899 = vld [vmem:[#allocation12 + $0x1ec] sm:$0xff]
    %v5900 = vld [vmem:[#allocation12 + $0x1f4] sm:$0xf]
    %v5901 = vld [vmem:[#allocation12 + $0x1f8] sm:$0xff]
    %v5902 = vld [vmem:[#allocation12 + $0x200] sm:$0xff]
    %v5903 = vld [vmem:[#allocation12 + $0x208] sm:$0xff]
    %v5904 = vld [vmem:[#allocation12 + $0x210] sm:$0xf]
    %v5905 = vld [vmem:[#allocation12 + $0x214] sm:$0xff]
    %v5906 = vld [vmem:[#allocation12 + $0x21c] sm:$0xff]
    %v5907 = vld [vmem:[#allocation12 + $0x224] sm:$0xff]
    %v5908 = vld [vmem:[#allocation12 + $0x22c] sm:$0xf]
    %v5909 = vld [vmem:[#allocation12 + $0x230] sm:$0xff]
    %v5910 = vld [vmem:[#allocation12 + $0x238] sm:$0xff]
    %v5911 = vld [vmem:[#allocation12 + $0x240] sm:$0xff]
    %v5912 = vld [vmem:[#allocation12 + $0x248] sm:$0xf]
    %v5913 = vld [vmem:[#allocation12 + $0x24c] sm:$0xff]
    %v5914 = vld [vmem:[#allocation12 + $0x254] sm:$0xff]
    %v5915 = vld [vmem:[#allocation12 + $0x25c] sm:$0xff]
    %v5916 = vld [vmem:[#allocation12 + $0x264] sm:$0xf]
    %v5917 = vld [vmem:[#allocation12 + $0x268] sm:$0xff]
    %v5918 = vld [vmem:[#allocation12 + $0x270] sm:$0xff]
    %v5919 = vld [vmem:[#allocation12 + $0x278] sm:$0xff]
    %v5920 = vld [vmem:[#allocation12 + $0x280] sm:$0xf]
    %v5921 = vld [vmem:[#allocation12 + $0x284] sm:$0xff]
    %v5922 = vld [vmem:[#allocation12 + $0x28c] sm:$0xff]
    %v5923 = vld [vmem:[#allocation12 + $0x294] sm:$0xff]
    %v5924 = vld [vmem:[#allocation12 + $0x29c] sm:$0xf]
    %v5925 = vld [vmem:[#allocation12 + $0x2a0] sm:$0xff]
    %v5926 = vld [vmem:[#allocation12 + $0x2a8] sm:$0xff]
    %v5927 = vld [vmem:[#allocation12 + $0x2b0] sm:$0xff]
    %v5928 = vld [vmem:[#allocation12 + $0x2b8] sm:$0xf]
    %v5929 = vld [vmem:[#allocation12 + $0x2bc] sm:$0xff]
    %v5930 = vld [vmem:[#allocation12 + $0x2c4] sm:$0xff]
    %v5931 = vld [vmem:[#allocation12 + $0x2cc] sm:$0xff]
    %v5932 = vld [vmem:[#allocation12 + $0x2d4] sm:$0xf]
    %v5933 = vld [vmem:[#allocation12 + $0x2d8] sm:$0xff]
    %v5934 = vld [vmem:[#allocation12 + $0x2e0] sm:$0xff]
    %v5935 = vld [vmem:[#allocation12 + $0x2e8] sm:$0xff]
    %v5936 = vld [vmem:[#allocation12 + $0x2f0] sm:$0xf]
    %v5937 = vld [vmem:[#allocation12 + $0x2f4] sm:$0xff]
    %v5938 = vld [vmem:[#allocation12 + $0x2fc] sm:$0xff]
    %v5939 = vld [vmem:[#allocation12 + $0x304] sm:$0xff]
    %v5940 = vld [vmem:[#allocation12 + $0x30c] sm:$0xf]
    %v5941 = vld [vmem:[#allocation12 + $0x310] sm:$0xff]
    %v5942 = vld [vmem:[#allocation12 + $0x318] sm:$0xff]
    %v5943 = vld [vmem:[#allocation12 + $0x320] sm:$0xff]
    %v5944 = vld [vmem:[#allocation12 + $0x328] sm:$0xf]
    %v5945 = vld [vmem:[#allocation12 + $0x32c] sm:$0xff]
    %v5946 = vld [vmem:[#allocation12 + $0x334] sm:$0xff]
    %v5947 = vld [vmem:[#allocation12 + $0x33c] sm:$0xff]
    %v5948 = vld [vmem:[#allocation12 + $0x344] sm:$0xf]
    %v5949 = vld [vmem:[#allocation12 + $0x348] sm:$0xff]
    %v5950 = vld [vmem:[#allocation12 + $0x350] sm:$0xff]
    %v5951 = vld [vmem:[#allocation12 + $0x358] sm:$0xff]
    %v5952 = vld [vmem:[#allocation12 + $0x360] sm:$0xf]
    %v5953 = vld [vmem:[#allocation12 + $0x364] sm:$0xff]
    %v5954 = vld [vmem:[#allocation12 + $0x36c] sm:$0xff]
    %v5955 = vld [vmem:[#allocation12 + $0x374] sm:$0xff]
    %v5956 = vld [vmem:[#allocation12 + $0x37c] sm:$0xf]
    %v5957 = vld [vmem:[#allocation12 + $0x380] sm:$0xff]
    %v5958 = vld [vmem:[#allocation12 + $0x388] sm:$0xff]
    %v5959 = vld [vmem:[#allocation12 + $0x390] sm:$0xff]
    %v5960 = vld [vmem:[#allocation12 + $0x398] sm:$0xf]
    %v5961 = vld [vmem:[#allocation12 + $0x39c] sm:$0xff]
    %v5962 = vld [vmem:[#allocation12 + $0x3a4] sm:$0xff]
    %v5963 = vld [vmem:[#allocation12 + $0x3ac] sm:$0xff]
    %v5964 = vld [vmem:[#allocation12 + $0x3b4] sm:$0xf]
    %v5965 = vld [vmem:[#allocation12 + $0x3b8] sm:$0xff]
    %v5966 = vld [vmem:[#allocation12 + $0x3c0] sm:$0xff]
    %v5967 = vld [vmem:[#allocation12 + $0x3c8] sm:$0xff]
    %v5968 = vld [vmem:[#allocation12 + $0x3d0] sm:$0xf]
    %v5969 = vld [vmem:[#allocation12 + $0x3d4] sm:$0xff]
    %v5970 = vld [vmem:[#allocation12 + $0x3dc] sm:$0xff]
    %v5971 = vld [vmem:[#allocation12 + $0x3e4] sm:$0xff]
    %v5972 = vld [vmem:[#allocation12 + $0x3ec] sm:$0xf]
    %v5973 = vld [vmem:[#allocation12 + $0x3f0] sm:$0xff]
    %v5974 = vld [vmem:[#allocation12 + $0x3f8] sm:$0xff]
    %v5975 = vld [vmem:[#allocation12 + $0x400] sm:$0xff]
    %v5976 = vld [vmem:[#allocation12 + $0x408] sm:$0xf]
    %v5977 = vld [vmem:[#allocation12 + $0x40c] sm:$0xff]
    %v5978 = vld [vmem:[#allocation12 + $0x414] sm:$0xff]
    %v5979 = vld [vmem:[#allocation12 + $0x41c] sm:$0xff]
    %v5980 = vld [vmem:[#allocation12 + $0x424] sm:$0xf]
    %v5981 = vld [vmem:[#allocation12 + $0x428] sm:$0xff]
    %v5982 = vld [vmem:[#allocation12 + $0x430] sm:$0xff]
    %v5983 = vld [vmem:[#allocation12 + $0x438] sm:$0xff]
    %v5984 = vld [vmem:[#allocation12 + $0x440] sm:$0xf]
    %v5985 = vld [vmem:[#allocation12 + $0x444] sm:$0xff]
    %v5986 = vld [vmem:[#allocation12 + $0x44c] sm:$0xff]
    %v5987 = vld [vmem:[#allocation12 + $0x454] sm:$0xff]
    %v5988 = vld [vmem:[#allocation12 + $0x45c] sm:$0xf]
    %v5989 = vld [vmem:[#allocation12 + $0x460] sm:$0xff]
    %v5990 = vld [vmem:[#allocation12 + $0x468] sm:$0xff]
    %v5991 = vld [vmem:[#allocation12 + $0x470] sm:$0xff]
    %v5992 = vld [vmem:[#allocation12 + $0x478] sm:$0xf]
    %v5993 = vld [vmem:[#allocation12 + $0x47c] sm:$0xff]
    %v5994 = vld [vmem:[#allocation12 + $0x484] sm:$0xff]
    %v5995 = vld [vmem:[#allocation12 + $0x48c] sm:$0xff]
    %v5996 = vld [vmem:[#allocation12 + $0x494] sm:$0xf]
    %v5997 = vld [vmem:[#allocation12 + $0x498] sm:$0xff]
    %v5998 = vld [vmem:[#allocation12 + $0x4a0] sm:$0xff]
    %v5999 = vld [vmem:[#allocation12 + $0x4a8] sm:$0xff]
    %v6000 = vld [vmem:[#allocation12 + $0x4b0] sm:$0xf]
    %v6001 = vld [vmem:[#allocation12 + $0x4b4] sm:$0xff]
    %v6002 = vld [vmem:[#allocation12 + $0x4bc] sm:$0xff]
    %v6003 = vld [vmem:[#allocation12 + $0x4c4] sm:$0xff]
    %v6004 = vld [vmem:[#allocation12 + $0x4cc] sm:$0xf]
    %v6005 = vld [vmem:[#allocation12 + $0x4d0] sm:$0xff]
    %v6006 = vld [vmem:[#allocation12 + $0x4d8] sm:$0xff]
    %v6007 = vld [vmem:[#allocation12 + $0x4e0] sm:$0xff]
    %v6008 = vld [vmem:[#allocation12 + $0x4e8] sm:$0xf]
    %v6009 = vld [vmem:[#allocation12 + $0x4ec] sm:$0xff]
    %v6010 = vld [vmem:[#allocation12 + $0x4f4] sm:$0xff]
    %v6011 = vld [vmem:[#allocation12 + $0x4fc] sm:$0xff]
    %v6012 = vld [vmem:[#allocation12 + $0x504] sm:$0xf]
    %v6013 = vld [vmem:[#allocation12 + $0x508] sm:$0xff]
    %v6014 = vld [vmem:[#allocation12 + $0x510] sm:$0xff]
    %v6015 = vld [vmem:[#allocation12 + $0x518] sm:$0xff]
    %v6016 = vld [vmem:[#allocation12 + $0x520] sm:$0xf]
    %v6017 = vld [vmem:[#allocation12 + $0x524] sm:$0xff]
    %v6018 = vld [vmem:[#allocation12 + $0x52c] sm:$0xff]
    %v6019 = vld [vmem:[#allocation12 + $0x534] sm:$0xff]
    %v6020 = vld [vmem:[#allocation12 + $0x53c] sm:$0xf]
    %v6021 = vld [vmem:[#allocation12 + $0x540] sm:$0xff]
    %v6022 = vld [vmem:[#allocation12 + $0x548] sm:$0xff]
    %v6023 = vld [vmem:[#allocation12 + $0x550] sm:$0xff]
    %v6024 = vld [vmem:[#allocation12 + $0x558] sm:$0xf]
    %v6025 = vld [vmem:[#allocation12 + $0x55c] sm:$0xff]
    %v6026 = vld [vmem:[#allocation12 + $0x564] sm:$0xff]
    %v6027 = vld [vmem:[#allocation12 + $0x56c] sm:$0xff]
    %v6028 = vld [vmem:[#allocation12 + $0x574] sm:$0xf]
    %v6029 = vld [vmem:[#allocation12 + $0x578] sm:$0xff]
    %v6030 = vld [vmem:[#allocation12 + $0x580] sm:$0xff]
    %v6031 = vld [vmem:[#allocation12 + $0x588] sm:$0xff]
    %v6032 = vld [vmem:[#allocation12 + $0x590] sm:$0xf]
    %v6033 = vld [vmem:[#allocation12 + $0x594] sm:$0xff]
    %v6034 = vld [vmem:[#allocation12 + $0x59c] sm:$0xff]
    %v6035 = vld [vmem:[#allocation12 + $0x5a4] sm:$0xff]
    %v6036 = vld [vmem:[#allocation12 + $0x5ac] sm:$0xf]
    %v6037 = vld [vmem:[#allocation12 + $0x5b0] sm:$0xff]
    %v6038 = vld [vmem:[#allocation12 + $0x5b8] sm:$0xff]
    %v6039 = vld [vmem:[#allocation12 + $0x5c0] sm:$0xff]
    %v6040 = vld [vmem:[#allocation12 + $0x5c8] sm:$0xf]
    %v6041 = vld [vmem:[#allocation12 + $0x5cc] sm:$0xff]
    %v6042 = vld [vmem:[#allocation12 + $0x5d4] sm:$0xff]
    %v6043 = vld [vmem:[#allocation12 + $0x5dc] sm:$0xff]
    %v6044 = vld [vmem:[#allocation12 + $0x5e4] sm:$0xf]
    %v6045 = vld [vmem:[#allocation12 + $0x5e8] sm:$0xff]
    %v6046 = vld [vmem:[#allocation12 + $0x5f0] sm:$0xff]
    %v6047 = vld [vmem:[#allocation12 + $0x5f8] sm:$0xff]
    %v6048 = vld [vmem:[#allocation12 + $0x600] sm:$0xf]
    %v6049 = vld [vmem:[#allocation12 + $0x604] sm:$0xff]
    %v6050 = vld [vmem:[#allocation12 + $0x60c] sm:$0xff]
    %v6051 = vld [vmem:[#allocation12 + $0x614] sm:$0xff]
    %v6052 = vld [vmem:[#allocation12 + $0x61c] sm:$0xf]
    %v6053 = vld [vmem:[#allocation12 + $0x620] sm:$0xff]
    %v6054 = vld [vmem:[#allocation12 + $0x628] sm:$0xff]
    %v6055 = vld [vmem:[#allocation12 + $0x630] sm:$0xff]
    %v6056 = vld [vmem:[#allocation12 + $0x638] sm:$0xf]
    %v6057 = vld [vmem:[#allocation12 + $0x63c] sm:$0xff]
    %v6058 = vld [vmem:[#allocation12 + $0x644] sm:$0xff]
    %v6059 = vld [vmem:[#allocation12 + $0x64c] sm:$0xff]
    %v6060 = vld [vmem:[#allocation12 + $0x654] sm:$0xf]
    %v6061 = vld [vmem:[#allocation12 + $0x658] sm:$0xff]
    %v6062 = vld [vmem:[#allocation12 + $0x660] sm:$0xff]
    %v6063 = vld [vmem:[#allocation12 + $0x668] sm:$0xff]
    %v6064 = vld [vmem:[#allocation12 + $0x670] sm:$0xf]
    %v6065 = vld [vmem:[#allocation12 + $0x674] sm:$0xff]
    %v6066 = vld [vmem:[#allocation12 + $0x67c] sm:$0xff]
    %v6067 = vld [vmem:[#allocation12 + $0x684] sm:$0xff]
    %v6068 = vld [vmem:[#allocation12 + $0x68c] sm:$0xf]
    %v6069 = vld [vmem:[#allocation12 + $0x690] sm:$0xff]
    %v6070 = vld [vmem:[#allocation12 + $0x698] sm:$0xff]
    %v6071 = vld [vmem:[#allocation12 + $0x6a0] sm:$0xff]
    %v6072 = vld [vmem:[#allocation12 + $0x6a8] sm:$0xf]
    %v6073 = vld [vmem:[#allocation12 + $0x6ac] sm:$0xff]
    %v6074 = vld [vmem:[#allocation12 + $0x6b4] sm:$0xff]
    %v6075 = vld [vmem:[#allocation12 + $0x6bc] sm:$0xff]
    %v6076 = vld [vmem:[#allocation12 + $0x6c4] sm:$0xf]
    %v6077 = vld [vmem:[#allocation12 + $0x6c8] sm:$0xff]
    %v6078 = vld [vmem:[#allocation12 + $0x6d0] sm:$0xff]
    %v6079 = vld [vmem:[#allocation12 + $0x6d8] sm:$0xff]
    %v6080 = vld [vmem:[#allocation12 + $0x6e0] sm:$0xf]
    %v6081 = vld [vmem:[#allocation12 + $0x6e4] sm:$0xff]
    %v6082 = vld [vmem:[#allocation12 + $0x6ec] sm:$0xff]
    %v6083 = vld [vmem:[#allocation12 + $0x6f4] sm:$0xff]
    %v6084 = vld [vmem:[#allocation12 + $0x6fc] sm:$0xf]
    %v6085 = vld [vmem:[#allocation12 + $0x700] sm:$0xff]
    %v6086 = vld [vmem:[#allocation12 + $0x708] sm:$0xff]
    %v6087 = vld [vmem:[#allocation12 + $0x710] sm:$0xff]
    %v6088 = vld [vmem:[#allocation12 + $0x718] sm:$0xf]
    %v6089 = vld [vmem:[#allocation12 + $0x71c] sm:$0xff]
    %v6090 = vld [vmem:[#allocation12 + $0x724] sm:$0xff]
    %v6091 = vld [vmem:[#allocation12 + $0x72c] sm:$0xff]
    %v6092 = vld [vmem:[#allocation12 + $0x734] sm:$0xf]
    %v6093 = vld [vmem:[#allocation12 + $0x738] sm:$0xff]
    %v6094 = vld [vmem:[#allocation12 + $0x740] sm:$0xff]
    %v6095 = vld [vmem:[#allocation12 + $0x748] sm:$0xff]
    %v6096 = vld [vmem:[#allocation12 + $0x750] sm:$0xf]
    %v6097 = vld [vmem:[#allocation12 + $0x754] sm:$0xff]
    %v6098 = vld [vmem:[#allocation12 + $0x75c] sm:$0xff]
    %v6099 = vld [vmem:[#allocation12 + $0x764] sm:$0xff]
    %v6100 = vld [vmem:[#allocation12 + $0x76c] sm:$0xf]
    %v6101 = vld [vmem:[#allocation12 + $0x770] sm:$0xff]
    %v6102 = vld [vmem:[#allocation12 + $0x778] sm:$0xff]
    %v6103 = vld [vmem:[#allocation12 + $0x780] sm:$0xff]
    %v6104 = vld [vmem:[#allocation12 + $0x788] sm:$0xf]
    %v6105 = vld [vmem:[#allocation12 + $0x78c] sm:$0xff]
    %v6106 = vld [vmem:[#allocation12 + $0x794] sm:$0xff]
    %v6107 = vld [vmem:[#allocation12 + $0x79c] sm:$0xff]
    %v6108 = vld [vmem:[#allocation12 + $0x7a4] sm:$0xf]
    %v6109 = vld [vmem:[#allocation12 + $0x7a8] sm:$0xff]
    %v6110 = vld [vmem:[#allocation12 + $0x7b0] sm:$0xff]
    %v6111 = vld [vmem:[#allocation12 + $0x7b8] sm:$0xff]
    %v6112 = vld [vmem:[#allocation12 + $0x7c0] sm:$0xf]
    %v6113 = vld [vmem:[#allocation12 + $0x7c4] sm:$0xff]
    %v6114 = vld [vmem:[#allocation12 + $0x7cc] sm:$0xff]
    %v6115 = vld [vmem:[#allocation12 + $0x7d4] sm:$0xff]
    %v6116 = vld [vmem:[#allocation12 + $0x7dc] sm:$0xf]
    %v6117 = vld [vmem:[#allocation12 + $0x7e0] sm:$0xff]
    %v6118 = vld [vmem:[#allocation12 + $0x7e8] sm:$0xff]
    %v6119 = vld [vmem:[#allocation12 + $0x7f0] sm:$0xff]
    %v6120 = vld [vmem:[#allocation12 + $0x7f8] sm:$0xf]
    %v6121 = vld [vmem:[#allocation12 + $0x7fc] sm:$0xff]
    %v6122 = vld [vmem:[#allocation12 + $0x804] sm:$0xff]
    %v6123 = vld [vmem:[#allocation12 + $0x80c] sm:$0xff]
    %v6124 = vld [vmem:[#allocation12 + $0x814] sm:$0xf]
    %v6125 = vld [vmem:[#allocation12 + $0x818] sm:$0xff]
    %v6126 = vld [vmem:[#allocation12 + $0x820] sm:$0xff]
    %v6127 = vld [vmem:[#allocation12 + $0x828] sm:$0xff]
    %v6128 = vld [vmem:[#allocation12 + $0x830] sm:$0xf]
    %v6129 = vld [vmem:[#allocation12 + $0x834] sm:$0xff]
    %v6130 = vld [vmem:[#allocation12 + $0x83c] sm:$0xff]
    %v6131 = vld [vmem:[#allocation12 + $0x844] sm:$0xff]
    %v6132 = vld [vmem:[#allocation12 + $0x84c] sm:$0xf]
    %v6133 = vld [vmem:[#allocation12 + $0x850] sm:$0xff]
    %v6134 = vld [vmem:[#allocation12 + $0x858] sm:$0xff]
    %v6135 = vld [vmem:[#allocation12 + $0x860] sm:$0xff]
    %v6136 = vld [vmem:[#allocation12 + $0x868] sm:$0xf]
    %v6137 = vld [vmem:[#allocation12 + $0x86c] sm:$0xff]
    %v6138 = vld [vmem:[#allocation12 + $0x874] sm:$0xff]
    %v6139 = vld [vmem:[#allocation12 + $0x87c] sm:$0xff]
    %v6140 = vld [vmem:[#allocation12 + $0x884] sm:$0xf]
    %v6141 = vld [vmem:[#allocation12 + $0x888] sm:$0xff]
    %v6142 = vld [vmem:[#allocation12 + $0x890] sm:$0xff]
    %v6143 = vld [vmem:[#allocation12 + $0x898] sm:$0xff]
    %v6144 = vld [vmem:[#allocation12 + $0x8a0] sm:$0xf]
    %v6145 = vld [vmem:[#allocation12 + $0x8a4] sm:$0xff]
    %v6146 = vld [vmem:[#allocation12 + $0x8ac] sm:$0xff]
    %v6147 = vld [vmem:[#allocation12 + $0x8b4] sm:$0xff]
    %v6148 = vld [vmem:[#allocation12 + $0x8bc] sm:$0xf]
    %v6149 = vld [vmem:[#allocation12 + $0x8c0] sm:$0xff]
    %v6150 = vld [vmem:[#allocation12 + $0x8c8] sm:$0xff]
    %v6151 = vld [vmem:[#allocation12 + $0x8d0] sm:$0xff]
    %v6152 = vld [vmem:[#allocation12 + $0x8d8] sm:$0xf]
    %v6153 = vld [vmem:[#allocation12 + $0x8dc] sm:$0xff]
    %v6154 = vld [vmem:[#allocation12 + $0x8e4] sm:$0xff]
    %v6155 = vld [vmem:[#allocation12 + $0x8ec] sm:$0xff]
    %v6156 = vld [vmem:[#allocation12 + $0x8f4] sm:$0xf]
    %v6157 = vld [vmem:[#allocation12 + $0x8f8] sm:$0xff]
    %v6158 = vld [vmem:[#allocation12 + $0x900] sm:$0xff]
    %v6159 = vld [vmem:[#allocation12 + $0x908] sm:$0xff]
    %v6160 = vld [vmem:[#allocation12 + $0x910] sm:$0xf]
    %v6161 = vld [vmem:[#allocation12 + $0x914] sm:$0xff]
    %v6162 = vld [vmem:[#allocation12 + $0x91c] sm:$0xff]
    %v6163 = vld [vmem:[#allocation12 + $0x924] sm:$0xff]
    %v6164 = vld [vmem:[#allocation12 + $0x92c] sm:$0xf]
    %v6165 = vld [vmem:[#allocation12 + $0x930] sm:$0xff]
    %v6166 = vld [vmem:[#allocation12 + $0x938] sm:$0xff]
    %v6167 = vld [vmem:[#allocation12 + $0x940] sm:$0xff]
    %v6168 = vld [vmem:[#allocation12 + $0x948] sm:$0xf]
    %v6169 = vld [vmem:[#allocation12 + $0x94c] sm:$0xff]
    %v6170 = vld [vmem:[#allocation12 + $0x954] sm:$0xff]
    %v6171 = vld [vmem:[#allocation12 + $0x95c] sm:$0xff]
    %v6172 = vld [vmem:[#allocation12 + $0x964] sm:$0xf]
    %v6173 = vld [vmem:[#allocation12 + $0x968] sm:$0xff]
    %v6174 = vld [vmem:[#allocation12 + $0x970] sm:$0xff]
    %v6175 = vld [vmem:[#allocation12 + $0x978] sm:$0xff]
    %v6176 = vld [vmem:[#allocation12 + $0x980] sm:$0xf]
    %v6177 = vld [vmem:[#allocation12 + $0x984] sm:$0xff]
    %v6178 = vld [vmem:[#allocation12 + $0x98c] sm:$0xff]
    %v6179 = vld [vmem:[#allocation12 + $0x994] sm:$0xff]
    %v6180 = vld [vmem:[#allocation12 + $0x99c] sm:$0xf]
    %v6181 = vld [vmem:[#allocation12 + $0x9a0] sm:$0xff]
    %v6182 = vld [vmem:[#allocation12 + $0x9a8] sm:$0xff]
    %v6183 = vld [vmem:[#allocation12 + $0x9b0] sm:$0xff]
    %v6184 = vld [vmem:[#allocation12 + $0x9b8] sm:$0xf]
    %v6185 = vld [vmem:[#allocation12 + $0x9bc] sm:$0xff]
    %v6186 = vld [vmem:[#allocation12 + $0x9c4] sm:$0xff]
    %v6187 = vld [vmem:[#allocation12 + $0x9cc] sm:$0xff]
    %v6188 = vld [vmem:[#allocation12 + $0x9d4] sm:$0xf]
    %v6189 = vld [vmem:[#allocation12 + $0x9d8] sm:$0xff]
    %v6190 = vld [vmem:[#allocation12 + $0x9e0] sm:$0xff]
    %v6191 = vld [vmem:[#allocation12 + $0x9e8] sm:$0xff]
    %v6192 = vld [vmem:[#allocation12 + $0x9f0] sm:$0xf]
    %v6193 = vld [vmem:[#allocation12 + $0x9f4] sm:$0xff]
    %v6194 = vld [vmem:[#allocation12 + $0x9fc] sm:$0xff]
    %v6195 = vld [vmem:[#allocation12 + $0xa04] sm:$0xff]
    %v6196 = vld [vmem:[#allocation12 + $0xa0c] sm:$0xf]
    %v6197 = vld [vmem:[#allocation12 + $0xa10] sm:$0xff]
    %v6198 = vld [vmem:[#allocation12 + $0xa18] sm:$0xff]
    %v6199 = vld [vmem:[#allocation12 + $0xa20] sm:$0xff]
    %v6200 = vld [vmem:[#allocation12 + $0xa28] sm:$0xf]
    %v6201 = vld [vmem:[#allocation12 + $0xa2c] sm:$0xff]
    %v6202 = vld [vmem:[#allocation12 + $0xa34] sm:$0xff]
    %v6203 = vld [vmem:[#allocation12 + $0xa3c] sm:$0xff]
    %v6204 = vld [vmem:[#allocation12 + $0xa44] sm:$0xf]
    %v6205 = vld [vmem:[#allocation12 + $0xa48] sm:$0xff]
    %v6206 = vld [vmem:[#allocation12 + $0xa50] sm:$0xff]
    %v6207 = vld [vmem:[#allocation12 + $0xa58] sm:$0xff]
    %v6208 = vld [vmem:[#allocation12 + $0xa60] sm:$0xf]
    %v6209 = vld [vmem:[#allocation12 + $0xa64] sm:$0xff]
    %v6210 = vld [vmem:[#allocation12 + $0xa6c] sm:$0xff]
    %v6211 = vld [vmem:[#allocation12 + $0xa74] sm:$0xff]
    %v6212 = vld [vmem:[#allocation12 + $0xa7c] sm:$0xf]
    %v6213 = vld [vmem:[#allocation12 + $0xa80] sm:$0xff]
    %v6214 = vld [vmem:[#allocation12 + $0xa88] sm:$0xff]
    %v6215 = vld [vmem:[#allocation12 + $0xa90] sm:$0xff]
    %v6216 = vld [vmem:[#allocation12 + $0xa98] sm:$0xf]
    %v6217 = vld [vmem:[#allocation12 + $0xa9c] sm:$0xff]
    %v6218 = vld [vmem:[#allocation12 + $0xaa4] sm:$0xff]
    %v6219 = vld [vmem:[#allocation12 + $0xaac] sm:$0xff]
    %v6220 = vld [vmem:[#allocation12 + $0xab4] sm:$0xf]
    %v6221 = vld [vmem:[#allocation12 + $0xab8] sm:$0xff]
    %v6222 = vld [vmem:[#allocation12 + $0xac0] sm:$0xff]
    %v6223 = vld [vmem:[#allocation12 + $0xac8] sm:$0xff]
    %v6224 = vld [vmem:[#allocation12 + $0xad0] sm:$0xf]
    %v6225 = vld [vmem:[#allocation12 + $0xad4] sm:$0xff]
    %v6226 = vld [vmem:[#allocation12 + $0xadc] sm:$0xff]
    %v6227 = vld [vmem:[#allocation12 + $0xae4] sm:$0xff]
    %v6228 = vld [vmem:[#allocation12 + $0xaec] sm:$0xf]
    %v6229 = vld [vmem:[#allocation12 + $0xaf0] sm:$0xff]
    %v6230 = vld [vmem:[#allocation12 + $0xaf8] sm:$0xff]
    %v6231 = vld [vmem:[#allocation12 + $0xb00] sm:$0xff]
    %v6232 = vld [vmem:[#allocation12 + $0xb08] sm:$0xf]
    %v6233 = vld [vmem:[#allocation12 + $0xb0c] sm:$0xff]
    %v6234 = vld [vmem:[#allocation12 + $0xb14] sm:$0xff]
    %v6235 = vld [vmem:[#allocation12 + $0xb1c] sm:$0xff]
    %v6236 = vld [vmem:[#allocation12 + $0xb24] sm:$0xf]
    %v6237 = vld [vmem:[#allocation12 + $0xb28] sm:$0xff]
    %v6238 = vld [vmem:[#allocation12 + $0xb30] sm:$0xff]
    %v6239 = vld [vmem:[#allocation12 + $0xb38] sm:$0xff]
    %v6240 = vld [vmem:[#allocation12 + $0xb40] sm:$0xf]
    %v6241 = vld [vmem:[#allocation12 + $0xb44] sm:$0xff]
    %v6242 = vld [vmem:[#allocation12 + $0xb4c] sm:$0xff]
    %v6243 = vld [vmem:[#allocation12 + $0xb54] sm:$0xff]
    %v6244 = vld [vmem:[#allocation12 + $0xb5c] sm:$0xf]
    %v6245 = vld [vmem:[#allocation12 + $0xb60] sm:$0xff]
    %v6246 = vld [vmem:[#allocation12 + $0xb68] sm:$0xff]
    %v6247 = vld [vmem:[#allocation12 + $0xb70] sm:$0xff]
    %v6248 = vld [vmem:[#allocation12 + $0xb78] sm:$0xf]
    %v6249 = vld [vmem:[#allocation12 + $0xb7c] sm:$0xff]
    %v6250 = vld [vmem:[#allocation12 + $0xb84] sm:$0xff]
    %v6251 = vld [vmem:[#allocation12 + $0xb8c] sm:$0xff]
    %v6252 = vld [vmem:[#allocation12 + $0xb94] sm:$0xf]
    %v6253 = vld [vmem:[#allocation12 + $0xb98] sm:$0xff]
    %v6254 = vld [vmem:[#allocation12 + $0xba0] sm:$0xff]
    %v6255 = vld [vmem:[#allocation12 + $0xba8] sm:$0xff]
    %v6256 = vld [vmem:[#allocation12 + $0xbb0] sm:$0xf]
    %v6257 = vld [vmem:[#allocation12 + $0xbb4] sm:$0xff]
    %v6258 = vld [vmem:[#allocation12 + $0xbbc] sm:$0xff]
    %v6259 = vld [vmem:[#allocation12 + $0xbc4] sm:$0xff]
    %v6260 = vld [vmem:[#allocation12 + $0xbcc] sm:$0xf]
    %v6261 = vld [vmem:[#allocation12 + $0xbd0] sm:$0xff]
    %v6262 = vld [vmem:[#allocation12 + $0xbd8] sm:$0xff]
    %v6263 = vld [vmem:[#allocation12 + $0xbe0] sm:$0xff]
    %v6264 = vld [vmem:[#allocation12 + $0xbe8] sm:$0xf]
    %v6265 = vld [vmem:[#allocation12 + $0xbec] sm:$0xff]
    %v6266 = vld [vmem:[#allocation12 + $0xbf4] sm:$0xff]
    %v6267 = vld [vmem:[#allocation12 + $0xbfc] sm:$0xff]
    %v6268 = vld [vmem:[#allocation12 + $0xc04] sm:$0xf]
    %v6269 = vld [vmem:[#allocation12 + $0xc08] sm:$0xff]
    %v6270 = vld [vmem:[#allocation12 + $0xc10] sm:$0xff]
    %v6271 = vld [vmem:[#allocation12 + $0xc18] sm:$0xff]
    %v6272 = vld [vmem:[#allocation12 + $0xc20] sm:$0xf]
    %v6273 = vld [vmem:[#allocation12 + $0xc24] sm:$0xff]
    %v6274 = vld [vmem:[#allocation12 + $0xc2c] sm:$0xff]
    %v6275 = vld [vmem:[#allocation12 + $0xc34] sm:$0xff]
    %v6276 = vld [vmem:[#allocation12 + $0xc3c] sm:$0xf]
    %v6277 = vld [vmem:[#allocation12 + $0xc40] sm:$0xff]
    %v6278 = vld [vmem:[#allocation12 + $0xc48] sm:$0xff]
    %v6279 = vld [vmem:[#allocation12 + $0xc50] sm:$0xff]
    %v6280 = vld [vmem:[#allocation12 + $0xc58] sm:$0xf]
    %v6281 = vld [vmem:[#allocation12 + $0xc5c] sm:$0xff]
    %v6282 = vld [vmem:[#allocation12 + $0xc64] sm:$0xff]
    %v6283 = vld [vmem:[#allocation12 + $0xc6c] sm:$0xff]
    %v6284 = vld [vmem:[#allocation12 + $0xc74] sm:$0xf]
    %v6285 = vld [vmem:[#allocation12 + $0xc78] sm:$0xff]
    %v6286 = vld [vmem:[#allocation12 + $0xc80] sm:$0xff]
    %v6287 = vld [vmem:[#allocation12 + $0xc88] sm:$0xff]
    %v6288 = vld [vmem:[#allocation12 + $0xc90] sm:$0xf]
    %v6289 = vld [vmem:[#allocation12 + $0xc94] sm:$0xff]
    %v6290 = vld [vmem:[#allocation12 + $0xc9c] sm:$0xff]
    %v6291 = vld [vmem:[#allocation12 + $0xca4] sm:$0xff]
    %v6292 = vld [vmem:[#allocation12 + $0xcac] sm:$0xf]
    %v6293 = vld [vmem:[#allocation12 + $0xcb0] sm:$0xff]
    %v6294 = vld [vmem:[#allocation12 + $0xcb8] sm:$0xff]
    %v6295 = vld [vmem:[#allocation12 + $0xcc0] sm:$0xff]
    %v6296 = vld [vmem:[#allocation12 + $0xcc8] sm:$0xf]
    %v6297 = vld [vmem:[#allocation12 + $0xccc] sm:$0xff]
    %v6298 = vld [vmem:[#allocation12 + $0xcd4] sm:$0xff]
    %v6299 = vld [vmem:[#allocation12 + $0xcdc] sm:$0xff]
    %v6300 = vld [vmem:[#allocation12 + $0xce4] sm:$0xf]
    %v6301 = vld [vmem:[#allocation12 + $0xce8] sm:$0xff]
    %v6302 = vld [vmem:[#allocation12 + $0xcf0] sm:$0xff]
    %v6303 = vld [vmem:[#allocation12 + $0xcf8] sm:$0xff]
    %v6304 = vld [vmem:[#allocation12 + $0xd00] sm:$0xf]
    %v6305 = vld [vmem:[#allocation12 + $0xd04] sm:$0xff]
    %v6306 = vld [vmem:[#allocation12 + $0xd0c] sm:$0xff]
    %v6307 = vld [vmem:[#allocation12 + $0xd14] sm:$0xff]
    %v6308 = vld [vmem:[#allocation12 + $0xd1c] sm:$0xf]
    %v6309 = vld [vmem:[#allocation12 + $0xd20] sm:$0xff]
    %v6310 = vld [vmem:[#allocation12 + $0xd28] sm:$0xff]
    %v6311 = vld [vmem:[#allocation12 + $0xd30] sm:$0xff]
    %v6312 = vld [vmem:[#allocation12 + $0xd38] sm:$0xf]
    %v6313 = vld [vmem:[#allocation12 + $0xd3c] sm:$0xff]
    %v6314 = vld [vmem:[#allocation12 + $0xd44] sm:$0xff]
    %v6315 = vld [vmem:[#allocation12 + $0xd4c] sm:$0xff]
    %v6316 = vld [vmem:[#allocation12 + $0xd54] sm:$0xf]
    %v6317 = vld [vmem:[#allocation12 + $0xd58] sm:$0xff]
    %v6318 = vld [vmem:[#allocation12 + $0xd60] sm:$0xff]
    %v6319 = vld [vmem:[#allocation12 + $0xd68] sm:$0xff]
    %v6320 = vld [vmem:[#allocation12 + $0xd70] sm:$0xf]
    %v6321 = vld [vmem:[#allocation12 + $0xd74] sm:$0xff]
    %v6322 = vld [vmem:[#allocation12 + $0xd7c] sm:$0xff]
    %v6323 = vld [vmem:[#allocation12 + $0xd84] sm:$0xff]
    %v6324 = vld [vmem:[#allocation12 + $0xd8c] sm:$0xf]
    %v6325 = vld [vmem:[#allocation12 + $0xd90] sm:$0xff]
    %v6326 = vld [vmem:[#allocation12 + $0xd98] sm:$0xff]
    %v6327 = vld [vmem:[#allocation12 + $0xda0] sm:$0xff]
    %v6328 = vld [vmem:[#allocation12 + $0xda8] sm:$0xf]
    %v6329 = vld [vmem:[#allocation12 + $0xdac] sm:$0xff]
    %v6330 = vld [vmem:[#allocation12 + $0xdb4] sm:$0xff]
    %v6331 = vld [vmem:[#allocation12 + $0xdbc] sm:$0xff]
    %v6332 = vld [vmem:[#allocation12 + $0xdc4] sm:$0xf]
    %v6333 = vld [vmem:[#allocation12 + $0xdc8] sm:$0xff]
    %v6334 = vld [vmem:[#allocation12 + $0xdd0] sm:$0xff]
    %v6335 = vld [vmem:[#allocation12 + $0xdd8] sm:$0xff]
    %v6336 = vld [vmem:[#allocation12 + $0xde0] sm:$0xf]
    %v6337 = vld [vmem:[#allocation12 + $0xde4] sm:$0xff]
    %v6338 = vld [vmem:[#allocation12 + $0xdec] sm:$0xff]
    %v6339 = vld [vmem:[#allocation12 + $0xdf4] sm:$0xff]
    %v6340 = vld [vmem:[#allocation12 + $0xdfc] sm:$0xf]
    %v6341 = vld [vmem:[#allocation13] sm:$0xff]
    %v6343 = vperm.slane %v6341, 0
    %v6344 = vperm.slane %v6341, 1
    %v6345 = vperm.slane %v6341, 2
    %v6346 = vperm.slane %v6341, 3
    %v6347 = vperm.slane %v6341, 4
    %v6348 = vperm.slane %v6341, 5
    %v6349 = vperm.slane %v6341, 6
    %v6869 = vunpack.c.l.b16 %v5829
    %v6870 = vunpack.c.h.b16 %v5829
    %v6871 = vunpack.c.l.b16 %v5830
    %v6872 = vunpack.c.h.b16 %v5830
    %v6873 = vunpack.c.l.b16 %v5831
    %v6874 = vunpack.c.h.b16 %v5831
    %v6875 = vunpack.c.l.b16 %v5832
    %v6876 = vunpack.c.l.b16 %v5833
    %v6877 = vunpack.c.h.b16 %v5833
    %v6878 = vunpack.c.l.b16 %v5834
    %v6879 = vunpack.c.h.b16 %v5834
    %v6880 = vunpack.c.l.b16 %v5835
    %v6881 = vunpack.c.h.b16 %v5835
    %v6882 = vunpack.c.l.b16 %v5836
    %v6883 = vunpack.c.l.b16 %v5837
    %v6884 = vunpack.c.h.b16 %v5837
    %v6885 = vunpack.c.l.b16 %v5838
    %v6886 = vunpack.c.h.b16 %v5838
    %v6887 = vunpack.c.l.b16 %v5839
    %v6888 = vunpack.c.h.b16 %v5839
    %v6889 = vunpack.c.l.b16 %v5840
    %v6890 = vunpack.c.l.b16 %v5841
    %v6891 = vunpack.c.h.b16 %v5841
    %v6892 = vunpack.c.l.b16 %v5842
    %v6893 = vunpack.c.h.b16 %v5842
    %v6894 = vunpack.c.l.b16 %v5843
    %v6895 = vunpack.c.h.b16 %v5843
    %v6896 = vunpack.c.l.b16 %v5844
    %v6897 = vunpack.c.l.b16 %v5845
    %v6898 = vunpack.c.h.b16 %v5845
    %v6899 = vunpack.c.l.b16 %v5846
    %v6900 = vunpack.c.h.b16 %v5846
    %v6901 = vunpack.c.l.b16 %v5847
    %v6902 = vunpack.c.h.b16 %v5847
    %v6903 = vunpack.c.l.b16 %v5848
    %v6904 = vunpack.c.l.b16 %v5849
    %v6905 = vunpack.c.h.b16 %v5849
    %v6906 = vunpack.c.l.b16 %v5850
    %v6907 = vunpack.c.h.b16 %v5850
    %v6908 = vunpack.c.l.b16 %v5851
    %v6909 = vunpack.c.h.b16 %v5851
    %v6910 = vunpack.c.l.b16 %v5852
    %v6911 = vunpack.c.l.b16 %v5853
    %v6912 = vunpack.c.h.b16 %v5853
    %v6913 = vunpack.c.l.b16 %v5854
    %v6914 = vunpack.c.h.b16 %v5854
    %v6915 = vunpack.c.l.b16 %v5855
    %v6916 = vunpack.c.h.b16 %v5855
    %v6917 = vunpack.c.l.b16 %v5856
    %v6918 = vunpack.c.l.b16 %v5857
    %v6919 = vunpack.c.h.b16 %v5857
    %v6920 = vunpack.c.l.b16 %v5858
    %v6921 = vunpack.c.h.b16 %v5858
    %v6922 = vunpack.c.l.b16 %v5859
    %v6923 = vunpack.c.h.b16 %v5859
    %v6924 = vunpack.c.l.b16 %v5860
    %v6925 = vunpack.c.l.b16 %v5861
    %v6926 = vunpack.c.h.b16 %v5861
    %v6927 = vunpack.c.l.b16 %v5862
    %v6928 = vunpack.c.h.b16 %v5862
    %v6929 = vunpack.c.l.b16 %v5863
    %v6930 = vunpack.c.h.b16 %v5863
    %v6931 = vunpack.c.l.b16 %v5864
    %v6932 = vunpack.c.l.b16 %v5865
    %v6933 = vunpack.c.h.b16 %v5865
    %v6934 = vunpack.c.l.b16 %v5866
    %v6935 = vunpack.c.h.b16 %v5866
    %v6936 = vunpack.c.l.b16 %v5867
    %v6937 = vunpack.c.h.b16 %v5867
    %v6938 = vunpack.c.l.b16 %v5868
    %v6939 = vunpack.c.l.b16 %v5869
    %v6940 = vunpack.c.h.b16 %v5869
    %v6941 = vunpack.c.l.b16 %v5870
    %v6942 = vunpack.c.h.b16 %v5870
    %v6943 = vunpack.c.l.b16 %v5871
    %v6944 = vunpack.c.h.b16 %v5871
    %v6945 = vunpack.c.l.b16 %v5872
    %v6946 = vunpack.c.l.b16 %v5873
    %v6947 = vunpack.c.h.b16 %v5873
    %v6948 = vunpack.c.l.b16 %v5874
    %v6949 = vunpack.c.h.b16 %v5874
    %v6950 = vunpack.c.l.b16 %v5875
    %v6951 = vunpack.c.h.b16 %v5875
    %v6952 = vunpack.c.l.b16 %v5876
    %v6953 = vunpack.c.l.b16 %v5877
    %v6954 = vunpack.c.h.b16 %v5877
    %v6955 = vunpack.c.l.b16 %v5878
    %v6956 = vunpack.c.h.b16 %v5878
    %v6957 = vunpack.c.l.b16 %v5879
    %v6958 = vunpack.c.h.b16 %v5879
    %v6959 = vunpack.c.l.b16 %v5880
    %v6960 = vunpack.c.l.b16 %v5881
    %v6961 = vunpack.c.h.b16 %v5881
    %v6962 = vunpack.c.l.b16 %v5882
    %v6963 = vunpack.c.h.b16 %v5882
    %v6964 = vunpack.c.l.b16 %v5883
    %v6965 = vunpack.c.h.b16 %v5883
    %v6966 = vunpack.c.l.b16 %v5884
    %v6967 = vunpack.c.l.b16 %v5885
    %v6968 = vunpack.c.h.b16 %v5885
    %v6969 = vunpack.c.l.b16 %v5886
    %v6970 = vunpack.c.h.b16 %v5886
    %v6971 = vunpack.c.l.b16 %v5887
    %v6972 = vunpack.c.h.b16 %v5887
    %v6973 = vunpack.c.l.b16 %v5888
    %v6974 = vunpack.c.l.b16 %v5889
    %v6975 = vunpack.c.h.b16 %v5889
    %v6976 = vunpack.c.l.b16 %v5890
    %v6977 = vunpack.c.h.b16 %v5890
    %v6978 = vunpack.c.l.b16 %v5891
    %v6979 = vunpack.c.h.b16 %v5891
    %v6980 = vunpack.c.l.b16 %v5892
    %v6981 = vunpack.c.l.b16 %v5893
    %v6982 = vunpack.c.h.b16 %v5893
    %v6983 = vunpack.c.l.b16 %v5894
    %v6984 = vunpack.c.h.b16 %v5894
    %v6985 = vunpack.c.l.b16 %v5895
    %v6986 = vunpack.c.h.b16 %v5895
    %v6987 = vunpack.c.l.b16 %v5896
    %v6988 = vunpack.c.l.b16 %v5897
    %v6989 = vunpack.c.h.b16 %v5897
    %v6990 = vunpack.c.l.b16 %v5898
    %v6991 = vunpack.c.h.b16 %v5898
    %v6992 = vunpack.c.l.b16 %v5899
    %v6993 = vunpack.c.h.b16 %v5899
    %v6994 = vunpack.c.l.b16 %v5900
    %v6995 = vunpack.c.l.b16 %v5901
    %v6996 = vunpack.c.h.b16 %v5901
    %v6997 = vunpack.c.l.b16 %v5902
    %v6998 = vunpack.c.h.b16 %v5902
    %v6999 = vunpack.c.l.b16 %v5903
    %v7000 = vunpack.c.h.b16 %v5903
    %v7001 = vunpack.c.l.b16 %v5904
    %v7002 = vunpack.c.l.b16 %v5905
    %v7003 = vunpack.c.h.b16 %v5905
    %v7004 = vunpack.c.l.b16 %v5906
    %v7005 = vunpack.c.h.b16 %v5906
    %v7006 = vunpack.c.l.b16 %v5907
    %v7007 = vunpack.c.h.b16 %v5907
    %v7008 = vunpack.c.l.b16 %v5908
    %v7009 = vunpack.c.l.b16 %v5909
    %v7010 = vunpack.c.h.b16 %v5909
    %v7011 = vunpack.c.l.b16 %v5910
    %v7012 = vunpack.c.h.b16 %v5910
    %v7013 = vunpack.c.l.b16 %v5911
    %v7014 = vunpack.c.h.b16 %v5911
    %v7015 = vunpack.c.l.b16 %v5912
    %v7016 = vunpack.c.l.b16 %v5913
    %v7017 = vunpack.c.h.b16 %v5913
    %v7018 = vunpack.c.l.b16 %v5914
    %v7019 = vunpack.c.h.b16 %v5914
    %v7020 = vunpack.c.l.b16 %v5915
    %v7021 = vunpack.c.h.b16 %v5915
    %v7022 = vunpack.c.l.b16 %v5916
    %v7023 = vunpack.c.l.b16 %v5917
    %v7024 = vunpack.c.h.b16 %v5917
    %v7025 = vunpack.c.l.b16 %v5918
    %v7026 = vunpack.c.h.b16 %v5918
    %v7027 = vunpack.c.l.b16 %v5919
    %v7028 = vunpack.c.h.b16 %v5919
    %v7029 = vunpack.c.l.b16 %v5920
    %v7030 = vunpack.c.l.b16 %v5921
    %v7031 = vunpack.c.h.b16 %v5921
    %v7032 = vunpack.c.l.b16 %v5922
    %v7033 = vunpack.c.h.b16 %v5922
    %v7034 = vunpack.c.l.b16 %v5923
    %v7035 = vunpack.c.h.b16 %v5923
    %v7036 = vunpack.c.l.b16 %v5924
    %v7037 = vunpack.c.l.b16 %v5925
    %v7038 = vunpack.c.h.b16 %v5925
    %v7039 = vunpack.c.l.b16 %v5926
    %v7040 = vunpack.c.h.b16 %v5926
    %v7041 = vunpack.c.l.b16 %v5927
    %v7042 = vunpack.c.h.b16 %v5927
    %v7043 = vunpack.c.l.b16 %v5928
    %v7044 = vunpack.c.l.b16 %v5929
    %v7045 = vunpack.c.h.b16 %v5929
    %v7046 = vunpack.c.l.b16 %v5930
    %v7047 = vunpack.c.h.b16 %v5930
    %v7048 = vunpack.c.l.b16 %v5931
    %v7049 = vunpack.c.h.b16 %v5931
    %v7050 = vunpack.c.l.b16 %v5932
    %v7051 = vunpack.c.l.b16 %v5933
    %v7052 = vunpack.c.h.b16 %v5933
    %v7053 = vunpack.c.l.b16 %v5934
    %v7054 = vunpack.c.h.b16 %v5934
    %v7055 = vunpack.c.l.b16 %v5935
    %v7056 = vunpack.c.h.b16 %v5935
    %v7057 = vunpack.c.l.b16 %v5936
    %v7058 = vunpack.c.l.b16 %v5937
    %v7059 = vunpack.c.h.b16 %v5937
    %v7060 = vunpack.c.l.b16 %v5938
    %v7061 = vunpack.c.h.b16 %v5938
    %v7062 = vunpack.c.l.b16 %v5939
    %v7063 = vunpack.c.h.b16 %v5939
    %v7064 = vunpack.c.l.b16 %v5940
    %v7065 = vunpack.c.l.b16 %v5941
    %v7066 = vunpack.c.h.b16 %v5941
    %v7067 = vunpack.c.l.b16 %v5942
    %v7068 = vunpack.c.h.b16 %v5942
    %v7069 = vunpack.c.l.b16 %v5943
    %v7070 = vunpack.c.h.b16 %v5943
    %v7071 = vunpack.c.l.b16 %v5944
    %v7072 = vunpack.c.l.b16 %v5945
    %v7073 = vunpack.c.h.b16 %v5945
    %v7074 = vunpack.c.l.b16 %v5946
    %v7075 = vunpack.c.h.b16 %v5946
    %v7076 = vunpack.c.l.b16 %v5947
    %v7077 = vunpack.c.h.b16 %v5947
    %v7078 = vunpack.c.l.b16 %v5948
    %v7079 = vunpack.c.l.b16 %v5949
    %v7080 = vunpack.c.h.b16 %v5949
    %v7081 = vunpack.c.l.b16 %v5950
    %v7082 = vunpack.c.h.b16 %v5950
    %v7083 = vunpack.c.l.b16 %v5951
    %v7084 = vunpack.c.h.b16 %v5951
    %v7085 = vunpack.c.l.b16 %v5952
    %v7086 = vunpack.c.l.b16 %v5953
    %v7087 = vunpack.c.h.b16 %v5953
    %v7088 = vunpack.c.l.b16 %v5954
    %v7089 = vunpack.c.h.b16 %v5954
    %v7090 = vunpack.c.l.b16 %v5955
    %v7091 = vunpack.c.h.b16 %v5955
    %v7092 = vunpack.c.l.b16 %v5956
    %v7093 = vunpack.c.l.b16 %v5957
    %v7094 = vunpack.c.h.b16 %v5957
    %v7095 = vunpack.c.l.b16 %v5958
    %v7096 = vunpack.c.h.b16 %v5958
    %v7097 = vunpack.c.l.b16 %v5959
    %v7098 = vunpack.c.h.b16 %v5959
    %v7099 = vunpack.c.l.b16 %v5960
    %v7100 = vunpack.c.l.b16 %v5961
    %v7101 = vunpack.c.h.b16 %v5961
    %v7102 = vunpack.c.l.b16 %v5962
    %v7103 = vunpack.c.h.b16 %v5962
    %v7104 = vunpack.c.l.b16 %v5963
    %v7105 = vunpack.c.h.b16 %v5963
    %v7106 = vunpack.c.l.b16 %v5964
    %v7107 = vunpack.c.l.b16 %v5965
    %v7108 = vunpack.c.h.b16 %v5965
    %v7109 = vunpack.c.l.b16 %v5966
    %v7110 = vunpack.c.h.b16 %v5966
    %v7111 = vunpack.c.l.b16 %v5967
    %v7112 = vunpack.c.h.b16 %v5967
    %v7113 = vunpack.c.l.b16 %v5968
    %v7114 = vunpack.c.l.b16 %v5969
    %v7115 = vunpack.c.h.b16 %v5969
    %v7116 = vunpack.c.l.b16 %v5970
    %v7117 = vunpack.c.h.b16 %v5970
    %v7118 = vunpack.c.l.b16 %v5971
    %v7119 = vunpack.c.h.b16 %v5971
    %v7120 = vunpack.c.l.b16 %v5972
    %v7121 = vunpack.c.l.b16 %v5973
    %v7122 = vunpack.c.h.b16 %v5973
    %v7123 = vunpack.c.l.b16 %v5974
    %v7124 = vunpack.c.h.b16 %v5974
    %v7125 = vunpack.c.l.b16 %v5975
    %v7126 = vunpack.c.h.b16 %v5975
    %v7127 = vunpack.c.l.b16 %v5976
    %v7128 = vunpack.c.l.b16 %v5977
    %v7129 = vunpack.c.h.b16 %v5977
    %v7130 = vunpack.c.l.b16 %v5978
    %v7131 = vunpack.c.h.b16 %v5978
    %v7132 = vunpack.c.l.b16 %v5979
    %v7133 = vunpack.c.h.b16 %v5979
    %v7134 = vunpack.c.l.b16 %v5980
    %v7135 = vunpack.c.l.b16 %v5981
    %v7136 = vunpack.c.h.b16 %v5981
    %v7137 = vunpack.c.l.b16 %v5982
    %v7138 = vunpack.c.h.b16 %v5982
    %v7139 = vunpack.c.l.b16 %v5983
    %v7140 = vunpack.c.h.b16 %v5983
    %v7141 = vunpack.c.l.b16 %v5984
    %v7142 = vunpack.c.l.b16 %v5985
    %v7143 = vunpack.c.h.b16 %v5985
    %v7144 = vunpack.c.l.b16 %v5986
    %v7145 = vunpack.c.h.b16 %v5986
    %v7146 = vunpack.c.l.b16 %v5987
    %v7147 = vunpack.c.h.b16 %v5987
    %v7148 = vunpack.c.l.b16 %v5988
    %v7149 = vunpack.c.l.b16 %v5989
    %v7150 = vunpack.c.h.b16 %v5989
    %v7151 = vunpack.c.l.b16 %v5990
    %v7152 = vunpack.c.h.b16 %v5990
    %v7153 = vunpack.c.l.b16 %v5991
    %v7154 = vunpack.c.h.b16 %v5991
    %v7155 = vunpack.c.l.b16 %v5992
    %v7156 = vunpack.c.l.b16 %v5993
    %v7157 = vunpack.c.h.b16 %v5993
    %v7158 = vunpack.c.l.b16 %v5994
    %v7159 = vunpack.c.h.b16 %v5994
    %v7160 = vunpack.c.l.b16 %v5995
    %v7161 = vunpack.c.h.b16 %v5995
    %v7162 = vunpack.c.l.b16 %v5996
    %v7163 = vunpack.c.l.b16 %v5997
    %v7164 = vunpack.c.h.b16 %v5997
    %v7165 = vunpack.c.l.b16 %v5998
    %v7166 = vunpack.c.h.b16 %v5998
    %v7167 = vunpack.c.l.b16 %v5999
    %v7168 = vunpack.c.h.b16 %v5999
    %v7169 = vunpack.c.l.b16 %v6000
    %v7170 = vunpack.c.l.b16 %v6001
    %v7171 = vunpack.c.h.b16 %v6001
    %v7172 = vunpack.c.l.b16 %v6002
    %v7173 = vunpack.c.h.b16 %v6002
    %v7174 = vunpack.c.l.b16 %v6003
    %v7175 = vunpack.c.h.b16 %v6003
    %v7176 = vunpack.c.l.b16 %v6004
    %v7177 = vunpack.c.l.b16 %v6005
    %v7178 = vunpack.c.h.b16 %v6005
    %v7179 = vunpack.c.l.b16 %v6006
    %v7180 = vunpack.c.h.b16 %v6006
    %v7181 = vunpack.c.l.b16 %v6007
    %v7182 = vunpack.c.h.b16 %v6007
    %v7183 = vunpack.c.l.b16 %v6008
    %v7184 = vunpack.c.l.b16 %v6009
    %v7185 = vunpack.c.h.b16 %v6009
    %v7186 = vunpack.c.l.b16 %v6010
    %v7187 = vunpack.c.h.b16 %v6010
    %v7188 = vunpack.c.l.b16 %v6011
    %v7189 = vunpack.c.h.b16 %v6011
    %v7190 = vunpack.c.l.b16 %v6012
    %v7191 = vunpack.c.l.b16 %v6013
    %v7192 = vunpack.c.h.b16 %v6013
    %v7193 = vunpack.c.l.b16 %v6014
    %v7194 = vunpack.c.h.b16 %v6014
    %v7195 = vunpack.c.l.b16 %v6015
    %v7196 = vunpack.c.h.b16 %v6015
    %v7197 = vunpack.c.l.b16 %v6016
    %v7198 = vunpack.c.l.b16 %v6017
    %v7199 = vunpack.c.h.b16 %v6017
    %v7200 = vunpack.c.l.b16 %v6018
    %v7201 = vunpack.c.h.b16 %v6018
    %v7202 = vunpack.c.l.b16 %v6019
    %v7203 = vunpack.c.h.b16 %v6019
    %v7204 = vunpack.c.l.b16 %v6020
    %v7205 = vunpack.c.l.b16 %v6021
    %v7206 = vunpack.c.h.b16 %v6021
    %v7207 = vunpack.c.l.b16 %v6022
    %v7208 = vunpack.c.h.b16 %v6022
    %v7209 = vunpack.c.l.b16 %v6023
    %v7210 = vunpack.c.h.b16 %v6023
    %v7211 = vunpack.c.l.b16 %v6024
    %v7212 = vunpack.c.l.b16 %v6025
    %v7213 = vunpack.c.h.b16 %v6025
    %v7214 = vunpack.c.l.b16 %v6026
    %v7215 = vunpack.c.h.b16 %v6026
    %v7216 = vunpack.c.l.b16 %v6027
    %v7217 = vunpack.c.h.b16 %v6027
    %v7218 = vunpack.c.l.b16 %v6028
    %v7219 = vunpack.c.l.b16 %v6029
    %v7220 = vunpack.c.h.b16 %v6029
    %v7221 = vunpack.c.l.b16 %v6030
    %v7222 = vunpack.c.h.b16 %v6030
    %v7223 = vunpack.c.l.b16 %v6031
    %v7224 = vunpack.c.h.b16 %v6031
    %v7225 = vunpack.c.l.b16 %v6032
    %v7226 = vunpack.c.l.b16 %v6033
    %v7227 = vunpack.c.h.b16 %v6033
    %v7228 = vunpack.c.l.b16 %v6034
    %v7229 = vunpack.c.h.b16 %v6034
    %v7230 = vunpack.c.l.b16 %v6035
    %v7231 = vunpack.c.h.b16 %v6035
    %v7232 = vunpack.c.l.b16 %v6036
    %v7233 = vunpack.c.l.b16 %v6037
    %v7234 = vunpack.c.h.b16 %v6037
    %v7235 = vunpack.c.l.b16 %v6038
    %v7236 = vunpack.c.h.b16 %v6038
    %v7237 = vunpack.c.l.b16 %v6039
    %v7238 = vunpack.c.h.b16 %v6039
    %v7239 = vunpack.c.l.b16 %v6040
    %v7240 = vunpack.c.l.b16 %v6041
    %v7241 = vunpack.c.h.b16 %v6041
    %v7242 = vunpack.c.l.b16 %v6042
    %v7243 = vunpack.c.h.b16 %v6042
    %v7244 = vunpack.c.l.b16 %v6043
    %v7245 = vunpack.c.h.b16 %v6043
    %v7246 = vunpack.c.l.b16 %v6044
    %v7247 = vunpack.c.l.b16 %v6045
    %v7248 = vunpack.c.h.b16 %v6045
    %v7249 = vunpack.c.l.b16 %v6046
    %v7250 = vunpack.c.h.b16 %v6046
    %v7251 = vunpack.c.l.b16 %v6047
    %v7252 = vunpack.c.h.b16 %v6047
    %v7253 = vunpack.c.l.b16 %v6048
    %v7254 = vunpack.c.l.b16 %v6049
    %v7255 = vunpack.c.h.b16 %v6049
    %v7256 = vunpack.c.l.b16 %v6050
    %v7257 = vunpack.c.h.b16 %v6050
    %v7258 = vunpack.c.l.b16 %v6051
    %v7259 = vunpack.c.h.b16 %v6051
    %v7260 = vunpack.c.l.b16 %v6052
    %v7261 = vunpack.c.l.b16 %v6053
    %v7262 = vunpack.c.h.b16 %v6053
    %v7263 = vunpack.c.l.b16 %v6054
    %v7264 = vunpack.c.h.b16 %v6054
    %v7265 = vunpack.c.l.b16 %v6055
    %v7266 = vunpack.c.h.b16 %v6055
    %v7267 = vunpack.c.l.b16 %v6056
    %v7268 = vunpack.c.l.b16 %v6057
    %v7269 = vunpack.c.h.b16 %v6057
    %v7270 = vunpack.c.l.b16 %v6058
    %v7271 = vunpack.c.h.b16 %v6058
    %v7272 = vunpack.c.l.b16 %v6059
    %v7273 = vunpack.c.h.b16 %v6059
    %v7274 = vunpack.c.l.b16 %v6060
    %v7275 = vunpack.c.l.b16 %v6061
    %v7276 = vunpack.c.h.b16 %v6061
    %v7277 = vunpack.c.l.b16 %v6062
    %v7278 = vunpack.c.h.b16 %v6062
    %v7279 = vunpack.c.l.b16 %v6063
    %v7280 = vunpack.c.h.b16 %v6063
    %v7281 = vunpack.c.l.b16 %v6064
    %v7282 = vunpack.c.l.b16 %v6065
    %v7283 = vunpack.c.h.b16 %v6065
    %v7284 = vunpack.c.l.b16 %v6066
    %v7285 = vunpack.c.h.b16 %v6066
    %v7286 = vunpack.c.l.b16 %v6067
    %v7287 = vunpack.c.h.b16 %v6067
    %v7288 = vunpack.c.l.b16 %v6068
    %v7289 = vunpack.c.l.b16 %v6069
    %v7290 = vunpack.c.h.b16 %v6069
    %v7291 = vunpack.c.l.b16 %v6070
    %v7292 = vunpack.c.h.b16 %v6070
    %v7293 = vunpack.c.l.b16 %v6071
    %v7294 = vunpack.c.h.b16 %v6071
    %v7295 = vunpack.c.l.b16 %v6072
    %v7296 = vunpack.c.l.b16 %v6073
    %v7297 = vunpack.c.h.b16 %v6073
    %v7298 = vunpack.c.l.b16 %v6074
    %v7299 = vunpack.c.h.b16 %v6074
    %v7300 = vunpack.c.l.b16 %v6075
    %v7301 = vunpack.c.h.b16 %v6075
    %v7302 = vunpack.c.l.b16 %v6076
    %v7303 = vunpack.c.l.b16 %v6077
    %v7304 = vunpack.c.h.b16 %v6077
    %v7305 = vunpack.c.l.b16 %v6078
    %v7306 = vunpack.c.h.b16 %v6078
    %v7307 = vunpack.c.l.b16 %v6079
    %v7308 = vunpack.c.h.b16 %v6079
    %v7309 = vunpack.c.l.b16 %v6080
    %v7310 = vunpack.c.l.b16 %v6081
    %v7311 = vunpack.c.h.b16 %v6081
    %v7312 = vunpack.c.l.b16 %v6082
    %v7313 = vunpack.c.h.b16 %v6082
    %v7314 = vunpack.c.l.b16 %v6083
    %v7315 = vunpack.c.h.b16 %v6083
    %v7316 = vunpack.c.l.b16 %v6084
    %v7317 = vunpack.c.l.b16 %v6085
    %v7318 = vunpack.c.h.b16 %v6085
    %v7319 = vunpack.c.l.b16 %v6086
    %v7320 = vunpack.c.h.b16 %v6086
    %v7321 = vunpack.c.l.b16 %v6087
    %v7322 = vunpack.c.h.b16 %v6087
    %v7323 = vunpack.c.l.b16 %v6088
    %v7324 = vunpack.c.l.b16 %v6089
    %v7325 = vunpack.c.h.b16 %v6089
    %v7326 = vunpack.c.l.b16 %v6090
    %v7327 = vunpack.c.h.b16 %v6090
    %v7328 = vunpack.c.l.b16 %v6091
    %v7329 = vunpack.c.h.b16 %v6091
    %v7330 = vunpack.c.l.b16 %v6092
    %v7331 = vunpack.c.l.b16 %v6093
    %v7332 = vunpack.c.h.b16 %v6093
    %v7333 = vunpack.c.l.b16 %v6094
    %v7334 = vunpack.c.h.b16 %v6094
    %v7335 = vunpack.c.l.b16 %v6095
    %v7336 = vunpack.c.h.b16 %v6095
    %v7337 = vunpack.c.l.b16 %v6096
    %v7338 = vunpack.c.l.b16 %v6097
    %v7339 = vunpack.c.h.b16 %v6097
    %v7340 = vunpack.c.l.b16 %v6098
    %v7341 = vunpack.c.h.b16 %v6098
    %v7342 = vunpack.c.l.b16 %v6099
    %v7343 = vunpack.c.h.b16 %v6099
    %v7344 = vunpack.c.l.b16 %v6100
    %v7345 = vunpack.c.l.b16 %v6101
    %v7346 = vunpack.c.h.b16 %v6101
    %v7347 = vunpack.c.l.b16 %v6102
    %v7348 = vunpack.c.h.b16 %v6102
    %v7349 = vunpack.c.l.b16 %v6103
    %v7350 = vunpack.c.h.b16 %v6103
    %v7351 = vunpack.c.l.b16 %v6104
    %v7352 = vunpack.c.l.b16 %v6105
    %v7353 = vunpack.c.h.b16 %v6105
    %v7354 = vunpack.c.l.b16 %v6106
    %v7355 = vunpack.c.h.b16 %v6106
    %v7356 = vunpack.c.l.b16 %v6107
    %v7357 = vunpack.c.h.b16 %v6107
    %v7358 = vunpack.c.l.b16 %v6108
    %v7359 = vunpack.c.l.b16 %v6109
    %v7360 = vunpack.c.h.b16 %v6109
    %v7361 = vunpack.c.l.b16 %v6110
    %v7362 = vunpack.c.h.b16 %v6110
    %v7363 = vunpack.c.l.b16 %v6111
    %v7364 = vunpack.c.h.b16 %v6111
    %v7365 = vunpack.c.l.b16 %v6112
    %v7366 = vunpack.c.l.b16 %v6113
    %v7367 = vunpack.c.h.b16 %v6113
    %v7368 = vunpack.c.l.b16 %v6114
    %v7369 = vunpack.c.h.b16 %v6114
    %v7370 = vunpack.c.l.b16 %v6115
    %v7371 = vunpack.c.h.b16 %v6115
    %v7372 = vunpack.c.l.b16 %v6116
    %v7373 = vunpack.c.l.b16 %v6117
    %v7374 = vunpack.c.h.b16 %v6117
    %v7375 = vunpack.c.l.b16 %v6118
    %v7376 = vunpack.c.h.b16 %v6118
    %v7377 = vunpack.c.l.b16 %v6119
    %v7378 = vunpack.c.h.b16 %v6119
    %v7379 = vunpack.c.l.b16 %v6120
    %v7380 = vunpack.c.l.b16 %v6121
    %v7381 = vunpack.c.h.b16 %v6121
    %v7382 = vunpack.c.l.b16 %v6122
    %v7383 = vunpack.c.h.b16 %v6122
    %v7384 = vunpack.c.l.b16 %v6123
    %v7385 = vunpack.c.h.b16 %v6123
    %v7386 = vunpack.c.l.b16 %v6124
    %v7387 = vunpack.c.l.b16 %v6125
    %v7388 = vunpack.c.h.b16 %v6125
    %v7389 = vunpack.c.l.b16 %v6126
    %v7390 = vunpack.c.h.b16 %v6126
    %v7391 = vunpack.c.l.b16 %v6127
    %v7392 = vunpack.c.h.b16 %v6127
    %v7393 = vunpack.c.l.b16 %v6128
    %v7394 = vunpack.c.l.b16 %v6129
    %v7395 = vunpack.c.h.b16 %v6129
    %v7396 = vunpack.c.l.b16 %v6130
    %v7397 = vunpack.c.h.b16 %v6130
    %v7398 = vunpack.c.l.b16 %v6131
    %v7399 = vunpack.c.h.b16 %v6131
    %v7400 = vunpack.c.l.b16 %v6132
    %v7401 = vunpack.c.l.b16 %v6133
    %v7402 = vunpack.c.h.b16 %v6133
    %v7403 = vunpack.c.l.b16 %v6134
    %v7404 = vunpack.c.h.b16 %v6134
    %v7405 = vunpack.c.l.b16 %v6135
    %v7406 = vunpack.c.h.b16 %v6135
    %v7407 = vunpack.c.l.b16 %v6136
    %v7408 = vunpack.c.l.b16 %v6137
    %v7409 = vunpack.c.h.b16 %v6137
    %v7410 = vunpack.c.l.b16 %v6138
    %v7411 = vunpack.c.h.b16 %v6138
    %v7412 = vunpack.c.l.b16 %v6139
    %v7413 = vunpack.c.h.b16 %v6139
    %v7414 = vunpack.c.l.b16 %v6140
    %v7415 = vunpack.c.l.b16 %v6141
    %v7416 = vunpack.c.h.b16 %v6141
    %v7417 = vunpack.c.l.b16 %v6142
    %v7418 = vunpack.c.h.b16 %v6142
    %v7419 = vunpack.c.l.b16 %v6143
    %v7420 = vunpack.c.h.b16 %v6143
    %v7421 = vunpack.c.l.b16 %v6144
    %v7422 = vunpack.c.l.b16 %v6145
    %v7423 = vunpack.c.h.b16 %v6145
    %v7424 = vunpack.c.l.b16 %v6146
    %v7425 = vunpack.c.h.b16 %v6146
    %v7426 = vunpack.c.l.b16 %v6147
    %v7427 = vunpack.c.h.b16 %v6147
    %v7428 = vunpack.c.l.b16 %v6148
    %v7429 = vunpack.c.l.b16 %v6149
    %v7430 = vunpack.c.h.b16 %v6149
    %v7431 = vunpack.c.l.b16 %v6150
    %v7432 = vunpack.c.h.b16 %v6150
    %v7433 = vunpack.c.l.b16 %v6151
    %v7434 = vunpack.c.h.b16 %v6151
    %v7435 = vunpack.c.l.b16 %v6152
    %v7436 = vunpack.c.l.b16 %v6153
    %v7437 = vunpack.c.h.b16 %v6153
    %v7438 = vunpack.c.l.b16 %v6154
    %v7439 = vunpack.c.h.b16 %v6154
    %v7440 = vunpack.c.l.b16 %v6155
    %v7441 = vunpack.c.h.b16 %v6155
    %v7442 = vunpack.c.l.b16 %v6156
    %v7443 = vunpack.c.l.b16 %v6157
    %v7444 = vunpack.c.h.b16 %v6157
    %v7445 = vunpack.c.l.b16 %v6158
    %v7446 = vunpack.c.h.b16 %v6158
    %v7447 = vunpack.c.l.b16 %v6159
    %v7448 = vunpack.c.h.b16 %v6159
    %v7449 = vunpack.c.l.b16 %v6160
    %v7450 = vunpack.c.l.b16 %v6161
    %v7451 = vunpack.c.h.b16 %v6161
    %v7452 = vunpack.c.l.b16 %v6162
    %v7453 = vunpack.c.h.b16 %v6162
    %v7454 = vunpack.c.l.b16 %v6163
    %v7455 = vunpack.c.h.b16 %v6163
    %v7456 = vunpack.c.l.b16 %v6164
    %v7457 = vunpack.c.l.b16 %v6165
    %v7458 = vunpack.c.h.b16 %v6165
    %v7459 = vunpack.c.l.b16 %v6166
    %v7460 = vunpack.c.h.b16 %v6166
    %v7461 = vunpack.c.l.b16 %v6167
    %v7462 = vunpack.c.h.b16 %v6167
    %v7463 = vunpack.c.l.b16 %v6168
    %v7464 = vunpack.c.l.b16 %v6169
    %v7465 = vunpack.c.h.b16 %v6169
    %v7466 = vunpack.c.l.b16 %v6170
    %v7467 = vunpack.c.h.b16 %v6170
    %v7468 = vunpack.c.l.b16 %v6171
    %v7469 = vunpack.c.h.b16 %v6171
    %v7470 = vunpack.c.l.b16 %v6172
    %v7471 = vunpack.c.l.b16 %v6173
    %v7472 = vunpack.c.h.b16 %v6173
    %v7473 = vunpack.c.l.b16 %v6174
    %v7474 = vunpack.c.h.b16 %v6174
    %v7475 = vunpack.c.l.b16 %v6175
    %v7476 = vunpack.c.h.b16 %v6175
    %v7477 = vunpack.c.l.b16 %v6176
    %v7478 = vunpack.c.l.b16 %v6177
    %v7479 = vunpack.c.h.b16 %v6177
    %v7480 = vunpack.c.l.b16 %v6178
    %v7481 = vunpack.c.h.b16 %v6178
    %v7482 = vunpack.c.l.b16 %v6179
    %v7483 = vunpack.c.h.b16 %v6179
    %v7484 = vunpack.c.l.b16 %v6180
    %v7485 = vunpack.c.l.b16 %v6181
    %v7486 = vunpack.c.h.b16 %v6181
    %v7487 = vunpack.c.l.b16 %v6182
    %v7488 = vunpack.c.h.b16 %v6182
    %v7489 = vunpack.c.l.b16 %v6183
    %v7490 = vunpack.c.h.b16 %v6183
    %v7491 = vunpack.c.l.b16 %v6184
    %v7492 = vunpack.c.l.b16 %v6185
    %v7493 = vunpack.c.h.b16 %v6185
    %v7494 = vunpack.c.l.b16 %v6186
    %v7495 = vunpack.c.h.b16 %v6186
    %v7496 = vunpack.c.l.b16 %v6187
    %v7497 = vunpack.c.h.b16 %v6187
    %v7498 = vunpack.c.l.b16 %v6188
    %v7499 = vunpack.c.l.b16 %v6189
    %v7500 = vunpack.c.h.b16 %v6189
    %v7501 = vunpack.c.l.b16 %v6190
    %v7502 = vunpack.c.h.b16 %v6190
    %v7503 = vunpack.c.l.b16 %v6191
    %v7504 = vunpack.c.h.b16 %v6191
    %v7505 = vunpack.c.l.b16 %v6192
    %v7506 = vunpack.c.l.b16 %v6193
    %v7507 = vunpack.c.h.b16 %v6193
    %v7508 = vunpack.c.l.b16 %v6194
    %v7509 = vunpack.c.h.b16 %v6194
    %v7510 = vunpack.c.l.b16 %v6195
    %v7511 = vunpack.c.h.b16 %v6195
    %v7512 = vunpack.c.l.b16 %v6196
    %v7513 = vunpack.c.l.b16 %v6197
    %v7514 = vunpack.c.h.b16 %v6197
    %v7515 = vunpack.c.l.b16 %v6198
    %v7516 = vunpack.c.h.b16 %v6198
    %v7517 = vunpack.c.l.b16 %v6199
    %v7518 = vunpack.c.h.b16 %v6199
    %v7519 = vunpack.c.l.b16 %v6200
    %v7520 = vunpack.c.l.b16 %v6201
    %v7521 = vunpack.c.h.b16 %v6201
    %v7522 = vunpack.c.l.b16 %v6202
    %v7523 = vunpack.c.h.b16 %v6202
    %v7524 = vunpack.c.l.b16 %v6203
    %v7525 = vunpack.c.h.b16 %v6203
    %v7526 = vunpack.c.l.b16 %v6204
    %v7527 = vunpack.c.l.b16 %v6205
    %v7528 = vunpack.c.h.b16 %v6205
    %v7529 = vunpack.c.l.b16 %v6206
    %v7530 = vunpack.c.h.b16 %v6206
    %v7531 = vunpack.c.l.b16 %v6207
    %v7532 = vunpack.c.h.b16 %v6207
    %v7533 = vunpack.c.l.b16 %v6208
    %v7534 = vunpack.c.l.b16 %v6209
    %v7535 = vunpack.c.h.b16 %v6209
    %v7536 = vunpack.c.l.b16 %v6210
    %v7537 = vunpack.c.h.b16 %v6210
    %v7538 = vunpack.c.l.b16 %v6211
    %v7539 = vunpack.c.h.b16 %v6211
    %v7540 = vunpack.c.l.b16 %v6212
    %v7541 = vunpack.c.l.b16 %v6213
    %v7542 = vunpack.c.h.b16 %v6213
    %v7543 = vunpack.c.l.b16 %v6214
    %v7544 = vunpack.c.h.b16 %v6214
    %v7545 = vunpack.c.l.b16 %v6215
    %v7546 = vunpack.c.h.b16 %v6215
    %v7547 = vunpack.c.l.b16 %v6216
    %v7548 = vunpack.c.l.b16 %v6217
    %v7549 = vunpack.c.h.b16 %v6217
    %v7550 = vunpack.c.l.b16 %v6218
    %v7551 = vunpack.c.h.b16 %v6218
    %v7552 = vunpack.c.l.b16 %v6219
    %v7553 = vunpack.c.h.b16 %v6219
    %v7554 = vunpack.c.l.b16 %v6220
    %v7555 = vunpack.c.l.b16 %v6221
    %v7556 = vunpack.c.h.b16 %v6221
    %v7557 = vunpack.c.l.b16 %v6222
    %v7558 = vunpack.c.h.b16 %v6222
    %v7559 = vunpack.c.l.b16 %v6223
    %v7560 = vunpack.c.h.b16 %v6223
    %v7561 = vunpack.c.l.b16 %v6224
    %v7562 = vunpack.c.l.b16 %v6225
    %v7563 = vunpack.c.h.b16 %v6225
    %v7564 = vunpack.c.l.b16 %v6226
    %v7565 = vunpack.c.h.b16 %v6226
    %v7566 = vunpack.c.l.b16 %v6227
    %v7567 = vunpack.c.h.b16 %v6227
    %v7568 = vunpack.c.l.b16 %v6228
    %v7569 = vunpack.c.l.b16 %v6229
    %v7570 = vunpack.c.h.b16 %v6229
    %v7571 = vunpack.c.l.b16 %v6230
    %v7572 = vunpack.c.h.b16 %v6230
    %v7573 = vunpack.c.l.b16 %v6231
    %v7574 = vunpack.c.h.b16 %v6231
    %v7575 = vunpack.c.l.b16 %v6232
    %v7576 = vunpack.c.l.b16 %v6233
    %v7577 = vunpack.c.h.b16 %v6233
    %v7578 = vunpack.c.l.b16 %v6234
    %v7579 = vunpack.c.h.b16 %v6234
    %v7580 = vunpack.c.l.b16 %v6235
    %v7581 = vunpack.c.h.b16 %v6235
    %v7582 = vunpack.c.l.b16 %v6236
    %v7583 = vunpack.c.l.b16 %v6237
    %v7584 = vunpack.c.h.b16 %v6237
    %v7585 = vunpack.c.l.b16 %v6238
    %v7586 = vunpack.c.h.b16 %v6238
    %v7587 = vunpack.c.l.b16 %v6239
    %v7588 = vunpack.c.h.b16 %v6239
    %v7589 = vunpack.c.l.b16 %v6240
    %v7590 = vunpack.c.l.b16 %v6241
    %v7591 = vunpack.c.h.b16 %v6241
    %v7592 = vunpack.c.l.b16 %v6242
    %v7593 = vunpack.c.h.b16 %v6242
    %v7594 = vunpack.c.l.b16 %v6243
    %v7595 = vunpack.c.h.b16 %v6243
    %v7596 = vunpack.c.l.b16 %v6244
    %v7597 = vunpack.c.l.b16 %v6245
    %v7598 = vunpack.c.h.b16 %v6245
    %v7599 = vunpack.c.l.b16 %v6246
    %v7600 = vunpack.c.h.b16 %v6246
    %v7601 = vunpack.c.l.b16 %v6247
    %v7602 = vunpack.c.h.b16 %v6247
    %v7603 = vunpack.c.l.b16 %v6248
    %v7604 = vunpack.c.l.b16 %v6249
    %v7605 = vunpack.c.h.b16 %v6249
    %v7606 = vunpack.c.l.b16 %v6250
    %v7607 = vunpack.c.h.b16 %v6250
    %v7608 = vunpack.c.l.b16 %v6251
    %v7609 = vunpack.c.h.b16 %v6251
    %v7610 = vunpack.c.l.b16 %v6252
    %v7611 = vunpack.c.l.b16 %v6253
    %v7612 = vunpack.c.h.b16 %v6253
    %v7613 = vunpack.c.l.b16 %v6254
    %v7614 = vunpack.c.h.b16 %v6254
    %v7615 = vunpack.c.l.b16 %v6255
    %v7616 = vunpack.c.h.b16 %v6255
    %v7617 = vunpack.c.l.b16 %v6256
    %v7618 = vunpack.c.l.b16 %v6257
    %v7619 = vunpack.c.h.b16 %v6257
    %v7620 = vunpack.c.l.b16 %v6258
    %v7621 = vunpack.c.h.b16 %v6258
    %v7622 = vunpack.c.l.b16 %v6259
    %v7623 = vunpack.c.h.b16 %v6259
    %v7624 = vunpack.c.l.b16 %v6260
    %v7625 = vunpack.c.l.b16 %v6261
    %v7626 = vunpack.c.h.b16 %v6261
    %v7627 = vunpack.c.l.b16 %v6262
    %v7628 = vunpack.c.h.b16 %v6262
    %v7629 = vunpack.c.l.b16 %v6263
    %v7630 = vunpack.c.h.b16 %v6263
    %v7631 = vunpack.c.l.b16 %v6264
    %v7632 = vunpack.c.l.b16 %v6265
    %v7633 = vunpack.c.h.b16 %v6265
    %v7634 = vunpack.c.l.b16 %v6266
    %v7635 = vunpack.c.h.b16 %v6266
    %v7636 = vunpack.c.l.b16 %v6267
    %v7637 = vunpack.c.h.b16 %v6267
    %v7638 = vunpack.c.l.b16 %v6268
    %v7639 = vunpack.c.l.b16 %v6269
    %v7640 = vunpack.c.h.b16 %v6269
    %v7641 = vunpack.c.l.b16 %v6270
    %v7642 = vunpack.c.h.b16 %v6270
    %v7643 = vunpack.c.l.b16 %v6271
    %v7644 = vunpack.c.h.b16 %v6271
    %v7645 = vunpack.c.l.b16 %v6272
    %v7646 = vunpack.c.l.b16 %v6273
    %v7647 = vunpack.c.h.b16 %v6273
    %v7648 = vunpack.c.l.b16 %v6274
    %v7649 = vunpack.c.h.b16 %v6274
    %v7650 = vunpack.c.l.b16 %v6275
    %v7651 = vunpack.c.h.b16 %v6275
    %v7652 = vunpack.c.l.b16 %v6276
    %v7653 = vunpack.c.l.b16 %v6277
    %v7654 = vunpack.c.h.b16 %v6277
    %v7655 = vunpack.c.l.b16 %v6278
    %v7656 = vunpack.c.h.b16 %v6278
    %v7657 = vunpack.c.l.b16 %v6279
    %v7658 = vunpack.c.h.b16 %v6279
    %v7659 = vunpack.c.l.b16 %v6280
    %v7660 = vunpack.c.l.b16 %v6281
    %v7661 = vunpack.c.h.b16 %v6281
    %v7662 = vunpack.c.l.b16 %v6282
    %v7663 = vunpack.c.h.b16 %v6282
    %v7664 = vunpack.c.l.b16 %v6283
    %v7665 = vunpack.c.h.b16 %v6283
    %v7666 = vunpack.c.l.b16 %v6284
    %v7667 = vunpack.c.l.b16 %v6285
    %v7668 = vunpack.c.h.b16 %v6285
    %v7669 = vunpack.c.l.b16 %v6286
    %v7670 = vunpack.c.h.b16 %v6286
    %v7671 = vunpack.c.l.b16 %v6287
    %v7672 = vunpack.c.h.b16 %v6287
    %v7673 = vunpack.c.l.b16 %v6288
    %v7674 = vunpack.c.l.b16 %v6289
    %v7675 = vunpack.c.h.b16 %v6289
    %v7676 = vunpack.c.l.b16 %v6290
    %v7677 = vunpack.c.h.b16 %v6290
    %v7678 = vunpack.c.l.b16 %v6291
    %v7679 = vunpack.c.h.b16 %v6291
    %v7680 = vunpack.c.l.b16 %v6292
    %v7681 = vunpack.c.l.b16 %v6293
    %v7682 = vunpack.c.h.b16 %v6293
    %v7683 = vunpack.c.l.b16 %v6294
    %v7684 = vunpack.c.h.b16 %v6294
    %v7685 = vunpack.c.l.b16 %v6295
    %v7686 = vunpack.c.h.b16 %v6295
    %v7687 = vunpack.c.l.b16 %v6296
    %v7688 = vunpack.c.l.b16 %v6297
    %v7689 = vunpack.c.h.b16 %v6297
    %v7690 = vunpack.c.l.b16 %v6298
    %v7691 = vunpack.c.h.b16 %v6298
    %v7692 = vunpack.c.l.b16 %v6299
    %v7693 = vunpack.c.h.b16 %v6299
    %v7694 = vunpack.c.l.b16 %v6300
    %v7695 = vunpack.c.l.b16 %v6301
    %v7696 = vunpack.c.h.b16 %v6301
    %v7697 = vunpack.c.l.b16 %v6302
    %v7698 = vunpack.c.h.b16 %v6302
    %v7699 = vunpack.c.l.b16 %v6303
    %v7700 = vunpack.c.h.b16 %v6303
    %v7701 = vunpack.c.l.b16 %v6304
    %v7702 = vunpack.c.l.b16 %v6305
    %v7703 = vunpack.c.h.b16 %v6305
    %v7704 = vunpack.c.l.b16 %v6306
    %v7705 = vunpack.c.h.b16 %v6306
    %v7706 = vunpack.c.l.b16 %v6307
    %v7707 = vunpack.c.h.b16 %v6307
    %v7708 = vunpack.c.l.b16 %v6308
    %v7709 = vunpack.c.l.b16 %v6309
    %v7710 = vunpack.c.h.b16 %v6309
    %v7711 = vunpack.c.l.b16 %v6310
    %v7712 = vunpack.c.h.b16 %v6310
    %v7713 = vunpack.c.l.b16 %v6311
    %v7714 = vunpack.c.h.b16 %v6311
    %v7715 = vunpack.c.l.b16 %v6312
    %v7716 = vunpack.c.l.b16 %v6313
    %v7717 = vunpack.c.h.b16 %v6313
    %v7718 = vunpack.c.l.b16 %v6314
    %v7719 = vunpack.c.h.b16 %v6314
    %v7720 = vunpack.c.l.b16 %v6315
    %v7721 = vunpack.c.h.b16 %v6315
    %v7722 = vunpack.c.l.b16 %v6316
    %v7723 = vunpack.c.l.b16 %v6317
    %v7724 = vunpack.c.h.b16 %v6317
    %v7725 = vunpack.c.l.b16 %v6318
    %v7726 = vunpack.c.h.b16 %v6318
    %v7727 = vunpack.c.l.b16 %v6319
    %v7728 = vunpack.c.h.b16 %v6319
    %v7729 = vunpack.c.l.b16 %v6320
    %v7730 = vunpack.c.l.b16 %v6321
    %v7731 = vunpack.c.h.b16 %v6321
    %v7732 = vunpack.c.l.b16 %v6322
    %v7733 = vunpack.c.h.b16 %v6322
    %v7734 = vunpack.c.l.b16 %v6323
    %v7735 = vunpack.c.h.b16 %v6323
    %v7736 = vunpack.c.l.b16 %v6324
    %v7737 = vunpack.c.l.b16 %v6325
    %v7738 = vunpack.c.h.b16 %v6325
    %v7739 = vunpack.c.l.b16 %v6326
    %v7740 = vunpack.c.h.b16 %v6326
    %v7741 = vunpack.c.l.b16 %v6327
    %v7742 = vunpack.c.h.b16 %v6327
    %v7743 = vunpack.c.l.b16 %v6328
    %v7744 = vunpack.c.l.b16 %v6329
    %v7745 = vunpack.c.h.b16 %v6329
    %v7746 = vunpack.c.l.b16 %v6330
    %v7747 = vunpack.c.h.b16 %v6330
    %v7748 = vunpack.c.l.b16 %v6331
    %v7749 = vunpack.c.h.b16 %v6331
    %v7750 = vunpack.c.l.b16 %v6332
    %v7751 = vunpack.c.l.b16 %v6333
    %v7752 = vunpack.c.h.b16 %v6333
    %v7753 = vunpack.c.l.b16 %v6334
    %v7754 = vunpack.c.h.b16 %v6334
    %v7755 = vunpack.c.l.b16 %v6335
    %v7756 = vunpack.c.h.b16 %v6335
    %v7757 = vunpack.c.l.b16 %v6336
    %v7758 = vunpack.c.l.b16 %v6337
    %v7759 = vunpack.c.h.b16 %v6337
    %v7760 = vunpack.c.l.b16 %v6338
    %v7761 = vunpack.c.h.b16 %v6338
    %v7762 = vunpack.c.l.b16 %v6339
    %v7763 = vunpack.c.h.b16 %v6339
    %v7764 = vunpack.c.l.b16 %v6340
    %v7765 = vpack.c.b16 %v6876, %v6869
    %v7766 = vpack.c.b16 %v6877, %v6870
    %v7767 = vpack.c.b16 %v6878, %v6871
    %v7768 = vpack.c.b16 %v6879, %v6872
    %v7769 = vpack.c.b16 %v6880, %v6873
    %v7770 = vpack.c.b16 %v6881, %v6874
    %v7771 = vpack.c.b16 %v6882, %v6875
    %v7772 = vpack.c.b16 %v6890, %v6883
    %v7773 = vpack.c.b16 %v6891, %v6884
    %v7774 = vpack.c.b16 %v6892, %v6885
    %v7775 = vpack.c.b16 %v6893, %v6886
    %v7776 = vpack.c.b16 %v6894, %v6887
    %v7777 = vpack.c.b16 %v6895, %v6888
    %v7778 = vpack.c.b16 %v6896, %v6889
    %v7779 = vpack.c.b16 %v6904, %v6897
    %v7780 = vpack.c.b16 %v6905, %v6898
    %v7781 = vpack.c.b16 %v6906, %v6899
    %v7782 = vpack.c.b16 %v6907, %v6900
    %v7783 = vpack.c.b16 %v6908, %v6901
    %v7784 = vpack.c.b16 %v6909, %v6902
    %v7785 = vpack.c.b16 %v6910, %v6903
    %v7786 = vpack.c.b16 %v6918, %v6911
    %v7787 = vpack.c.b16 %v6919, %v6912
    %v7788 = vpack.c.b16 %v6920, %v6913
    %v7789 = vpack.c.b16 %v6921, %v6914
    %v7790 = vpack.c.b16 %v6922, %v6915
    %v7791 = vpack.c.b16 %v6923, %v6916
    %v7792 = vpack.c.b16 %v6924, %v6917
    %v7793 = vpack.c.b16 %v6932, %v6925
    %v7794 = vpack.c.b16 %v6933, %v6926
    %v7795 = vpack.c.b16 %v6934, %v6927
    %v7796 = vpack.c.b16 %v6935, %v6928
    %v7797 = vpack.c.b16 %v6936, %v6929
    %v7798 = vpack.c.b16 %v6937, %v6930
    %v7799 = vpack.c.b16 %v6938, %v6931
    %v7800 = vpack.c.b16 %v6946, %v6939
    %v7801 = vpack.c.b16 %v6947, %v6940
    %v7802 = vpack.c.b16 %v6948, %v6941
    %v7803 = vpack.c.b16 %v6949, %v6942
    %v7804 = vpack.c.b16 %v6950, %v6943
    %v7805 = vpack.c.b16 %v6951, %v6944
    %v7806 = vpack.c.b16 %v6952, %v6945
    %v7807 = vpack.c.b16 %v6960, %v6953
    %v7808 = vpack.c.b16 %v6961, %v6954
    %v7809 = vpack.c.b16 %v6962, %v6955
    %v7810 = vpack.c.b16 %v6963, %v6956
    %v7811 = vpack.c.b16 %v6964, %v6957
    %v7812 = vpack.c.b16 %v6965, %v6958
    %v7813 = vpack.c.b16 %v6966, %v6959
    %v7814 = vpack.c.b16 %v6974, %v6967
    %v7815 = vpack.c.b16 %v6975, %v6968
    %v7816 = vpack.c.b16 %v6976, %v6969
    %v7817 = vpack.c.b16 %v6977, %v6970
    %v7818 = vpack.c.b16 %v6978, %v6971
    %v7819 = vpack.c.b16 %v6979, %v6972
    %v7820 = vpack.c.b16 %v6980, %v6973
    %v7821 = vpack.c.b16 %v6988, %v6981
    %v7822 = vpack.c.b16 %v6989, %v6982
    %v7823 = vpack.c.b16 %v6990, %v6983
    %v7824 = vpack.c.b16 %v6991, %v6984
    %v7825 = vpack.c.b16 %v6992, %v6985
    %v7826 = vpack.c.b16 %v6993, %v6986
    %v7827 = vpack.c.b16 %v6994, %v6987
    %v7828 = vpack.c.b16 %v7002, %v6995
    %v7829 = vpack.c.b16 %v7003, %v6996
    %v7830 = vpack.c.b16 %v7004, %v6997
    %v7831 = vpack.c.b16 %v7005, %v6998
    %v7832 = vpack.c.b16 %v7006, %v6999
    %v7833 = vpack.c.b16 %v7007, %v7000
    %v7834 = vpack.c.b16 %v7008, %v7001
    %v7835 = vpack.c.b16 %v7016, %v7009
    %v7836 = vpack.c.b16 %v7017, %v7010
    %v7837 = vpack.c.b16 %v7018, %v7011
    %v7838 = vpack.c.b16 %v7019, %v7012
    %v7839 = vpack.c.b16 %v7020, %v7013
    %v7840 = vpack.c.b16 %v7021, %v7014
    %v7841 = vpack.c.b16 %v7022, %v7015
    %v7842 = vpack.c.b16 %v7030, %v7023
    %v7843 = vpack.c.b16 %v7031, %v7024
    %v7844 = vpack.c.b16 %v7032, %v7025
    %v7845 = vpack.c.b16 %v7033, %v7026
    %v7846 = vpack.c.b16 %v7034, %v7027
    %v7847 = vpack.c.b16 %v7035, %v7028
    %v7848 = vpack.c.b16 %v7036, %v7029
    %v7849 = vpack.c.b16 %v7044, %v7037
    %v7850 = vpack.c.b16 %v7045, %v7038
    %v7851 = vpack.c.b16 %v7046, %v7039
    %v7852 = vpack.c.b16 %v7047, %v7040
    %v7853 = vpack.c.b16 %v7048, %v7041
    %v7854 = vpack.c.b16 %v7049, %v7042
    %v7855 = vpack.c.b16 %v7050, %v7043
    %v7856 = vpack.c.b16 %v7058, %v7051
    %v7857 = vpack.c.b16 %v7059, %v7052
    %v7858 = vpack.c.b16 %v7060, %v7053
    %v7859 = vpack.c.b16 %v7061, %v7054
    %v7860 = vpack.c.b16 %v7062, %v7055
    %v7861 = vpack.c.b16 %v7063, %v7056
    %v7862 = vpack.c.b16 %v7064, %v7057
    %v7863 = vpack.c.b16 %v7072, %v7065
    %v7864 = vpack.c.b16 %v7073, %v7066
    %v7865 = vpack.c.b16 %v7074, %v7067
    %v7866 = vpack.c.b16 %v7075, %v7068
    %v7867 = vpack.c.b16 %v7076, %v7069
    %v7868 = vpack.c.b16 %v7077, %v7070
    %v7869 = vpack.c.b16 %v7078, %v7071
    %v7870 = vpack.c.b16 %v7086, %v7079
    %v7871 = vpack.c.b16 %v7087, %v7080
    %v7872 = vpack.c.b16 %v7088, %v7081
    %v7873 = vpack.c.b16 %v7089, %v7082
    %v7874 = vpack.c.b16 %v7090, %v7083
    %v7875 = vpack.c.b16 %v7091, %v7084
    %v7876 = vpack.c.b16 %v7092, %v7085
    %v7877 = vpack.c.b16 %v7100, %v7093
    %v7878 = vpack.c.b16 %v7101, %v7094
    %v7879 = vpack.c.b16 %v7102, %v7095
    %v7880 = vpack.c.b16 %v7103, %v7096
    %v7881 = vpack.c.b16 %v7104, %v7097
    %v7882 = vpack.c.b16 %v7105, %v7098
    %v7883 = vpack.c.b16 %v7106, %v7099
    %v7884 = vpack.c.b16 %v7114, %v7107
    %v7885 = vpack.c.b16 %v7115, %v7108
    %v7886 = vpack.c.b16 %v7116, %v7109
    %v7887 = vpack.c.b16 %v7117, %v7110
    %v7888 = vpack.c.b16 %v7118, %v7111
    %v7889 = vpack.c.b16 %v7119, %v7112
    %v7890 = vpack.c.b16 %v7120, %v7113
    %v7891 = vpack.c.b16 %v7128, %v7121
    %v7892 = vpack.c.b16 %v7129, %v7122
    %v7893 = vpack.c.b16 %v7130, %v7123
    %v7894 = vpack.c.b16 %v7131, %v7124
    %v7895 = vpack.c.b16 %v7132, %v7125
    %v7896 = vpack.c.b16 %v7133, %v7126
    %v7897 = vpack.c.b16 %v7134, %v7127
    %v7898 = vpack.c.b16 %v7142, %v7135
    %v7899 = vpack.c.b16 %v7143, %v7136
    %v7900 = vpack.c.b16 %v7144, %v7137
    %v7901 = vpack.c.b16 %v7145, %v7138
    %v7902 = vpack.c.b16 %v7146, %v7139
    %v7903 = vpack.c.b16 %v7147, %v7140
    %v7904 = vpack.c.b16 %v7148, %v7141
    %v7905 = vpack.c.b16 %v7156, %v7149
    %v7906 = vpack.c.b16 %v7157, %v7150
    %v7907 = vpack.c.b16 %v7158, %v7151
    %v7908 = vpack.c.b16 %v7159, %v7152
    %v7909 = vpack.c.b16 %v7160, %v7153
    %v7910 = vpack.c.b16 %v7161, %v7154
    %v7911 = vpack.c.b16 %v7162, %v7155
    %v7912 = vpack.c.b16 %v7170, %v7163
    %v7913 = vpack.c.b16 %v7171, %v7164
    %v7914 = vpack.c.b16 %v7172, %v7165
    %v7915 = vpack.c.b16 %v7173, %v7166
    %v7916 = vpack.c.b16 %v7174, %v7167
    %v7917 = vpack.c.b16 %v7175, %v7168
    %v7918 = vpack.c.b16 %v7176, %v7169
    %v7919 = vpack.c.b16 %v7184, %v7177
    %v7920 = vpack.c.b16 %v7185, %v7178
    %v7921 = vpack.c.b16 %v7186, %v7179
    %v7922 = vpack.c.b16 %v7187, %v7180
    %v7923 = vpack.c.b16 %v7188, %v7181
    %v7924 = vpack.c.b16 %v7189, %v7182
    %v7925 = vpack.c.b16 %v7190, %v7183
    %v7926 = vpack.c.b16 %v7198, %v7191
    %v7927 = vpack.c.b16 %v7199, %v7192
    %v7928 = vpack.c.b16 %v7200, %v7193
    %v7929 = vpack.c.b16 %v7201, %v7194
    %v7930 = vpack.c.b16 %v7202, %v7195
    %v7931 = vpack.c.b16 %v7203, %v7196
    %v7932 = vpack.c.b16 %v7204, %v7197
    %v7933 = vpack.c.b16 %v7212, %v7205
    %v7934 = vpack.c.b16 %v7213, %v7206
    %v7935 = vpack.c.b16 %v7214, %v7207
    %v7936 = vpack.c.b16 %v7215, %v7208
    %v7937 = vpack.c.b16 %v7216, %v7209
    %v7938 = vpack.c.b16 %v7217, %v7210
    %v7939 = vpack.c.b16 %v7218, %v7211
    %v7940 = vpack.c.b16 %v7226, %v7219
    %v7941 = vpack.c.b16 %v7227, %v7220
    %v7942 = vpack.c.b16 %v7228, %v7221
    %v7943 = vpack.c.b16 %v7229, %v7222
    %v7944 = vpack.c.b16 %v7230, %v7223
    %v7945 = vpack.c.b16 %v7231, %v7224
    %v7946 = vpack.c.b16 %v7232, %v7225
    %v7947 = vpack.c.b16 %v7240, %v7233
    %v7948 = vpack.c.b16 %v7241, %v7234
    %v7949 = vpack.c.b16 %v7242, %v7235
    %v7950 = vpack.c.b16 %v7243, %v7236
    %v7951 = vpack.c.b16 %v7244, %v7237
    %v7952 = vpack.c.b16 %v7245, %v7238
    %v7953 = vpack.c.b16 %v7246, %v7239
    %v7954 = vpack.c.b16 %v7254, %v7247
    %v7955 = vpack.c.b16 %v7255, %v7248
    %v7956 = vpack.c.b16 %v7256, %v7249
    %v7957 = vpack.c.b16 %v7257, %v7250
    %v7958 = vpack.c.b16 %v7258, %v7251
    %v7959 = vpack.c.b16 %v7259, %v7252
    %v7960 = vpack.c.b16 %v7260, %v7253
    %v7961 = vpack.c.b16 %v7268, %v7261
    %v7962 = vpack.c.b16 %v7269, %v7262
    %v7963 = vpack.c.b16 %v7270, %v7263
    %v7964 = vpack.c.b16 %v7271, %v7264
    %v7965 = vpack.c.b16 %v7272, %v7265
    %v7966 = vpack.c.b16 %v7273, %v7266
    %v7967 = vpack.c.b16 %v7274, %v7267
    %v7968 = vpack.c.b16 %v7282, %v7275
    %v7969 = vpack.c.b16 %v7283, %v7276
    %v7970 = vpack.c.b16 %v7284, %v7277
    %v7971 = vpack.c.b16 %v7285, %v7278
    %v7972 = vpack.c.b16 %v7286, %v7279
    %v7973 = vpack.c.b16 %v7287, %v7280
    %v7974 = vpack.c.b16 %v7288, %v7281
    %v7975 = vpack.c.b16 %v7296, %v7289
    %v7976 = vpack.c.b16 %v7297, %v7290
    %v7977 = vpack.c.b16 %v7298, %v7291
    %v7978 = vpack.c.b16 %v7299, %v7292
    %v7979 = vpack.c.b16 %v7300, %v7293
    %v7980 = vpack.c.b16 %v7301, %v7294
    %v7981 = vpack.c.b16 %v7302, %v7295
    %v7982 = vpack.c.b16 %v7310, %v7303
    %v7983 = vpack.c.b16 %v7311, %v7304
    %v7984 = vpack.c.b16 %v7312, %v7305
    %v7985 = vpack.c.b16 %v7313, %v7306
    %v7986 = vpack.c.b16 %v7314, %v7307
    %v7987 = vpack.c.b16 %v7315, %v7308
    %v7988 = vpack.c.b16 %v7316, %v7309
    %v7989 = vpack.c.b16 %v7324, %v7317
    %v7990 = vpack.c.b16 %v7325, %v7318
    %v7991 = vpack.c.b16 %v7326, %v7319
    %v7992 = vpack.c.b16 %v7327, %v7320
    %v7993 = vpack.c.b16 %v7328, %v7321
    %v7994 = vpack.c.b16 %v7329, %v7322
    %v7995 = vpack.c.b16 %v7330, %v7323
    %v7996 = vpack.c.b16 %v7338, %v7331
    %v7997 = vpack.c.b16 %v7339, %v7332
    %v7998 = vpack.c.b16 %v7340, %v7333
    %v7999 = vpack.c.b16 %v7341, %v7334
    %v8000 = vpack.c.b16 %v7342, %v7335
    %v8001 = vpack.c.b16 %v7343, %v7336
    %v8002 = vpack.c.b16 %v7344, %v7337
    %v8003 = vpack.c.b16 %v7352, %v7345
    %v8004 = vpack.c.b16 %v7353, %v7346
    %v8005 = vpack.c.b16 %v7354, %v7347
    %v8006 = vpack.c.b16 %v7355, %v7348
    %v8007 = vpack.c.b16 %v7356, %v7349
    %v8008 = vpack.c.b16 %v7357, %v7350
    %v8009 = vpack.c.b16 %v7358, %v7351
    %v8010 = vpack.c.b16 %v7366, %v7359
    %v8011 = vpack.c.b16 %v7367, %v7360
    %v8012 = vpack.c.b16 %v7368, %v7361
    %v8013 = vpack.c.b16 %v7369, %v7362
    %v8014 = vpack.c.b16 %v7370, %v7363
    %v8015 = vpack.c.b16 %v7371, %v7364
    %v8016 = vpack.c.b16 %v7372, %v7365
    %v8017 = vpack.c.b16 %v7380, %v7373
    %v8018 = vpack.c.b16 %v7381, %v7374
    %v8019 = vpack.c.b16 %v7382, %v7375
    %v8020 = vpack.c.b16 %v7383, %v7376
    %v8021 = vpack.c.b16 %v7384, %v7377
    %v8022 = vpack.c.b16 %v7385, %v7378
    %v8023 = vpack.c.b16 %v7386, %v7379
    %v8024 = vpack.c.b16 %v7394, %v7387
    %v8025 = vpack.c.b16 %v7395, %v7388
    %v8026 = vpack.c.b16 %v7396, %v7389
    %v8027 = vpack.c.b16 %v7397, %v7390
    %v8028 = vpack.c.b16 %v7398, %v7391
    %v8029 = vpack.c.b16 %v7399, %v7392
    %v8030 = vpack.c.b16 %v7400, %v7393
    %v8031 = vpack.c.b16 %v7408, %v7401
    %v8032 = vpack.c.b16 %v7409, %v7402
    %v8033 = vpack.c.b16 %v7410, %v7403
    %v8034 = vpack.c.b16 %v7411, %v7404
    %v8035 = vpack.c.b16 %v7412, %v7405
    %v8036 = vpack.c.b16 %v7413, %v7406
    %v8037 = vpack.c.b16 %v7414, %v7407
    %v8038 = vpack.c.b16 %v7422, %v7415
    %v8039 = vpack.c.b16 %v7423, %v7416
    %v8040 = vpack.c.b16 %v7424, %v7417
    %v8041 = vpack.c.b16 %v7425, %v7418
    %v8042 = vpack.c.b16 %v7426, %v7419
    %v8043 = vpack.c.b16 %v7427, %v7420
    %v8044 = vpack.c.b16 %v7428, %v7421
    %v8045 = vpack.c.b16 %v7436, %v7429
    %v8046 = vpack.c.b16 %v7437, %v7430
    %v8047 = vpack.c.b16 %v7438, %v7431
    %v8048 = vpack.c.b16 %v7439, %v7432
    %v8049 = vpack.c.b16 %v7440, %v7433
    %v8050 = vpack.c.b16 %v7441, %v7434
    %v8051 = vpack.c.b16 %v7442, %v7435
    %v8052 = vpack.c.b16 %v7450, %v7443
    %v8053 = vpack.c.b16 %v7451, %v7444
    %v8054 = vpack.c.b16 %v7452, %v7445
    %v8055 = vpack.c.b16 %v7453, %v7446
    %v8056 = vpack.c.b16 %v7454, %v7447
    %v8057 = vpack.c.b16 %v7455, %v7448
    %v8058 = vpack.c.b16 %v7456, %v7449
    %v8059 = vpack.c.b16 %v7464, %v7457
    %v8060 = vpack.c.b16 %v7465, %v7458
    %v8061 = vpack.c.b16 %v7466, %v7459
    %v8062 = vpack.c.b16 %v7467, %v7460
    %v8063 = vpack.c.b16 %v7468, %v7461
    %v8064 = vpack.c.b16 %v7469, %v7462
    %v8065 = vpack.c.b16 %v7470, %v7463
    %v8066 = vpack.c.b16 %v7478, %v7471
    %v8067 = vpack.c.b16 %v7479, %v7472
    %v8068 = vpack.c.b16 %v7480, %v7473
    %v8069 = vpack.c.b16 %v7481, %v7474
    %v8070 = vpack.c.b16 %v7482, %v7475
    %v8071 = vpack.c.b16 %v7483, %v7476
    %v8072 = vpack.c.b16 %v7484, %v7477
    %v8073 = vpack.c.b16 %v7492, %v7485
    %v8074 = vpack.c.b16 %v7493, %v7486
    %v8075 = vpack.c.b16 %v7494, %v7487
    %v8076 = vpack.c.b16 %v7495, %v7488
    %v8077 = vpack.c.b16 %v7496, %v7489
    %v8078 = vpack.c.b16 %v7497, %v7490
    %v8079 = vpack.c.b16 %v7498, %v7491
    %v8080 = vpack.c.b16 %v7506, %v7499
    %v8081 = vpack.c.b16 %v7507, %v7500
    %v8082 = vpack.c.b16 %v7508, %v7501
    %v8083 = vpack.c.b16 %v7509, %v7502
    %v8084 = vpack.c.b16 %v7510, %v7503
    %v8085 = vpack.c.b16 %v7511, %v7504
    %v8086 = vpack.c.b16 %v7512, %v7505
    %v8087 = vpack.c.b16 %v7520, %v7513
    %v8088 = vpack.c.b16 %v7521, %v7514
    %v8089 = vpack.c.b16 %v7522, %v7515
    %v8090 = vpack.c.b16 %v7523, %v7516
    %v8091 = vpack.c.b16 %v7524, %v7517
    %v8092 = vpack.c.b16 %v7525, %v7518
    %v8093 = vpack.c.b16 %v7526, %v7519
    %v8094 = vpack.c.b16 %v7534, %v7527
    %v8095 = vpack.c.b16 %v7535, %v7528
    %v8096 = vpack.c.b16 %v7536, %v7529
    %v8097 = vpack.c.b16 %v7537, %v7530
    %v8098 = vpack.c.b16 %v7538, %v7531
    %v8099 = vpack.c.b16 %v7539, %v7532
    %v8100 = vpack.c.b16 %v7540, %v7533
    %v8101 = vpack.c.b16 %v7548, %v7541
    %v8102 = vpack.c.b16 %v7549, %v7542
    %v8103 = vpack.c.b16 %v7550, %v7543
    %v8104 = vpack.c.b16 %v7551, %v7544
    %v8105 = vpack.c.b16 %v7552, %v7545
    %v8106 = vpack.c.b16 %v7553, %v7546
    %v8107 = vpack.c.b16 %v7554, %v7547
    %v8108 = vpack.c.b16 %v7562, %v7555
    %v8109 = vpack.c.b16 %v7563, %v7556
    %v8110 = vpack.c.b16 %v7564, %v7557
    %v8111 = vpack.c.b16 %v7565, %v7558
    %v8112 = vpack.c.b16 %v7566, %v7559
    %v8113 = vpack.c.b16 %v7567, %v7560
    %v8114 = vpack.c.b16 %v7568, %v7561
    %v8115 = vpack.c.b16 %v7576, %v7569
    %v8116 = vpack.c.b16 %v7577, %v7570
    %v8117 = vpack.c.b16 %v7578, %v7571
    %v8118 = vpack.c.b16 %v7579, %v7572
    %v8119 = vpack.c.b16 %v7580, %v7573
    %v8120 = vpack.c.b16 %v7581, %v7574
    %v8121 = vpack.c.b16 %v7582, %v7575
    %v8122 = vpack.c.b16 %v7590, %v7583
    %v8123 = vpack.c.b16 %v7591, %v7584
    %v8124 = vpack.c.b16 %v7592, %v7585
    %v8125 = vpack.c.b16 %v7593, %v7586
    %v8126 = vpack.c.b16 %v7594, %v7587
    %v8127 = vpack.c.b16 %v7595, %v7588
    %v8128 = vpack.c.b16 %v7596, %v7589
    %v8129 = vpack.c.b16 %v7604, %v7597
    %v8130 = vpack.c.b16 %v7605, %v7598
    %v8131 = vpack.c.b16 %v7606, %v7599
    %v8132 = vpack.c.b16 %v7607, %v7600
    %v8133 = vpack.c.b16 %v7608, %v7601
    %v8134 = vpack.c.b16 %v7609, %v7602
    %v8135 = vpack.c.b16 %v7610, %v7603
    %v8136 = vpack.c.b16 %v7618, %v7611
    %v8137 = vpack.c.b16 %v7619, %v7612
    %v8138 = vpack.c.b16 %v7620, %v7613
    %v8139 = vpack.c.b16 %v7621, %v7614
    %v8140 = vpack.c.b16 %v7622, %v7615
    %v8141 = vpack.c.b16 %v7623, %v7616
    %v8142 = vpack.c.b16 %v7624, %v7617
    %v8143 = vpack.c.b16 %v7632, %v7625
    %v8144 = vpack.c.b16 %v7633, %v7626
    %v8145 = vpack.c.b16 %v7634, %v7627
    %v8146 = vpack.c.b16 %v7635, %v7628
    %v8147 = vpack.c.b16 %v7636, %v7629
    %v8148 = vpack.c.b16 %v7637, %v7630
    %v8149 = vpack.c.b16 %v7638, %v7631
    %v8150 = vpack.c.b16 %v7646, %v7639
    %v8151 = vpack.c.b16 %v7647, %v7640
    %v8152 = vpack.c.b16 %v7648, %v7641
    %v8153 = vpack.c.b16 %v7649, %v7642
    %v8154 = vpack.c.b16 %v7650, %v7643
    %v8155 = vpack.c.b16 %v7651, %v7644
    %v8156 = vpack.c.b16 %v7652, %v7645
    %v8157 = vpack.c.b16 %v7660, %v7653
    %v8158 = vpack.c.b16 %v7661, %v7654
    %v8159 = vpack.c.b16 %v7662, %v7655
    %v8160 = vpack.c.b16 %v7663, %v7656
    %v8161 = vpack.c.b16 %v7664, %v7657
    %v8162 = vpack.c.b16 %v7665, %v7658
    %v8163 = vpack.c.b16 %v7666, %v7659
    %v8164 = vpack.c.b16 %v7674, %v7667
    %v8165 = vpack.c.b16 %v7675, %v7668
    %v8166 = vpack.c.b16 %v7676, %v7669
    %v8167 = vpack.c.b16 %v7677, %v7670
    %v8168 = vpack.c.b16 %v7678, %v7671
    %v8169 = vpack.c.b16 %v7679, %v7672
    %v8170 = vpack.c.b16 %v7680, %v7673
    %v8171 = vpack.c.b16 %v7688, %v7681
    %v8172 = vpack.c.b16 %v7689, %v7682
    %v8173 = vpack.c.b16 %v7690, %v7683
    %v8174 = vpack.c.b16 %v7691, %v7684
    %v8175 = vpack.c.b16 %v7692, %v7685
    %v8176 = vpack.c.b16 %v7693, %v7686
    %v8177 = vpack.c.b16 %v7694, %v7687
    %v8178 = vpack.c.b16 %v7702, %v7695
    %v8179 = vpack.c.b16 %v7703, %v7696
    %v8180 = vpack.c.b16 %v7704, %v7697
    %v8181 = vpack.c.b16 %v7705, %v7698
    %v8182 = vpack.c.b16 %v7706, %v7699
    %v8183 = vpack.c.b16 %v7707, %v7700
    %v8184 = vpack.c.b16 %v7708, %v7701
    %v8185 = vpack.c.b16 %v7716, %v7709
    %v8186 = vpack.c.b16 %v7717, %v7710
    %v8187 = vpack.c.b16 %v7718, %v7711
    %v8188 = vpack.c.b16 %v7719, %v7712
    %v8189 = vpack.c.b16 %v7720, %v7713
    %v8190 = vpack.c.b16 %v7721, %v7714
    %v8191 = vpack.c.b16 %v7722, %v7715
    %v8192 = vpack.c.b16 %v7730, %v7723
    %v8193 = vpack.c.b16 %v7731, %v7724
    %v8194 = vpack.c.b16 %v7732, %v7725
    %v8195 = vpack.c.b16 %v7733, %v7726
    %v8196 = vpack.c.b16 %v7734, %v7727
    %v8197 = vpack.c.b16 %v7735, %v7728
    %v8198 = vpack.c.b16 %v7736, %v7729
    %v8199 = vpack.c.b16 %v7744, %v7737
    %v8200 = vpack.c.b16 %v7745, %v7738
    %v8201 = vpack.c.b16 %v7746, %v7739
    %v8202 = vpack.c.b16 %v7747, %v7740
    %v8203 = vpack.c.b16 %v7748, %v7741
    %v8204 = vpack.c.b16 %v7749, %v7742
    %v8205 = vpack.c.b16 %v7750, %v7743
    %v8206 = vpack.c.b16 %v7758, %v7751
    %v8207 = vpack.c.b16 %v7759, %v7752
    %v8208 = vpack.c.b16 %v7760, %v7753
    %v8209 = vpack.c.b16 %v7761, %v7754
    %v8210 = vpack.c.b16 %v7762, %v7755
    %v8211 = vpack.c.b16 %v7763, %v7756
    %v8212 = vpack.c.b16 %v7764, %v7757
    %8661 = vmatpush.bf16.msra.mxu0 %v7814
    %8662 = vmatpush.bf16.msra.mxu0 %v7807
    %8663 = vmatpush.bf16.msra.mxu0 %v7800
    %8664 = vmatpush.bf16.msra.mxu0 %v7793
    %8665 = vmatpush.bf16.msra.mxu0 %v7786
    %8666 = vmatpush.bf16.msra.mxu0 %v7779
    %8667 = vmatpush.bf16.msra.mxu0 %v7772
    %8668 = vmatpush.bf16.msra.mxu0 %v7765
    %8669 = vmatmul.bf16.gmra.mxu0 %v5821
    %v8670 = vpop.f32.mrf.mxu0
    %v8671 = vadd.f32 %v6343, %v8670
    %v8672 = vpop.f32.mrf.mxu0
    %v8673 = vadd.f32 %v6343, %v8672
    %8674 = vdwg.mxu0
    %8675 = vmatpush.bf16.msra.mxu0 %v7870
    %8676 = vmatpush.bf16.msra.mxu0 %v7863
    %8677 = vmatpush.bf16.msra.mxu0 %v7856
    %8678 = vmatpush.bf16.msra.mxu0 %v7849
    %8679 = vmatpush.bf16.msra.mxu0 %v7842
    %8680 = vmatpush.bf16.msra.mxu0 %v7835
    %8681 = vmatpush.bf16.msra.mxu0 %v7828
    %8682 = vmatpush.bf16.msra.mxu0 %v7821
    %8683 = vmatmul.bf16.gmra.mxu0 %v5822
    %v8684 = vpop.f32.mrf.mxu0
    %v8685 = vadd.f32 %v8671, %v8684
    %v8686 = vpop.f32.mrf.mxu0
    %v8687 = vadd.f32 %v8673, %v8686
    %8688 = vdwg.mxu0
    %8689 = vmatpush.bf16.msra.mxu0 %v7926
    %8690 = vmatpush.bf16.msra.mxu0 %v7919
    %8691 = vmatpush.bf16.msra.mxu0 %v7912
    %8692 = vmatpush.bf16.msra.mxu0 %v7905
    %8693 = vmatpush.bf16.msra.mxu0 %v7898
    %8694 = vmatpush.bf16.msra.mxu0 %v7891
    %8695 = vmatpush.bf16.msra.mxu0 %v7884
    %8696 = vmatpush.bf16.msra.mxu0 %v7877
    %8697 = vmatmul.bf16.gmra.mxu0 %v5823
    %v8698 = vpop.f32.mrf.mxu0
    %v8699 = vadd.f32 %v8685, %v8698
    %v8700 = vpop.f32.mrf.mxu0
    %v8701 = vadd.f32 %v8687, %v8700
    %8702 = vdwg.mxu0
    %8703 = vmatpush.bf16.msra.mxu0 %v7982
    %8704 = vmatpush.bf16.msra.mxu0 %v7975
    %8705 = vmatpush.bf16.msra.mxu0 %v7968
    %8706 = vmatpush.bf16.msra.mxu0 %v7961
    %8707 = vmatpush.bf16.msra.mxu0 %v7954
    %8708 = vmatpush.bf16.msra.mxu0 %v7947
    %8709 = vmatpush.bf16.msra.mxu0 %v7940
    %8710 = vmatpush.bf16.msra.mxu0 %v7933
    %8711 = vmatmul.bf16.gmra.mxu0 %v5824
    %v8712 = vpop.f32.mrf.mxu0
    %v8713 = vadd.f32 %v8699, %v8712
    %v8714 = vpop.f32.mrf.mxu0
    %v8715 = vadd.f32 %v8701, %v8714
    %8716 = vdwg.mxu0
    %8717 = vmatpush.bf16.msra.mxu0 %v8038
    %8718 = vmatpush.bf16.msra.mxu0 %v8031
    %8719 = vmatpush.bf16.msra.mxu0 %v8024
    %8720 = vmatpush.bf16.msra.mxu0 %v8017
    %8721 = vmatpush.bf16.msra.mxu0 %v8010
    %8722 = vmatpush.bf16.msra.mxu0 %v8003
    %8723 = vmatpush.bf16.msra.mxu0 %v7996
    %8724 = vmatpush.bf16.msra.mxu0 %v7989
    %8725 = vmatmul.bf16.gmra.mxu0 %v5825
    %v8726 = vpop.f32.mrf.mxu0
    %v8727 = vadd.f32 %v8713, %v8726
    %v8728 = vpop.f32.mrf.mxu0
    %v8729 = vadd.f32 %v8715, %v8728
    %8730 = vdwg.mxu0
    %8731 = vmatpush.bf16.msra.mxu0 %v8094
    %8732 = vmatpush.bf16.msra.mxu0 %v8087
    %8733 = vmatpush.bf16.msra.mxu0 %v8080
    %8734 = vmatpush.bf16.msra.mxu0 %v8073
    %8735 = vmatpush.bf16.msra.mxu0 %v8066
    %8736 = vmatpush.bf16.msra.mxu0 %v8059
    %8737 = vmatpush.bf16.msra.mxu0 %v8052
    %8738 = vmatpush.bf16.msra.mxu0 %v8045
    %8739 = vmatmul.bf16.gmra.mxu0 %v5826
    %v8740 = vpop.f32.mrf.mxu0
    %v8741 = vadd.f32 %v8727, %v8740
    %v8742 = vpop.f32.mrf.mxu0
    %v8743 = vadd.f32 %v8729, %v8742
    %8744 = vdwg.mxu0
    %8745 = vmatpush.bf16.msra.mxu0 %v8150
    %8746 = vmatpush.bf16.msra.mxu0 %v8143
    %8747 = vmatpush.bf16.msra.mxu0 %v8136
    %8748 = vmatpush.bf16.msra.mxu0 %v8129
    %8749 = vmatpush.bf16.msra.mxu0 %v8122
    %8750 = vmatpush.bf16.msra.mxu0 %v8115
    %8751 = vmatpush.bf16.msra.mxu0 %v8108
    %8752 = vmatpush.bf16.msra.mxu0 %v8101
    %8753 = vmatmul.bf16.gmra.mxu0 %v5827
    %v8754 = vpop.f32.mrf.mxu0
    %v8755 = vadd.f32 %v8741, %v8754
    %v8756 = vpop.f32.mrf.mxu0
    %v8757 = vadd.f32 %v8743, %v8756
    %8758 = vdwg.mxu0
    %8759 = vmatpush.bf16.msra.mxu0 %v8206
    %8760 = vmatpush.bf16.msra.mxu0 %v8199
    %8761 = vmatpush.bf16.msra.mxu0 %v8192
    %8762 = vmatpush.bf16.msra.mxu0 %v8185
    %8763 = vmatpush.bf16.msra.mxu0 %v8178
    %8764 = vmatpush.bf16.msra.mxu0 %v8171
    %8765 = vmatpush.bf16.msra.mxu0 %v8164
    %8766 = vmatpush.bf16.msra.mxu0 %v8157
    %8767 = vmatmul.bf16.gmra.mxu0 %v5828
    %v8768 = vpop.f32.mrf.mxu0
    %v8769 = vadd.f32 %v8755, %v8768
    %v8770 = vpop.f32.mrf.mxu0
    %v8771 = vadd.f32 %v8757, %v8770
    %8772 = vdwg.mxu0
    %8773 = vmatpush.bf16.msra.mxu0 %v7815
    %8774 = vmatpush.bf16.msra.mxu0 %v7808
    %8775 = vmatpush.bf16.msra.mxu0 %v7801
    %8776 = vmatpush.bf16.msra.mxu0 %v7794
    %8777 = vmatpush.bf16.msra.mxu0 %v7787
    %8778 = vmatpush.bf16.msra.mxu0 %v7780
    %8779 = vmatpush.bf16.msra.mxu0 %v7773
    %8780 = vmatpush.bf16.msra.mxu0 %v7766
    %8781 = vmatmul.bf16.gmra.mxu0 %v5821
    %v8782 = vpop.f32.mrf.mxu0
    %v8783 = vadd.f32 %v6344, %v8782
    %v8784 = vpop.f32.mrf.mxu0
    %v8785 = vadd.f32 %v6344, %v8784
    %8786 = vdwg.mxu0
    %8787 = vmatpush.bf16.msra.mxu0 %v7871
    %8788 = vmatpush.bf16.msra.mxu0 %v7864
    %8789 = vmatpush.bf16.msra.mxu0 %v7857
    %8790 = vmatpush.bf16.msra.mxu0 %v7850
    %8791 = vmatpush.bf16.msra.mxu0 %v7843
    %8792 = vmatpush.bf16.msra.mxu0 %v7836
    %8793 = vmatpush.bf16.msra.mxu0 %v7829
    %8794 = vmatpush.bf16.msra.mxu0 %v7822
    %8795 = vmatmul.bf16.gmra.mxu0 %v5822
    %v8796 = vpop.f32.mrf.mxu0
    %v8797 = vadd.f32 %v8783, %v8796
    %v8798 = vpop.f32.mrf.mxu0
    %v8799 = vadd.f32 %v8785, %v8798
    %8800 = vdwg.mxu0
    %8801 = vmatpush.bf16.msra.mxu0 %v7927
    %8802 = vmatpush.bf16.msra.mxu0 %v7920
    %8803 = vmatpush.bf16.msra.mxu0 %v7913
    %8804 = vmatpush.bf16.msra.mxu0 %v7906
    %8805 = vmatpush.bf16.msra.mxu0 %v7899
    %8806 = vmatpush.bf16.msra.mxu0 %v7892
    %8807 = vmatpush.bf16.msra.mxu0 %v7885
    %8808 = vmatpush.bf16.msra.mxu0 %v7878
    %8809 = vmatmul.bf16.gmra.mxu0 %v5823
    %v8810 = vpop.f32.mrf.mxu0
    %v8811 = vadd.f32 %v8797, %v8810
    %v8812 = vpop.f32.mrf.mxu0
    %v8813 = vadd.f32 %v8799, %v8812
    %8814 = vdwg.mxu0
    %8815 = vmatpush.bf16.msra.mxu0 %v7983
    %8816 = vmatpush.bf16.msra.mxu0 %v7976
    %8817 = vmatpush.bf16.msra.mxu0 %v7969
    %8818 = vmatpush.bf16.msra.mxu0 %v7962
    %8819 = vmatpush.bf16.msra.mxu0 %v7955
    %8820 = vmatpush.bf16.msra.mxu0 %v7948
    %8821 = vmatpush.bf16.msra.mxu0 %v7941
    %8822 = vmatpush.bf16.msra.mxu0 %v7934
    %8823 = vmatmul.bf16.gmra.mxu0 %v5824
    %v8824 = vpop.f32.mrf.mxu0
    %v8825 = vadd.f32 %v8811, %v8824
    %v8826 = vpop.f32.mrf.mxu0
    %v8827 = vadd.f32 %v8813, %v8826
    %8828 = vdwg.mxu0
    %8829 = vmatpush.bf16.msra.mxu0 %v8039
    %8830 = vmatpush.bf16.msra.mxu0 %v8032
    %8831 = vmatpush.bf16.msra.mxu0 %v8025
    %8832 = vmatpush.bf16.msra.mxu0 %v8018
    %8833 = vmatpush.bf16.msra.mxu0 %v8011
    %8834 = vmatpush.bf16.msra.mxu0 %v8004
    %8835 = vmatpush.bf16.msra.mxu0 %v7997
    %8836 = vmatpush.bf16.msra.mxu0 %v7990
    %8837 = vmatmul.bf16.gmra.mxu0 %v5825
    %v8838 = vpop.f32.mrf.mxu0
    %v8839 = vadd.f32 %v8825, %v8838
    %v8840 = vpop.f32.mrf.mxu0
    %v8841 = vadd.f32 %v8827, %v8840
    %8842 = vdwg.mxu0
    %8843 = vmatpush.bf16.msra.mxu0 %v8095
    %8844 = vmatpush.bf16.msra.mxu0 %v8088
    %8845 = vmatpush.bf16.msra.mxu0 %v8081
    %8846 = vmatpush.bf16.msra.mxu0 %v8074
    %8847 = vmatpush.bf16.msra.mxu0 %v8067
    %8848 = vmatpush.bf16.msra.mxu0 %v8060
    %8849 = vmatpush.bf16.msra.mxu0 %v8053
    %8850 = vmatpush.bf16.msra.mxu0 %v8046
    %8851 = vmatmul.bf16.gmra.mxu0 %v5826
    %v8852 = vpop.f32.mrf.mxu0
    %v8853 = vadd.f32 %v8839, %v8852
    %v8854 = vpop.f32.mrf.mxu0
    %v8855 = vadd.f32 %v8841, %v8854
    %8856 = vdwg.mxu0
    %8857 = vmatpush.bf16.msra.mxu0 %v8151
    %8858 = vmatpush.bf16.msra.mxu0 %v8144
    %8859 = vmatpush.bf16.msra.mxu0 %v8137
    %8860 = vmatpush.bf16.msra.mxu0 %v8130
    %8861 = vmatpush.bf16.msra.mxu0 %v8123
    %8862 = vmatpush.bf16.msra.mxu0 %v8116
    %8863 = vmatpush.bf16.msra.mxu0 %v8109
    %8864 = vmatpush.bf16.msra.mxu0 %v8102
    %8865 = vmatmul.bf16.gmra.mxu0 %v5827
    %v8866 = vpop.f32.mrf.mxu0
    %v8867 = vadd.f32 %v8853, %v8866
    %v8868 = vpop.f32.mrf.mxu0
    %v8869 = vadd.f32 %v8855, %v8868
    %8870 = vdwg.mxu0
    %8871 = vmatpush.bf16.msra.mxu0 %v8207
    %8872 = vmatpush.bf16.msra.mxu0 %v8200
    %8873 = vmatpush.bf16.msra.mxu0 %v8193
    %8874 = vmatpush.bf16.msra.mxu0 %v8186
    %8875 = vmatpush.bf16.msra.mxu0 %v8179
    %8876 = vmatpush.bf16.msra.mxu0 %v8172
    %8877 = vmatpush.bf16.msra.mxu0 %v8165
    %8878 = vmatpush.bf16.msra.mxu0 %v8158
    %8879 = vmatmul.bf16.gmra.mxu0 %v5828
    %v8880 = vpop.f32.mrf.mxu0
    %v8881 = vadd.f32 %v8867, %v8880
    %v8882 = vpop.f32.mrf.mxu0
    %v8883 = vadd.f32 %v8869, %v8882
    %8884 = vdwg.mxu0
    %8885 = vmatpush.bf16.msra.mxu0 %v7816
    %8886 = vmatpush.bf16.msra.mxu0 %v7809
    %8887 = vmatpush.bf16.msra.mxu0 %v7802
    %8888 = vmatpush.bf16.msra.mxu0 %v7795
    %8889 = vmatpush.bf16.msra.mxu0 %v7788
    %8890 = vmatpush.bf16.msra.mxu0 %v7781
    %8891 = vmatpush.bf16.msra.mxu0 %v7774
    %8892 = vmatpush.bf16.msra.mxu0 %v7767
    %8893 = vmatmul.bf16.gmra.mxu0 %v5821
    %v8894 = vpop.f32.mrf.mxu0
    %v8895 = vadd.f32 %v6345, %v8894
    %v8896 = vpop.f32.mrf.mxu0
    %v8897 = vadd.f32 %v6345, %v8896
    %8898 = vdwg.mxu0
    %8899 = vmatpush.bf16.msra.mxu0 %v7872
    %8900 = vmatpush.bf16.msra.mxu0 %v7865
    %8901 = vmatpush.bf16.msra.mxu0 %v7858
    %8902 = vmatpush.bf16.msra.mxu0 %v7851
    %8903 = vmatpush.bf16.msra.mxu0 %v7844
    %8904 = vmatpush.bf16.msra.mxu0 %v7837
    %8905 = vmatpush.bf16.msra.mxu0 %v7830
    %8906 = vmatpush.bf16.msra.mxu0 %v7823
    %8907 = vmatmul.bf16.gmra.mxu0 %v5822
    %v8908 = vpop.f32.mrf.mxu0
    %v8909 = vadd.f32 %v8895, %v8908
    %v8910 = vpop.f32.mrf.mxu0
    %v8911 = vadd.f32 %v8897, %v8910
    %8912 = vdwg.mxu0
    %8913 = vmatpush.bf16.msra.mxu0 %v7928
    %8914 = vmatpush.bf16.msra.mxu0 %v7921
    %8915 = vmatpush.bf16.msra.mxu0 %v7914
    %8916 = vmatpush.bf16.msra.mxu0 %v7907
    %8917 = vmatpush.bf16.msra.mxu0 %v7900
    %8918 = vmatpush.bf16.msra.mxu0 %v7893
    %8919 = vmatpush.bf16.msra.mxu0 %v7886
    %8920 = vmatpush.bf16.msra.mxu0 %v7879
    %8921 = vmatmul.bf16.gmra.mxu0 %v5823
    %v8922 = vpop.f32.mrf.mxu0
    %v8923 = vadd.f32 %v8909, %v8922
    %v8924 = vpop.f32.mrf.mxu0
    %v8925 = vadd.f32 %v8911, %v8924
    %8926 = vdwg.mxu0
    %8927 = vmatpush.bf16.msra.mxu0 %v7984
    %8928 = vmatpush.bf16.msra.mxu0 %v7977
    %8929 = vmatpush.bf16.msra.mxu0 %v7970
    %8930 = vmatpush.bf16.msra.mxu0 %v7963
    %8931 = vmatpush.bf16.msra.mxu0 %v7956
    %8932 = vmatpush.bf16.msra.mxu0 %v7949
    %8933 = vmatpush.bf16.msra.mxu0 %v7942
    %8934 = vmatpush.bf16.msra.mxu0 %v7935
    %8935 = vmatmul.bf16.gmra.mxu0 %v5824
    %v8936 = vpop.f32.mrf.mxu0
    %v8937 = vadd.f32 %v8923, %v8936
    %v8938 = vpop.f32.mrf.mxu0
    %v8939 = vadd.f32 %v8925, %v8938
    %8940 = vdwg.mxu0
    %8941 = vmatpush.bf16.msra.mxu0 %v8040
    %8942 = vmatpush.bf16.msra.mxu0 %v8033
    %8943 = vmatpush.bf16.msra.mxu0 %v8026
    %8944 = vmatpush.bf16.msra.mxu0 %v8019
    %8945 = vmatpush.bf16.msra.mxu0 %v8012
    %8946 = vmatpush.bf16.msra.mxu0 %v8005
    %8947 = vmatpush.bf16.msra.mxu0 %v7998
    %8948 = vmatpush.bf16.msra.mxu0 %v7991
    %8949 = vmatmul.bf16.gmra.mxu0 %v5825
    %v8950 = vpop.f32.mrf.mxu0
    %v8951 = vadd.f32 %v8937, %v8950
    %v8952 = vpop.f32.mrf.mxu0
    %v8953 = vadd.f32 %v8939, %v8952
    %8954 = vdwg.mxu0
    %8955 = vmatpush.bf16.msra.mxu0 %v8096
    %8956 = vmatpush.bf16.msra.mxu0 %v8089
    %8957 = vmatpush.bf16.msra.mxu0 %v8082
    %8958 = vmatpush.bf16.msra.mxu0 %v8075
    %8959 = vmatpush.bf16.msra.mxu0 %v8068
    %8960 = vmatpush.bf16.msra.mxu0 %v8061
    %8961 = vmatpush.bf16.msra.mxu0 %v8054
    %8962 = vmatpush.bf16.msra.mxu0 %v8047
    %8963 = vmatmul.bf16.gmra.mxu0 %v5826
    %v8964 = vpop.f32.mrf.mxu0
    %v8965 = vadd.f32 %v8951, %v8964
    %v8966 = vpop.f32.mrf.mxu0
    %v8967 = vadd.f32 %v8953, %v8966
    %8968 = vdwg.mxu0
    %8969 = vmatpush.bf16.msra.mxu0 %v8152
    %8970 = vmatpush.bf16.msra.mxu0 %v8145
    %8971 = vmatpush.bf16.msra.mxu0 %v8138
    %8972 = vmatpush.bf16.msra.mxu0 %v8131
    %8973 = vmatpush.bf16.msra.mxu0 %v8124
    %8974 = vmatpush.bf16.msra.mxu0 %v8117
    %8975 = vmatpush.bf16.msra.mxu0 %v8110
    %8976 = vmatpush.bf16.msra.mxu0 %v8103
    %8977 = vmatmul.bf16.gmra.mxu0 %v5827
    %v8978 = vpop.f32.mrf.mxu0
    %v8979 = vadd.f32 %v8965, %v8978
    %v8980 = vpop.f32.mrf.mxu0
    %v8981 = vadd.f32 %v8967, %v8980
    %8982 = vdwg.mxu0
    %8983 = vmatpush.bf16.msra.mxu0 %v8208
    %8984 = vmatpush.bf16.msra.mxu0 %v8201
    %8985 = vmatpush.bf16.msra.mxu0 %v8194
    %8986 = vmatpush.bf16.msra.mxu0 %v8187
    %8987 = vmatpush.bf16.msra.mxu0 %v8180
    %8988 = vmatpush.bf16.msra.mxu0 %v8173
    %8989 = vmatpush.bf16.msra.mxu0 %v8166
    %8990 = vmatpush.bf16.msra.mxu0 %v8159
    %8991 = vmatmul.bf16.gmra.mxu0 %v5828
    %v8992 = vpop.f32.mrf.mxu0
    %v8993 = vadd.f32 %v8979, %v8992
    %v8994 = vpop.f32.mrf.mxu0
    %v8995 = vadd.f32 %v8981, %v8994
    %8996 = vdwg.mxu0
    %8997 = vmatpush.bf16.msra.mxu0 %v7817
    %8998 = vmatpush.bf16.msra.mxu0 %v7810
    %8999 = vmatpush.bf16.msra.mxu0 %v7803
    %9000 = vmatpush.bf16.msra.mxu0 %v7796
    %9001 = vmatpush.bf16.msra.mxu0 %v7789
    %9002 = vmatpush.bf16.msra.mxu0 %v7782
    %9003 = vmatpush.bf16.msra.mxu0 %v7775
    %9004 = vmatpush.bf16.msra.mxu0 %v7768
    %9005 = vmatmul.bf16.gmra.mxu0 %v5821
    %v9006 = vpop.f32.mrf.mxu0
    %v9007 = vadd.f32 %v6346, %v9006
    %v9008 = vpop.f32.mrf.mxu0
    %v9009 = vadd.f32 %v6346, %v9008
    %9010 = vdwg.mxu0
    %9011 = vmatpush.bf16.msra.mxu0 %v7873
    %9012 = vmatpush.bf16.msra.mxu0 %v7866
    %9013 = vmatpush.bf16.msra.mxu0 %v7859
    %9014 = vmatpush.bf16.msra.mxu0 %v7852
    %9015 = vmatpush.bf16.msra.mxu0 %v7845
    %9016 = vmatpush.bf16.msra.mxu0 %v7838
    %9017 = vmatpush.bf16.msra.mxu0 %v7831
    %9018 = vmatpush.bf16.msra.mxu0 %v7824
    %9019 = vmatmul.bf16.gmra.mxu0 %v5822
    %v9020 = vpop.f32.mrf.mxu0
    %v9021 = vadd.f32 %v9007, %v9020
    %v9022 = vpop.f32.mrf.mxu0
    %v9023 = vadd.f32 %v9009, %v9022
    %9024 = vdwg.mxu0
    %9025 = vmatpush.bf16.msra.mxu0 %v7929
    %9026 = vmatpush.bf16.msra.mxu0 %v7922
    %9027 = vmatpush.bf16.msra.mxu0 %v7915
    %9028 = vmatpush.bf16.msra.mxu0 %v7908
    %9029 = vmatpush.bf16.msra.mxu0 %v7901
    %9030 = vmatpush.bf16.msra.mxu0 %v7894
    %9031 = vmatpush.bf16.msra.mxu0 %v7887
    %9032 = vmatpush.bf16.msra.mxu0 %v7880
    %9033 = vmatmul.bf16.gmra.mxu0 %v5823
    %v9034 = vpop.f32.mrf.mxu0
    %v9035 = vadd.f32 %v9021, %v9034
    %v9036 = vpop.f32.mrf.mxu0
    %v9037 = vadd.f32 %v9023, %v9036
    %9038 = vdwg.mxu0
    %9039 = vmatpush.bf16.msra.mxu0 %v7985
    %9040 = vmatpush.bf16.msra.mxu0 %v7978
    %9041 = vmatpush.bf16.msra.mxu0 %v7971
    %9042 = vmatpush.bf16.msra.mxu0 %v7964
    %9043 = vmatpush.bf16.msra.mxu0 %v7957
    %9044 = vmatpush.bf16.msra.mxu0 %v7950
    %9045 = vmatpush.bf16.msra.mxu0 %v7943
    %9046 = vmatpush.bf16.msra.mxu0 %v7936
    %9047 = vmatmul.bf16.gmra.mxu0 %v5824
    %v9048 = vpop.f32.mrf.mxu0
    %v9049 = vadd.f32 %v9035, %v9048
    %v9050 = vpop.f32.mrf.mxu0
    %v9051 = vadd.f32 %v9037, %v9050
    %9052 = vdwg.mxu0
    %9053 = vmatpush.bf16.msra.mxu0 %v8041
    %9054 = vmatpush.bf16.msra.mxu0 %v8034
    %9055 = vmatpush.bf16.msra.mxu0 %v8027
    %9056 = vmatpush.bf16.msra.mxu0 %v8020
    %9057 = vmatpush.bf16.msra.mxu0 %v8013
    %9058 = vmatpush.bf16.msra.mxu0 %v8006
    %9059 = vmatpush.bf16.msra.mxu0 %v7999
    %9060 = vmatpush.bf16.msra.mxu0 %v7992
    %9061 = vmatmul.bf16.gmra.mxu0 %v5825
    %v9062 = vpop.f32.mrf.mxu0
    %v9063 = vadd.f32 %v9049, %v9062
    %v9064 = vpop.f32.mrf.mxu0
    %v9065 = vadd.f32 %v9051, %v9064
    %9066 = vdwg.mxu0
    %9067 = vmatpush.bf16.msra.mxu0 %v8097
    %9068 = vmatpush.bf16.msra.mxu0 %v8090
    %9069 = vmatpush.bf16.msra.mxu0 %v8083
    %9070 = vmatpush.bf16.msra.mxu0 %v8076
    %9071 = vmatpush.bf16.msra.mxu0 %v8069
    %9072 = vmatpush.bf16.msra.mxu0 %v8062
    %9073 = vmatpush.bf16.msra.mxu0 %v8055
    %9074 = vmatpush.bf16.msra.mxu0 %v8048
    %9075 = vmatmul.bf16.gmra.mxu0 %v5826
    %v9076 = vpop.f32.mrf.mxu0
    %v9077 = vadd.f32 %v9063, %v9076
    %v9078 = vpop.f32.mrf.mxu0
    %v9079 = vadd.f32 %v9065, %v9078
    %9080 = vdwg.mxu0
    %9081 = vmatpush.bf16.msra.mxu0 %v8153
    %9082 = vmatpush.bf16.msra.mxu0 %v8146
    %9083 = vmatpush.bf16.msra.mxu0 %v8139
    %9084 = vmatpush.bf16.msra.mxu0 %v8132
    %9085 = vmatpush.bf16.msra.mxu0 %v8125
    %9086 = vmatpush.bf16.msra.mxu0 %v8118
    %9087 = vmatpush.bf16.msra.mxu0 %v8111
    %9088 = vmatpush.bf16.msra.mxu0 %v8104
    %9089 = vmatmul.bf16.gmra.mxu0 %v5827
    %v9090 = vpop.f32.mrf.mxu0
    %v9091 = vadd.f32 %v9077, %v9090
    %v9092 = vpop.f32.mrf.mxu0
    %v9093 = vadd.f32 %v9079, %v9092
    %9094 = vdwg.mxu0
    %9095 = vmatpush.bf16.msra.mxu0 %v8209
    %9096 = vmatpush.bf16.msra.mxu0 %v8202
    %9097 = vmatpush.bf16.msra.mxu0 %v8195
    %9098 = vmatpush.bf16.msra.mxu0 %v8188
    %9099 = vmatpush.bf16.msra.mxu0 %v8181
    %9100 = vmatpush.bf16.msra.mxu0 %v8174
    %9101 = vmatpush.bf16.msra.mxu0 %v8167
    %9102 = vmatpush.bf16.msra.mxu0 %v8160
    %9103 = vmatmul.bf16.gmra.mxu0 %v5828
    %v9104 = vpop.f32.mrf.mxu0
    %v9105 = vadd.f32 %v9091, %v9104
    %v9106 = vpop.f32.mrf.mxu0
    %v9107 = vadd.f32 %v9093, %v9106
    %9108 = vdwg.mxu0
    %9109 = vmatpush.bf16.msra.mxu0 %v7818
    %9110 = vmatpush.bf16.msra.mxu0 %v7811
    %9111 = vmatpush.bf16.msra.mxu0 %v7804
    %9112 = vmatpush.bf16.msra.mxu0 %v7797
    %9113 = vmatpush.bf16.msra.mxu0 %v7790
    %9114 = vmatpush.bf16.msra.mxu0 %v7783
    %9115 = vmatpush.bf16.msra.mxu0 %v7776
    %9116 = vmatpush.bf16.msra.mxu0 %v7769
    %9117 = vmatmul.bf16.gmra.mxu0 %v5821
    %v9118 = vpop.f32.mrf.mxu0
    %v9119 = vadd.f32 %v6347, %v9118
    %v9120 = vpop.f32.mrf.mxu0
    %v9121 = vadd.f32 %v6347, %v9120
    %9122 = vdwg.mxu0
    %9123 = vmatpush.bf16.msra.mxu0 %v7874
    %9124 = vmatpush.bf16.msra.mxu0 %v7867
    %9125 = vmatpush.bf16.msra.mxu0 %v7860
    %9126 = vmatpush.bf16.msra.mxu0 %v7853
    %9127 = vmatpush.bf16.msra.mxu0 %v7846
    %9128 = vmatpush.bf16.msra.mxu0 %v7839
    %9129 = vmatpush.bf16.msra.mxu0 %v7832
    %9130 = vmatpush.bf16.msra.mxu0 %v7825
    %9131 = vmatmul.bf16.gmra.mxu0 %v5822
    %v9132 = vpop.f32.mrf.mxu0
    %v9133 = vadd.f32 %v9119, %v9132
    %v9134 = vpop.f32.mrf.mxu0
    %v9135 = vadd.f32 %v9121, %v9134
    %9136 = vdwg.mxu0
    %9137 = vmatpush.bf16.msra.mxu0 %v7930
    %9138 = vmatpush.bf16.msra.mxu0 %v7923
    %9139 = vmatpush.bf16.msra.mxu0 %v7916
    %9140 = vmatpush.bf16.msra.mxu0 %v7909
    %9141 = vmatpush.bf16.msra.mxu0 %v7902
    %9142 = vmatpush.bf16.msra.mxu0 %v7895
    %9143 = vmatpush.bf16.msra.mxu0 %v7888
    %9144 = vmatpush.bf16.msra.mxu0 %v7881
    %9145 = vmatmul.bf16.gmra.mxu0 %v5823
    %v9146 = vpop.f32.mrf.mxu0
    %v9147 = vadd.f32 %v9133, %v9146
    %v9148 = vpop.f32.mrf.mxu0
    %v9149 = vadd.f32 %v9135, %v9148
    %9150 = vdwg.mxu0
    %9151 = vmatpush.bf16.msra.mxu0 %v7986
    %9152 = vmatpush.bf16.msra.mxu0 %v7979
    %9153 = vmatpush.bf16.msra.mxu0 %v7972
    %9154 = vmatpush.bf16.msra.mxu0 %v7965
    %9155 = vmatpush.bf16.msra.mxu0 %v7958
    %9156 = vmatpush.bf16.msra.mxu0 %v7951
    %9157 = vmatpush.bf16.msra.mxu0 %v7944
    %9158 = vmatpush.bf16.msra.mxu0 %v7937
    %9159 = vmatmul.bf16.gmra.mxu0 %v5824
    %v9160 = vpop.f32.mrf.mxu0
    %v9161 = vadd.f32 %v9147, %v9160
    %v9162 = vpop.f32.mrf.mxu0
    %v9163 = vadd.f32 %v9149, %v9162
    %9164 = vdwg.mxu0
    %9165 = vmatpush.bf16.msra.mxu0 %v8042
    %9166 = vmatpush.bf16.msra.mxu0 %v8035
    %9167 = vmatpush.bf16.msra.mxu0 %v8028
    %9168 = vmatpush.bf16.msra.mxu0 %v8021
    %9169 = vmatpush.bf16.msra.mxu0 %v8014
    %9170 = vmatpush.bf16.msra.mxu0 %v8007
    %9171 = vmatpush.bf16.msra.mxu0 %v8000
    %9172 = vmatpush.bf16.msra.mxu0 %v7993
    %9173 = vmatmul.bf16.gmra.mxu0 %v5825
    %v9174 = vpop.f32.mrf.mxu0
    %v9175 = vadd.f32 %v9161, %v9174
    %v9176 = vpop.f32.mrf.mxu0
    %v9177 = vadd.f32 %v9163, %v9176
    %9178 = vdwg.mxu0
    %9179 = vmatpush.bf16.msra.mxu0 %v8098
    %9180 = vmatpush.bf16.msra.mxu0 %v8091
    %9181 = vmatpush.bf16.msra.mxu0 %v8084
    %9182 = vmatpush.bf16.msra.mxu0 %v8077
    %9183 = vmatpush.bf16.msra.mxu0 %v8070
    %9184 = vmatpush.bf16.msra.mxu0 %v8063
    %9185 = vmatpush.bf16.msra.mxu0 %v8056
    %9186 = vmatpush.bf16.msra.mxu0 %v8049
    %9187 = vmatmul.bf16.gmra.mxu0 %v5826
    %v9188 = vpop.f32.mrf.mxu0
    %v9189 = vadd.f32 %v9175, %v9188
    %v9190 = vpop.f32.mrf.mxu0
    %v9191 = vadd.f32 %v9177, %v9190
    %9192 = vdwg.mxu0
    %9193 = vmatpush.bf16.msra.mxu0 %v8154
    %9194 = vmatpush.bf16.msra.mxu0 %v8147
    %9195 = vmatpush.bf16.msra.mxu0 %v8140
    %9196 = vmatpush.bf16.msra.mxu0 %v8133
    %9197 = vmatpush.bf16.msra.mxu0 %v8126
    %9198 = vmatpush.bf16.msra.mxu0 %v8119
    %9199 = vmatpush.bf16.msra.mxu0 %v8112
    %9200 = vmatpush.bf16.msra.mxu0 %v8105
    %9201 = vmatmul.bf16.gmra.mxu0 %v5827
    %v9202 = vpop.f32.mrf.mxu0
    %v9203 = vadd.f32 %v9189, %v9202
    %v9204 = vpop.f32.mrf.mxu0
    %v9205 = vadd.f32 %v9191, %v9204
    %9206 = vdwg.mxu0
    %9207 = vmatpush.bf16.msra.mxu0 %v8210
    %9208 = vmatpush.bf16.msra.mxu0 %v8203
    %9209 = vmatpush.bf16.msra.mxu0 %v8196
    %9210 = vmatpush.bf16.msra.mxu0 %v8189
    %9211 = vmatpush.bf16.msra.mxu0 %v8182
    %9212 = vmatpush.bf16.msra.mxu0 %v8175
    %9213 = vmatpush.bf16.msra.mxu0 %v8168
    %9214 = vmatpush.bf16.msra.mxu0 %v8161
    %9215 = vmatmul.bf16.gmra.mxu0 %v5828
    %v9216 = vpop.f32.mrf.mxu0
    %v9217 = vadd.f32 %v9203, %v9216
    %v9218 = vpop.f32.mrf.mxu0
    %v9219 = vadd.f32 %v9205, %v9218
    %9220 = vdwg.mxu0
    %9221 = vmatpush.bf16.msra.mxu0 %v7819
    %9222 = vmatpush.bf16.msra.mxu0 %v7812
    %9223 = vmatpush.bf16.msra.mxu0 %v7805
    %9224 = vmatpush.bf16.msra.mxu0 %v7798
    %9225 = vmatpush.bf16.msra.mxu0 %v7791
    %9226 = vmatpush.bf16.msra.mxu0 %v7784
    %9227 = vmatpush.bf16.msra.mxu0 %v7777
    %9228 = vmatpush.bf16.msra.mxu0 %v7770
    %9229 = vmatmul.bf16.gmra.mxu0 %v5821
    %v9230 = vpop.f32.mrf.mxu0
    %v9231 = vadd.f32 %v6348, %v9230
    %v9232 = vpop.f32.mrf.mxu0
    %v9233 = vadd.f32 %v6348, %v9232
    %9234 = vdwg.mxu0
    %9235 = vmatpush.bf16.msra.mxu0 %v7875
    %9236 = vmatpush.bf16.msra.mxu0 %v7868
    %9237 = vmatpush.bf16.msra.mxu0 %v7861
    %9238 = vmatpush.bf16.msra.mxu0 %v7854
    %9239 = vmatpush.bf16.msra.mxu0 %v7847
    %9240 = vmatpush.bf16.msra.mxu0 %v7840
    %9241 = vmatpush.bf16.msra.mxu0 %v7833
    %9242 = vmatpush.bf16.msra.mxu0 %v7826
    %9243 = vmatmul.bf16.gmra.mxu0 %v5822
    %v9244 = vpop.f32.mrf.mxu0
    %v9245 = vadd.f32 %v9231, %v9244
    %v9246 = vpop.f32.mrf.mxu0
    %v9247 = vadd.f32 %v9233, %v9246
    %9248 = vdwg.mxu0
    %9249 = vmatpush.bf16.msra.mxu0 %v7931
    %9250 = vmatpush.bf16.msra.mxu0 %v7924
    %9251 = vmatpush.bf16.msra.mxu0 %v7917
    %9252 = vmatpush.bf16.msra.mxu0 %v7910
    %9253 = vmatpush.bf16.msra.mxu0 %v7903
    %9254 = vmatpush.bf16.msra.mxu0 %v7896
    %9255 = vmatpush.bf16.msra.mxu0 %v7889
    %9256 = vmatpush.bf16.msra.mxu0 %v7882
    %9257 = vmatmul.bf16.gmra.mxu0 %v5823
    %v9258 = vpop.f32.mrf.mxu0
    %v9259 = vadd.f32 %v9245, %v9258
    %v9260 = vpop.f32.mrf.mxu0
    %v9261 = vadd.f32 %v9247, %v9260
    %9262 = vdwg.mxu0
    %9263 = vmatpush.bf16.msra.mxu0 %v7987
    %9264 = vmatpush.bf16.msra.mxu0 %v7980
    %9265 = vmatpush.bf16.msra.mxu0 %v7973
    %9266 = vmatpush.bf16.msra.mxu0 %v7966
    %9267 = vmatpush.bf16.msra.mxu0 %v7959
    %9268 = vmatpush.bf16.msra.mxu0 %v7952
    %9269 = vmatpush.bf16.msra.mxu0 %v7945
    %9270 = vmatpush.bf16.msra.mxu0 %v7938
    %9271 = vmatmul.bf16.gmra.mxu0 %v5824
    %v9272 = vpop.f32.mrf.mxu0
    %v9273 = vadd.f32 %v9259, %v9272
    %v9274 = vpop.f32.mrf.mxu0
    %v9275 = vadd.f32 %v9261, %v9274
    %9276 = vdwg.mxu0
    %9277 = vmatpush.bf16.msra.mxu0 %v8043
    %9278 = vmatpush.bf16.msra.mxu0 %v8036
    %9279 = vmatpush.bf16.msra.mxu0 %v8029
    %9280 = vmatpush.bf16.msra.mxu0 %v8022
    %9281 = vmatpush.bf16.msra.mxu0 %v8015
    %9282 = vmatpush.bf16.msra.mxu0 %v8008
    %9283 = vmatpush.bf16.msra.mxu0 %v8001
    %9284 = vmatpush.bf16.msra.mxu0 %v7994
    %9285 = vmatmul.bf16.gmra.mxu0 %v5825
    %v9286 = vpop.f32.mrf.mxu0
    %v9287 = vadd.f32 %v9273, %v9286
    %v9288 = vpop.f32.mrf.mxu0
    %v9289 = vadd.f32 %v9275, %v9288
    %9290 = vdwg.mxu0
    %9291 = vmatpush.bf16.msra.mxu0 %v8099
    %9292 = vmatpush.bf16.msra.mxu0 %v8092
    %9293 = vmatpush.bf16.msra.mxu0 %v8085
    %9294 = vmatpush.bf16.msra.mxu0 %v8078
    %9295 = vmatpush.bf16.msra.mxu0 %v8071
    %9296 = vmatpush.bf16.msra.mxu0 %v8064
    %9297 = vmatpush.bf16.msra.mxu0 %v8057
    %9298 = vmatpush.bf16.msra.mxu0 %v8050
    %9299 = vmatmul.bf16.gmra.mxu0 %v5826
    %v9300 = vpop.f32.mrf.mxu0
    %v9301 = vadd.f32 %v9287, %v9300
    %v9302 = vpop.f32.mrf.mxu0
    %v9303 = vadd.f32 %v9289, %v9302
    %9304 = vdwg.mxu0
    %9305 = vmatpush.bf16.msra.mxu0 %v8155
    %9306 = vmatpush.bf16.msra.mxu0 %v8148
    %9307 = vmatpush.bf16.msra.mxu0 %v8141
    %9308 = vmatpush.bf16.msra.mxu0 %v8134
    %9309 = vmatpush.bf16.msra.mxu0 %v8127
    %9310 = vmatpush.bf16.msra.mxu0 %v8120
    %9311 = vmatpush.bf16.msra.mxu0 %v8113
    %9312 = vmatpush.bf16.msra.mxu0 %v8106
    %9313 = vmatmul.bf16.gmra.mxu0 %v5827
    %v9314 = vpop.f32.mrf.mxu0
    %v9315 = vadd.f32 %v9301, %v9314
    %v9316 = vpop.f32.mrf.mxu0
    %v9317 = vadd.f32 %v9303, %v9316
    %9318 = vdwg.mxu0
    %9319 = vmatpush.bf16.msra.mxu0 %v8211
    %9320 = vmatpush.bf16.msra.mxu0 %v8204
    %9321 = vmatpush.bf16.msra.mxu0 %v8197
    %9322 = vmatpush.bf16.msra.mxu0 %v8190
    %9323 = vmatpush.bf16.msra.mxu0 %v8183
    %9324 = vmatpush.bf16.msra.mxu0 %v8176
    %9325 = vmatpush.bf16.msra.mxu0 %v8169
    %9326 = vmatpush.bf16.msra.mxu0 %v8162
    %9327 = vmatmul.bf16.gmra.mxu0 %v5828
    %v9328 = vpop.f32.mrf.mxu0
    %v9329 = vadd.f32 %v9315, %v9328
    %v9330 = vpop.f32.mrf.mxu0
    %v9331 = vadd.f32 %v9317, %v9330
    %9332 = vdwg.mxu0
    %9333 = vmatpush.bf16.msra.mxu0 %v7820
    %9334 = vmatpush.bf16.msra.mxu0 %v7813
    %9335 = vmatpush.bf16.msra.mxu0 %v7806
    %9336 = vmatpush.bf16.msra.mxu0 %v7799
    %9337 = vmatpush.bf16.msra.mxu0 %v7792
    %9338 = vmatpush.bf16.msra.mxu0 %v7785
    %9339 = vmatpush.bf16.msra.mxu0 %v7778
    %9340 = vmatpush.bf16.msra.mxu0 %v7771
    %9341 = vmatmul.bf16.gmra.mxu0 %v5821
    %v9342 = vpop.f32.mrf.mxu0
    %v9343 = vadd.f32 %v6349, %v9342
    %v9344 = vpop.f32.mrf.mxu0
    %v9345 = vadd.f32 %v6349, %v9344
    %9346 = vdwg.mxu0
    %9347 = vmatpush.bf16.msra.mxu0 %v7876
    %9348 = vmatpush.bf16.msra.mxu0 %v7869
    %9349 = vmatpush.bf16.msra.mxu0 %v7862
    %9350 = vmatpush.bf16.msra.mxu0 %v7855
    %9351 = vmatpush.bf16.msra.mxu0 %v7848
    %9352 = vmatpush.bf16.msra.mxu0 %v7841
    %9353 = vmatpush.bf16.msra.mxu0 %v7834
    %9354 = vmatpush.bf16.msra.mxu0 %v7827
    %9355 = vmatmul.bf16.gmra.mxu0 %v5822
    %v9356 = vpop.f32.mrf.mxu0
    %v9357 = vadd.f32 %v9343, %v9356
    %v9358 = vpop.f32.mrf.mxu0
    %v9359 = vadd.f32 %v9345, %v9358
    %9360 = vdwg.mxu0
    %9361 = vmatpush.bf16.msra.mxu0 %v7932
    %9362 = vmatpush.bf16.msra.mxu0 %v7925
    %9363 = vmatpush.bf16.msra.mxu0 %v7918
    %9364 = vmatpush.bf16.msra.mxu0 %v7911
    %9365 = vmatpush.bf16.msra.mxu0 %v7904
    %9366 = vmatpush.bf16.msra.mxu0 %v7897
    %9367 = vmatpush.bf16.msra.mxu0 %v7890
    %9368 = vmatpush.bf16.msra.mxu0 %v7883
    %9369 = vmatmul.bf16.gmra.mxu0 %v5823
    %v9370 = vpop.f32.mrf.mxu0
    %v9371 = vadd.f32 %v9357, %v9370
    %v9372 = vpop.f32.mrf.mxu0
    %v9373 = vadd.f32 %v9359, %v9372
    %9374 = vdwg.mxu0
    %9375 = vmatpush.bf16.msra.mxu0 %v7988
    %9376 = vmatpush.bf16.msra.mxu0 %v7981
    %9377 = vmatpush.bf16.msra.mxu0 %v7974
    %9378 = vmatpush.bf16.msra.mxu0 %v7967
    %9379 = vmatpush.bf16.msra.mxu0 %v7960
    %9380 = vmatpush.bf16.msra.mxu0 %v7953
    %9381 = vmatpush.bf16.msra.mxu0 %v7946
    %9382 = vmatpush.bf16.msra.mxu0 %v7939
    %9383 = vmatmul.bf16.gmra.mxu0 %v5824
    %v9384 = vpop.f32.mrf.mxu0
    %v9385 = vadd.f32 %v9371, %v9384
    %v9386 = vpop.f32.mrf.mxu0
    %v9387 = vadd.f32 %v9373, %v9386
    %9388 = vdwg.mxu0
    %9389 = vmatpush.bf16.msra.mxu0 %v8044
    %9390 = vmatpush.bf16.msra.mxu0 %v8037
    %9391 = vmatpush.bf16.msra.mxu0 %v8030
    %9392 = vmatpush.bf16.msra.mxu0 %v8023
    %9393 = vmatpush.bf16.msra.mxu0 %v8016
    %9394 = vmatpush.bf16.msra.mxu0 %v8009
    %9395 = vmatpush.bf16.msra.mxu0 %v8002
    %9396 = vmatpush.bf16.msra.mxu0 %v7995
    %9397 = vmatmul.bf16.gmra.mxu0 %v5825
    %v9398 = vpop.f32.mrf.mxu0
    %v9399 = vadd.f32 %v9385, %v9398
    %v9400 = vpop.f32.mrf.mxu0
    %v9401 = vadd.f32 %v9387, %v9400
    %9402 = vdwg.mxu0
    %9403 = vmatpush.bf16.msra.mxu0 %v8100
    %9404 = vmatpush.bf16.msra.mxu0 %v8093
    %9405 = vmatpush.bf16.msra.mxu0 %v8086
    %9406 = vmatpush.bf16.msra.mxu0 %v8079
    %9407 = vmatpush.bf16.msra.mxu0 %v8072
    %9408 = vmatpush.bf16.msra.mxu0 %v8065
    %9409 = vmatpush.bf16.msra.mxu0 %v8058
    %9410 = vmatpush.bf16.msra.mxu0 %v8051
    %9411 = vmatmul.bf16.gmra.mxu0 %v5826
    %v9412 = vpop.f32.mrf.mxu0
    %v9413 = vadd.f32 %v9399, %v9412
    %v9414 = vpop.f32.mrf.mxu0
    %v9415 = vadd.f32 %v9401, %v9414
    %9416 = vdwg.mxu0
    %9417 = vmatpush.bf16.msra.mxu0 %v8156
    %9418 = vmatpush.bf16.msra.mxu0 %v8149
    %9419 = vmatpush.bf16.msra.mxu0 %v8142
    %9420 = vmatpush.bf16.msra.mxu0 %v8135
    %9421 = vmatpush.bf16.msra.mxu0 %v8128
    %9422 = vmatpush.bf16.msra.mxu0 %v8121
    %9423 = vmatpush.bf16.msra.mxu0 %v8114
    %9424 = vmatpush.bf16.msra.mxu0 %v8107
    %9425 = vmatmul.bf16.gmra.mxu0 %v5827
    %v9426 = vpop.f32.mrf.mxu0
    %v9427 = vadd.f32 %v9413, %v9426
    %v9428 = vpop.f32.mrf.mxu0
    %v9429 = vadd.f32 %v9415, %v9428
    %9430 = vdwg.mxu0
    %9431 = vmatpush.bf16.msra.mxu0 %v8212
    %9432 = vmatpush.bf16.msra.mxu0 %v8205
    %9433 = vmatpush.bf16.msra.mxu0 %v8198
    %9434 = vmatpush.bf16.msra.mxu0 %v8191
    %9435 = vmatpush.bf16.msra.mxu0 %v8184
    %9436 = vmatpush.bf16.msra.mxu0 %v8177
    %9437 = vmatpush.bf16.msra.mxu0 %v8170
    %9438 = vmatpush.bf16.msra.mxu0 %v8163
    %9439 = vmatmul.bf16.gmra.mxu0 %v5828
    %v9440 = vpop.f32.mrf.mxu0
    %v9441 = vadd.f32 %v9427, %v9440
    %v9442 = vpop.f32.mrf.mxu0
    %v9443 = vadd.f32 %v9429, %v9442
    %9444 = vdwg.mxu0
    %v9445 = vmax.f32 %v8769, 0.0
    %v9446 = vmax.f32 %v8881, 0.0
    %v9447 = vmax.f32 %v8993, 0.0
    %v9448 = vmax.f32 %v9105, 0.0
    %v9449 = vmax.f32 %v9217, 0.0
    %v9450 = vmax.f32 %v9329, 0.0
    %v9451 = vmax.f32 %v9441, 0.0
    %v9452 = vmax.f32 %v8771, 0.0
    %v9453 = vmax.f32 %v8883, 0.0
    %v9454 = vmax.f32 %v8995, 0.0
    %v9455 = vmax.f32 %v9107, 0.0
    %v9456 = vmax.f32 %v9219, 0.0
    %v9457 = vmax.f32 %v9331, 0.0
    %v9458 = vmax.f32 %v9443, 0.0
    %v9459 = vpack.c.bf16 %v9452, %v9445
    %v9460 = vpack.c.bf16 %v9453, %v9446
    %v9461 = vpack.c.bf16 %v9454, %v9447
    %v9462 = vpack.c.bf16 %v9455, %v9448
    %v9463 = vpack.c.bf16 %v9456, %v9449
    %v9464 = vpack.c.bf16 %v9457, %v9450
    %v9465 = vpack.c.bf16 %v9458, %v9451
    %v9466 = vld [vmem:[#allocation15] sm:$0xff]
    %v9467 = vld [vmem:[#allocation15 + $0x8] sm:$0xff]
    %v9468 = vld [vmem:[#allocation15 + $0x10] sm:$0xff]
    %v9469 = vld [vmem:[#allocation15 + $0x18] sm:$0xff]
    %v9470 = vld [vmem:[#allocation15 + $0x20] sm:$0xff]
    %v9471 = vld [vmem:[#allocation15 + $0x28] sm:$0xff]
    %v9472 = vld [vmem:[#allocation15 + $0x30] sm:$0xff]
    %v9473 = vld [vmem:[#allocation15 + $0x38] sm:$0xff]
    %v9474 = vld [vmem:[#allocation15 + $0x40] sm:$0xff]
    %v9475 = vld [vmem:[#allocation15 + $0x48] sm:$0xff]
    %v9476 = vld [vmem:[#allocation15 + $0x50] sm:$0xff]
    %v9477 = vld [vmem:[#allocation15 + $0x58] sm:$0xff]
    %v9478 = vld [vmem:[#allocation15 + $0x60] sm:$0xff]
    %v9479 = vld [vmem:[#allocation15 + $0x68] sm:$0xff]
    %v9480 = vld [vmem:[#allocation15 + $0x70] sm:$0xff]
    %v9481 = vld [vmem:[#allocation15 + $0x78] sm:$0xff]
    %v9482 = vld [vmem:[#allocation15 + $0x80] sm:$0xff]
    %v9483 = vld [vmem:[#allocation15 + $0x88] sm:$0xff]
    %v9484 = vld [vmem:[#allocation15 + $0x90] sm:$0xff]
    %v9485 = vld [vmem:[#allocation15 + $0x98] sm:$0xff]
    %v9486 = vld [vmem:[#allocation15 + $0xa0] sm:$0xff]
    %v9487 = vld [vmem:[#allocation15 + $0xa8] sm:$0xff]
    %v9488 = vld [vmem:[#allocation15 + $0xb0] sm:$0xff]
    %v9489 = vld [vmem:[#allocation15 + $0xb8] sm:$0xff]
    %v9490 = vld [vmem:[#allocation15 + $0xc0] sm:$0xff]
    %v9491 = vld [vmem:[#allocation15 + $0xc8] sm:$0xff]
    %v9492 = vld [vmem:[#allocation15 + $0xd0] sm:$0xff]
    %v9493 = vld [vmem:[#allocation15 + $0xd8] sm:$0xff]
    %v9494 = vld [vmem:[#allocation15 + $0xe0] sm:$0xff]
    %v9495 = vld [vmem:[#allocation15 + $0xe8] sm:$0xff]
    %v9496 = vld [vmem:[#allocation15 + $0xf0] sm:$0xff]
    %v9497 = vld [vmem:[#allocation15 + $0xf8] sm:$0xff]
    %v9498 = vld [vmem:[#allocation15 + $0x100] sm:$0xff]
    %v9499 = vld [vmem:[#allocation15 + $0x108] sm:$0xff]
    %v9500 = vld [vmem:[#allocation15 + $0x110] sm:$0xff]
    %v9501 = vld [vmem:[#allocation15 + $0x118] sm:$0xff]
    %v9502 = vld [vmem:[#allocation15 + $0x120] sm:$0xff]
    %v9503 = vld [vmem:[#allocation15 + $0x128] sm:$0xff]
    %v9504 = vld [vmem:[#allocation15 + $0x130] sm:$0xff]
    %v9505 = vld [vmem:[#allocation15 + $0x138] sm:$0xff]
    %v9506 = vld [vmem:[#allocation15 + $0x140] sm:$0xff]
    %v9507 = vld [vmem:[#allocation15 + $0x148] sm:$0xff]
    %v9508 = vld [vmem:[#allocation15 + $0x150] sm:$0xff]
    %v9509 = vld [vmem:[#allocation15 + $0x158] sm:$0xff]
    %v9510 = vld [vmem:[#allocation15 + $0x160] sm:$0xff]
    %v9511 = vld [vmem:[#allocation15 + $0x168] sm:$0xff]
    %v9512 = vld [vmem:[#allocation15 + $0x170] sm:$0xff]
    %v9513 = vld [vmem:[#allocation15 + $0x178] sm:$0xff]
    %v9514 = vld [vmem:[#allocation15 + $0x180] sm:$0xff]
    %v9515 = vld [vmem:[#allocation15 + $0x188] sm:$0xff]
    %v9516 = vld [vmem:[#allocation15 + $0x190] sm:$0xff]
    %v9517 = vld [vmem:[#allocation15 + $0x198] sm:$0xff]
    %v9518 = vld [vmem:[#allocation15 + $0x1a0] sm:$0xff]
    %v9519 = vld [vmem:[#allocation15 + $0x1a8] sm:$0xff]
    %v9520 = vld [vmem:[#allocation15 + $0x1b0] sm:$0xff]
    %v9521 = vld [vmem:[#allocation15 + $0x1b8] sm:$0xff]
    %v9522 = vld [vmem:[#allocation15 + $0x1c0] sm:$0xff]
    %v9523 = vld [vmem:[#allocation15 + $0x1c8] sm:$0xff]
    %v9524 = vld [vmem:[#allocation15 + $0x1d0] sm:$0xff]
    %v9525 = vld [vmem:[#allocation15 + $0x1d8] sm:$0xff]
    %v9526 = vld [vmem:[#allocation15 + $0x1e0] sm:$0xff]
    %v9527 = vld [vmem:[#allocation15 + $0x1e8] sm:$0xff]
    %v9528 = vld [vmem:[#allocation15 + $0x1f0] sm:$0xff]
    %v9529 = vld [vmem:[#allocation15 + $0x1f8] sm:$0xff]
    %v9530 = vld [vmem:[#allocation15 + $0x200] sm:$0xff]
    %v9531 = vld [vmem:[#allocation15 + $0x208] sm:$0xff]
    %v9532 = vld [vmem:[#allocation15 + $0x210] sm:$0xff]
    %v9533 = vld [vmem:[#allocation15 + $0x218] sm:$0xff]
    %v9534 = vld [vmem:[#allocation15 + $0x220] sm:$0xff]
    %v9535 = vld [vmem:[#allocation15 + $0x228] sm:$0xff]
    %v9536 = vld [vmem:[#allocation15 + $0x230] sm:$0xff]
    %v9537 = vld [vmem:[#allocation15 + $0x238] sm:$0xff]
    %v9538 = vld [vmem:[#allocation15 + $0x240] sm:$0xff]
    %v9539 = vld [vmem:[#allocation15 + $0x248] sm:$0xff]
    %v9540 = vld [vmem:[#allocation15 + $0x250] sm:$0xff]
    %v9541 = vld [vmem:[#allocation15 + $0x258] sm:$0xff]
    %v9542 = vld [vmem:[#allocation15 + $0x260] sm:$0xff]
    %v9543 = vld [vmem:[#allocation15 + $0x268] sm:$0xff]
    %v9544 = vld [vmem:[#allocation15 + $0x270] sm:$0xff]
    %v9545 = vld [vmem:[#allocation15 + $0x278] sm:$0xff]
    %v9546 = vld [vmem:[#allocation15 + $0x280] sm:$0xff]
    %v9547 = vld [vmem:[#allocation15 + $0x288] sm:$0xff]
    %v9548 = vld [vmem:[#allocation15 + $0x290] sm:$0xff]
    %v9549 = vld [vmem:[#allocation15 + $0x298] sm:$0xff]
    %v9550 = vld [vmem:[#allocation15 + $0x2a0] sm:$0xff]
    %v9551 = vld [vmem:[#allocation15 + $0x2a8] sm:$0xff]
    %v9552 = vld [vmem:[#allocation15 + $0x2b0] sm:$0xff]
    %v9553 = vld [vmem:[#allocation15 + $0x2b8] sm:$0xff]
    %v9554 = vld [vmem:[#allocation15 + $0x2c0] sm:$0xff]
    %v9555 = vld [vmem:[#allocation15 + $0x2c8] sm:$0xff]
    %v9556 = vld [vmem:[#allocation15 + $0x2d0] sm:$0xff]
    %v9557 = vld [vmem:[#allocation15 + $0x2d8] sm:$0xff]
    %v9558 = vld [vmem:[#allocation15 + $0x2e0] sm:$0xff]
    %v9559 = vld [vmem:[#allocation15 + $0x2e8] sm:$0xff]
    %v9560 = vld [vmem:[#allocation15 + $0x2f0] sm:$0xff]
    %v9561 = vld [vmem:[#allocation15 + $0x2f8] sm:$0xff]
    %v9562 = vld [vmem:[#allocation15 + $0x300] sm:$0xff]
    %v9563 = vld [vmem:[#allocation15 + $0x308] sm:$0xff]
    %v9564 = vld [vmem:[#allocation15 + $0x310] sm:$0xff]
    %v9565 = vld [vmem:[#allocation15 + $0x318] sm:$0xff]
    %v9566 = vld [vmem:[#allocation15 + $0x320] sm:$0xff]
    %v9567 = vld [vmem:[#allocation15 + $0x328] sm:$0xff]
    %v9568 = vld [vmem:[#allocation15 + $0x330] sm:$0xff]
    %v9569 = vld [vmem:[#allocation15 + $0x338] sm:$0xff]
    %v9570 = vld [vmem:[#allocation15 + $0x340] sm:$0xff]
    %v9571 = vld [vmem:[#allocation15 + $0x348] sm:$0xff]
    %v9572 = vld [vmem:[#allocation15 + $0x350] sm:$0xff]
    %v9573 = vld [vmem:[#allocation15 + $0x358] sm:$0xff]
    %v9574 = vld [vmem:[#allocation15 + $0x360] sm:$0xff]
    %v9575 = vld [vmem:[#allocation15 + $0x368] sm:$0xff]
    %v9576 = vld [vmem:[#allocation15 + $0x370] sm:$0xff]
    %v9577 = vld [vmem:[#allocation15 + $0x378] sm:$0xff]
    %v9578 = vld [vmem:[#allocation16] sm:$0x3]
    %v9580 = vperm.slane %v9578, 0
    %v9581 = vperm.slane %v9578, 1
    %v9696 = vunpack.c.l.b16 %v9466
    %v9697 = vunpack.c.h.b16 %v9466
    %v9698 = vunpack.c.l.b16 %v9467
    %v9699 = vunpack.c.h.b16 %v9467
    %v9700 = vunpack.c.l.b16 %v9468
    %v9701 = vunpack.c.h.b16 %v9468
    %v9702 = vunpack.c.l.b16 %v9469
    %v9703 = vunpack.c.h.b16 %v9469
    %v9704 = vunpack.c.l.b16 %v9470
    %v9705 = vunpack.c.h.b16 %v9470
    %v9706 = vunpack.c.l.b16 %v9471
    %v9707 = vunpack.c.h.b16 %v9471
    %v9708 = vunpack.c.l.b16 %v9472
    %v9709 = vunpack.c.h.b16 %v9472
    %v9710 = vunpack.c.l.b16 %v9473
    %v9711 = vunpack.c.h.b16 %v9473
    %v9712 = vunpack.c.l.b16 %v9474
    %v9713 = vunpack.c.h.b16 %v9474
    %v9714 = vunpack.c.l.b16 %v9475
    %v9715 = vunpack.c.h.b16 %v9475
    %v9716 = vunpack.c.l.b16 %v9476
    %v9717 = vunpack.c.h.b16 %v9476
    %v9718 = vunpack.c.l.b16 %v9477
    %v9719 = vunpack.c.h.b16 %v9477
    %v9720 = vunpack.c.l.b16 %v9478
    %v9721 = vunpack.c.h.b16 %v9478
    %v9722 = vunpack.c.l.b16 %v9479
    %v9723 = vunpack.c.h.b16 %v9479
    %v9724 = vunpack.c.l.b16 %v9480
    %v9725 = vunpack.c.h.b16 %v9480
    %v9726 = vunpack.c.l.b16 %v9481
    %v9727 = vunpack.c.h.b16 %v9481
    %v9728 = vunpack.c.l.b16 %v9482
    %v9729 = vunpack.c.h.b16 %v9482
    %v9730 = vunpack.c.l.b16 %v9483
    %v9731 = vunpack.c.h.b16 %v9483
    %v9732 = vunpack.c.l.b16 %v9484
    %v9733 = vunpack.c.h.b16 %v9484
    %v9734 = vunpack.c.l.b16 %v9485
    %v9735 = vunpack.c.h.b16 %v9485
    %v9736 = vunpack.c.l.b16 %v9486
    %v9737 = vunpack.c.h.b16 %v9486
    %v9738 = vunpack.c.l.b16 %v9487
    %v9739 = vunpack.c.h.b16 %v9487
    %v9740 = vunpack.c.l.b16 %v9488
    %v9741 = vunpack.c.h.b16 %v9488
    %v9742 = vunpack.c.l.b16 %v9489
    %v9743 = vunpack.c.h.b16 %v9489
    %v9744 = vunpack.c.l.b16 %v9490
    %v9745 = vunpack.c.h.b16 %v9490
    %v9746 = vunpack.c.l.b16 %v9491
    %v9747 = vunpack.c.h.b16 %v9491
    %v9748 = vunpack.c.l.b16 %v9492
    %v9749 = vunpack.c.h.b16 %v9492
    %v9750 = vunpack.c.l.b16 %v9493
    %v9751 = vunpack.c.h.b16 %v9493
    %v9752 = vunpack.c.l.b16 %v9494
    %v9753 = vunpack.c.h.b16 %v9494
    %v9754 = vunpack.c.l.b16 %v9495
    %v9755 = vunpack.c.h.b16 %v9495
    %v9756 = vunpack.c.l.b16 %v9496
    %v9757 = vunpack.c.h.b16 %v9496
    %v9758 = vunpack.c.l.b16 %v9497
    %v9759 = vunpack.c.h.b16 %v9497
    %v9760 = vunpack.c.l.b16 %v9498
    %v9761 = vunpack.c.h.b16 %v9498
    %v9762 = vunpack.c.l.b16 %v9499
    %v9763 = vunpack.c.h.b16 %v9499
    %v9764 = vunpack.c.l.b16 %v9500
    %v9765 = vunpack.c.h.b16 %v9500
    %v9766 = vunpack.c.l.b16 %v9501
    %v9767 = vunpack.c.h.b16 %v9501
    %v9768 = vunpack.c.l.b16 %v9502
    %v9769 = vunpack.c.h.b16 %v9502
    %v9770 = vunpack.c.l.b16 %v9503
    %v9771 = vunpack.c.h.b16 %v9503
    %v9772 = vunpack.c.l.b16 %v9504
    %v9773 = vunpack.c.h.b16 %v9504
    %v9774 = vunpack.c.l.b16 %v9505
    %v9775 = vunpack.c.h.b16 %v9505
    %v9776 = vunpack.c.l.b16 %v9506
    %v9777 = vunpack.c.h.b16 %v9506
    %v9778 = vunpack.c.l.b16 %v9507
    %v9779 = vunpack.c.h.b16 %v9507
    %v9780 = vunpack.c.l.b16 %v9508
    %v9781 = vunpack.c.h.b16 %v9508
    %v9782 = vunpack.c.l.b16 %v9509
    %v9783 = vunpack.c.h.b16 %v9509
    %v9784 = vunpack.c.l.b16 %v9510
    %v9785 = vunpack.c.h.b16 %v9510
    %v9786 = vunpack.c.l.b16 %v9511
    %v9787 = vunpack.c.h.b16 %v9511
    %v9788 = vunpack.c.l.b16 %v9512
    %v9789 = vunpack.c.h.b16 %v9512
    %v9790 = vunpack.c.l.b16 %v9513
    %v9791 = vunpack.c.h.b16 %v9513
    %v9792 = vunpack.c.l.b16 %v9514
    %v9793 = vunpack.c.h.b16 %v9514
    %v9794 = vunpack.c.l.b16 %v9515
    %v9795 = vunpack.c.h.b16 %v9515
    %v9796 = vunpack.c.l.b16 %v9516
    %v9797 = vunpack.c.h.b16 %v9516
    %v9798 = vunpack.c.l.b16 %v9517
    %v9799 = vunpack.c.h.b16 %v9517
    %v9800 = vunpack.c.l.b16 %v9518
    %v9801 = vunpack.c.h.b16 %v9518
    %v9802 = vunpack.c.l.b16 %v9519
    %v9803 = vunpack.c.h.b16 %v9519
    %v9804 = vunpack.c.l.b16 %v9520
    %v9805 = vunpack.c.h.b16 %v9520
    %v9806 = vunpack.c.l.b16 %v9521
    %v9807 = vunpack.c.h.b16 %v9521
    %v9808 = vunpack.c.l.b16 %v9522
    %v9809 = vunpack.c.h.b16 %v9522
    %v9810 = vunpack.c.l.b16 %v9523
    %v9811 = vunpack.c.h.b16 %v9523
    %v9812 = vunpack.c.l.b16 %v9524
    %v9813 = vunpack.c.h.b16 %v9524
    %v9814 = vunpack.c.l.b16 %v9525
    %v9815 = vunpack.c.h.b16 %v9525
    %v9816 = vunpack.c.l.b16 %v9526
    %v9817 = vunpack.c.h.b16 %v9526
    %v9818 = vunpack.c.l.b16 %v9527
    %v9819 = vunpack.c.h.b16 %v9527
    %v9820 = vunpack.c.l.b16 %v9528
    %v9821 = vunpack.c.h.b16 %v9528
    %v9822 = vunpack.c.l.b16 %v9529
    %v9823 = vunpack.c.h.b16 %v9529
    %v9824 = vunpack.c.l.b16 %v9530
    %v9825 = vunpack.c.h.b16 %v9530
    %v9826 = vunpack.c.l.b16 %v9531
    %v9827 = vunpack.c.h.b16 %v9531
    %v9828 = vunpack.c.l.b16 %v9532
    %v9829 = vunpack.c.h.b16 %v9532
    %v9830 = vunpack.c.l.b16 %v9533
    %v9831 = vunpack.c.h.b16 %v9533
    %v9832 = vunpack.c.l.b16 %v9534
    %v9833 = vunpack.c.h.b16 %v9534
    %v9834 = vunpack.c.l.b16 %v9535
    %v9835 = vunpack.c.h.b16 %v9535
    %v9836 = vunpack.c.l.b16 %v9536
    %v9837 = vunpack.c.h.b16 %v9536
    %v9838 = vunpack.c.l.b16 %v9537
    %v9839 = vunpack.c.h.b16 %v9537
    %v9840 = vunpack.c.l.b16 %v9538
    %v9841 = vunpack.c.h.b16 %v9538
    %v9842 = vunpack.c.l.b16 %v9539
    %v9843 = vunpack.c.h.b16 %v9539
    %v9844 = vunpack.c.l.b16 %v9540
    %v9845 = vunpack.c.h.b16 %v9540
    %v9846 = vunpack.c.l.b16 %v9541
    %v9847 = vunpack.c.h.b16 %v9541
    %v9848 = vunpack.c.l.b16 %v9542
    %v9849 = vunpack.c.h.b16 %v9542
    %v9850 = vunpack.c.l.b16 %v9543
    %v9851 = vunpack.c.h.b16 %v9543
    %v9852 = vunpack.c.l.b16 %v9544
    %v9853 = vunpack.c.h.b16 %v9544
    %v9854 = vunpack.c.l.b16 %v9545
    %v9855 = vunpack.c.h.b16 %v9545
    %v9856 = vunpack.c.l.b16 %v9546
    %v9857 = vunpack.c.h.b16 %v9546
    %v9858 = vunpack.c.l.b16 %v9547
    %v9859 = vunpack.c.h.b16 %v9547
    %v9860 = vunpack.c.l.b16 %v9548
    %v9861 = vunpack.c.h.b16 %v9548
    %v9862 = vunpack.c.l.b16 %v9549
    %v9863 = vunpack.c.h.b16 %v9549
    %v9864 = vunpack.c.l.b16 %v9550
    %v9865 = vunpack.c.h.b16 %v9550
    %v9866 = vunpack.c.l.b16 %v9551
    %v9867 = vunpack.c.h.b16 %v9551
    %v9868 = vunpack.c.l.b16 %v9552
    %v9869 = vunpack.c.h.b16 %v9552
    %v9870 = vunpack.c.l.b16 %v9553
    %v9871 = vunpack.c.h.b16 %v9553
    %v9872 = vunpack.c.l.b16 %v9554
    %v9873 = vunpack.c.h.b16 %v9554
    %v9874 = vunpack.c.l.b16 %v9555
    %v9875 = vunpack.c.h.b16 %v9555
    %v9876 = vunpack.c.l.b16 %v9556
    %v9877 = vunpack.c.h.b16 %v9556
    %v9878 = vunpack.c.l.b16 %v9557
    %v9879 = vunpack.c.h.b16 %v9557
    %v9880 = vunpack.c.l.b16 %v9558
    %v9881 = vunpack.c.h.b16 %v9558
    %v9882 = vunpack.c.l.b16 %v9559
    %v9883 = vunpack.c.h.b16 %v9559
    %v9884 = vunpack.c.l.b16 %v9560
    %v9885 = vunpack.c.h.b16 %v9560
    %v9886 = vunpack.c.l.b16 %v9561
    %v9887 = vunpack.c.h.b16 %v9561
    %v9888 = vunpack.c.l.b16 %v9562
    %v9889 = vunpack.c.h.b16 %v9562
    %v9890 = vunpack.c.l.b16 %v9563
    %v9891 = vunpack.c.h.b16 %v9563
    %v9892 = vunpack.c.l.b16 %v9564
    %v9893 = vunpack.c.h.b16 %v9564
    %v9894 = vunpack.c.l.b16 %v9565
    %v9895 = vunpack.c.h.b16 %v9565
    %v9896 = vunpack.c.l.b16 %v9566
    %v9897 = vunpack.c.h.b16 %v9566
    %v9898 = vunpack.c.l.b16 %v9567
    %v9899 = vunpack.c.h.b16 %v9567
    %v9900 = vunpack.c.l.b16 %v9568
    %v9901 = vunpack.c.h.b16 %v9568
    %v9902 = vunpack.c.l.b16 %v9569
    %v9903 = vunpack.c.h.b16 %v9569
    %v9904 = vunpack.c.l.b16 %v9570
    %v9905 = vunpack.c.h.b16 %v9570
    %v9906 = vunpack.c.l.b16 %v9571
    %v9907 = vunpack.c.h.b16 %v9571
    %v9908 = vunpack.c.l.b16 %v9572
    %v9909 = vunpack.c.h.b16 %v9572
    %v9910 = vunpack.c.l.b16 %v9573
    %v9911 = vunpack.c.h.b16 %v9573
    %v9912 = vunpack.c.l.b16 %v9574
    %v9913 = vunpack.c.h.b16 %v9574
    %v9914 = vunpack.c.l.b16 %v9575
    %v9915 = vunpack.c.h.b16 %v9575
    %v9916 = vunpack.c.l.b16 %v9576
    %v9917 = vunpack.c.h.b16 %v9576
    %v9918 = vunpack.c.l.b16 %v9577
    %v9919 = vunpack.c.h.b16 %v9577
    %v9920 = vpack.c.b16 %v9698, %v9696
    %v9921 = vpack.c.b16 %v9699, %v9697
    %v9922 = vpack.c.b16 %v9702, %v9700
    %v9923 = vpack.c.b16 %v9703, %v9701
    %v9924 = vpack.c.b16 %v9706, %v9704
    %v9925 = vpack.c.b16 %v9707, %v9705
    %v9926 = vpack.c.b16 %v9710, %v9708
    %v9927 = vpack.c.b16 %v9711, %v9709
    %v9928 = vpack.c.b16 %v9714, %v9712
    %v9929 = vpack.c.b16 %v9715, %v9713
    %v9930 = vpack.c.b16 %v9718, %v9716
    %v9931 = vpack.c.b16 %v9719, %v9717
    %v9932 = vpack.c.b16 %v9722, %v9720
    %v9933 = vpack.c.b16 %v9723, %v9721
    %v9934 = vpack.c.b16 %v9726, %v9724
    %v9935 = vpack.c.b16 %v9727, %v9725
    %v9936 = vpack.c.b16 %v9730, %v9728
    %v9937 = vpack.c.b16 %v9731, %v9729
    %v9938 = vpack.c.b16 %v9734, %v9732
    %v9939 = vpack.c.b16 %v9735, %v9733
    %v9940 = vpack.c.b16 %v9738, %v9736
    %v9941 = vpack.c.b16 %v9739, %v9737
    %v9942 = vpack.c.b16 %v9742, %v9740
    %v9943 = vpack.c.b16 %v9743, %v9741
    %v9944 = vpack.c.b16 %v9746, %v9744
    %v9945 = vpack.c.b16 %v9747, %v9745
    %v9946 = vpack.c.b16 %v9750, %v9748
    %v9947 = vpack.c.b16 %v9751, %v9749
    %v9948 = vpack.c.b16 %v9754, %v9752
    %v9949 = vpack.c.b16 %v9755, %v9753
    %v9950 = vpack.c.b16 %v9758, %v9756
    %v9951 = vpack.c.b16 %v9759, %v9757
    %v9952 = vpack.c.b16 %v9762, %v9760
    %v9953 = vpack.c.b16 %v9763, %v9761
    %v9954 = vpack.c.b16 %v9766, %v9764
    %v9955 = vpack.c.b16 %v9767, %v9765
    %v9956 = vpack.c.b16 %v9770, %v9768
    %v9957 = vpack.c.b16 %v9771, %v9769
    %v9958 = vpack.c.b16 %v9774, %v9772
    %v9959 = vpack.c.b16 %v9775, %v9773
    %v9960 = vpack.c.b16 %v9778, %v9776
    %v9961 = vpack.c.b16 %v9779, %v9777
    %v9962 = vpack.c.b16 %v9782, %v9780
    %v9963 = vpack.c.b16 %v9783, %v9781
    %v9964 = vpack.c.b16 %v9786, %v9784
    %v9965 = vpack.c.b16 %v9787, %v9785
    %v9966 = vpack.c.b16 %v9790, %v9788
    %v9967 = vpack.c.b16 %v9791, %v9789
    %v9968 = vpack.c.b16 %v9794, %v9792
    %v9969 = vpack.c.b16 %v9795, %v9793
    %v9970 = vpack.c.b16 %v9798, %v9796
    %v9971 = vpack.c.b16 %v9799, %v9797
    %v9972 = vpack.c.b16 %v9802, %v9800
    %v9973 = vpack.c.b16 %v9803, %v9801
    %v9974 = vpack.c.b16 %v9806, %v9804
    %v9975 = vpack.c.b16 %v9807, %v9805
    %v9976 = vpack.c.b16 %v9810, %v9808
    %v9977 = vpack.c.b16 %v9811, %v9809
    %v9978 = vpack.c.b16 %v9814, %v9812
    %v9979 = vpack.c.b16 %v9815, %v9813
    %v9980 = vpack.c.b16 %v9818, %v9816
    %v9981 = vpack.c.b16 %v9819, %v9817
    %v9982 = vpack.c.b16 %v9822, %v9820
    %v9983 = vpack.c.b16 %v9823, %v9821
    %v9984 = vpack.c.b16 %v9826, %v9824
    %v9985 = vpack.c.b16 %v9827, %v9825
    %v9986 = vpack.c.b16 %v9830, %v9828
    %v9987 = vpack.c.b16 %v9831, %v9829
    %v9988 = vpack.c.b16 %v9834, %v9832
    %v9989 = vpack.c.b16 %v9835, %v9833
    %v9990 = vpack.c.b16 %v9838, %v9836
    %v9991 = vpack.c.b16 %v9839, %v9837
    %v9992 = vpack.c.b16 %v9842, %v9840
    %v9993 = vpack.c.b16 %v9843, %v9841
    %v9994 = vpack.c.b16 %v9846, %v9844
    %v9995 = vpack.c.b16 %v9847, %v9845
    %v9996 = vpack.c.b16 %v9850, %v9848
    %v9997 = vpack.c.b16 %v9851, %v9849
    %v9998 = vpack.c.b16 %v9854, %v9852
    %v9999 = vpack.c.b16 %v9855, %v9853
    %v10000 = vpack.c.b16 %v9858, %v9856
    %v10001 = vpack.c.b16 %v9859, %v9857
    %v10002 = vpack.c.b16 %v9862, %v9860
    %v10003 = vpack.c.b16 %v9863, %v9861
    %v10004 = vpack.c.b16 %v9866, %v9864
    %v10005 = vpack.c.b16 %v9867, %v9865
    %v10006 = vpack.c.b16 %v9870, %v9868
    %v10007 = vpack.c.b16 %v9871, %v9869
    %v10008 = vpack.c.b16 %v9874, %v9872
    %v10009 = vpack.c.b16 %v9875, %v9873
    %v10010 = vpack.c.b16 %v9878, %v9876
    %v10011 = vpack.c.b16 %v9879, %v9877
    %v10012 = vpack.c.b16 %v9882, %v9880
    %v10013 = vpack.c.b16 %v9883, %v9881
    %v10014 = vpack.c.b16 %v9886, %v9884
    %v10015 = vpack.c.b16 %v9887, %v9885
    %v10016 = vpack.c.b16 %v9890, %v9888
    %v10017 = vpack.c.b16 %v9891, %v9889
    %v10018 = vpack.c.b16 %v9894, %v9892
    %v10019 = vpack.c.b16 %v9895, %v9893
    %v10020 = vpack.c.b16 %v9898, %v9896
    %v10021 = vpack.c.b16 %v9899, %v9897
    %v10022 = vpack.c.b16 %v9902, %v9900
    %v10023 = vpack.c.b16 %v9903, %v9901
    %v10024 = vpack.c.b16 %v9906, %v9904
    %v10025 = vpack.c.b16 %v9907, %v9905
    %v10026 = vpack.c.b16 %v9910, %v9908
    %v10027 = vpack.c.b16 %v9911, %v9909
    %v10028 = vpack.c.b16 %v9914, %v9912
    %v10029 = vpack.c.b16 %v9915, %v9913
    %v10030 = vpack.c.b16 %v9918, %v9916
    %v10031 = vpack.c.b16 %v9919, %v9917
    %10144 = vmatpush.bf16.msra.mxu0 %v9934
    %10145 = vmatpush.bf16.msra.mxu0 %v9932
    %10146 = vmatpush.bf16.msra.mxu0 %v9930
    %10147 = vmatpush.bf16.msra.mxu0 %v9928
    %10148 = vmatpush.bf16.msra.mxu0 %v9926
    %10149 = vmatpush.bf16.msra.mxu0 %v9924
    %10150 = vmatpush.bf16.msra.mxu0 %v9922
    %10151 = vmatpush.bf16.msra.mxu0 %v9920
    %10152 = vmatmul.bf16.gmra.mxu0 %v9459
    %v10153 = vpop.f32.mrf.mxu0
    %v10154 = vadd.f32 %v9580, %v10153
    %v10155 = vpop.f32.mrf.mxu0
    %v10156 = vadd.f32 %v9580, %v10155
    %10157 = vdwg.mxu0
    %10158 = vmatpush.bf16.msra.mxu0 %v9950
    %10159 = vmatpush.bf16.msra.mxu0 %v9948
    %10160 = vmatpush.bf16.msra.mxu0 %v9946
    %10161 = vmatpush.bf16.msra.mxu0 %v9944
    %10162 = vmatpush.bf16.msra.mxu0 %v9942
    %10163 = vmatpush.bf16.msra.mxu0 %v9940
    %10164 = vmatpush.bf16.msra.mxu0 %v9938
    %10165 = vmatpush.bf16.msra.mxu0 %v9936
    %10166 = vmatmul.bf16.gmra.mxu0 %v9460
    %v10167 = vpop.f32.mrf.mxu0
    %v10168 = vadd.f32 %v10154, %v10167
    %v10169 = vpop.f32.mrf.mxu0
    %v10170 = vadd.f32 %v10156, %v10169
    %10171 = vdwg.mxu0
    %10172 = vmatpush.bf16.msra.mxu0 %v9966
    %10173 = vmatpush.bf16.msra.mxu0 %v9964
    %10174 = vmatpush.bf16.msra.mxu0 %v9962
    %10175 = vmatpush.bf16.msra.mxu0 %v9960
    %10176 = vmatpush.bf16.msra.mxu0 %v9958
    %10177 = vmatpush.bf16.msra.mxu0 %v9956
    %10178 = vmatpush.bf16.msra.mxu0 %v9954
    %10179 = vmatpush.bf16.msra.mxu0 %v9952
    %10180 = vmatmul.bf16.gmra.mxu0 %v9461
    %v10181 = vpop.f32.mrf.mxu0
    %v10182 = vadd.f32 %v10168, %v10181
    %v10183 = vpop.f32.mrf.mxu0
    %v10184 = vadd.f32 %v10170, %v10183
    %10185 = vdwg.mxu0
    %10186 = vmatpush.bf16.msra.mxu0 %v9982
    %10187 = vmatpush.bf16.msra.mxu0 %v9980
    %10188 = vmatpush.bf16.msra.mxu0 %v9978
    %10189 = vmatpush.bf16.msra.mxu0 %v9976
    %10190 = vmatpush.bf16.msra.mxu0 %v9974
    %10191 = vmatpush.bf16.msra.mxu0 %v9972
    %10192 = vmatpush.bf16.msra.mxu0 %v9970
    %10193 = vmatpush.bf16.msra.mxu0 %v9968
    %10194 = vmatmul.bf16.gmra.mxu0 %v9462
    %v10195 = vpop.f32.mrf.mxu0
    %v10196 = vadd.f32 %v10182, %v10195
    %v10197 = vpop.f32.mrf.mxu0
    %v10198 = vadd.f32 %v10184, %v10197
    %10199 = vdwg.mxu0
    %10200 = vmatpush.bf16.msra.mxu0 %v9998
    %10201 = vmatpush.bf16.msra.mxu0 %v9996
    %10202 = vmatpush.bf16.msra.mxu0 %v9994
    %10203 = vmatpush.bf16.msra.mxu0 %v9992
    %10204 = vmatpush.bf16.msra.mxu0 %v9990
    %10205 = vmatpush.bf16.msra.mxu0 %v9988
    %10206 = vmatpush.bf16.msra.mxu0 %v9986
    %10207 = vmatpush.bf16.msra.mxu0 %v9984
    %10208 = vmatmul.bf16.gmra.mxu0 %v9463
    %v10209 = vpop.f32.mrf.mxu0
    %v10210 = vadd.f32 %v10196, %v10209
    %v10211 = vpop.f32.mrf.mxu0
    %v10212 = vadd.f32 %v10198, %v10211
    %10213 = vdwg.mxu0
    %10214 = vmatpush.bf16.msra.mxu0 %v10014
    %10215 = vmatpush.bf16.msra.mxu0 %v10012
    %10216 = vmatpush.bf16.msra.mxu0 %v10010
    %10217 = vmatpush.bf16.msra.mxu0 %v10008
    %10218 = vmatpush.bf16.msra.mxu0 %v10006
    %10219 = vmatpush.bf16.msra.mxu0 %v10004
    %10220 = vmatpush.bf16.msra.mxu0 %v10002
    %10221 = vmatpush.bf16.msra.mxu0 %v10000
    %10222 = vmatmul.bf16.gmra.mxu0 %v9464
    %v10223 = vpop.f32.mrf.mxu0
    %v10224 = vadd.f32 %v10210, %v10223
    %v10225 = vpop.f32.mrf.mxu0
    %v10226 = vadd.f32 %v10212, %v10225
    %10227 = vdwg.mxu0
    %10228 = vmatpush.bf16.msra.mxu0 %v10030
    %10229 = vmatpush.bf16.msra.mxu0 %v10028
    %10230 = vmatpush.bf16.msra.mxu0 %v10026
    %10231 = vmatpush.bf16.msra.mxu0 %v10024
    %10232 = vmatpush.bf16.msra.mxu0 %v10022
    %10233 = vmatpush.bf16.msra.mxu0 %v10020
    %10234 = vmatpush.bf16.msra.mxu0 %v10018
    %10235 = vmatpush.bf16.msra.mxu0 %v10016
    %10236 = vmatmul.bf16.gmra.mxu0 %v9465
    %v10237 = vpop.f32.mrf.mxu0
    %v10238 = vadd.f32 %v10224, %v10237
    %v10239 = vpop.f32.mrf.mxu0
    %v10240 = vadd.f32 %v10226, %v10239
    %10241 = vdwg.mxu0
    %10242 = vmatpush.bf16.msra.mxu0 %v9935
    %10243 = vmatpush.bf16.msra.mxu0 %v9933
    %10244 = vmatpush.bf16.msra.mxu0 %v9931
    %10245 = vmatpush.bf16.msra.mxu0 %v9929
    %10246 = vmatpush.bf16.msra.mxu0 %v9927
    %10247 = vmatpush.bf16.msra.mxu0 %v9925
    %10248 = vmatpush.bf16.msra.mxu0 %v9923
    %10249 = vmatpush.bf16.msra.mxu0 %v9921
    %10250 = vmatmul.bf16.gmra.mxu0 %v9459
    %v10251 = vpop.f32.mrf.mxu0
    %v10252 = vadd.f32 %v9581, %v10251
    %v10253 = vpop.f32.mrf.mxu0
    %v10254 = vadd.f32 %v9581, %v10253
    %10255 = vdwg.mxu0
    %10256 = vmatpush.bf16.msra.mxu0 %v9951
    %10257 = vmatpush.bf16.msra.mxu0 %v9949
    %10258 = vmatpush.bf16.msra.mxu0 %v9947
    %10259 = vmatpush.bf16.msra.mxu0 %v9945
    %10260 = vmatpush.bf16.msra.mxu0 %v9943
    %10261 = vmatpush.bf16.msra.mxu0 %v9941
    %10262 = vmatpush.bf16.msra.mxu0 %v9939
    %10263 = vmatpush.bf16.msra.mxu0 %v9937
    %10264 = vmatmul.bf16.gmra.mxu0 %v9460
    %v10265 = vpop.f32.mrf.mxu0
    %v10266 = vadd.f32 %v10252, %v10265
    %v10267 = vpop.f32.mrf.mxu0
    %v10268 = vadd.f32 %v10254, %v10267
    %10269 = vdwg.mxu0
    %10270 = vmatpush.bf16.msra.mxu0 %v9967
    %10271 = vmatpush.bf16.msra.mxu0 %v9965
    %10272 = vmatpush.bf16.msra.mxu0 %v9963
    %10273 = vmatpush.bf16.msra.mxu0 %v9961
    %10274 = vmatpush.bf16.msra.mxu0 %v9959
    %10275 = vmatpush.bf16.msra.mxu0 %v9957
    %10276 = vmatpush.bf16.msra.mxu0 %v9955
    %10277 = vmatpush.bf16.msra.mxu0 %v9953
    %10278 = vmatmul.bf16.gmra.mxu0 %v9461
    %v10279 = vpop.f32.mrf.mxu0
    %v10280 = vadd.f32 %v10266, %v10279
    %v10281 = vpop.f32.mrf.mxu0
    %v10282 = vadd.f32 %v10268, %v10281
    %10283 = vdwg.mxu0
    %10284 = vmatpush.bf16.msra.mxu0 %v9983
    %10285 = vmatpush.bf16.msra.mxu0 %v9981
    %10286 = vmatpush.bf16.msra.mxu0 %v9979
    %10287 = vmatpush.bf16.msra.mxu0 %v9977
    %10288 = vmatpush.bf16.msra.mxu0 %v9975
    %10289 = vmatpush.bf16.msra.mxu0 %v9973
    %10290 = vmatpush.bf16.msra.mxu0 %v9971
    %10291 = vmatpush.bf16.msra.mxu0 %v9969
    %10292 = vmatmul.bf16.gmra.mxu0 %v9462
    %v10293 = vpop.f32.mrf.mxu0
    %v10294 = vadd.f32 %v10280, %v10293
    %v10295 = vpop.f32.mrf.mxu0
    %v10296 = vadd.f32 %v10282, %v10295
    %10297 = vdwg.mxu0
    %10298 = vmatpush.bf16.msra.mxu0 %v9999
    %10299 = vmatpush.bf16.msra.mxu0 %v9997
    %10300 = vmatpush.bf16.msra.mxu0 %v9995
    %10301 = vmatpush.bf16.msra.mxu0 %v9993
    %10302 = vmatpush.bf16.msra.mxu0 %v9991
    %10303 = vmatpush.bf16.msra.mxu0 %v9989
    %10304 = vmatpush.bf16.msra.mxu0 %v9987
    %10305 = vmatpush.bf16.msra.mxu0 %v9985
    %10306 = vmatmul.bf16.gmra.mxu0 %v9463
    %v10307 = vpop.f32.mrf.mxu0
    %v10308 = vadd.f32 %v10294, %v10307
    %v10309 = vpop.f32.mrf.mxu0
    %v10310 = vadd.f32 %v10296, %v10309
    %10311 = vdwg.mxu0
    %10312 = vmatpush.bf16.msra.mxu0 %v10015
    %10313 = vmatpush.bf16.msra.mxu0 %v10013
    %10314 = vmatpush.bf16.msra.mxu0 %v10011
    %10315 = vmatpush.bf16.msra.mxu0 %v10009
    %10316 = vmatpush.bf16.msra.mxu0 %v10007
    %10317 = vmatpush.bf16.msra.mxu0 %v10005
    %10318 = vmatpush.bf16.msra.mxu0 %v10003
    %10319 = vmatpush.bf16.msra.mxu0 %v10001
    %10320 = vmatmul.bf16.gmra.mxu0 %v9464
    %v10321 = vpop.f32.mrf.mxu0
    %v10322 = vadd.f32 %v10308, %v10321
    %v10323 = vpop.f32.mrf.mxu0
    %v10324 = vadd.f32 %v10310, %v10323
    %10325 = vdwg.mxu0
    %10326 = vmatpush.bf16.msra.mxu0 %v10031
    %10327 = vmatpush.bf16.msra.mxu0 %v10029
    %10328 = vmatpush.bf16.msra.mxu0 %v10027
    %10329 = vmatpush.bf16.msra.mxu0 %v10025
    %10330 = vmatpush.bf16.msra.mxu0 %v10023
    %10331 = vmatpush.bf16.msra.mxu0 %v10021
    %10332 = vmatpush.bf16.msra.mxu0 %v10019
    %10333 = vmatpush.bf16.msra.mxu0 %v10017
    %10334 = vmatmul.bf16.gmra.mxu0 %v9465
    %v10335 = vpop.f32.mrf.mxu0
    %v10336 = vadd.f32 %v10322, %v10335
    %v10337 = vpop.f32.mrf.mxu0
    %v10338 = vadd.f32 %v10324, %v10337
    %10339 = vdwg.mxu0
    %10340 = vst [vmem:[%s11] sm:$0xff] %v10238
    %10341 = vst [vmem:[%s11 + $0x8] sm:$0xff] %v10336
    %10342 = vst [vmem:[%s11 + $0x10] sm:$0xff] %v10240
    %10343 = vst [vmem:[%s11 + $0x18] sm:$0xff] %v10338
    // Predicated region
    $region86: #{dqn_forward.1} parent=1 // pred_check
      _
    $region87: #{dqn_forward.1} parent=1 // pred_check_branch
      %10345 = sbr.rel (0) target = $region89
    $region88: #{dqn_forward.1} parent=1 // pred_region
      _
    $region89: #{dqn_forward.1} parent=1 // pred_fallthru
      _
    // Predicated region
    $region90: #{dqn_forward.1} parent=1 // pred_check
      _
    $region91: #{dqn_forward.1} parent=1 // pred_check_branch
      %10347 = sbr.rel (0) target = $region93
    $region92: #{dqn_forward.1} parent=1 // pred_region
      _
    $region93: #{dqn_forward.1} parent=1 // pred_fallthru
      _
    %10348 = vsyncpa [#allocation3], 1
    %10349 = vsyncpa [#allocation5], 1
    %10350 = vsyncpa [#allocation8], 1
    %10351 = vsyncpa [#allocation11], 1
    %10352 = vsyncpa [#allocation14], 1
    %10353 = vsyncpa [#allocation17], 1

</llo_original>
